<compile_context>
chip_gen: v7x
topology: tpu7x:2x2x1
jax: 0.10.0
libtpu: 0.0.40
codegen_flags: <defaults>
</compile_context>

<pallas_src>
import functools

import jax
import jax.numpy as jnp
import numpy as np
from jax import lax
from jax.experimental import pallas as pl
from jax.experimental.pallas import tpu as pltpu


def _round_up(x, m):
    return ((x + m - 1) // m) * m


# ---------------------------------------------------------------------------
# Fused kernel: bidirectional LSTM recurrence + attention pooling + FC.
# ---------------------------------------------------------------------------
def _fused_kernel(T, BP, HP,
                  emb_ref, wih_ref, b_ref, whh_ref,
                  w1_ref, w2_ref, exp_ref, w3_ref, sel_ref, fcb_ref,
                  logits_ref,
                  xg_ref, seq_ref):
    H2 = 2 * HP

    # Hoisted input projection for BOTH directions and all timesteps, biases folded in.
    # emb row s*BP+b is [x[s,b] | x[T-1-s,b]] and wih is block-diagonal, so
    #   xg[s*BP+b, fwd gate cols] = W_ih_f @ x[s],  xg[s*BP+b, bwd gate cols] = W_ih_b @ x[T-1-s]
    # i.e. the per-step recurrence only needs ONE contiguous row block of xg.
    xg_ref[...] = (jnp.dot(emb_ref[...], wih_ref[...],
                           preferred_element_type=jnp.float32) + b_ref[...])

    # Carried state for both directions, lane-concatenated: [h_f | h_b], [c_f | c_b].
    h2 = jnp.zeros((BP, H2), jnp.float32)
    c2 = jnp.zeros((BP, H2), jnp.float32)

    # Fully unrolled recurrence (T is small here); single block-diagonal matmul per step.
    # TODO(synk): keep the recurrent RHS resident via pltpu.matmul_push_rhs/acc_lhs/pop,
    # switch to lax.fori_loop(..., unroll=k) once T grows beyond ~32, and on v7x split
    # the two directions across the two TensorCores with pl.core_map.
    for s in range(T):
        rf = s * BP              # forward direction emits time s
        rb = (T - 1 - s) * BP    # backward direction emits time T-1-s
        pre = xg_ref[rf:rf + BP, :] + jnp.dot(
            h2, whh_ref[...], preferred_element_type=jnp.float32)     # (BP, 8*HP)
        # Interleaved gate layout: [i_f,i_b | f_f,f_b | g_f,g_b | o_f,o_b], 2*HP each.
        i2 = jax.nn.sigmoid(pre[:, 0 * H2:1 * H2])
        f2 = jax.nn.sigmoid(pre[:, 1 * H2:2 * H2])
        g2 = jnp.tanh(pre[:, 2 * H2:3 * H2])
        o2 = jax.nn.sigmoid(pre[:, 3 * H2:4 * H2])
        c2 = f2 * c2 + i2 * g2
        h2 = o2 * jnp.tanh(c2)
        # Full 128-lane unmasked stores into the activation slab.
        seq_ref[rf:rf + BP, 0:HP] = h2[:, 0:HP]        # fwd hidden for time s
        seq_ref[rb:rb + BP, HP:H2] = h2[:, HP:H2]      # bwd hidden for time T-1-s

    # ---- attention pooling + FC on the (T*BP, 2*HP) activation slab ----
    # All lane widths are multiples of 128 (host-padded weights); padded lanes/columns
    # are provably zero, so the math is identical to the unpadded model.
    seqv = seq_ref[...]                                                # (T*BP, 2*HP)
    a1 = jnp.tanh(jnp.dot(seqv, w1_ref[...],
                          preferred_element_type=jnp.float32))         # (T*BP, D1P)
    sc = jnp.dot(a1, w2_ref[...],
                 preferred_element_type=jnp.float32)                   # (T*BP, D2P)
    D2P = sc.shape[1]
    sc3 = sc.reshape(T, BP, D2P)
    m = jnp.max(sc3, axis=0, keepdims=True)
    e3 = jnp.exp(sc3 - m)
    att3 = e3 / jnp.sum(e3, axis=0, keepdims=True)                     # softmax over time
    # Expand dim2 attention columns to the (dim2*labels) axis with a 0/1 matmul
    # (replaces the old 5x-duplicated W2 columns -> no redundant exp work on the EUP).
    att_exp = jnp.dot(att3.reshape(T * BP, D2P), exp_ref[...],
                      preferred_element_type=jnp.float32)              # (T*BP, DLP)
    q = jnp.dot(seqv, w3_ref[...],
                preferred_element_type=jnp.float32)                    # (T*BP, DLP)
    DLP = q.shape[1]
    red = jnp.sum((att_exp * q).reshape(T, BP, DLP), axis=0)           # (BP, DLP)
    logits_ref[...] = (jnp.dot(red, sel_ref[...],
                               preferred_element_type=jnp.float32)
                       + fcb_ref[...])                                 # (BP, LP)


# ---------------------------------------------------------------------------
# Parameter packing (host side, done once).
# ---------------------------------------------------------------------------
def prepare_params(raw):
    H = int(raw["w_hh_f"].shape[1])
    E = int(raw["w_ih_f"].shape[1])
    dim1 = int(raw["W1"].shape[1])
    dim2 = int(raw["W2"].shape[1])
    labels = int(raw["fc_b"].shape[0])
    HP = max(128, _round_up(H, 128))
    D1P = _round_up(dim1, 128)
    D2P = _round_up(dim2, 128)
    DL = dim2 * labels
    DLP = _round_up(DL, 128)
    LP = _round_up(labels, 128)
    W8 = 8 * HP

    # --- LSTM weights: block-diagonal, row-padded, interleaved gate columns ---
    # column block for gate g (i,f,g,o order) of direction d (0=fwd,1=bwd): (2*g+d)*HP.
    wih_all = np.zeros((2 * E, W8), np.float32)     # rows 0:E fwd input, E:2E bwd input
    whh_blk = np.zeros((2 * HP, W8), np.float32)    # rows 0:HP -> h_f, HP:2HP -> h_b
    b_all = np.zeros((1, W8), np.float32)
    dirs = [(raw["w_ih_f"], raw["w_hh_f"], raw["b_ih_f"], raw["b_hh_f"]),
            (raw["w_ih_b"], raw["w_hh_b"], raw["b_ih_b"], raw["b_hh_b"])]
    for d, (w_ih, w_hh, b_ih, b_hh) in enumerate(dirs):
        w_ih = np.asarray(w_ih, np.float32)         # (4H, E), PyTorch gate order i,f,g,o
        w_hh = np.asarray(w_hh, np.float32)         # (4H, H)
        bias = np.asarray(b_ih, np.float32) + np.asarray(b_hh, np.float32)
        for g in range(4):
            c0 = (2 * g + d) * HP
            wih_all[d * E:(d + 1) * E, c0:c0 + H] = w_ih[g * H:(g + 1) * H, :].T
            whh_blk[d * HP:d * HP + H, c0:c0 + H] = w_hh[g * H:(g + 1) * H, :].T
            b_all[0, c0:c0 + H] = bias[g * H:(g + 1) * H]

    # Invariant guard (review concern): padded gate columns must be exactly zero so the
    # padded h/c lanes stay 0 (sigmoid(0)=0.5 but g=tanh(0)=0 -> c_pad = h_pad = 0),
    # which the row-padded tail weights rely on.
    pad_mask = np.ones((W8,), bool)
    for g in range(8):
        pad_mask[g * HP:g * HP + H] = False
    assert not wih_all[:, pad_mask].any()
    assert not whh_blk[:, pad_mask].any()
    assert not b_all[:, pad_mask].any()

    # --- attention / FC weights, row-padded per direction & lane-padded to 128 ---
    W1 = np.asarray(raw["W1"], np.float32)          # (2H, dim1)
    w1_pad = np.zeros((2 * HP, D1P), np.float32)
    w1_pad[0:H, 0:dim1] = W1[0:H]
    w1_pad[HP:HP + H, 0:dim1] = W1[H:2 * H]

    W2 = np.asarray(raw["W2"], np.float32)          # (dim1, dim2)
    w2_pad = np.zeros((D1P, D2P), np.float32)
    w2_pad[0:dim1, 0:dim2] = W2

    # 0/1 expansion: attention column d -> labels-wide block d of the (dim2*labels) axis.
    expand = np.zeros((D2P, DLP), np.float32)
    for dd in range(dim2):
        expand[dd, dd * labels:(dd + 1) * labels] = 1.0

    # fc weight (labels, dim2*2H); flat col = d*2H + h  ->  w3m[h, d*labels + l]
    fc_w = np.asarray(raw["fc_w"], np.float32)
    w3 = fc_w.T.reshape(dim2, 2 * H, labels)        # [d, h, l]
    w3m = np.transpose(w3, (1, 0, 2)).reshape(2 * H, DL)
    w3m_pad = np.zeros((2 * HP, DLP), np.float32)
    w3m_pad[0:H, 0:DL] = w3m[0:H]
    w3m_pad[HP:HP + H, 0:DL] = w3m[H:2 * H]

    # 0/1 segment-sum over the dim2 blocks per label + lane-padded fc bias.
    sel_pad = np.zeros((DLP, LP), np.float32)
    for dd in range(dim2):
        for ll in range(labels):
            sel_pad[dd * labels + ll, ll] = 1.0
    fcb_pad = np.zeros((1, LP), np.float32)
    fcb_pad[0, 0:labels] = np.asarray(raw["fc_b"], np.float32)

    # TODO(synk): cast matmul operands to bf16 (f32 accumulate) only once T/B grow;
    # at these sizes f32 keeps the numeric check tight and VMEM is a non-issue.
    return dict(embedding=raw["embedding"], fc_b=raw["fc_b"],
                wih_all=jnp.asarray(wih_all), b_all=jnp.asarray(b_all),
                whh_blk=jnp.asarray(whh_blk),
                w1_pad=jnp.asarray(w1_pad), w2_pad=jnp.asarray(w2_pad),
                expand=jnp.asarray(expand), w3m_pad=jnp.asarray(w3m_pad),
                sel_pad=jnp.asarray(sel_pad), fcb_pad=jnp.asarray(fcb_pad))


# ---------------------------------------------------------------------------
# Forward pass (one kernel launch).
# ---------------------------------------------------------------------------
@jax.jit
def model2_forward(x_ids, p):
    T, B = x_ids.shape
    emb_tbl = p["embedding"]
    E = emb_tbl.shape[1]
    HP = p["whh_blk"].shape[0] // 2
    W8 = p["whh_blk"].shape[1]
    LP = p["fcb_pad"].shape[1]
    labels = p["fc_b"].shape[0]
    BP = max(8, _round_up(B, 8))                 # pad batch to full sublanes

    # Embedding lookup (torch.no_grad) stays a plain XLA gather; eval Dropout == identity.
    emb = emb_tbl[x_ids].astype(jnp.float32)                  # (T, B, E)
    # Pre-flip the backward direction's input so each kernel step reads ONE row block:
    # row s*BP+b = [x[s,b] | x[T-1-s,b]].
    emb_cat = jnp.concatenate([emb, emb[::-1]], axis=-1)      # (T, B, 2E)
    emb_cat = jnp.pad(emb_cat, ((0, 0), (0, BP - B), (0, 0)))
    emb2d = emb_cat.reshape(T * BP, 2 * E)

    kernel = functools.partial(_fused_kernel, T, BP, HP)
    logits_pad = pl.pallas_call(
        kernel,
        out_shape=jax.ShapeDtypeStruct((BP, LP), jnp.float32),
        scratch_shapes=[
            pltpu.VMEM((T * BP, W8), jnp.float32),       # hoisted input projections
            pltpu.VMEM((T * BP, 2 * HP), jnp.float32),   # fwd/bwd hidden-state slab
        ],
    )(emb2d, p["wih_all"], p["b_all"], p["whh_blk"],
      p["w1_pad"], p["w2_pad"], p["expand"], p["w3m_pad"], p["sel_pad"], p["fcb_pad"])
    # Padded batch rows and lane-padded label columns are sliced off outside the kernel.
    return logits_pad[:B, :labels]


# ---------------------------------------------------------------------------
# Pure-JAX reference (mirrors the PyTorch module) and parameter init.
# ---------------------------------------------------------------------------
def model2_reference(x_ids, raw):
    emb = raw["embedding"][x_ids]                            # (T, B, E)
    T, B, _ = emb.shape
    H = raw["w_hh_f"].shape[1]

    def lstm_dir(x_seq, w_ih, w_hh, b_ih, b_hh):
        def step(carry, x_t):
            h, c = carry
            gates = x_t @ w_ih.T + h @ w_hh.T + b_ih + b_hh
            i, f, g, o = jnp.split(gates, 4, axis=-1)
            i, f, o = jax.nn.sigmoid(i), jax.nn.sigmoid(f), jax.nn.sigmoid(o)
            g = jnp.tanh(g)
            c = f * c + i * g
            h = o * jnp.tanh(c)
            return (h, c), h
        init = (jnp.zeros((B, H), jnp.float32), jnp.zeros((B, H), jnp.float32))
        _, hs = lax.scan(step, init, x_seq)
        return hs                                            # (T, B, H)

    out_f = lstm_dir(emb, raw["w_ih_f"], raw["w_hh_f"], raw["b_ih_f"], raw["b_hh_f"])
    out_b = lstm_dir(emb[::-1], raw["w_ih_b"], raw["w_hh_b"],
                     raw["b_ih_b"], raw["b_hh_b"])[::-1]
    output = jnp.transpose(jnp.concatenate([out_f, out_b], axis=-1), (1, 0, 2))  # (B,T,2H)
    scores = jnp.einsum('btk,kl->btl',
                        jnp.tanh(jnp.einsum('btk,kl->btl', output, raw["W1"])),
                        raw["W2"])
    att = jax.nn.softmax(scores, axis=1)                     # softmax over time
    result = jnp.einsum('bth,btd->bdh', output, att)         # (B, dim2, 2H)
    flat = result.reshape(B, -1)                             # index = d*2H + h
    return flat @ raw["fc_w"].T + raw["fc_b"]                # Dropout(0.5) == identity (eval)


def init_params(key, embeddingNum, embeddingDim, unitNums, dim1=150, dim2=10, labels=5):
    H, E = unitNums, embeddingDim
    fcInput = unitNums * dim2 * 2
    ks = jax.random.split(key, 13)
    s = 1.0 / (H ** 0.5)
    kfc = 1.0 / (fcInput ** 0.5)
    return {
        "embedding": jax.random.normal(ks[0], (embeddingNum, E), jnp.float32),
        "W1": jax.random.normal(ks[1], (2 * H, dim1), jnp.float32),
        "W2": jax.random.normal(ks[2], (dim1, dim2), jnp.float32),
        "fc_w": jax.random.uniform(ks[3], (labels, fcInput), jnp.float32, -kfc, kfc),
        "fc_b": jax.random.uniform(ks[4], (labels,), jnp.float32, -kfc, kfc),
        "w_ih_f": jax.random.uniform(ks[5], (4 * H, E), jnp.float32, -s, s),
        "w_hh_f": jax.random.uniform(ks[6], (4 * H, H), jnp.float32, -s, s),
        "b_ih_f": jax.random.uniform(ks[7], (4 * H,), jnp.float32, -s, s),
        "b_hh_f": jax.random.uniform(ks[8], (4 * H,), jnp.float32, -s, s),
        "w_ih_b": jax.random.uniform(ks[9], (4 * H, E), jnp.float32, -s, s),
        "w_hh_b": jax.random.uniform(ks[10], (4 * H, H), jnp.float32, -s, s),
        "b_ih_b": jax.random.uniform(ks[11], (4 * H,), jnp.float32, -s, s),
        "b_hh_b": jax.random.uniform(ks[12], (4 * H,), jnp.float32, -s, s),
    }


if __name__ == "__main__":
    embeddingDim, embeddingNum, unitNums = 16, 50, 32
    dim1, dim2, labels = 150, 10, 5
    seq_len, batch = 8, 2

    key = jax.random.PRNGKey(0)
    pkey, xkey = jax.random.split(key)
    raw = init_params(pkey, embeddingNum, embeddingDim, unitNums, dim1, dim2, labels)
    packed = prepare_params(raw)
    x_ids = jax.random.randint(xkey, (seq_len, batch), 0, embeddingNum, jnp.int32)

    logits = model2_forward(x_ids, packed)
    jax.block_until_ready(logits)
    assert logits.shape == (batch, labels)

    ref = model2_reference(x_ids, raw)
    np.testing.assert_allclose(np.asarray(logits), np.asarray(ref), rtol=2e-3, atol=2e-3)

    print("KERNEL_OK")
</pallas_src>

<mosaic_0001>
module attributes {stable_mosaic.version = 11 : i64} {
  func.func @_fused_kernel(%arg0: memref<64x32xf32, #tpu.memory_space<vmem>>, %arg1: memref<32x1024xf32, #tpu.memory_space<vmem>>, %arg2: memref<1x1024xf32, #tpu.memory_space<vmem>>, %arg3: memref<256x1024xf32, #tpu.memory_space<vmem>>, %arg4: memref<256x256xf32, #tpu.memory_space<vmem>>, %arg5: memref<256x128xf32, #tpu.memory_space<vmem>>, %arg6: memref<128x128xf32, #tpu.memory_space<vmem>>, %arg7: memref<256x128xf32, #tpu.memory_space<vmem>>, %arg8: memref<128x128xf32, #tpu.memory_space<vmem>>, %arg9: memref<1x128xf32, #tpu.memory_space<vmem>>, %arg10: memref<8x128xf32, #tpu.memory_space<vmem>>, %arg11: memref<64x1024xf32, #tpu.memory_space<vmem>>, %arg12: memref<64x256xf32, #tpu.memory_space<vmem>>) attributes {dimension_semantics = [], scalar_prefetch = 0 : i64, scratch_operands = 2 : i64, tpu.core_type = #tpu.core_type<tc>} {
    %c0 = arith.constant 0 : index
    %c0_0 = arith.constant 0 : index
    %0 = vector.load %arg0[%c0, %c0_0] : memref<64x32xf32, #tpu.memory_space<vmem>>, vector<64x32xf32>
    %c0_1 = arith.constant 0 : index
    %c0_2 = arith.constant 0 : index
    %1 = vector.load %arg1[%c0_1, %c0_2] : memref<32x1024xf32, #tpu.memory_space<vmem>>, vector<32x1024xf32>
    %cst = arith.constant dense<0.000000e+00> : vector<64x1024xf32>
    %2 = tpu.matmul %0, %1, %cst {dimension_numbers = #tpu.dot_dimension_numbers<[1], [0], [0], [1], [0, 0, 1, 1], [], []>} : vector<64x32xf32>, vector<32x1024xf32>, vector<64x1024xf32> -> vector<64x1024xf32>
    %c0_3 = arith.constant 0 : index
    %c0_4 = arith.constant 0 : index
    %3 = vector.load %arg2[%c0_3, %c0_4] : memref<1x1024xf32, #tpu.memory_space<vmem>>, vector<1x1024xf32>
    %4 = vector.broadcast %3 : vector<1x1024xf32> to vector<64x1024xf32>
    %5 = arith.addf %2, %4 : vector<64x1024xf32>
    %c0_5 = arith.constant 0 : index
    %c0_6 = arith.constant 0 : index
    %6 = vector.load %arg11[%c0_5, %c0_6] : memref<64x1024xf32, #tpu.memory_space<vmem>>, vector<64x1024xf32>
    tpu.vector_store %arg11[%c0_5, %c0_6], %5 {strides = array<i32>} : memref<64x1024xf32, #tpu.memory_space<vmem>>, vector<64x1024xf32>,
    %cst_7 = arith.constant 0.000000e+00 : f32
    %7 = vector.broadcast %cst_7 : f32 to vector<8x256xf32>
    %cst_8 = arith.constant 0.000000e+00 : f32
    %8 = vector.broadcast %cst_8 : f32 to vector<8x256xf32>
    %c0_9 = arith.constant 0 : index
    %c0_10 = arith.constant 0 : index
    %9 = vector.load %arg11[%c0_9, %c0_10] : memref<64x1024xf32, #tpu.memory_space<vmem>>, vector<8x1024xf32>
    %c0_11 = arith.constant 0 : index
    %c0_12 = arith.constant 0 : index
    %10 = vector.load %arg3[%c0_11, %c0_12] : memref<256x1024xf32, #tpu.memory_space<vmem>>, vector<256x1024xf32>
    %cst_13 = arith.constant dense<0.000000e+00> : vector<8x1024xf32>
    %11 = tpu.matmul %7, %10, %cst_13 {dimension_numbers = #tpu.dot_dimension_numbers<[1], [0], [0], [1], [0, 0, 1, 1], [], []>} : vector<8x256xf32>, vector<256x1024xf32>, vector<8x1024xf32> -> vector<8x1024xf32>
    %12 = arith.addf %9, %11 : vector<8x1024xf32>
    %13 = vector.extract_strided_slice %12 {offsets = [0, 0], sizes = [8, 256], strides = [1, 1]} : vector<8x1024xf32> to vector<8x256xf32>
    %14 = arith.negf %13 : vector<8x256xf32>
    %15 = math.exp %14 : vector<8x256xf32>
    %cst_14 = arith.constant 1.000000e+00 : f32
    %16 = vector.broadcast %cst_14 : f32 to vector<8x256xf32>
    %17 = arith.addf %16, %15 : vector<8x256xf32>
    %18 = arith.divf %16, %17 : vector<8x256xf32>
    %19 = vector.extract_strided_slice %12 {offsets = [0, 256], sizes = [8, 256], strides = [1, 1]} : vector<8x1024xf32> to vector<8x256xf32>
    %20 = arith.negf %19 : vector<8x256xf32>
    %21 = math.exp %20 : vector<8x256xf32>
    %cst_15 = arith.constant 1.000000e+00 : f32
    %22 = vector.broadcast %cst_15 : f32 to vector<8x256xf32>
    %23 = arith.addf %22, %21 : vector<8x256xf32>
    %24 = arith.divf %22, %23 : vector<8x256xf32>
    %25 = vector.extract_strided_slice %12 {offsets = [0, 512], sizes = [8, 256], strides = [1, 1]} : vector<8x1024xf32> to vector<8x256xf32>
    %26 = math.tanh %25 : vector<8x256xf32>
    %27 = vector.extract_strided_slice %12 {offsets = [0, 768], sizes = [8, 256], strides = [1, 1]} : vector<8x1024xf32> to vector<8x256xf32>
    %28 = arith.negf %27 : vector<8x256xf32>
    %29 = math.exp %28 : vector<8x256xf32>
    %cst_16 = arith.constant 1.000000e+00 : f32
    %30 = vector.broadcast %cst_16 : f32 to vector<8x256xf32>
    %31 = arith.addf %30, %29 : vector<8x256xf32>
    %32 = arith.divf %30, %31 : vector<8x256xf32>
    %33 = arith.mulf %24, %8 : vector<8x256xf32>
    %34 = arith.mulf %18, %26 : vector<8x256xf32>
    %35 = arith.addf %33, %34 : vector<8x256xf32>
    %36 = math.tanh %35 : vector<8x256xf32>
    %37 = arith.mulf %32, %36 : vector<8x256xf32>
    %38 = vector.extract_strided_slice %37 {offsets = [0, 0], sizes = [8, 128], strides = [1, 1]} : vector<8x256xf32> to vector<8x128xf32>
    %c0_17 = arith.constant 0 : index
    %c0_18 = arith.constant 0 : index
    %39 = vector.load %arg12[%c0_17, %c0_18] : memref<64x256xf32, #tpu.memory_space<vmem>>, vector<8x128xf32>
    tpu.vector_store %arg12[%c0_17, %c0_18], %38 {strides = array<i32>} : memref<64x256xf32, #tpu.memory_space<vmem>>, vector<8x128xf32>,
    %40 = vector.extract_strided_slice %37 {offsets = [0, 128], sizes = [8, 128], strides = [1, 1]} : vector<8x256xf32> to vector<8x128xf32>
    %c56 = arith.constant 56 : index
    %c128 = arith.constant 128 : index
    %41 = vector.load %arg12[%c56, %c128] : memref<64x256xf32, #tpu.memory_space<vmem>>, vector<8x128xf32>
    tpu.vector_store %arg12[%c56, %c128], %40 {strides = array<i32>} : memref<64x256xf32, #tpu.memory_space<vmem>>, vector<8x128xf32>,
    %c8 = arith.constant 8 : index
    %c0_19 = arith.constant 0 : index
    %42 = vector.load %arg11[%c8, %c0_19] : memref<64x1024xf32, #tpu.memory_space<vmem>>, vector<8x1024xf32>
    %c0_20 = arith.constant 0 : index
    %c0_21 = arith.constant 0 : index
    %43 = vector.load %arg3[%c0_20, %c0_21] : memref<256x1024xf32, #tpu.memory_space<vmem>>, vector<256x1024xf32>
    %cst_22 = arith.constant dense<0.000000e+00> : vector<8x1024xf32>
    %44 = tpu.matmul %37, %43, %cst_22 {dimension_numbers = #tpu.dot_dimension_numbers<[1], [0], [0], [1], [0, 0, 1, 1], [], []>} : vector<8x256xf32>, vector<256x1024xf32>, vector<8x1024xf32> -> vector<8x1024xf32>
    %45 = arith.addf %42, %44 : vector<8x1024xf32>
    %46 = vector.extract_strided_slice %45 {offsets = [0, 0], sizes = [8, 256], strides = [1, 1]} : vector<8x1024xf32> to vector<8x256xf32>
    %47 = arith.negf %46 : vector<8x256xf32>
    %48 = math.exp %47 : vector<8x256xf32>
    %cst_23 = arith.constant 1.000000e+00 : f32
    %49 = vector.broadcast %cst_23 : f32 to vector<8x256xf32>
    %50 = arith.addf %49, %48 : vector<8x256xf32>
    %51 = arith.divf %49, %50 : vector<8x256xf32>
    %52 = vector.extract_strided_slice %45 {offsets = [0, 256], sizes = [8, 256], strides = [1, 1]} : vector<8x1024xf32> to vector<8x256xf32>
    %53 = arith.negf %52 : vector<8x256xf32>
    %54 = math.exp %53 : vector<8x256xf32>
    %cst_24 = arith.constant 1.000000e+00 : f32
    %55 = vector.broadcast %cst_24 : f32 to vector<8x256xf32>
    %56 = arith.addf %55, %54 : vector<8x256xf32>
    %57 = arith.divf %55, %56 : vector<8x256xf32>
    %58 = vector.extract_strided_slice %45 {offsets = [0, 512], sizes = [8, 256], strides = [1, 1]} : vector<8x1024xf32> to vector<8x256xf32>
    %59 = math.tanh %58 : vector<8x256xf32>
    %60 = vector.extract_strided_slice %45 {offsets = [0, 768], sizes = [8, 256], strides = [1, 1]} : vector<8x1024xf32> to vector<8x256xf32>
    %61 = arith.negf %60 : vector<8x256xf32>
    %62 = math.exp %61 : vector<8x256xf32>
    %cst_25 = arith.constant 1.000000e+00 : f32
    %63 = vector.broadcast %cst_25 : f32 to vector<8x256xf32>
    %64 = arith.addf %63, %62 : vector<8x256xf32>
    %65 = arith.divf %63, %64 : vector<8x256xf32>
    %66 = arith.mulf %57, %35 : vector<8x256xf32>
    %67 = arith.mulf %51, %59 : vector<8x256xf32>
    %68 = arith.addf %66, %67 : vector<8x256xf32>
    %69 = math.tanh %68 : vector<8x256xf32>
    %70 = arith.mulf %65, %69 : vector<8x256xf32>
    %71 = vector.extract_strided_slice %70 {offsets = [0, 0], sizes = [8, 128], strides = [1, 1]} : vector<8x256xf32> to vector<8x128xf32>
    %c8_26 = arith.constant 8 : index
    %c0_27 = arith.constant 0 : index
    %72 = vector.load %arg12[%c8_26, %c0_27] : memref<64x256xf32, #tpu.memory_space<vmem>>, vector<8x128xf32>
    tpu.vector_store %arg12[%c8_26, %c0_27], %71 {strides = array<i32>} : memref<64x256xf32, #tpu.memory_space<vmem>>, vector<8x128xf32>,
    %73 = vector.extract_strided_slice %70 {offsets = [0, 128], sizes = [8, 128], strides = [1, 1]} : vector<8x256xf32> to vector<8x128xf32>
    %c48 = arith.constant 48 : index
    %c128_28 = arith.constant 128 : index
    %74 = vector.load %arg12[%c48, %c128_28] : memref<64x256xf32, #tpu.memory_space<vmem>>, vector<8x128xf32>
    tpu.vector_store %arg12[%c48, %c128_28], %73 {strides = array<i32>} : memref<64x256xf32, #tpu.memory_space<vmem>>, vector<8x128xf32>,
    %c16 = arith.constant 16 : index
    %c0_29 = arith.constant 0 : index
    %75 = vector.load %arg11[%c16, %c0_29] : memref<64x1024xf32, #tpu.memory_space<vmem>>, vector<8x1024xf32>
    %c0_30 = arith.constant 0 : index
    %c0_31 = arith.constant 0 : index
    %76 = vector.load %arg3[%c0_30, %c0_31] : memref<256x1024xf32, #tpu.memory_space<vmem>>, vector<256x1024xf32>
    %cst_32 = arith.constant dense<0.000000e+00> : vector<8x1024xf32>
    %77 = tpu.matmul %70, %76, %cst_32 {dimension_numbers = #tpu.dot_dimension_numbers<[1], [0], [0], [1], [0, 0, 1, 1], [], []>} : vector<8x256xf32>, vector<256x1024xf32>, vector<8x1024xf32> -> vector<8x1024xf32>
    %78 = arith.addf %75, %77 : vector<8x1024xf32>
    %79 = vector.extract_strided_slice %78 {offsets = [0, 0], sizes = [8, 256], strides = [1, 1]} : vector<8x1024xf32> to vector<8x256xf32>
    %80 = arith.negf %79 : vector<8x256xf32>
    %81 = math.exp %80 : vector<8x256xf32>
    %cst_33 = arith.constant 1.000000e+00 : f32
    %82 = vector.broadcast %cst_33 : f32 to vector<8x256xf32>
    %83 = arith.addf %82, %81 : vector<8x256xf32>
    %84 = arith.divf %82, %83 : vector<8x256xf32>
    %85 = vector.extract_strided_slice %78 {offsets = [0, 256], sizes = [8, 256], strides = [1, 1]} : vector<8x1024xf32> to vector<8x256xf32>
    %86 = arith.negf %85 : vector<8x256xf32>
    %87 = math.exp %86 : vector<8x256xf32>
    %cst_34 = arith.constant 1.000000e+00 : f32
    %88 = vector.broadcast %cst_34 : f32 to vector<8x256xf32>
    %89 = arith.addf %88, %87 : vector<8x256xf32>
    %90 = arith.divf %88, %89 : vector<8x256xf32>
    %91 = vector.extract_strided_slice %78 {offsets = [0, 512], sizes = [8, 256], strides = [1, 1]} : vector<8x1024xf32> to vector<8x256xf32>
    %92 = math.tanh %91 : vector<8x256xf32>
    %93 = vector.extract_strided_slice %78 {offsets = [0, 768], sizes = [8, 256], strides = [1, 1]} : vector<8x1024xf32> to vector<8x256xf32>
    %94 = arith.negf %93 : vector<8x256xf32>
    %95 = math.exp %94 : vector<8x256xf32>
    %cst_35 = arith.constant 1.000000e+00 : f32
    %96 = vector.broadcast %cst_35 : f32 to vector<8x256xf32>
    %97 = arith.addf %96, %95 : vector<8x256xf32>
    %98 = arith.divf %96, %97 : vector<8x256xf32>
    %99 = arith.mulf %90, %68 : vector<8x256xf32>
    %100 = arith.mulf %84, %92 : vector<8x256xf32>
    %101 = arith.addf %99, %100 : vector<8x256xf32>
    %102 = math.tanh %101 : vector<8x256xf32>
    %103 = arith.mulf %98, %102 : vector<8x256xf32>
    %104 = vector.extract_strided_slice %103 {offsets = [0, 0], sizes = [8, 128], strides = [1, 1]} : vector<8x256xf32> to vector<8x128xf32>
    %c16_36 = arith.constant 16 : index
    %c0_37 = arith.constant 0 : index
    %105 = vector.load %arg12[%c16_36, %c0_37] : memref<64x256xf32, #tpu.memory_space<vmem>>, vector<8x128xf32>
    tpu.vector_store %arg12[%c16_36, %c0_37], %104 {strides = array<i32>} : memref<64x256xf32, #tpu.memory_space<vmem>>, vector<8x128xf32>,
    %106 = vector.extract_strided_slice %103 {offsets = [0, 128], sizes = [8, 128], strides = [1, 1]} : vector<8x256xf32> to vector<8x128xf32>
    %c40 = arith.constant 40 : index
    %c128_38 = arith.constant 128 : index
    %107 = vector.load %arg12[%c40, %c128_38] : memref<64x256xf32, #tpu.memory_space<vmem>>, vector<8x128xf32>
    tpu.vector_store %arg12[%c40, %c128_38], %106 {strides = array<i32>} : memref<64x256xf32, #tpu.memory_space<vmem>>, vector<8x128xf32>,
    %c24 = arith.constant 24 : index
    %c0_39 = arith.constant 0 : index
    %108 = vector.load %arg11[%c24, %c0_39] : memref<64x1024xf32, #tpu.memory_space<vmem>>, vector<8x1024xf32>
    %c0_40 = arith.constant 0 : index
    %c0_41 = arith.constant 0 : index
    %109 = vector.load %arg3[%c0_40, %c0_41] : memref<256x1024xf32, #tpu.memory_space<vmem>>, vector<256x1024xf32>
    %cst_42 = arith.constant dense<0.000000e+00> : vector<8x1024xf32>
    %110 = tpu.matmul %103, %109, %cst_42 {dimension_numbers = #tpu.dot_dimension_numbers<[1], [0], [0], [1], [0, 0, 1, 1], [], []>} : vector<8x256xf32>, vector<256x1024xf32>, vector<8x1024xf32> -> vector<8x1024xf32>
    %111 = arith.addf %108, %110 : vector<8x1024xf32>
    %112 = vector.extract_strided_slice %111 {offsets = [0, 0], sizes = [8, 256], strides = [1, 1]} : vector<8x1024xf32> to vector<8x256xf32>
    %113 = arith.negf %112 : vector<8x256xf32>
    %114 = math.exp %113 : vector<8x256xf32>
    %cst_43 = arith.constant 1.000000e+00 : f32
    %115 = vector.broadcast %cst_43 : f32 to vector<8x256xf32>
    %116 = arith.addf %115, %114 : vector<8x256xf32>
    %117 = arith.divf %115, %116 : vector<8x256xf32>
    %118 = vector.extract_strided_slice %111 {offsets = [0, 256], sizes = [8, 256], strides = [1, 1]} : vector<8x1024xf32> to vector<8x256xf32>
    %119 = arith.negf %118 : vector<8x256xf32>
    %120 = math.exp %119 : vector<8x256xf32>
    %cst_44 = arith.constant 1.000000e+00 : f32
    %121 = vector.broadcast %cst_44 : f32 to vector<8x256xf32>
    %122 = arith.addf %121, %120 : vector<8x256xf32>
    %123 = arith.divf %121, %122 : vector<8x256xf32>
    %124 = vector.extract_strided_slice %111 {offsets = [0, 512], sizes = [8, 256], strides = [1, 1]} : vector<8x1024xf32> to vector<8x256xf32>
    %125 = math.tanh %124 : vector<8x256xf32>
    %126 = vector.extract_strided_slice %111 {offsets = [0, 768], sizes = [8, 256], strides = [1, 1]} : vector<8x1024xf32> to vector<8x256xf32>
    %127 = arith.negf %126 : vector<8x256xf32>
    %128 = math.exp %127 : vector<8x256xf32>
    %cst_45 = arith.constant 1.000000e+00 : f32
    %129 = vector.broadcast %cst_45 : f32 to vector<8x256xf32>
    %130 = arith.addf %129, %128 : vector<8x256xf32>
    %131 = arith.divf %129, %130 : vector<8x256xf32>
    %132 = arith.mulf %123, %101 : vector<8x256xf32>
    %133 = arith.mulf %117, %125 : vector<8x256xf32>
    %134 = arith.addf %132, %133 : vector<8x256xf32>
    %135 = math.tanh %134 : vector<8x256xf32>
    %136 = arith.mulf %131, %135 : vector<8x256xf32>
    %137 = vector.extract_strided_slice %136 {offsets = [0, 0], sizes = [8, 128], strides = [1, 1]} : vector<8x256xf32> to vector<8x128xf32>
    %c24_46 = arith.constant 24 : index
    %c0_47 = arith.constant 0 : index
    %138 = vector.load %arg12[%c24_46, %c0_47] : memref<64x256xf32, #tpu.memory_space<vmem>>, vector<8x128xf32>
    tpu.vector_store %arg12[%c24_46, %c0_47], %137 {strides = array<i32>} : memref<64x256xf32, #tpu.memory_space<vmem>>, vector<8x128xf32>,
    %139 = vector.extract_strided_slice %136 {offsets = [0, 128], sizes = [8, 128], strides = [1, 1]} : vector<8x256xf32> to vector<8x128xf32>
    %c32 = arith.constant 32 : index
    %c128_48 = arith.constant 128 : index
    %140 = vector.load %arg12[%c32, %c128_48] : memref<64x256xf32, #tpu.memory_space<vmem>>, vector<8x128xf32>
    tpu.vector_store %arg12[%c32, %c128_48], %139 {strides = array<i32>} : memref<64x256xf32, #tpu.memory_space<vmem>>, vector<8x128xf32>,
    %c32_49 = arith.constant 32 : index
    %c0_50 = arith.constant 0 : index
    %141 = vector.load %arg11[%c32_49, %c0_50] : memref<64x1024xf32, #tpu.memory_space<vmem>>, vector<8x1024xf32>
    %c0_51 = arith.constant 0 : index
    %c0_52 = arith.constant 0 : index
    %142 = vector.load %arg3[%c0_51, %c0_52] : memref<256x1024xf32, #tpu.memory_space<vmem>>, vector<256x1024xf32>
    %cst_53 = arith.constant dense<0.000000e+00> : vector<8x1024xf32>
    %143 = tpu.matmul %136, %142, %cst_53 {dimension_numbers = #tpu.dot_dimension_numbers<[1], [0], [0], [1], [0, 0, 1, 1], [], []>} : vector<8x256xf32>, vector<256x1024xf32>, vector<8x1024xf32> -> vector<8x1024xf32>
    %144 = arith.addf %141, %143 : vector<8x1024xf32>
    %145 = vector.extract_strided_slice %144 {offsets = [0, 0], sizes = [8, 256], strides = [1, 1]} : vector<8x1024xf32> to vector<8x256xf32>
    %146 = arith.negf %145 : vector<8x256xf32>
    %147 = math.exp %146 : vector<8x256xf32>
    %cst_54 = arith.constant 1.000000e+00 : f32
    %148 = vector.broadcast %cst_54 : f32 to vector<8x256xf32>
    %149 = arith.addf %148, %147 : vector<8x256xf32>
    %150 = arith.divf %148, %149 : vector<8x256xf32>
    %151 = vector.extract_strided_slice %144 {offsets = [0, 256], sizes = [8, 256], strides = [1, 1]} : vector<8x1024xf32> to vector<8x256xf32>
    %152 = arith.negf %151 : vector<8x256xf32>
    %153 = math.exp %152 : vector<8x256xf32>
    %cst_55 = arith.constant 1.000000e+00 : f32
    %154 = vector.broadcast %cst_55 : f32 to vector<8x256xf32>
    %155 = arith.addf %154, %153 : vector<8x256xf32>
    %156 = arith.divf %154, %155 : vector<8x256xf32>
    %157 = vector.extract_strided_slice %144 {offsets = [0, 512], sizes = [8, 256], strides = [1, 1]} : vector<8x1024xf32> to vector<8x256xf32>
    %158 = math.tanh %157 : vector<8x256xf32>
    %159 = vector.extract_strided_slice %144 {offsets = [0, 768], sizes = [8, 256], strides = [1, 1]} : vector<8x1024xf32> to vector<8x256xf32>
    %160 = arith.negf %159 : vector<8x256xf32>
    %161 = math.exp %160 : vector<8x256xf32>
    %cst_56 = arith.constant 1.000000e+00 : f32
    %162 = vector.broadcast %cst_56 : f32 to vector<8x256xf32>
    %163 = arith.addf %162, %161 : vector<8x256xf32>
    %164 = arith.divf %162, %163 : vector<8x256xf32>
    %165 = arith.mulf %156, %134 : vector<8x256xf32>
    %166 = arith.mulf %150, %158 : vector<8x256xf32>
    %167 = arith.addf %165, %166 : vector<8x256xf32>
    %168 = math.tanh %167 : vector<8x256xf32>
    %169 = arith.mulf %164, %168 : vector<8x256xf32>
    %170 = vector.extract_strided_slice %169 {offsets = [0, 0], sizes = [8, 128], strides = [1, 1]} : vector<8x256xf32> to vector<8x128xf32>
    %c32_57 = arith.constant 32 : index
    %c0_58 = arith.constant 0 : index
    %171 = vector.load %arg12[%c32_57, %c0_58] : memref<64x256xf32, #tpu.memory_space<vmem>>, vector<8x128xf32>
    tpu.vector_store %arg12[%c32_57, %c0_58], %170 {strides = array<i32>} : memref<64x256xf32, #tpu.memory_space<vmem>>, vector<8x128xf32>,
    %172 = vector.extract_strided_slice %169 {offsets = [0, 128], sizes = [8, 128], strides = [1, 1]} : vector<8x256xf32> to vector<8x128xf32>
    %c24_59 = arith.constant 24 : index
    %c128_60 = arith.constant 128 : index
    %173 = vector.load %arg12[%c24_59, %c128_60] : memref<64x256xf32, #tpu.memory_space<vmem>>, vector<8x128xf32>
    tpu.vector_store %arg12[%c24_59, %c128_60], %172 {strides = array<i32>} : memref<64x256xf32, #tpu.memory_space<vmem>>, vector<8x128xf32>,
    %c40_61 = arith.constant 40 : index
    %c0_62 = arith.constant 0 : index
    %174 = vector.load %arg11[%c40_61, %c0_62] : memref<64x1024xf32, #tpu.memory_space<vmem>>, vector<8x1024xf32>
    %c0_63 = arith.constant 0 : index
    %c0_64 = arith.constant 0 : index
    %175 = vector.load %arg3[%c0_63, %c0_64] : memref<256x1024xf32, #tpu.memory_space<vmem>>, vector<256x1024xf32>
    %cst_65 = arith.constant dense<0.000000e+00> : vector<8x1024xf32>
    %176 = tpu.matmul %169, %175, %cst_65 {dimension_numbers = #tpu.dot_dimension_numbers<[1], [0], [0], [1], [0, 0, 1, 1], [], []>} : vector<8x256xf32>, vector<256x1024xf32>, vector<8x1024xf32> -> vector<8x1024xf32>
    %177 = arith.addf %174, %176 : vector<8x1024xf32>
    %178 = vector.extract_strided_slice %177 {offsets = [0, 0], sizes = [8, 256], strides = [1, 1]} : vector<8x1024xf32> to vector<8x256xf32>
    %179 = arith.negf %178 : vector<8x256xf32>
    %180 = math.exp %179 : vector<8x256xf32>
    %cst_66 = arith.constant 1.000000e+00 : f32
    %181 = vector.broadcast %cst_66 : f32 to vector<8x256xf32>
    %182 = arith.addf %181, %180 : vector<8x256xf32>
    %183 = arith.divf %181, %182 : vector<8x256xf32>
    %184 = vector.extract_strided_slice %177 {offsets = [0, 256], sizes = [8, 256], strides = [1, 1]} : vector<8x1024xf32> to vector<8x256xf32>
    %185 = arith.negf %184 : vector<8x256xf32>
    %186 = math.exp %185 : vector<8x256xf32>
    %cst_67 = arith.constant 1.000000e+00 : f32
    %187 = vector.broadcast %cst_67 : f32 to vector<8x256xf32>
    %188 = arith.addf %187, %186 : vector<8x256xf32>
    %189 = arith.divf %187, %188 : vector<8x256xf32>
    %190 = vector.extract_strided_slice %177 {offsets = [0, 512], sizes = [8, 256], strides = [1, 1]} : vector<8x1024xf32> to vector<8x256xf32>
    %191 = math.tanh %190 : vector<8x256xf32>
    %192 = vector.extract_strided_slice %177 {offsets = [0, 768], sizes = [8, 256], strides = [1, 1]} : vector<8x1024xf32> to vector<8x256xf32>
    %193 = arith.negf %192 : vector<8x256xf32>
    %194 = math.exp %193 : vector<8x256xf32>
    %cst_68 = arith.constant 1.000000e+00 : f32
    %195 = vector.broadcast %cst_68 : f32 to vector<8x256xf32>
    %196 = arith.addf %195, %194 : vector<8x256xf32>
    %197 = arith.divf %195, %196 : vector<8x256xf32>
    %198 = arith.mulf %189, %167 : vector<8x256xf32>
    %199 = arith.mulf %183, %191 : vector<8x256xf32>
    %200 = arith.addf %198, %199 : vector<8x256xf32>
    %201 = math.tanh %200 : vector<8x256xf32>
    %202 = arith.mulf %197, %201 : vector<8x256xf32>
    %203 = vector.extract_strided_slice %202 {offsets = [0, 0], sizes = [8, 128], strides = [1, 1]} : vector<8x256xf32> to vector<8x128xf32>
    %c40_69 = arith.constant 40 : index
    %c0_70 = arith.constant 0 : index
    %204 = vector.load %arg12[%c40_69, %c0_70] : memref<64x256xf32, #tpu.memory_space<vmem>>, vector<8x128xf32>
    tpu.vector_store %arg12[%c40_69, %c0_70], %203 {strides = array<i32>} : memref<64x256xf32, #tpu.memory_space<vmem>>, vector<8x128xf32>,
    %205 = vector.extract_strided_slice %202 {offsets = [0, 128], sizes = [8, 128], strides = [1, 1]} : vector<8x256xf32> to vector<8x128xf32>
    %c16_71 = arith.constant 16 : index
    %c128_72 = arith.constant 128 : index
    %206 = vector.load %arg12[%c16_71, %c128_72] : memref<64x256xf32, #tpu.memory_space<vmem>>, vector<8x128xf32>
    tpu.vector_store %arg12[%c16_71, %c128_72], %205 {strides = array<i32>} : memref<64x256xf32, #tpu.memory_space<vmem>>, vector<8x128xf32>,
    %c48_73 = arith.constant 48 : index
    %c0_74 = arith.constant 0 : index
    %207 = vector.load %arg11[%c48_73, %c0_74] : memref<64x1024xf32, #tpu.memory_space<vmem>>, vector<8x1024xf32>
    %c0_75 = arith.constant 0 : index
    %c0_76 = arith.constant 0 : index
    %208 = vector.load %arg3[%c0_75, %c0_76] : memref<256x1024xf32, #tpu.memory_space<vmem>>, vector<256x1024xf32>
    %cst_77 = arith.constant dense<0.000000e+00> : vector<8x1024xf32>
    %209 = tpu.matmul %202, %208, %cst_77 {dimension_numbers = #tpu.dot_dimension_numbers<[1], [0], [0], [1], [0, 0, 1, 1], [], []>} : vector<8x256xf32>, vector<256x1024xf32>, vector<8x1024xf32> -> vector<8x1024xf32>
    %210 = arith.addf %207, %209 : vector<8x1024xf32>
    %211 = vector.extract_strided_slice %210 {offsets = [0, 0], sizes = [8, 256], strides = [1, 1]} : vector<8x1024xf32> to vector<8x256xf32>
    %212 = arith.negf %211 : vector<8x256xf32>
    %213 = math.exp %212 : vector<8x256xf32>
    %cst_78 = arith.constant 1.000000e+00 : f32
    %214 = vector.broadcast %cst_78 : f32 to vector<8x256xf32>
    %215 = arith.addf %214, %213 : vector<8x256xf32>
    %216 = arith.divf %214, %215 : vector<8x256xf32>
    %217 = vector.extract_strided_slice %210 {offsets = [0, 256], sizes = [8, 256], strides = [1, 1]} : vector<8x1024xf32> to vector<8x256xf32>
    %218 = arith.negf %217 : vector<8x256xf32>
    %219 = math.exp %218 : vector<8x256xf32>
    %cst_79 = arith.constant 1.000000e+00 : f32
    %220 = vector.broadcast %cst_79 : f32 to vector<8x256xf32>
    %221 = arith.addf %220, %219 : vector<8x256xf32>
    %222 = arith.divf %220, %221 : vector<8x256xf32>
    %223 = vector.extract_strided_slice %210 {offsets = [0, 512], sizes = [8, 256], strides = [1, 1]} : vector<8x1024xf32> to vector<8x256xf32>
    %224 = math.tanh %223 : vector<8x256xf32>
    %225 = vector.extract_strided_slice %210 {offsets = [0, 768], sizes = [8, 256], strides = [1, 1]} : vector<8x1024xf32> to vector<8x256xf32>
    %226 = arith.negf %225 : vector<8x256xf32>
    %227 = math.exp %226 : vector<8x256xf32>
    %cst_80 = arith.constant 1.000000e+00 : f32
    %228 = vector.broadcast %cst_80 : f32 to vector<8x256xf32>
    %229 = arith.addf %228, %227 : vector<8x256xf32>
    %230 = arith.divf %228, %229 : vector<8x256xf32>
    %231 = arith.mulf %222, %200 : vector<8x256xf32>
    %232 = arith.mulf %216, %224 : vector<8x256xf32>
    %233 = arith.addf %231, %232 : vector<8x256xf32>
    %234 = math.tanh %233 : vector<8x256xf32>
    %235 = arith.mulf %230, %234 : vector<8x256xf32>
    %236 = vector.extract_strided_slice %235 {offsets = [0, 0], sizes = [8, 128], strides = [1, 1]} : vector<8x256xf32> to vector<8x128xf32>
    %c48_81 = arith.constant 48 : index
    %c0_82 = arith.constant 0 : index
    %237 = vector.load %arg12[%c48_81, %c0_82] : memref<64x256xf32, #tpu.memory_space<vmem>>, vector<8x128xf32>
    tpu.vector_store %arg12[%c48_81, %c0_82], %236 {strides = array<i32>} : memref<64x256xf32, #tpu.memory_space<vmem>>, vector<8x128xf32>,
    %238 = vector.extract_strided_slice %235 {offsets = [0, 128], sizes = [8, 128], strides = [1, 1]} : vector<8x256xf32> to vector<8x128xf32>
    %c8_83 = arith.constant 8 : index
    %c128_84 = arith.constant 128 : index
    %239 = vector.load %arg12[%c8_83, %c128_84] : memref<64x256xf32, #tpu.memory_space<vmem>>, vector<8x128xf32>
    tpu.vector_store %arg12[%c8_83, %c128_84], %238 {strides = array<i32>} : memref<64x256xf32, #tpu.memory_space<vmem>>, vector<8x128xf32>,
    %c56_85 = arith.constant 56 : index
    %c0_86 = arith.constant 0 : index
    %240 = vector.load %arg11[%c56_85, %c0_86] : memref<64x1024xf32, #tpu.memory_space<vmem>>, vector<8x1024xf32>
    %c0_87 = arith.constant 0 : index
    %c0_88 = arith.constant 0 : index
    %241 = vector.load %arg3[%c0_87, %c0_88] : memref<256x1024xf32, #tpu.memory_space<vmem>>, vector<256x1024xf32>
    %cst_89 = arith.constant dense<0.000000e+00> : vector<8x1024xf32>
    %242 = tpu.matmul %235, %241, %cst_89 {dimension_numbers = #tpu.dot_dimension_numbers<[1], [0], [0], [1], [0, 0, 1, 1], [], []>} : vector<8x256xf32>, vector<256x1024xf32>, vector<8x1024xf32> -> vector<8x1024xf32>
    %243 = arith.addf %240, %242 : vector<8x1024xf32>
    %244 = vector.extract_strided_slice %243 {offsets = [0, 0], sizes = [8, 256], strides = [1, 1]} : vector<8x1024xf32> to vector<8x256xf32>
    %245 = arith.negf %244 : vector<8x256xf32>
    %246 = math.exp %245 : vector<8x256xf32>
    %cst_90 = arith.constant 1.000000e+00 : f32
    %247 = vector.broadcast %cst_90 : f32 to vector<8x256xf32>
    %248 = arith.addf %247, %246 : vector<8x256xf32>
    %249 = arith.divf %247, %248 : vector<8x256xf32>
    %250 = vector.extract_strided_slice %243 {offsets = [0, 256], sizes = [8, 256], strides = [1, 1]} : vector<8x1024xf32> to vector<8x256xf32>
    %251 = arith.negf %250 : vector<8x256xf32>
    %252 = math.exp %251 : vector<8x256xf32>
    %cst_91 = arith.constant 1.000000e+00 : f32
    %253 = vector.broadcast %cst_91 : f32 to vector<8x256xf32>
    %254 = arith.addf %253, %252 : vector<8x256xf32>
    %255 = arith.divf %253, %254 : vector<8x256xf32>
    %256 = vector.extract_strided_slice %243 {offsets = [0, 512], sizes = [8, 256], strides = [1, 1]} : vector<8x1024xf32> to vector<8x256xf32>
    %257 = math.tanh %256 : vector<8x256xf32>
    %258 = vector.extract_strided_slice %243 {offsets = [0, 768], sizes = [8, 256], strides = [1, 1]} : vector<8x1024xf32> to vector<8x256xf32>
    %259 = arith.negf %258 : vector<8x256xf32>
    %260 = math.exp %259 : vector<8x256xf32>
    %cst_92 = arith.constant 1.000000e+00 : f32
    %261 = vector.broadcast %cst_92 : f32 to vector<8x256xf32>
    %262 = arith.addf %261, %260 : vector<8x256xf32>
    %263 = arith.divf %261, %262 : vector<8x256xf32>
    %264 = arith.mulf %255, %233 : vector<8x256xf32>
    %265 = arith.mulf %249, %257 : vector<8x256xf32>
    %266 = arith.addf %264, %265 : vector<8x256xf32>
    %267 = math.tanh %266 : vector<8x256xf32>
    %268 = arith.mulf %263, %267 : vector<8x256xf32>
    %269 = vector.extract_strided_slice %268 {offsets = [0, 0], sizes = [8, 128], strides = [1, 1]} : vector<8x256xf32> to vector<8x128xf32>
    %c56_93 = arith.constant 56 : index
    %c0_94 = arith.constant 0 : index
    %270 = vector.load %arg12[%c56_93, %c0_94] : memref<64x256xf32, #tpu.memory_space<vmem>>, vector<8x128xf32>
    tpu.vector_store %arg12[%c56_93, %c0_94], %269 {strides = array<i32>} : memref<64x256xf32, #tpu.memory_space<vmem>>, vector<8x128xf32>,
    %271 = vector.extract_strided_slice %268 {offsets = [0, 128], sizes = [8, 128], strides = [1, 1]} : vector<8x256xf32> to vector<8x128xf32>
    %c0_95 = arith.constant 0 : index
    %c128_96 = arith.constant 128 : index
    %272 = vector.load %arg12[%c0_95, %c128_96] : memref<64x256xf32, #tpu.memory_space<vmem>>, vector<8x128xf32>
    tpu.vector_store %arg12[%c0_95, %c128_96], %271 {strides = array<i32>} : memref<64x256xf32, #tpu.memory_space<vmem>>, vector<8x128xf32>,
    %c0_97 = arith.constant 0 : index
    %c0_98 = arith.constant 0 : index
    %273 = vector.load %arg12[%c0_97, %c0_98] : memref<64x256xf32, #tpu.memory_space<vmem>>, vector<64x256xf32>
    %c0_99 = arith.constant 0 : index
    %c0_100 = arith.constant 0 : index
    %274 = vector.load %arg4[%c0_99, %c0_100] : memref<256x256xf32, #tpu.memory_space<vmem>>, vector<256x256xf32>
    %cst_101 = arith.constant dense<0.000000e+00> : vector<64x256xf32>
    %275 = tpu.matmul %273, %274, %cst_101 {dimension_numbers = #tpu.dot_dimension_numbers<[1], [0], [0], [1], [0, 0, 1, 1], [], []>} : vector<64x256xf32>, vector<256x256xf32>, vector<64x256xf32> -> vector<64x256xf32>
    %276 = math.tanh %275 : vector<64x256xf32>
    %c0_102 = arith.constant 0 : index
    %c0_103 = arith.constant 0 : index
    %277 = vector.load %arg5[%c0_102, %c0_103] : memref<256x128xf32, #tpu.memory_space<vmem>>, vector<256x128xf32>
    %cst_104 = arith.constant dense<0.000000e+00> : vector<64x128xf32>
    %278 = tpu.matmul %276, %277, %cst_104 {dimension_numbers = #tpu.dot_dimension_numbers<[1], [0], [0], [1], [0, 0, 1, 1], [], []>} : vector<64x256xf32>, vector<256x128xf32>, vector<64x128xf32> -> vector<64x128xf32>
    %279 = vector.shape_cast %278 : vector<64x128xf32> to vector<8x8x128xf32>
    %cst_105 = arith.constant dense<0xFF800000> : vector<8x128xf32>
    %280 = vector.multi_reduction <maximumf>, %279, %cst_105 [0] : vector<8x8x128xf32> to vector<8x128xf32>
    %281 = vector.shape_cast %280 : vector<8x128xf32> to vector<1x8x128xf32>
    %282 = vector.broadcast %281 : vector<1x8x128xf32> to vector<8x8x128xf32>
    %283 = arith.subf %279, %282 : vector<8x8x128xf32>
    %284 = math.exp %283 : vector<8x8x128xf32>
    %cst_106 = arith.constant dense<0.000000e+00> : vector<8x128xf32>
    %285 = vector.multi_reduction <add>, %284, %cst_106 [0] : vector<8x8x128xf32> to vector<8x128xf32>
    %286 = vector.shape_cast %285 : vector<8x128xf32> to vector<1x8x128xf32>
    %287 = vector.broadcast %286 : vector<1x8x128xf32> to vector<8x8x128xf32>
    %288 = arith.divf %284, %287 : vector<8x8x128xf32>
    %289 = vector.shape_cast %288 : vector<8x8x128xf32> to vector<64x128xf32>
    %c0_107 = arith.constant 0 : index
    %c0_108 = arith.constant 0 : index
    %290 = vector.load %arg6[%c0_107, %c0_108] : memref<128x128xf32, #tpu.memory_space<vmem>>, vector<128x128xf32>
    %cst_109 = arith.constant dense<0.000000e+00> : vector<64x128xf32>
    %291 = tpu.matmul %289, %290, %cst_109 {dimension_numbers = #tpu.dot_dimension_numbers<[1], [0], [0], [1], [0, 0, 1, 1], [], []>} : vector<64x128xf32>, vector<128x128xf32>, vector<64x128xf32> -> vector<64x128xf32>
    %c0_110 = arith.constant 0 : index
    %c0_111 = arith.constant 0 : index
    %292 = vector.load %arg7[%c0_110, %c0_111] : memref<256x128xf32, #tpu.memory_space<vmem>>, vector<256x128xf32>
    %cst_112 = arith.constant dense<0.000000e+00> : vector<64x128xf32>
    %293 = tpu.matmul %273, %292, %cst_112 {dimension_numbers = #tpu.dot_dimension_numbers<[1], [0], [0], [1], [0, 0, 1, 1], [], []>} : vector<64x256xf32>, vector<256x128xf32>, vector<64x128xf32> -> vector<64x128xf32>
    %294 = arith.mulf %291, %293 : vector<64x128xf32>
    %295 = vector.shape_cast %294 : vector<64x128xf32> to vector<8x8x128xf32>
    %cst_113 = arith.constant dense<0.000000e+00> : vector<8x128xf32>
    %296 = vector.multi_reduction <add>, %295, %cst_113 [0] : vector<8x8x128xf32> to vector<8x128xf32>
    %c0_114 = arith.constant 0 : index
    %c0_115 = arith.constant 0 : index
    %297 = vector.load %arg8[%c0_114, %c0_115] : memref<128x128xf32, #tpu.memory_space<vmem>>, vector<128x128xf32>
    %cst_116 = arith.constant dense<0.000000e+00> : vector<8x128xf32>
    %298 = tpu.matmul %296, %297, %cst_116 {dimension_numbers = #tpu.dot_dimension_numbers<[1], [0], [0], [1], [0, 0, 1, 1], [], []>} : vector<8x128xf32>, vector<128x128xf32>, vector<8x128xf32> -> vector<8x128xf32>
    %c0_117 = arith.constant 0 : index
    %c0_118 = arith.constant 0 : index
    %299 = vector.load %arg9[%c0_117, %c0_118] : memref<1x128xf32, #tpu.memory_space<vmem>>, vector<1x128xf32>
    %300 = vector.broadcast %299 : vector<1x128xf32> to vector<8x128xf32>
    %301 = arith.addf %298, %300 : vector<8x128xf32>
    %c0_119 = arith.constant 0 : index
    %c0_120 = arith.constant 0 : index
    %302 = vector.load %arg10[%c0_119, %c0_120] : memref<8x128xf32, #tpu.memory_space<vmem>>, vector<8x128xf32>
    tpu.vector_store %arg10[%c0_119, %c0_120], %301 {strides = array<i32>} : memref<8x128xf32, #tpu.memory_space<vmem>>, vector<8x128xf32>,
    return
  }
}

</mosaic_0001>

<llo_original>
// kernel: model2_forward.1
$region0: #{model2_forward.1}
  #allocation0 [shape = 'u32[]', space=smem, size = 0x4, offset = 0x4, fixed_abs, tag = 'smem constant byte address 0x4 - core index']
  #allocation1 [shape = 'u32[144,128]{1,0:T(1,128)}', space=vmem, size = 0x12000, scoped, tag = 'internal scratch']
  #allocation2 [shape = 'f32[64,1024]{1,0:T(8,128)}', space=vmem, size = 0x40000, scoped, tag = 'scratch operand']
  #allocation3 [shape = 'f32[64,256]{1,0:T(8,128)}', space=vmem, size = 0x10000, scoped, tag = 'scratch operand']
  %s0 = inlined_call_operand.vmem [shape: f32[64,32], index: 0, kind: input, shape index: {}]
  %s1 = inlined_call_operand.vmem [shape: f32[32,1024], index: 1, kind: input, shape index: {}]
  %s2 = inlined_call_operand.vmem [shape: f32[1,1024], index: 2, kind: input, shape index: {}]
  %s3 = inlined_call_operand.hbm [shape: f32[256,1024], index: 3, kind: input, shape index: {}]
  %s4 = inlined_call_operand.hbm [shape: f32[256,256], index: 4, kind: input, shape index: {}]
  %s5 = inlined_call_operand.hbm [shape: f32[256,128], index: 5, kind: input, shape index: {}]
  %s6 = inlined_call_operand.vmem [shape: f32[128,128], index: 6, kind: input, shape index: {}]
  %s7 = inlined_call_operand.hbm [shape: f32[256,128], index: 7, kind: input, shape index: {}]
  %s8 = inlined_call_operand.hbm [shape: f32[128,128], index: 8, kind: input, shape index: {}]
  %s9 = inlined_call_operand.vmem [shape: f32[1,128], index: 9, kind: input, shape index: {}]
  %s10 = inlined_call_operand.vmem [shape: f32[8,128], index: 10, kind: output, shape index: {}]
  %s11 = sld [smem:[#allocation0]]
  $region70: #{model2_forward.1} parent=0
    _
  %s13 = ssub.s32 1, %s11
  %s14 = scalar_select 0, %s13, %s11
  $region1: #{model2_forward.1} parent=0
    #allocation4 [shape = 'u8[1048576]{0}', space=vmem, size = 0x100000, scoped, tag = 'input window, operand 3, single buffered']
    #allocation5 [shape = 's32[1]{0}', space=sflag, size = 0x4, scoped, tag = 'scoped memory for model2_forward.1']
    #allocation6 [shape = 'u8[262144]{0}', space=vmem, size = 0x40000, scoped, tag = 'input window, operand 4, single buffered']
    #allocation7 [shape = 's32[1]{0}', space=sflag, size = 0x4, scoped, tag = 'scoped memory for model2_forward.1']
    #allocation8 [shape = 'u8[131072]{0}', space=vmem, size = 0x20000, scoped, tag = 'input window, operand 5, single buffered']
    #allocation9 [shape = 'u8[131072]{0}', space=vmem, size = 0x20000, scoped, tag = 'input window, operand 7, single buffered']
    #allocation10 [shape = 's32[1]{0}', space=sflag, size = 0x4, scoped, tag = 'scoped memory for model2_forward.1']
    #allocation11 [shape = 'u8[65536]{0}', space=vmem, size = 0x10000, scoped, tag = 'input window, operand 8, single buffered']
    %15 = vsyncpa [#allocation5], 0
    %16 = vsyncpa [#allocation7], 0
    %17 = vsyncpa [#allocation10], 0
    // Predicated region
    $region2: #{model2_forward.1} parent=1 // pred_check
      _
    $region3: #{model2_forward.1} parent=1 // pred_check_branch
      %19 = sbr.rel (0) target = $region5
    $region4: #{model2_forward.1} parent=1 // pred_region
      _
    $region5: #{model2_forward.1} parent=1 // pred_fallthru
      _
    // Predicated region
    $region6: #{model2_forward.1} parent=1 // pred_check
      _
    $region7: #{model2_forward.1} parent=1 // pred_check_branch
      %21 = sbr.rel (0) target = $region9
    $region8: #{model2_forward.1} parent=1 // pred_region
      _
    $region9: #{model2_forward.1} parent=1 // pred_fallthru
      _
    // Predicated region
    $region10: #{model2_forward.1} parent=1 // pred_check
      _
    $region11: #{model2_forward.1} parent=1 // pred_check_branch
      %23 = sbr.rel (0) target = $region13
    $region12: #{model2_forward.1} parent=1 // pred_region
      _
    $region13: #{model2_forward.1} parent=1 // pred_fallthru
      _
    // Predicated region
    $region14: #{model2_forward.1} parent=1 // pred_check
      _
    $region15: #{model2_forward.1} parent=1 // pred_check_branch
      %25 = sbr.rel (0) target = $region17
    $region16: #{model2_forward.1} parent=1 // pred_region
      %s27 = ssub.s32 32768, 32768
      %28 = vsyncadd [#allocation5], %s27
      %s29 = sshll.u32 [#allocation4], 4
      %s30 = int_to_ptr.vmem [resolvable:$true] %s29
      %35 = dma.hbm_to_vmem [thread:$0]  %s3, 32768, %s30, [#allocation5], 1024, 1024, 64
    $region17: #{model2_forward.1} parent=1 // pred_fallthru
      _
    // Predicated region
    $region18: #{model2_forward.1} parent=1 // pred_check
      _
    $region19: #{model2_forward.1} parent=1 // pred_check_branch
      %37 = sbr.rel (0) target = $region21
    $region20: #{model2_forward.1} parent=1 // pred_region
      %s39 = ssub.s32 8192, 8192
      %40 = vsyncadd [#allocation7], %s39
      %s41 = sshll.u32 [#allocation6], 4
      %s42 = int_to_ptr.vmem [resolvable:$true] %s41
      %47 = dma.hbm_to_vmem [thread:$0]  %s4, 8192, %s42, [#allocation7], 256, 256, 16
    $region21: #{model2_forward.1} parent=1 // pred_fallthru
      _
    // Predicated region
    $region22: #{model2_forward.1} parent=1 // pred_check
      _
    $region23: #{model2_forward.1} parent=1 // pred_check_branch
      %49 = sbr.rel (0) target = $region25
    $region24: #{model2_forward.1} parent=1 // pred_region
      %s51 = ssub.s32 4096, 4096
      %52 = vsyncadd [#allocation7], %s51
      %s53 = sshll.u32 [#allocation8], 4
      %s54 = int_to_ptr.vmem [resolvable:$true] %s53
      %59 = dma.hbm_to_vmem [thread:$0]  %s5, 4096, %s54, [#allocation7], 128, 128, 8
    $region25: #{model2_forward.1} parent=1 // pred_fallthru
      _
    // Predicated region
    $region26: #{model2_forward.1} parent=1 // pred_check
      _
    $region27: #{model2_forward.1} parent=1 // pred_check_branch
      %61 = sbr.rel (0) target = $region29
    $region28: #{model2_forward.1} parent=1 // pred_region
      _
    $region29: #{model2_forward.1} parent=1 // pred_fallthru
      _
    // Predicated region
    $region30: #{model2_forward.1} parent=1 // pred_check
      _
    $region31: #{model2_forward.1} parent=1 // pred_check_branch
      %63 = sbr.rel (0) target = $region33
    $region32: #{model2_forward.1} parent=1 // pred_region
      %s65 = ssub.s32 4096, 4096
      %66 = vsyncadd [#allocation10], %s65
      %s67 = sshll.u32 [#allocation9], 4
      %s68 = int_to_ptr.vmem [resolvable:$true] %s67
      %73 = dma.hbm_to_vmem [thread:$0]  %s7, 4096, %s68, [#allocation10], 128, 128, 8
    $region33: #{model2_forward.1} parent=1 // pred_fallthru
      _
    // Predicated region
    $region34: #{model2_forward.1} parent=1 // pred_check
      _
    $region35: #{model2_forward.1} parent=1 // pred_check_branch
      %75 = sbr.rel (0) target = $region37
    $region36: #{model2_forward.1} parent=1 // pred_region
      %s77 = ssub.s32 2048, 2048
      %78 = vsyncadd [#allocation10], %s77
      %s79 = sshll.u32 [#allocation11], 4
      %s80 = int_to_ptr.vmem [resolvable:$true] %s79
      %85 = dma.hbm_to_vmem [thread:$0]  %s8, 2048, %s80, [#allocation10], 128, 128, 8
    $region37: #{model2_forward.1} parent=1 // pred_fallthru
      _
    // Predicated region
    $region38: #{model2_forward.1} parent=1 // pred_check
      _
    $region39: #{model2_forward.1} parent=1 // pred_check_branch
      %87 = sbr.rel (0) target = $region41
    $region40: #{model2_forward.1} parent=1 // pred_region
      _
    $region41: #{model2_forward.1} parent=1 // pred_fallthru
      _
    // Predicated region
    $region42: #{model2_forward.1} parent=1 // pred_check
      _
    $region43: #{model2_forward.1} parent=1 // pred_check_branch
      %89 = sbr.rel (0) target = $region45
    $region44: #{model2_forward.1} parent=1 // pred_region
      %90 = dma.done [#allocation5], 32768
    $region45: #{model2_forward.1} parent=1 // pred_fallthru
      _
    // Predicated region
    $region46: #{model2_forward.1} parent=1 // pred_check
      _
    $region47: #{model2_forward.1} parent=1 // pred_check_branch
      %92 = sbr.rel (0) target = $region49
    $region48: #{model2_forward.1} parent=1 // pred_region
      %93 = dma.done [#allocation7], 8192
    $region49: #{model2_forward.1} parent=1 // pred_fallthru
      _
    // Predicated region
    $region50: #{model2_forward.1} parent=1 // pred_check
      _
    $region51: #{model2_forward.1} parent=1 // pred_check_branch
      %95 = sbr.rel (0) target = $region53
    $region52: #{model2_forward.1} parent=1 // pred_region
      %96 = dma.done [#allocation7], 4096
    $region53: #{model2_forward.1} parent=1 // pred_fallthru
      _
    // Predicated region
    $region54: #{model2_forward.1} parent=1 // pred_check
      _
    $region55: #{model2_forward.1} parent=1 // pred_check_branch
      %98 = sbr.rel (0) target = $region57
    $region56: #{model2_forward.1} parent=1 // pred_region
      %99 = dma.done [#allocation10], 4096
    $region57: #{model2_forward.1} parent=1 // pred_fallthru
      _
    // Predicated region
    $region58: #{model2_forward.1} parent=1 // pred_check
      _
    $region59: #{model2_forward.1} parent=1 // pred_check_branch
      %101 = sbr.rel (0) target = $region61
    $region60: #{model2_forward.1} parent=1 // pred_region
      %102 = dma.done [#allocation10], 2048
    $region61: #{model2_forward.1} parent=1 // pred_fallthru
      _
    %v103 = vld [vmem:[%s0] sm:$0xff]
    %v104 = vld [vmem:[%s0 + $0x8] sm:$0xff]
    %v105 = vld [vmem:[%s0 + $0x10] sm:$0xff]
    %v106 = vld [vmem:[%s0 + $0x18] sm:$0xff]
    %v107 = vld [vmem:[%s0 + $0x20] sm:$0xff]
    %v108 = vld [vmem:[%s0 + $0x28] sm:$0xff]
    %v109 = vld [vmem:[%s0 + $0x30] sm:$0xff]
    %v110 = vld [vmem:[%s0 + $0x38] sm:$0xff]
    %v111 = vld [vmem:[%s1] sm:$0xff]
    %v112 = vld [vmem:[%s1 + $0x8] sm:$0xff]
    %v113 = vld [vmem:[%s1 + $0x10] sm:$0xff]
    %v114 = vld [vmem:[%s1 + $0x18] sm:$0xff]
    %v115 = vld [vmem:[%s1 + $0x20] sm:$0xff]
    %v116 = vld [vmem:[%s1 + $0x28] sm:$0xff]
    %v117 = vld [vmem:[%s1 + $0x30] sm:$0xff]
    %v118 = vld [vmem:[%s1 + $0x38] sm:$0xff]
    %v119 = vld [vmem:[%s1 + $0x40] sm:$0xff]
    %v120 = vld [vmem:[%s1 + $0x48] sm:$0xff]
    %v121 = vld [vmem:[%s1 + $0x50] sm:$0xff]
    %v122 = vld [vmem:[%s1 + $0x58] sm:$0xff]
    %v123 = vld [vmem:[%s1 + $0x60] sm:$0xff]
    %v124 = vld [vmem:[%s1 + $0x68] sm:$0xff]
    %v125 = vld [vmem:[%s1 + $0x70] sm:$0xff]
    %v126 = vld [vmem:[%s1 + $0x78] sm:$0xff]
    %v127 = vld [vmem:[%s1 + $0x80] sm:$0xff]
    %v128 = vld [vmem:[%s1 + $0x88] sm:$0xff]
    %v129 = vld [vmem:[%s1 + $0x90] sm:$0xff]
    %v130 = vld [vmem:[%s1 + $0x98] sm:$0xff]
    %v131 = vld [vmem:[%s1 + $0xa0] sm:$0xff]
    %v132 = vld [vmem:[%s1 + $0xa8] sm:$0xff]
    %v133 = vld [vmem:[%s1 + $0xb0] sm:$0xff]
    %v134 = vld [vmem:[%s1 + $0xb8] sm:$0xff]
    %v135 = vld [vmem:[%s1 + $0xc0] sm:$0xff]
    %v136 = vld [vmem:[%s1 + $0xc8] sm:$0xff]
    %v137 = vld [vmem:[%s1 + $0xd0] sm:$0xff]
    %v138 = vld [vmem:[%s1 + $0xd8] sm:$0xff]
    %v139 = vld [vmem:[%s1 + $0xe0] sm:$0xff]
    %v140 = vld [vmem:[%s1 + $0xe8] sm:$0xff]
    %v141 = vld [vmem:[%s1 + $0xf0] sm:$0xff]
    %v142 = vld [vmem:[%s1 + $0xf8] sm:$0xff]
    %v143 = vld [vmem:[%s2] sm:$0xff]
    %v145 = vlaneseq
    %v146 = vshrl.u32 %v145, 7
    %v147 = vsub.s32 0, %v146
    %v148 = vrot.slane %v143, %v147
    %v149 = vlaneseq
    %v150 = vshrl.u32 %v149, 7
    %v151 = vsub.s32 1, %v150
    %v152 = vrot.slane %v143, %v151
    %v153 = vlaneseq
    %v154 = vshrl.u32 %v153, 7
    %v155 = vsub.s32 2, %v154
    %v156 = vrot.slane %v143, %v155
    %v157 = vlaneseq
    %v158 = vshrl.u32 %v157, 7
    %v159 = vsub.s32 3, %v158
    %v160 = vrot.slane %v143, %v159
    %v161 = vlaneseq
    %v162 = vshrl.u32 %v161, 7
    %v163 = vsub.s32 4, %v162
    %v164 = vrot.slane %v143, %v163
    %v165 = vlaneseq
    %v166 = vshrl.u32 %v165, 7
    %v167 = vsub.s32 5, %v166
    %v168 = vrot.slane %v143, %v167
    %v169 = vlaneseq
    %v170 = vshrl.u32 %v169, 7
    %v171 = vsub.s32 6, %v170
    %v172 = vrot.slane %v143, %v171
    %v173 = vlaneseq
    %v174 = vshrl.u32 %v173, 7
    %v175 = vsub.s32 7, %v174
    %v176 = vrot.slane %v143, %v175
    %vm185 = vcmask 261120
    %v187 = vsel %vm185, %v103, 0
    %v190 = vsel %vm185, %v104, 0
    %v193 = vsel %vm185, %v105, 0
    %v196 = vsel %vm185, %v106, 0
    %v199 = vsel %vm185, %v107, 0
    %v202 = vsel %vm185, %v108, 0
    %v205 = vsel %vm185, %v109, 0
    %v208 = vsel %vm185, %v110, 0
    %210 = vmatprep.subr.mxu0 %v112
    %211 = vmatpush1.msra.mxu0 %v111
    %212 = vmatprep.subr.mxu0 %v120
    %213 = vmatpush1.msra.mxu0 %v119
    %214 = vmatprep.subr.mxu0 %v128
    %215 = vmatpush1.msra.mxu0 %v127
    %216 = vmatprep.subr.mxu0 %v136
    %217 = vmatpush1.msra.mxu0 %v135
    %218 = vmatprep.subr.mxu0 0.0
    %219 = vmatpush1.msra.mxu0 0.0
    %220 = vmatprep.subr.mxu0 0.0
    %221 = vmatpush1.msra.mxu0 0.0
    %222 = vmatprep.subr.mxu0 0.0
    %223 = vmatpush1.msra.mxu0 0.0
    %224 = vmatprep.subr.mxu0 0.0
    %225 = vmatpush1.msra.mxu0 0.0
    %226 = vmatprep.subr.mxu0 0.0
    %227 = vmatpush1.msra.mxu0 0.0
    %228 = vmatprep.subr.mxu0 0.0
    %229 = vmatpush1.msra.mxu0 0.0
    %230 = vmatprep.subr.mxu0 0.0
    %231 = vmatpush1.msra.mxu0 0.0
    %232 = vmatprep.subr.mxu0 0.0
    %233 = vmatpush1.msra.mxu0 0.0
    %234 = vmatprep.subr.mxu0 0.0
    %235 = vmatpush1.msra.mxu0 0.0
    %236 = vmatprep.subr.mxu0 0.0
    %237 = vmatpush1.msra.mxu0 0.0
    %238 = vmatprep.subr.mxu0 0.0
    %239 = vmatpush1.msra.mxu0 0.0
    %240 = vmatprep.subr.mxu0 0.0
    %241 = vmatpush1.msra.mxu0 0.0
    %242 = vmatprep.subr.mxu0 0.0
    %243 = vmatpush1.msra.mxu0 0.0
    %244 = vmatprep.subr.mxu0 0.0
    %245 = vmatpush1.msra.mxu0 0.0
    %246 = vmatprep.subr.mxu0 0.0
    %247 = vmatpush1.msra.mxu0 0.0
    %248 = vmatprep.subr.mxu0 0.0
    %249 = vmatpush1.msra.mxu0 0.0
    %250 = vmatprep.subr.mxu0 0.0
    %251 = vmatpush1.msra.mxu0 0.0
    %252 = vmatprep.subr.mxu0 0.0
    %253 = vmatpush1.msra.mxu0 0.0
    %254 = vmatprep.subr.mxu0 0.0
    %255 = vmatpush1.msra.mxu0 0.0
    %256 = vmatprep.subr.mxu0 0.0
    %257 = vmatpush1.msra.mxu0 0.0
    %258 = vmatprep.subr.mxu0 0.0
    %259 = vmatpush1.msra.mxu0 0.0
    %260 = vmatprep.subr.mxu0 0.0
    %261 = vmatpush1.msra.mxu0 0.0
    %262 = vmatprep.subr.mxu0 0.0
    %263 = vmatpush1.msra.mxu0 0.0
    %264 = vmatprep.subr.mxu0 0.0
    %265 = vmatpush1.msra.mxu0 0.0
    %266 = vmatprep.subr.mxu0 0.0
    %267 = vmatpush1.msra.mxu0 0.0
    %268 = vmatprep.subr.mxu0 0.0
    %269 = vmatpush1.msra.mxu0 0.0
    %270 = vmatprep.subr.mxu0 0.0
    %271 = vmatpush1.msra.mxu0 0.0
    %272 = vmatprep.subr.mxu0 0.0
    %273 = vmatpush1.msra.mxu0 0.0
    %274 = vmatprep.mubr.f32.mxu0 0.0
    %275 = vmatmul.mubr.f32.gmra.mrb[0].mxu0 %v187
    %v276 = vpop.f32.mrb[0].mxu0
    %v277 = vadd.f32 %v148, %v276
    %v278 = vpop.f32.mrb[0].mxu0
    %v279 = vadd.f32 %v152, %v278
    %280 = vmatprep.mubr.f32.mxu0 0.0
    %281 = vmatmul.mubr.f32.gmra.mrb[0].mxu0 %v190
    %v282 = vpop.f32.mrb[0].mxu0
    %v283 = vadd.f32 %v148, %v282
    %v284 = vpop.f32.mrb[0].mxu0
    %v285 = vadd.f32 %v152, %v284
    %286 = vmatprep.mubr.f32.mxu0 0.0
    %287 = vmatmul.mubr.f32.gmra.mrb[0].mxu0 %v193
    %v288 = vpop.f32.mrb[0].mxu0
    %v289 = vadd.f32 %v148, %v288
    %v290 = vpop.f32.mrb[0].mxu0
    %v291 = vadd.f32 %v152, %v290
    %292 = vmatprep.mubr.f32.mxu0 0.0
    %293 = vmatmul.mubr.f32.gmra.mrb[0].mxu0 %v196
    %v294 = vpop.f32.mrb[0].mxu0
    %v295 = vadd.f32 %v148, %v294
    %v296 = vpop.f32.mrb[0].mxu0
    %v297 = vadd.f32 %v152, %v296
    %298 = vmatprep.mubr.f32.mxu0 0.0
    %299 = vmatmul.mubr.f32.gmra.mrb[0].mxu0 %v199
    %v300 = vpop.f32.mrb[0].mxu0
    %v301 = vadd.f32 %v148, %v300
    %v302 = vpop.f32.mrb[0].mxu0
    %v303 = vadd.f32 %v152, %v302
    %304 = vmatprep.mubr.f32.mxu0 0.0
    %305 = vmatmul.mubr.f32.gmra.mrb[0].mxu0 %v202
    %v306 = vpop.f32.mrb[0].mxu0
    %v307 = vadd.f32 %v148, %v306
    %v308 = vpop.f32.mrb[0].mxu0
    %v309 = vadd.f32 %v152, %v308
    %310 = vmatprep.mubr.f32.mxu0 0.0
    %311 = vmatmul.mubr.f32.gmra.mrb[0].mxu0 %v205
    %v312 = vpop.f32.mrb[0].mxu0
    %v313 = vadd.f32 %v148, %v312
    %v314 = vpop.f32.mrb[0].mxu0
    %v315 = vadd.f32 %v152, %v314
    %316 = vmatprep.mubr.f32.mxu0 0.0
    %317 = vmatmul.mubr.f32.gmra.mrb[0].mxu0 %v208
    %v318 = vpop.f32.mrb[0].mxu0
    %v319 = vadd.f32 %v148, %v318
    %v320 = vpop.f32.mrb[0].mxu0
    %v321 = vadd.f32 %v152, %v320
    %322 = vdwg.mxu0
    %323 = vmatprep.subr.mxu0 %v114
    %324 = vmatpush1.msra.mxu0 %v113
    %325 = vmatprep.subr.mxu0 %v122
    %326 = vmatpush1.msra.mxu0 %v121
    %327 = vmatprep.subr.mxu0 %v130
    %328 = vmatpush1.msra.mxu0 %v129
    %329 = vmatprep.subr.mxu0 %v138
    %330 = vmatpush1.msra.mxu0 %v137
    %331 = vmatprep.subr.mxu0 0.0
    %332 = vmatpush1.msra.mxu0 0.0
    %333 = vmatprep.subr.mxu0 0.0
    %334 = vmatpush1.msra.mxu0 0.0
    %335 = vmatprep.subr.mxu0 0.0
    %336 = vmatpush1.msra.mxu0 0.0
    %337 = vmatprep.subr.mxu0 0.0
    %338 = vmatpush1.msra.mxu0 0.0
    %339 = vmatprep.subr.mxu0 0.0
    %340 = vmatpush1.msra.mxu0 0.0
    %341 = vmatprep.subr.mxu0 0.0
    %342 = vmatpush1.msra.mxu0 0.0
    %343 = vmatprep.subr.mxu0 0.0
    %344 = vmatpush1.msra.mxu0 0.0
    %345 = vmatprep.subr.mxu0 0.0
    %346 = vmatpush1.msra.mxu0 0.0
    %347 = vmatprep.subr.mxu0 0.0
    %348 = vmatpush1.msra.mxu0 0.0
    %349 = vmatprep.subr.mxu0 0.0
    %350 = vmatpush1.msra.mxu0 0.0
    %351 = vmatprep.subr.mxu0 0.0
    %352 = vmatpush1.msra.mxu0 0.0
    %353 = vmatprep.subr.mxu0 0.0
    %354 = vmatpush1.msra.mxu0 0.0
    %355 = vmatprep.subr.mxu0 0.0
    %356 = vmatpush1.msra.mxu0 0.0
    %357 = vmatprep.subr.mxu0 0.0
    %358 = vmatpush1.msra.mxu0 0.0
    %359 = vmatprep.subr.mxu0 0.0
    %360 = vmatpush1.msra.mxu0 0.0
    %361 = vmatprep.subr.mxu0 0.0
    %362 = vmatpush1.msra.mxu0 0.0
    %363 = vmatprep.subr.mxu0 0.0
    %364 = vmatpush1.msra.mxu0 0.0
    %365 = vmatprep.subr.mxu0 0.0
    %366 = vmatpush1.msra.mxu0 0.0
    %367 = vmatprep.subr.mxu0 0.0
    %368 = vmatpush1.msra.mxu0 0.0
    %369 = vmatprep.subr.mxu0 0.0
    %370 = vmatpush1.msra.mxu0 0.0
    %371 = vmatprep.subr.mxu0 0.0
    %372 = vmatpush1.msra.mxu0 0.0
    %373 = vmatprep.subr.mxu0 0.0
    %374 = vmatpush1.msra.mxu0 0.0
    %375 = vmatprep.subr.mxu0 0.0
    %376 = vmatpush1.msra.mxu0 0.0
    %377 = vmatprep.subr.mxu0 0.0
    %378 = vmatpush1.msra.mxu0 0.0
    %379 = vmatprep.subr.mxu0 0.0
    %380 = vmatpush1.msra.mxu0 0.0
    %381 = vmatprep.subr.mxu0 0.0
    %382 = vmatpush1.msra.mxu0 0.0
    %383 = vmatprep.subr.mxu0 0.0
    %384 = vmatpush1.msra.mxu0 0.0
    %385 = vmatprep.subr.mxu0 0.0
    %386 = vmatpush1.msra.mxu0 0.0
    %387 = vmatprep.mubr.f32.mxu0 0.0
    %388 = vmatmul.mubr.f32.gmra.mrb[0].mxu0 %v187
    %v389 = vpop.f32.mrb[0].mxu0
    %v390 = vadd.f32 %v156, %v389
    %v391 = vpop.f32.mrb[0].mxu0
    %v392 = vadd.f32 %v160, %v391
    %393 = vmatprep.mubr.f32.mxu0 0.0
    %394 = vmatmul.mubr.f32.gmra.mrb[0].mxu0 %v190
    %v395 = vpop.f32.mrb[0].mxu0
    %v396 = vadd.f32 %v156, %v395
    %v397 = vpop.f32.mrb[0].mxu0
    %v398 = vadd.f32 %v160, %v397
    %399 = vmatprep.mubr.f32.mxu0 0.0
    %400 = vmatmul.mubr.f32.gmra.mrb[0].mxu0 %v193
    %v401 = vpop.f32.mrb[0].mxu0
    %v402 = vadd.f32 %v156, %v401
    %v403 = vpop.f32.mrb[0].mxu0
    %v404 = vadd.f32 %v160, %v403
    %405 = vmatprep.mubr.f32.mxu0 0.0
    %406 = vmatmul.mubr.f32.gmra.mrb[0].mxu0 %v196
    %v407 = vpop.f32.mrb[0].mxu0
    %v408 = vadd.f32 %v156, %v407
    %v409 = vpop.f32.mrb[0].mxu0
    %v410 = vadd.f32 %v160, %v409
    %411 = vmatprep.mubr.f32.mxu0 0.0
    %412 = vmatmul.mubr.f32.gmra.mrb[0].mxu0 %v199
    %v413 = vpop.f32.mrb[0].mxu0
    %v414 = vadd.f32 %v156, %v413
    %v415 = vpop.f32.mrb[0].mxu0
    %v416 = vadd.f32 %v160, %v415
    %417 = vmatprep.mubr.f32.mxu0 0.0
    %418 = vmatmul.mubr.f32.gmra.mrb[0].mxu0 %v202
    %v419 = vpop.f32.mrb[0].mxu0
    %v420 = vadd.f32 %v156, %v419
    %v421 = vpop.f32.mrb[0].mxu0
    %v422 = vadd.f32 %v160, %v421
    %423 = vmatprep.mubr.f32.mxu0 0.0
    %424 = vmatmul.mubr.f32.gmra.mrb[0].mxu0 %v205
    %v425 = vpop.f32.mrb[0].mxu0
    %v426 = vadd.f32 %v156, %v425
    %v427 = vpop.f32.mrb[0].mxu0
    %v428 = vadd.f32 %v160, %v427
    %429 = vmatprep.mubr.f32.mxu0 0.0
    %430 = vmatmul.mubr.f32.gmra.mrb[0].mxu0 %v208
    %v431 = vpop.f32.mrb[0].mxu0
    %v432 = vadd.f32 %v156, %v431
    %v433 = vpop.f32.mrb[0].mxu0
    %v434 = vadd.f32 %v160, %v433
    %435 = vdwg.mxu0
    %436 = vmatprep.subr.mxu0 %v116
    %437 = vmatpush1.msra.mxu0 %v115
    %438 = vmatprep.subr.mxu0 %v124
    %439 = vmatpush1.msra.mxu0 %v123
    %440 = vmatprep.subr.mxu0 %v132
    %441 = vmatpush1.msra.mxu0 %v131
    %442 = vmatprep.subr.mxu0 %v140
    %443 = vmatpush1.msra.mxu0 %v139
    %444 = vmatprep.subr.mxu0 0.0
    %445 = vmatpush1.msra.mxu0 0.0
    %446 = vmatprep.subr.mxu0 0.0
    %447 = vmatpush1.msra.mxu0 0.0
    %448 = vmatprep.subr.mxu0 0.0
    %449 = vmatpush1.msra.mxu0 0.0
    %450 = vmatprep.subr.mxu0 0.0
    %451 = vmatpush1.msra.mxu0 0.0
    %452 = vmatprep.subr.mxu0 0.0
    %453 = vmatpush1.msra.mxu0 0.0
    %454 = vmatprep.subr.mxu0 0.0
    %455 = vmatpush1.msra.mxu0 0.0
    %456 = vmatprep.subr.mxu0 0.0
    %457 = vmatpush1.msra.mxu0 0.0
    %458 = vmatprep.subr.mxu0 0.0
    %459 = vmatpush1.msra.mxu0 0.0
    %460 = vmatprep.subr.mxu0 0.0
    %461 = vmatpush1.msra.mxu0 0.0
    %462 = vmatprep.subr.mxu0 0.0
    %463 = vmatpush1.msra.mxu0 0.0
    %464 = vmatprep.subr.mxu0 0.0
    %465 = vmatpush1.msra.mxu0 0.0
    %466 = vmatprep.subr.mxu0 0.0
    %467 = vmatpush1.msra.mxu0 0.0
    %468 = vmatprep.subr.mxu0 0.0
    %469 = vmatpush1.msra.mxu0 0.0
    %470 = vmatprep.subr.mxu0 0.0
    %471 = vmatpush1.msra.mxu0 0.0
    %472 = vmatprep.subr.mxu0 0.0
    %473 = vmatpush1.msra.mxu0 0.0
    %474 = vmatprep.subr.mxu0 0.0
    %475 = vmatpush1.msra.mxu0 0.0
    %476 = vmatprep.subr.mxu0 0.0
    %477 = vmatpush1.msra.mxu0 0.0
    %478 = vmatprep.subr.mxu0 0.0
    %479 = vmatpush1.msra.mxu0 0.0
    %480 = vmatprep.subr.mxu0 0.0
    %481 = vmatpush1.msra.mxu0 0.0
    %482 = vmatprep.subr.mxu0 0.0
    %483 = vmatpush1.msra.mxu0 0.0
    %484 = vmatprep.subr.mxu0 0.0
    %485 = vmatpush1.msra.mxu0 0.0
    %486 = vmatprep.subr.mxu0 0.0
    %487 = vmatpush1.msra.mxu0 0.0
    %488 = vmatprep.subr.mxu0 0.0
    %489 = vmatpush1.msra.mxu0 0.0
    %490 = vmatprep.subr.mxu0 0.0
    %491 = vmatpush1.msra.mxu0 0.0
    %492 = vmatprep.subr.mxu0 0.0
    %493 = vmatpush1.msra.mxu0 0.0
    %494 = vmatprep.subr.mxu0 0.0
    %495 = vmatpush1.msra.mxu0 0.0
    %496 = vmatprep.subr.mxu0 0.0
    %497 = vmatpush1.msra.mxu0 0.0
    %498 = vmatprep.subr.mxu0 0.0
    %499 = vmatpush1.msra.mxu0 0.0
    %500 = vmatprep.mubr.f32.mxu0 0.0
    %501 = vmatmul.mubr.f32.gmra.mrb[0].mxu0 %v187
    %v502 = vpop.f32.mrb[0].mxu0
    %v503 = vadd.f32 %v164, %v502
    %v504 = vpop.f32.mrb[0].mxu0
    %v505 = vadd.f32 %v168, %v504
    %506 = vmatprep.mubr.f32.mxu0 0.0
    %507 = vmatmul.mubr.f32.gmra.mrb[0].mxu0 %v190
    %v508 = vpop.f32.mrb[0].mxu0
    %v509 = vadd.f32 %v164, %v508
    %v510 = vpop.f32.mrb[0].mxu0
    %v511 = vadd.f32 %v168, %v510
    %512 = vmatprep.mubr.f32.mxu0 0.0
    %513 = vmatmul.mubr.f32.gmra.mrb[0].mxu0 %v193
    %v514 = vpop.f32.mrb[0].mxu0
    %v515 = vadd.f32 %v164, %v514
    %v516 = vpop.f32.mrb[0].mxu0
    %v517 = vadd.f32 %v168, %v516
    %518 = vmatprep.mubr.f32.mxu0 0.0
    %519 = vmatmul.mubr.f32.gmra.mrb[0].mxu0 %v196
    %v520 = vpop.f32.mrb[0].mxu0
    %v521 = vadd.f32 %v164, %v520
    %v522 = vpop.f32.mrb[0].mxu0
    %v523 = vadd.f32 %v168, %v522
    %524 = vmatprep.mubr.f32.mxu0 0.0
    %525 = vmatmul.mubr.f32.gmra.mrb[0].mxu0 %v199
    %v526 = vpop.f32.mrb[0].mxu0
    %v527 = vadd.f32 %v164, %v526
    %v528 = vpop.f32.mrb[0].mxu0
    %v529 = vadd.f32 %v168, %v528
    %530 = vmatprep.mubr.f32.mxu0 0.0
    %531 = vmatmul.mubr.f32.gmra.mrb[0].mxu0 %v202
    %v532 = vpop.f32.mrb[0].mxu0
    %v533 = vadd.f32 %v164, %v532
    %v534 = vpop.f32.mrb[0].mxu0
    %v535 = vadd.f32 %v168, %v534
    %536 = vmatprep.mubr.f32.mxu0 0.0
    %537 = vmatmul.mubr.f32.gmra.mrb[0].mxu0 %v205
    %v538 = vpop.f32.mrb[0].mxu0
    %v539 = vadd.f32 %v164, %v538
    %v540 = vpop.f32.mrb[0].mxu0
    %v541 = vadd.f32 %v168, %v540
    %542 = vmatprep.mubr.f32.mxu0 0.0
    %543 = vmatmul.mubr.f32.gmra.mrb[0].mxu0 %v208
    %v544 = vpop.f32.mrb[0].mxu0
    %v545 = vadd.f32 %v164, %v544
    %v546 = vpop.f32.mrb[0].mxu0
    %v547 = vadd.f32 %v168, %v546
    %548 = vdwg.mxu0
    %549 = vmatprep.subr.mxu0 %v118
    %550 = vmatpush1.msra.mxu0 %v117
    %551 = vmatprep.subr.mxu0 %v126
    %552 = vmatpush1.msra.mxu0 %v125
    %553 = vmatprep.subr.mxu0 %v134
    %554 = vmatpush1.msra.mxu0 %v133
    %555 = vmatprep.subr.mxu0 %v142
    %556 = vmatpush1.msra.mxu0 %v141
    %557 = vmatprep.subr.mxu0 0.0
    %558 = vmatpush1.msra.mxu0 0.0
    %559 = vmatprep.subr.mxu0 0.0
    %560 = vmatpush1.msra.mxu0 0.0
    %561 = vmatprep.subr.mxu0 0.0
    %562 = vmatpush1.msra.mxu0 0.0
    %563 = vmatprep.subr.mxu0 0.0
    %564 = vmatpush1.msra.mxu0 0.0
    %565 = vmatprep.subr.mxu0 0.0
    %566 = vmatpush1.msra.mxu0 0.0
    %567 = vmatprep.subr.mxu0 0.0
    %568 = vmatpush1.msra.mxu0 0.0
    %569 = vmatprep.subr.mxu0 0.0
    %570 = vmatpush1.msra.mxu0 0.0
    %571 = vmatprep.subr.mxu0 0.0
    %572 = vmatpush1.msra.mxu0 0.0
    %573 = vmatprep.subr.mxu0 0.0
    %574 = vmatpush1.msra.mxu0 0.0
    %575 = vmatprep.subr.mxu0 0.0
    %576 = vmatpush1.msra.mxu0 0.0
    %577 = vmatprep.subr.mxu0 0.0
    %578 = vmatpush1.msra.mxu0 0.0
    %579 = vmatprep.subr.mxu0 0.0
    %580 = vmatpush1.msra.mxu0 0.0
    %581 = vmatprep.subr.mxu0 0.0
    %582 = vmatpush1.msra.mxu0 0.0
    %583 = vmatprep.subr.mxu0 0.0
    %584 = vmatpush1.msra.mxu0 0.0
    %585 = vmatprep.subr.mxu0 0.0
    %586 = vmatpush1.msra.mxu0 0.0
    %587 = vmatprep.subr.mxu0 0.0
    %588 = vmatpush1.msra.mxu0 0.0
    %589 = vmatprep.subr.mxu0 0.0
    %590 = vmatpush1.msra.mxu0 0.0
    %591 = vmatprep.subr.mxu0 0.0
    %592 = vmatpush1.msra.mxu0 0.0
    %593 = vmatprep.subr.mxu0 0.0
    %594 = vmatpush1.msra.mxu0 0.0
    %595 = vmatprep.subr.mxu0 0.0
    %596 = vmatpush1.msra.mxu0 0.0
    %597 = vmatprep.subr.mxu0 0.0
    %598 = vmatpush1.msra.mxu0 0.0
    %599 = vmatprep.subr.mxu0 0.0
    %600 = vmatpush1.msra.mxu0 0.0
    %601 = vmatprep.subr.mxu0 0.0
    %602 = vmatpush1.msra.mxu0 0.0
    %603 = vmatprep.subr.mxu0 0.0
    %604 = vmatpush1.msra.mxu0 0.0
    %605 = vmatprep.subr.mxu0 0.0
    %606 = vmatpush1.msra.mxu0 0.0
    %607 = vmatprep.subr.mxu0 0.0
    %608 = vmatpush1.msra.mxu0 0.0
    %609 = vmatprep.subr.mxu0 0.0
    %610 = vmatpush1.msra.mxu0 0.0
    %611 = vmatprep.subr.mxu0 0.0
    %612 = vmatpush1.msra.mxu0 0.0
    %613 = vmatprep.mubr.f32.mxu0 0.0
    %614 = vmatmul.mubr.f32.gmra.mrb[0].mxu0 %v187
    %v615 = vpop.f32.mrb[0].mxu0
    %v616 = vadd.f32 %v172, %v615
    %v617 = vpop.f32.mrb[0].mxu0
    %v618 = vadd.f32 %v176, %v617
    %619 = vmatprep.mubr.f32.mxu0 0.0
    %620 = vmatmul.mubr.f32.gmra.mrb[0].mxu0 %v190
    %v621 = vpop.f32.mrb[0].mxu0
    %v622 = vadd.f32 %v172, %v621
    %v623 = vpop.f32.mrb[0].mxu0
    %v624 = vadd.f32 %v176, %v623
    %625 = vmatprep.mubr.f32.mxu0 0.0
    %626 = vmatmul.mubr.f32.gmra.mrb[0].mxu0 %v193
    %v627 = vpop.f32.mrb[0].mxu0
    %v628 = vadd.f32 %v172, %v627
    %v629 = vpop.f32.mrb[0].mxu0
    %v630 = vadd.f32 %v176, %v629
    %631 = vmatprep.mubr.f32.mxu0 0.0
    %632 = vmatmul.mubr.f32.gmra.mrb[0].mxu0 %v196
    %v633 = vpop.f32.mrb[0].mxu0
    %v634 = vadd.f32 %v172, %v633
    %v635 = vpop.f32.mrb[0].mxu0
    %v636 = vadd.f32 %v176, %v635
    %637 = vmatprep.mubr.f32.mxu0 0.0
    %638 = vmatmul.mubr.f32.gmra.mrb[0].mxu0 %v199
    %v639 = vpop.f32.mrb[0].mxu0
    %v640 = vadd.f32 %v172, %v639
    %v641 = vpop.f32.mrb[0].mxu0
    %v642 = vadd.f32 %v176, %v641
    %643 = vmatprep.mubr.f32.mxu0 0.0
    %644 = vmatmul.mubr.f32.gmra.mrb[0].mxu0 %v202
    %v645 = vpop.f32.mrb[0].mxu0
    %v646 = vadd.f32 %v172, %v645
    %v647 = vpop.f32.mrb[0].mxu0
    %v648 = vadd.f32 %v176, %v647
    %649 = vmatprep.mubr.f32.mxu0 0.0
    %650 = vmatmul.mubr.f32.gmra.mrb[0].mxu0 %v205
    %v651 = vpop.f32.mrb[0].mxu0
    %v652 = vadd.f32 %v172, %v651
    %v653 = vpop.f32.mrb[0].mxu0
    %v654 = vadd.f32 %v176, %v653
    %655 = vmatprep.mubr.f32.mxu0 0.0
    %656 = vmatmul.mubr.f32.gmra.mrb[0].mxu0 %v208
    %v657 = vpop.f32.mrb[0].mxu0
    %v658 = vadd.f32 %v172, %v657
    %v659 = vpop.f32.mrb[0].mxu0
    %v660 = vadd.f32 %v176, %v659
    %661 = vdwg.mxu0
    %662 = vst [vmem:[#allocation2] sm:$0xff] %v277
    %663 = vst [vmem:[#allocation2 + $0x8] sm:$0xff] %v279
    %664 = vst [vmem:[#allocation2 + $0x10] sm:$0xff] %v390
    %665 = vst [vmem:[#allocation2 + $0x18] sm:$0xff] %v392
    %666 = vst [vmem:[#allocation2 + $0x20] sm:$0xff] %v503
    %667 = vst [vmem:[#allocation2 + $0x28] sm:$0xff] %v505
    %668 = vst [vmem:[#allocation2 + $0x30] sm:$0xff] %v616
    %669 = vst [vmem:[#allocation2 + $0x38] sm:$0xff] %v618
    %670 = vst [vmem:[#allocation2 + $0x40] sm:$0xff] %v283
    %671 = vst [vmem:[#allocation2 + $0x48] sm:$0xff] %v285
    %672 = vst [vmem:[#allocation2 + $0x50] sm:$0xff] %v396
    %673 = vst [vmem:[#allocation2 + $0x58] sm:$0xff] %v398
    %674 = vst [vmem:[#allocation2 + $0x60] sm:$0xff] %v509
    %675 = vst [vmem:[#allocation2 + $0x68] sm:$0xff] %v511
    %676 = vst [vmem:[#allocation2 + $0x70] sm:$0xff] %v622
    %677 = vst [vmem:[#allocation2 + $0x78] sm:$0xff] %v624
    %678 = vst [vmem:[#allocation2 + $0x80] sm:$0xff] %v289
    %679 = vst [vmem:[#allocation2 + $0x88] sm:$0xff] %v291
    %680 = vst [vmem:[#allocation2 + $0x90] sm:$0xff] %v402
    %681 = vst [vmem:[#allocation2 + $0x98] sm:$0xff] %v404
    %682 = vst [vmem:[#allocation2 + $0xa0] sm:$0xff] %v515
    %683 = vst [vmem:[#allocation2 + $0xa8] sm:$0xff] %v517
    %684 = vst [vmem:[#allocation2 + $0xb0] sm:$0xff] %v628
    %685 = vst [vmem:[#allocation2 + $0xb8] sm:$0xff] %v630
    %686 = vst [vmem:[#allocation2 + $0xc0] sm:$0xff] %v295
    %687 = vst [vmem:[#allocation2 + $0xc8] sm:$0xff] %v297
    %688 = vst [vmem:[#allocation2 + $0xd0] sm:$0xff] %v408
    %689 = vst [vmem:[#allocation2 + $0xd8] sm:$0xff] %v410
    %690 = vst [vmem:[#allocation2 + $0xe0] sm:$0xff] %v521
    %691 = vst [vmem:[#allocation2 + $0xe8] sm:$0xff] %v523
    %692 = vst [vmem:[#allocation2 + $0xf0] sm:$0xff] %v634
    %693 = vst [vmem:[#allocation2 + $0xf8] sm:$0xff] %v636
    %694 = vst [vmem:[#allocation2 + $0x100] sm:$0xff] %v301
    %695 = vst [vmem:[#allocation2 + $0x108] sm:$0xff] %v303
    %696 = vst [vmem:[#allocation2 + $0x110] sm:$0xff] %v414
    %697 = vst [vmem:[#allocation2 + $0x118] sm:$0xff] %v416
    %698 = vst [vmem:[#allocation2 + $0x120] sm:$0xff] %v527
    %699 = vst [vmem:[#allocation2 + $0x128] sm:$0xff] %v529
    %700 = vst [vmem:[#allocation2 + $0x130] sm:$0xff] %v640
    %701 = vst [vmem:[#allocation2 + $0x138] sm:$0xff] %v642
    %702 = vst [vmem:[#allocation2 + $0x140] sm:$0xff] %v307
    %703 = vst [vmem:[#allocation2 + $0x148] sm:$0xff] %v309
    %704 = vst [vmem:[#allocation2 + $0x150] sm:$0xff] %v420
    %705 = vst [vmem:[#allocation2 + $0x158] sm:$0xff] %v422
    %706 = vst [vmem:[#allocation2 + $0x160] sm:$0xff] %v533
    %707 = vst [vmem:[#allocation2 + $0x168] sm:$0xff] %v535
    %708 = vst [vmem:[#allocation2 + $0x170] sm:$0xff] %v646
    %709 = vst [vmem:[#allocation2 + $0x178] sm:$0xff] %v648
    %710 = vst [vmem:[#allocation2 + $0x180] sm:$0xff] %v313
    %711 = vst [vmem:[#allocation2 + $0x188] sm:$0xff] %v315
    %712 = vst [vmem:[#allocation2 + $0x190] sm:$0xff] %v426
    %713 = vst [vmem:[#allocation2 + $0x198] sm:$0xff] %v428
    %714 = vst [vmem:[#allocation2 + $0x1a0] sm:$0xff] %v539
    %715 = vst [vmem:[#allocation2 + $0x1a8] sm:$0xff] %v541
    %716 = vst [vmem:[#allocation2 + $0x1b0] sm:$0xff] %v652
    %717 = vst [vmem:[#allocation2 + $0x1b8] sm:$0xff] %v654
    %718 = vst [vmem:[#allocation2 + $0x1c0] sm:$0xff] %v319
    %719 = vst [vmem:[#allocation2 + $0x1c8] sm:$0xff] %v321
    %720 = vst [vmem:[#allocation2 + $0x1d0] sm:$0xff] %v432
    %721 = vst [vmem:[#allocation2 + $0x1d8] sm:$0xff] %v434
    %722 = vst [vmem:[#allocation2 + $0x1e0] sm:$0xff] %v545
    %723 = vst [vmem:[#allocation2 + $0x1e8] sm:$0xff] %v547
    %724 = vst [vmem:[#allocation2 + $0x1f0] sm:$0xff] %v658
    %725 = vst [vmem:[#allocation2 + $0x1f8] sm:$0xff] %v660
    %v726 = vld [vmem:[#allocation2] sm:$0xff]
    %v727 = vld [vmem:[#allocation2 + $0x8] sm:$0xff]
    %v728 = vld [vmem:[#allocation2 + $0x10] sm:$0xff]
    %v729 = vld [vmem:[#allocation2 + $0x18] sm:$0xff]
    %v730 = vld [vmem:[#allocation2 + $0x20] sm:$0xff]
    %v731 = vld [vmem:[#allocation2 + $0x28] sm:$0xff]
    %v732 = vld [vmem:[#allocation2 + $0x30] sm:$0xff]
    %v733 = vld [vmem:[#allocation2 + $0x38] sm:$0xff]
    %v734 = vld [vmem:[#allocation4] sm:$0xff]
    %v735 = vld [vmem:[#allocation4 + $0x8] sm:$0xff]
    %v736 = vld [vmem:[#allocation4 + $0x10] sm:$0xff]
    %v737 = vld [vmem:[#allocation4 + $0x18] sm:$0xff]
    %v738 = vld [vmem:[#allocation4 + $0x20] sm:$0xff]
    %v739 = vld [vmem:[#allocation4 + $0x28] sm:$0xff]
    %v740 = vld [vmem:[#allocation4 + $0x30] sm:$0xff]
    %v741 = vld [vmem:[#allocation4 + $0x38] sm:$0xff]
    %v742 = vld [vmem:[#allocation4 + $0x40] sm:$0xff]
    %v743 = vld [vmem:[#allocation4 + $0x48] sm:$0xff]
    %v744 = vld [vmem:[#allocation4 + $0x50] sm:$0xff]
    %v745 = vld [vmem:[#allocation4 + $0x58] sm:$0xff]
    %v746 = vld [vmem:[#allocation4 + $0x60] sm:$0xff]
    %v747 = vld [vmem:[#allocation4 + $0x68] sm:$0xff]
    %v748 = vld [vmem:[#allocation4 + $0x70] sm:$0xff]
    %v749 = vld [vmem:[#allocation4 + $0x78] sm:$0xff]
    %v750 = vld [vmem:[#allocation4 + $0x80] sm:$0xff]
    %v751 = vld [vmem:[#allocation4 + $0x88] sm:$0xff]
    %v752 = vld [vmem:[#allocation4 + $0x90] sm:$0xff]
    %v753 = vld [vmem:[#allocation4 + $0x98] sm:$0xff]
    %v754 = vld [vmem:[#allocation4 + $0xa0] sm:$0xff]
    %v755 = vld [vmem:[#allocation4 + $0xa8] sm:$0xff]
    %v756 = vld [vmem:[#allocation4 + $0xb0] sm:$0xff]
    %v757 = vld [vmem:[#allocation4 + $0xb8] sm:$0xff]
    %v758 = vld [vmem:[#allocation4 + $0xc0] sm:$0xff]
    %v759 = vld [vmem:[#allocation4 + $0xc8] sm:$0xff]
    %v760 = vld [vmem:[#allocation4 + $0xd0] sm:$0xff]
    %v761 = vld [vmem:[#allocation4 + $0xd8] sm:$0xff]
    %v762 = vld [vmem:[#allocation4 + $0xe0] sm:$0xff]
    %v763 = vld [vmem:[#allocation4 + $0xe8] sm:$0xff]
    %v764 = vld [vmem:[#allocation4 + $0xf0] sm:$0xff]
    %v765 = vld [vmem:[#allocation4 + $0xf8] sm:$0xff]
    %v766 = vld [vmem:[#allocation4 + $0x100] sm:$0xff]
    %v767 = vld [vmem:[#allocation4 + $0x108] sm:$0xff]
    %v768 = vld [vmem:[#allocation4 + $0x110] sm:$0xff]
    %v769 = vld [vmem:[#allocation4 + $0x118] sm:$0xff]
    %v770 = vld [vmem:[#allocation4 + $0x120] sm:$0xff]
    %v771 = vld [vmem:[#allocation4 + $0x128] sm:$0xff]
    %v772 = vld [vmem:[#allocation4 + $0x130] sm:$0xff]
    %v773 = vld [vmem:[#allocation4 + $0x138] sm:$0xff]
    %v774 = vld [vmem:[#allocation4 + $0x140] sm:$0xff]
    %v775 = vld [vmem:[#allocation4 + $0x148] sm:$0xff]
    %v776 = vld [vmem:[#allocation4 + $0x150] sm:$0xff]
    %v777 = vld [vmem:[#allocation4 + $0x158] sm:$0xff]
    %v778 = vld [vmem:[#allocation4 + $0x160] sm:$0xff]
    %v779 = vld [vmem:[#allocation4 + $0x168] sm:$0xff]
    %v780 = vld [vmem:[#allocation4 + $0x170] sm:$0xff]
    %v781 = vld [vmem:[#allocation4 + $0x178] sm:$0xff]
    %v782 = vld [vmem:[#allocation4 + $0x180] sm:$0xff]
    %v783 = vld [vmem:[#allocation4 + $0x188] sm:$0xff]
    %v784 = vld [vmem:[#allocation4 + $0x190] sm:$0xff]
    %v785 = vld [vmem:[#allocation4 + $0x198] sm:$0xff]
    %v786 = vld [vmem:[#allocation4 + $0x1a0] sm:$0xff]
    %v787 = vld [vmem:[#allocation4 + $0x1a8] sm:$0xff]
    %v788 = vld [vmem:[#allocation4 + $0x1b0] sm:$0xff]
    %v789 = vld [vmem:[#allocation4 + $0x1b8] sm:$0xff]
    %v790 = vld [vmem:[#allocation4 + $0x1c0] sm:$0xff]
    %v791 = vld [vmem:[#allocation4 + $0x1c8] sm:$0xff]
    %v792 = vld [vmem:[#allocation4 + $0x1d0] sm:$0xff]
    %v793 = vld [vmem:[#allocation4 + $0x1d8] sm:$0xff]
    %v794 = vld [vmem:[#allocation4 + $0x1e0] sm:$0xff]
    %v795 = vld [vmem:[#allocation4 + $0x1e8] sm:$0xff]
    %v796 = vld [vmem:[#allocation4 + $0x1f0] sm:$0xff]
    %v797 = vld [vmem:[#allocation4 + $0x1f8] sm:$0xff]
    %v798 = vld [vmem:[#allocation4 + $0x200] sm:$0xff]
    %v799 = vld [vmem:[#allocation4 + $0x208] sm:$0xff]
    %v800 = vld [vmem:[#allocation4 + $0x210] sm:$0xff]
    %v801 = vld [vmem:[#allocation4 + $0x218] sm:$0xff]
    %v802 = vld [vmem:[#allocation4 + $0x220] sm:$0xff]
    %v803 = vld [vmem:[#allocation4 + $0x228] sm:$0xff]
    %v804 = vld [vmem:[#allocation4 + $0x230] sm:$0xff]
    %v805 = vld [vmem:[#allocation4 + $0x238] sm:$0xff]
    %v806 = vld [vmem:[#allocation4 + $0x240] sm:$0xff]
    %v807 = vld [vmem:[#allocation4 + $0x248] sm:$0xff]
    %v808 = vld [vmem:[#allocation4 + $0x250] sm:$0xff]
    %v809 = vld [vmem:[#allocation4 + $0x258] sm:$0xff]
    %v810 = vld [vmem:[#allocation4 + $0x260] sm:$0xff]
    %v811 = vld [vmem:[#allocation4 + $0x268] sm:$0xff]
    %v812 = vld [vmem:[#allocation4 + $0x270] sm:$0xff]
    %v813 = vld [vmem:[#allocation4 + $0x278] sm:$0xff]
    %v814 = vld [vmem:[#allocation4 + $0x280] sm:$0xff]
    %v815 = vld [vmem:[#allocation4 + $0x288] sm:$0xff]
    %v816 = vld [vmem:[#allocation4 + $0x290] sm:$0xff]
    %v817 = vld [vmem:[#allocation4 + $0x298] sm:$0xff]
    %v818 = vld [vmem:[#allocation4 + $0x2a0] sm:$0xff]
    %v819 = vld [vmem:[#allocation4 + $0x2a8] sm:$0xff]
    %v820 = vld [vmem:[#allocation4 + $0x2b0] sm:$0xff]
    %v821 = vld [vmem:[#allocation4 + $0x2b8] sm:$0xff]
    %v822 = vld [vmem:[#allocation4 + $0x2c0] sm:$0xff]
    %v823 = vld [vmem:[#allocation4 + $0x2c8] sm:$0xff]
    %v824 = vld [vmem:[#allocation4 + $0x2d0] sm:$0xff]
    %v825 = vld [vmem:[#allocation4 + $0x2d8] sm:$0xff]
    %v826 = vld [vmem:[#allocation4 + $0x2e0] sm:$0xff]
    %v827 = vld [vmem:[#allocation4 + $0x2e8] sm:$0xff]
    %v828 = vld [vmem:[#allocation4 + $0x2f0] sm:$0xff]
    %v829 = vld [vmem:[#allocation4 + $0x2f8] sm:$0xff]
    %v830 = vld [vmem:[#allocation4 + $0x300] sm:$0xff]
    %v831 = vld [vmem:[#allocation4 + $0x308] sm:$0xff]
    %v832 = vld [vmem:[#allocation4 + $0x310] sm:$0xff]
    %v833 = vld [vmem:[#allocation4 + $0x318] sm:$0xff]
    %v834 = vld [vmem:[#allocation4 + $0x320] sm:$0xff]
    %v835 = vld [vmem:[#allocation4 + $0x328] sm:$0xff]
    %v836 = vld [vmem:[#allocation4 + $0x330] sm:$0xff]
    %v837 = vld [vmem:[#allocation4 + $0x338] sm:$0xff]
    %v838 = vld [vmem:[#allocation4 + $0x340] sm:$0xff]
    %v839 = vld [vmem:[#allocation4 + $0x348] sm:$0xff]
    %v840 = vld [vmem:[#allocation4 + $0x350] sm:$0xff]
    %v841 = vld [vmem:[#allocation4 + $0x358] sm:$0xff]
    %v842 = vld [vmem:[#allocation4 + $0x360] sm:$0xff]
    %v843 = vld [vmem:[#allocation4 + $0x368] sm:$0xff]
    %v844 = vld [vmem:[#allocation4 + $0x370] sm:$0xff]
    %v845 = vld [vmem:[#allocation4 + $0x378] sm:$0xff]
    %v846 = vld [vmem:[#allocation4 + $0x380] sm:$0xff]
    %v847 = vld [vmem:[#allocation4 + $0x388] sm:$0xff]
    %v848 = vld [vmem:[#allocation4 + $0x390] sm:$0xff]
    %v849 = vld [vmem:[#allocation4 + $0x398] sm:$0xff]
    %v850 = vld [vmem:[#allocation4 + $0x3a0] sm:$0xff]
    %v851 = vld [vmem:[#allocation4 + $0x3a8] sm:$0xff]
    %v852 = vld [vmem:[#allocation4 + $0x3b0] sm:$0xff]
    %v853 = vld [vmem:[#allocation4 + $0x3b8] sm:$0xff]
    %v854 = vld [vmem:[#allocation4 + $0x3c0] sm:$0xff]
    %v855 = vld [vmem:[#allocation4 + $0x3c8] sm:$0xff]
    %v856 = vld [vmem:[#allocation4 + $0x3d0] sm:$0xff]
    %v857 = vld [vmem:[#allocation4 + $0x3d8] sm:$0xff]
    %v858 = vld [vmem:[#allocation4 + $0x3e0] sm:$0xff]
    %v859 = vld [vmem:[#allocation4 + $0x3e8] sm:$0xff]
    %v860 = vld [vmem:[#allocation4 + $0x3f0] sm:$0xff]
    %v861 = vld [vmem:[#allocation4 + $0x3f8] sm:$0xff]
    %v862 = vld [vmem:[#allocation4 + $0x400] sm:$0xff]
    %v863 = vld [vmem:[#allocation4 + $0x408] sm:$0xff]
    %v864 = vld [vmem:[#allocation4 + $0x410] sm:$0xff]
    %v865 = vld [vmem:[#allocation4 + $0x418] sm:$0xff]
    %v866 = vld [vmem:[#allocation4 + $0x420] sm:$0xff]
    %v867 = vld [vmem:[#allocation4 + $0x428] sm:$0xff]
    %v868 = vld [vmem:[#allocation4 + $0x430] sm:$0xff]
    %v869 = vld [vmem:[#allocation4 + $0x438] sm:$0xff]
    %v870 = vld [vmem:[#allocation4 + $0x440] sm:$0xff]
    %v871 = vld [vmem:[#allocation4 + $0x448] sm:$0xff]
    %v872 = vld [vmem:[#allocation4 + $0x450] sm:$0xff]
    %v873 = vld [vmem:[#allocation4 + $0x458] sm:$0xff]
    %v874 = vld [vmem:[#allocation4 + $0x460] sm:$0xff]
    %v875 = vld [vmem:[#allocation4 + $0x468] sm:$0xff]
    %v876 = vld [vmem:[#allocation4 + $0x470] sm:$0xff]
    %v877 = vld [vmem:[#allocation4 + $0x478] sm:$0xff]
    %v878 = vld [vmem:[#allocation4 + $0x480] sm:$0xff]
    %v879 = vld [vmem:[#allocation4 + $0x488] sm:$0xff]
    %v880 = vld [vmem:[#allocation4 + $0x490] sm:$0xff]
    %v881 = vld [vmem:[#allocation4 + $0x498] sm:$0xff]
    %v882 = vld [vmem:[#allocation4 + $0x4a0] sm:$0xff]
    %v883 = vld [vmem:[#allocation4 + $0x4a8] sm:$0xff]
    %v884 = vld [vmem:[#allocation4 + $0x4b0] sm:$0xff]
    %v885 = vld [vmem:[#allocation4 + $0x4b8] sm:$0xff]
    %v886 = vld [vmem:[#allocation4 + $0x4c0] sm:$0xff]
    %v887 = vld [vmem:[#allocation4 + $0x4c8] sm:$0xff]
    %v888 = vld [vmem:[#allocation4 + $0x4d0] sm:$0xff]
    %v889 = vld [vmem:[#allocation4 + $0x4d8] sm:$0xff]
    %v890 = vld [vmem:[#allocation4 + $0x4e0] sm:$0xff]
    %v891 = vld [vmem:[#allocation4 + $0x4e8] sm:$0xff]
    %v892 = vld [vmem:[#allocation4 + $0x4f0] sm:$0xff]
    %v893 = vld [vmem:[#allocation4 + $0x4f8] sm:$0xff]
    %v894 = vld [vmem:[#allocation4 + $0x500] sm:$0xff]
    %v895 = vld [vmem:[#allocation4 + $0x508] sm:$0xff]
    %v896 = vld [vmem:[#allocation4 + $0x510] sm:$0xff]
    %v897 = vld [vmem:[#allocation4 + $0x518] sm:$0xff]
    %v898 = vld [vmem:[#allocation4 + $0x520] sm:$0xff]
    %v899 = vld [vmem:[#allocation4 + $0x528] sm:$0xff]
    %v900 = vld [vmem:[#allocation4 + $0x530] sm:$0xff]
    %v901 = vld [vmem:[#allocation4 + $0x538] sm:$0xff]
    %v902 = vld [vmem:[#allocation4 + $0x540] sm:$0xff]
    %v903 = vld [vmem:[#allocation4 + $0x548] sm:$0xff]
    %v904 = vld [vmem:[#allocation4 + $0x550] sm:$0xff]
    %v905 = vld [vmem:[#allocation4 + $0x558] sm:$0xff]
    %v906 = vld [vmem:[#allocation4 + $0x560] sm:$0xff]
    %v907 = vld [vmem:[#allocation4 + $0x568] sm:$0xff]
    %v908 = vld [vmem:[#allocation4 + $0x570] sm:$0xff]
    %v909 = vld [vmem:[#allocation4 + $0x578] sm:$0xff]
    %v910 = vld [vmem:[#allocation4 + $0x580] sm:$0xff]
    %v911 = vld [vmem:[#allocation4 + $0x588] sm:$0xff]
    %v912 = vld [vmem:[#allocation4 + $0x590] sm:$0xff]
    %v913 = vld [vmem:[#allocation4 + $0x598] sm:$0xff]
    %v914 = vld [vmem:[#allocation4 + $0x5a0] sm:$0xff]
    %v915 = vld [vmem:[#allocation4 + $0x5a8] sm:$0xff]
    %v916 = vld [vmem:[#allocation4 + $0x5b0] sm:$0xff]
    %v917 = vld [vmem:[#allocation4 + $0x5b8] sm:$0xff]
    %v918 = vld [vmem:[#allocation4 + $0x5c0] sm:$0xff]
    %v919 = vld [vmem:[#allocation4 + $0x5c8] sm:$0xff]
    %v920 = vld [vmem:[#allocation4 + $0x5d0] sm:$0xff]
    %v921 = vld [vmem:[#allocation4 + $0x5d8] sm:$0xff]
    %v922 = vld [vmem:[#allocation4 + $0x5e0] sm:$0xff]
    %v923 = vld [vmem:[#allocation4 + $0x5e8] sm:$0xff]
    %v924 = vld [vmem:[#allocation4 + $0x5f0] sm:$0xff]
    %v925 = vld [vmem:[#allocation4 + $0x5f8] sm:$0xff]
    %v926 = vld [vmem:[#allocation4 + $0x600] sm:$0xff]
    %v927 = vld [vmem:[#allocation4 + $0x608] sm:$0xff]
    %v928 = vld [vmem:[#allocation4 + $0x610] sm:$0xff]
    %v929 = vld [vmem:[#allocation4 + $0x618] sm:$0xff]
    %v930 = vld [vmem:[#allocation4 + $0x620] sm:$0xff]
    %v931 = vld [vmem:[#allocation4 + $0x628] sm:$0xff]
    %v932 = vld [vmem:[#allocation4 + $0x630] sm:$0xff]
    %v933 = vld [vmem:[#allocation4 + $0x638] sm:$0xff]
    %v934 = vld [vmem:[#allocation4 + $0x640] sm:$0xff]
    %v935 = vld [vmem:[#allocation4 + $0x648] sm:$0xff]
    %v936 = vld [vmem:[#allocation4 + $0x650] sm:$0xff]
    %v937 = vld [vmem:[#allocation4 + $0x658] sm:$0xff]
    %v938 = vld [vmem:[#allocation4 + $0x660] sm:$0xff]
    %v939 = vld [vmem:[#allocation4 + $0x668] sm:$0xff]
    %v940 = vld [vmem:[#allocation4 + $0x670] sm:$0xff]
    %v941 = vld [vmem:[#allocation4 + $0x678] sm:$0xff]
    %v942 = vld [vmem:[#allocation4 + $0x680] sm:$0xff]
    %v943 = vld [vmem:[#allocation4 + $0x688] sm:$0xff]
    %v944 = vld [vmem:[#allocation4 + $0x690] sm:$0xff]
    %v945 = vld [vmem:[#allocation4 + $0x698] sm:$0xff]
    %v946 = vld [vmem:[#allocation4 + $0x6a0] sm:$0xff]
    %v947 = vld [vmem:[#allocation4 + $0x6a8] sm:$0xff]
    %v948 = vld [vmem:[#allocation4 + $0x6b0] sm:$0xff]
    %v949 = vld [vmem:[#allocation4 + $0x6b8] sm:$0xff]
    %v950 = vld [vmem:[#allocation4 + $0x6c0] sm:$0xff]
    %v951 = vld [vmem:[#allocation4 + $0x6c8] sm:$0xff]
    %v952 = vld [vmem:[#allocation4 + $0x6d0] sm:$0xff]
    %v953 = vld [vmem:[#allocation4 + $0x6d8] sm:$0xff]
    %v954 = vld [vmem:[#allocation4 + $0x6e0] sm:$0xff]
    %v955 = vld [vmem:[#allocation4 + $0x6e8] sm:$0xff]
    %v956 = vld [vmem:[#allocation4 + $0x6f0] sm:$0xff]
    %v957 = vld [vmem:[#allocation4 + $0x6f8] sm:$0xff]
    %v958 = vld [vmem:[#allocation4 + $0x700] sm:$0xff]
    %v959 = vld [vmem:[#allocation4 + $0x708] sm:$0xff]
    %v960 = vld [vmem:[#allocation4 + $0x710] sm:$0xff]
    %v961 = vld [vmem:[#allocation4 + $0x718] sm:$0xff]
    %v962 = vld [vmem:[#allocation4 + $0x720] sm:$0xff]
    %v963 = vld [vmem:[#allocation4 + $0x728] sm:$0xff]
    %v964 = vld [vmem:[#allocation4 + $0x730] sm:$0xff]
    %v965 = vld [vmem:[#allocation4 + $0x738] sm:$0xff]
    %v966 = vld [vmem:[#allocation4 + $0x740] sm:$0xff]
    %v967 = vld [vmem:[#allocation4 + $0x748] sm:$0xff]
    %v968 = vld [vmem:[#allocation4 + $0x750] sm:$0xff]
    %v969 = vld [vmem:[#allocation4 + $0x758] sm:$0xff]
    %v970 = vld [vmem:[#allocation4 + $0x760] sm:$0xff]
    %v971 = vld [vmem:[#allocation4 + $0x768] sm:$0xff]
    %v972 = vld [vmem:[#allocation4 + $0x770] sm:$0xff]
    %v973 = vld [vmem:[#allocation4 + $0x778] sm:$0xff]
    %v974 = vld [vmem:[#allocation4 + $0x780] sm:$0xff]
    %v975 = vld [vmem:[#allocation4 + $0x788] sm:$0xff]
    %v976 = vld [vmem:[#allocation4 + $0x790] sm:$0xff]
    %v977 = vld [vmem:[#allocation4 + $0x798] sm:$0xff]
    %v978 = vld [vmem:[#allocation4 + $0x7a0] sm:$0xff]
    %v979 = vld [vmem:[#allocation4 + $0x7a8] sm:$0xff]
    %v980 = vld [vmem:[#allocation4 + $0x7b0] sm:$0xff]
    %v981 = vld [vmem:[#allocation4 + $0x7b8] sm:$0xff]
    %v982 = vld [vmem:[#allocation4 + $0x7c0] sm:$0xff]
    %v983 = vld [vmem:[#allocation4 + $0x7c8] sm:$0xff]
    %v984 = vld [vmem:[#allocation4 + $0x7d0] sm:$0xff]
    %v985 = vld [vmem:[#allocation4 + $0x7d8] sm:$0xff]
    %v986 = vld [vmem:[#allocation4 + $0x7e0] sm:$0xff]
    %v987 = vld [vmem:[#allocation4 + $0x7e8] sm:$0xff]
    %v988 = vld [vmem:[#allocation4 + $0x7f0] sm:$0xff]
    %v989 = vld [vmem:[#allocation4 + $0x7f8] sm:$0xff]
    %990 = vmatprep.subr.mxu0 %v735
    %991 = vmatpush1.msra.mxu0 %v734
    %992 = vmatprep.subr.mxu0 %v743
    %993 = vmatpush1.msra.mxu0 %v742
    %994 = vmatprep.subr.mxu0 %v751
    %995 = vmatpush1.msra.mxu0 %v750
    %996 = vmatprep.subr.mxu0 %v759
    %997 = vmatpush1.msra.mxu0 %v758
    %998 = vmatprep.subr.mxu0 %v767
    %999 = vmatpush1.msra.mxu0 %v766
    %1000 = vmatprep.subr.mxu0 %v775
    %1001 = vmatpush1.msra.mxu0 %v774
    %1002 = vmatprep.subr.mxu0 %v783
    %1003 = vmatpush1.msra.mxu0 %v782
    %1004 = vmatprep.subr.mxu0 %v791
    %1005 = vmatpush1.msra.mxu0 %v790
    %1006 = vmatprep.subr.mxu0 %v799
    %1007 = vmatpush1.msra.mxu0 %v798
    %1008 = vmatprep.subr.mxu0 %v807
    %1009 = vmatpush1.msra.mxu0 %v806
    %1010 = vmatprep.subr.mxu0 %v815
    %1011 = vmatpush1.msra.mxu0 %v814
    %1012 = vmatprep.subr.mxu0 %v823
    %1013 = vmatpush1.msra.mxu0 %v822
    %1014 = vmatprep.subr.mxu0 %v831
    %1015 = vmatpush1.msra.mxu0 %v830
    %1016 = vmatprep.subr.mxu0 %v839
    %1017 = vmatpush1.msra.mxu0 %v838
    %1018 = vmatprep.subr.mxu0 %v847
    %1019 = vmatpush1.msra.mxu0 %v846
    %1020 = vmatprep.subr.mxu0 %v855
    %1021 = vmatpush1.msra.mxu0 %v854
    %1022 = vmatprep.subr.mxu0 %v863
    %1023 = vmatpush1.msra.mxu0 %v862
    %1024 = vmatprep.subr.mxu0 %v871
    %1025 = vmatpush1.msra.mxu0 %v870
    %1026 = vmatprep.subr.mxu0 %v879
    %1027 = vmatpush1.msra.mxu0 %v878
    %1028 = vmatprep.subr.mxu0 %v887
    %1029 = vmatpush1.msra.mxu0 %v886
    %1030 = vmatprep.subr.mxu0 %v895
    %1031 = vmatpush1.msra.mxu0 %v894
    %1032 = vmatprep.subr.mxu0 %v903
    %1033 = vmatpush1.msra.mxu0 %v902
    %1034 = vmatprep.subr.mxu0 %v911
    %1035 = vmatpush1.msra.mxu0 %v910
    %1036 = vmatprep.subr.mxu0 %v919
    %1037 = vmatpush1.msra.mxu0 %v918
    %1038 = vmatprep.subr.mxu0 %v927
    %1039 = vmatpush1.msra.mxu0 %v926
    %1040 = vmatprep.subr.mxu0 %v935
    %1041 = vmatpush1.msra.mxu0 %v934
    %1042 = vmatprep.subr.mxu0 %v943
    %1043 = vmatpush1.msra.mxu0 %v942
    %1044 = vmatprep.subr.mxu0 %v951
    %1045 = vmatpush1.msra.mxu0 %v950
    %1046 = vmatprep.subr.mxu0 %v959
    %1047 = vmatpush1.msra.mxu0 %v958
    %1048 = vmatprep.subr.mxu0 %v967
    %1049 = vmatpush1.msra.mxu0 %v966
    %1050 = vmatprep.subr.mxu0 %v975
    %1051 = vmatpush1.msra.mxu0 %v974
    %1052 = vmatprep.subr.mxu0 %v983
    %1053 = vmatpush1.msra.mxu0 %v982
    %1054 = vmatprep.mubr.f32.mxu0 0.0
    %1055 = vmatmul.mubr.f32.gmra.mrb[0].mxu0 0.0
    %v1056 = vpop.f32.mrb[0].mxu0
    %v1057 = vadd.f32 0.0, %v1056
    %v1058 = vpop.f32.mrb[0].mxu0
    %v1059 = vadd.f32 0.0, %v1058
    %1060 = vdwg.mxu0
    %1061 = vmatprep.subr.mxu0 %v737
    %1062 = vmatpush1.msra.mxu0 %v736
    %1063 = vmatprep.subr.mxu0 %v745
    %1064 = vmatpush1.msra.mxu0 %v744
    %1065 = vmatprep.subr.mxu0 %v753
    %1066 = vmatpush1.msra.mxu0 %v752
    %1067 = vmatprep.subr.mxu0 %v761
    %1068 = vmatpush1.msra.mxu0 %v760
    %1069 = vmatprep.subr.mxu0 %v769
    %1070 = vmatpush1.msra.mxu0 %v768
    %1071 = vmatprep.subr.mxu0 %v777
    %1072 = vmatpush1.msra.mxu0 %v776
    %1073 = vmatprep.subr.mxu0 %v785
    %1074 = vmatpush1.msra.mxu0 %v784
    %1075 = vmatprep.subr.mxu0 %v793
    %1076 = vmatpush1.msra.mxu0 %v792
    %1077 = vmatprep.subr.mxu0 %v801
    %1078 = vmatpush1.msra.mxu0 %v800
    %1079 = vmatprep.subr.mxu0 %v809
    %1080 = vmatpush1.msra.mxu0 %v808
    %1081 = vmatprep.subr.mxu0 %v817
    %1082 = vmatpush1.msra.mxu0 %v816
    %1083 = vmatprep.subr.mxu0 %v825
    %1084 = vmatpush1.msra.mxu0 %v824
    %1085 = vmatprep.subr.mxu0 %v833
    %1086 = vmatpush1.msra.mxu0 %v832
    %1087 = vmatprep.subr.mxu0 %v841
    %1088 = vmatpush1.msra.mxu0 %v840
    %1089 = vmatprep.subr.mxu0 %v849
    %1090 = vmatpush1.msra.mxu0 %v848
    %1091 = vmatprep.subr.mxu0 %v857
    %1092 = vmatpush1.msra.mxu0 %v856
    %1093 = vmatprep.subr.mxu0 %v865
    %1094 = vmatpush1.msra.mxu0 %v864
    %1095 = vmatprep.subr.mxu0 %v873
    %1096 = vmatpush1.msra.mxu0 %v872
    %1097 = vmatprep.subr.mxu0 %v881
    %1098 = vmatpush1.msra.mxu0 %v880
    %1099 = vmatprep.subr.mxu0 %v889
    %1100 = vmatpush1.msra.mxu0 %v888
    %1101 = vmatprep.subr.mxu0 %v897
    %1102 = vmatpush1.msra.mxu0 %v896
    %1103 = vmatprep.subr.mxu0 %v905
    %1104 = vmatpush1.msra.mxu0 %v904
    %1105 = vmatprep.subr.mxu0 %v913
    %1106 = vmatpush1.msra.mxu0 %v912
    %1107 = vmatprep.subr.mxu0 %v921
    %1108 = vmatpush1.msra.mxu0 %v920
    %1109 = vmatprep.subr.mxu0 %v929
    %1110 = vmatpush1.msra.mxu0 %v928
    %1111 = vmatprep.subr.mxu0 %v937
    %1112 = vmatpush1.msra.mxu0 %v936
    %1113 = vmatprep.subr.mxu0 %v945
    %1114 = vmatpush1.msra.mxu0 %v944
    %1115 = vmatprep.subr.mxu0 %v953
    %1116 = vmatpush1.msra.mxu0 %v952
    %1117 = vmatprep.subr.mxu0 %v961
    %1118 = vmatpush1.msra.mxu0 %v960
    %1119 = vmatprep.subr.mxu0 %v969
    %1120 = vmatpush1.msra.mxu0 %v968
    %1121 = vmatprep.subr.mxu0 %v977
    %1122 = vmatpush1.msra.mxu0 %v976
    %1123 = vmatprep.subr.mxu0 %v985
    %1124 = vmatpush1.msra.mxu0 %v984
    %1125 = vmatprep.mubr.f32.mxu0 0.0
    %1126 = vmatmul.mubr.f32.gmra.mrb[0].mxu0 0.0
    %v1127 = vpop.f32.mrb[0].mxu0
    %v1128 = vadd.f32 0.0, %v1127
    %v1129 = vpop.f32.mrb[0].mxu0
    %v1130 = vadd.f32 0.0, %v1129
    %1131 = vdwg.mxu0
    %1132 = vmatprep.subr.mxu0 %v739
    %1133 = vmatpush1.msra.mxu0 %v738
    %1134 = vmatprep.subr.mxu0 %v747
    %1135 = vmatpush1.msra.mxu0 %v746
    %1136 = vmatprep.subr.mxu0 %v755
    %1137 = vmatpush1.msra.mxu0 %v754
    %1138 = vmatprep.subr.mxu0 %v763
    %1139 = vmatpush1.msra.mxu0 %v762
    %1140 = vmatprep.subr.mxu0 %v771
    %1141 = vmatpush1.msra.mxu0 %v770
    %1142 = vmatprep.subr.mxu0 %v779
    %1143 = vmatpush1.msra.mxu0 %v778
    %1144 = vmatprep.subr.mxu0 %v787
    %1145 = vmatpush1.msra.mxu0 %v786
    %1146 = vmatprep.subr.mxu0 %v795
    %1147 = vmatpush1.msra.mxu0 %v794
    %1148 = vmatprep.subr.mxu0 %v803
    %1149 = vmatpush1.msra.mxu0 %v802
    %1150 = vmatprep.subr.mxu0 %v811
    %1151 = vmatpush1.msra.mxu0 %v810
    %1152 = vmatprep.subr.mxu0 %v819
    %1153 = vmatpush1.msra.mxu0 %v818
    %1154 = vmatprep.subr.mxu0 %v827
    %1155 = vmatpush1.msra.mxu0 %v826
    %1156 = vmatprep.subr.mxu0 %v835
    %1157 = vmatpush1.msra.mxu0 %v834
    %1158 = vmatprep.subr.mxu0 %v843
    %1159 = vmatpush1.msra.mxu0 %v842
    %1160 = vmatprep.subr.mxu0 %v851
    %1161 = vmatpush1.msra.mxu0 %v850
    %1162 = vmatprep.subr.mxu0 %v859
    %1163 = vmatpush1.msra.mxu0 %v858
    %1164 = vmatprep.subr.mxu0 %v867
    %1165 = vmatpush1.msra.mxu0 %v866
    %1166 = vmatprep.subr.mxu0 %v875
    %1167 = vmatpush1.msra.mxu0 %v874
    %1168 = vmatprep.subr.mxu0 %v883
    %1169 = vmatpush1.msra.mxu0 %v882
    %1170 = vmatprep.subr.mxu0 %v891
    %1171 = vmatpush1.msra.mxu0 %v890
    %1172 = vmatprep.subr.mxu0 %v899
    %1173 = vmatpush1.msra.mxu0 %v898
    %1174 = vmatprep.subr.mxu0 %v907
    %1175 = vmatpush1.msra.mxu0 %v906
    %1176 = vmatprep.subr.mxu0 %v915
    %1177 = vmatpush1.msra.mxu0 %v914
    %1178 = vmatprep.subr.mxu0 %v923
    %1179 = vmatpush1.msra.mxu0 %v922
    %1180 = vmatprep.subr.mxu0 %v931
    %1181 = vmatpush1.msra.mxu0 %v930
    %1182 = vmatprep.subr.mxu0 %v939
    %1183 = vmatpush1.msra.mxu0 %v938
    %1184 = vmatprep.subr.mxu0 %v947
    %1185 = vmatpush1.msra.mxu0 %v946
    %1186 = vmatprep.subr.mxu0 %v955
    %1187 = vmatpush1.msra.mxu0 %v954
    %1188 = vmatprep.subr.mxu0 %v963
    %1189 = vmatpush1.msra.mxu0 %v962
    %1190 = vmatprep.subr.mxu0 %v971
    %1191 = vmatpush1.msra.mxu0 %v970
    %1192 = vmatprep.subr.mxu0 %v979
    %1193 = vmatpush1.msra.mxu0 %v978
    %1194 = vmatprep.subr.mxu0 %v987
    %1195 = vmatpush1.msra.mxu0 %v986
    %1196 = vmatprep.mubr.f32.mxu0 0.0
    %1197 = vmatmul.mubr.f32.gmra.mrb[0].mxu0 0.0
    %v1198 = vpop.f32.mrb[0].mxu0
    %v1199 = vadd.f32 0.0, %v1198
    %v1200 = vpop.f32.mrb[0].mxu0
    %v1201 = vadd.f32 0.0, %v1200
    %1202 = vdwg.mxu0
    %1203 = vmatprep.subr.mxu0 %v741
    %1204 = vmatpush1.msra.mxu0 %v740
    %1205 = vmatprep.subr.mxu0 %v749
    %1206 = vmatpush1.msra.mxu0 %v748
    %1207 = vmatprep.subr.mxu0 %v757
    %1208 = vmatpush1.msra.mxu0 %v756
    %1209 = vmatprep.subr.mxu0 %v765
    %1210 = vmatpush1.msra.mxu0 %v764
    %1211 = vmatprep.subr.mxu0 %v773
    %1212 = vmatpush1.msra.mxu0 %v772
    %1213 = vmatprep.subr.mxu0 %v781
    %1214 = vmatpush1.msra.mxu0 %v780
    %1215 = vmatprep.subr.mxu0 %v789
    %1216 = vmatpush1.msra.mxu0 %v788
    %1217 = vmatprep.subr.mxu0 %v797
    %1218 = vmatpush1.msra.mxu0 %v796
    %1219 = vmatprep.subr.mxu0 %v805
    %1220 = vmatpush1.msra.mxu0 %v804
    %1221 = vmatprep.subr.mxu0 %v813
    %1222 = vmatpush1.msra.mxu0 %v812
    %1223 = vmatprep.subr.mxu0 %v821
    %1224 = vmatpush1.msra.mxu0 %v820
    %1225 = vmatprep.subr.mxu0 %v829
    %1226 = vmatpush1.msra.mxu0 %v828
    %1227 = vmatprep.subr.mxu0 %v837
    %1228 = vmatpush1.msra.mxu0 %v836
    %1229 = vmatprep.subr.mxu0 %v845
    %1230 = vmatpush1.msra.mxu0 %v844
    %1231 = vmatprep.subr.mxu0 %v853
    %1232 = vmatpush1.msra.mxu0 %v852
    %1233 = vmatprep.subr.mxu0 %v861
    %1234 = vmatpush1.msra.mxu0 %v860
    %1235 = vmatprep.subr.mxu0 %v869
    %1236 = vmatpush1.msra.mxu0 %v868
    %1237 = vmatprep.subr.mxu0 %v877
    %1238 = vmatpush1.msra.mxu0 %v876
    %1239 = vmatprep.subr.mxu0 %v885
    %1240 = vmatpush1.msra.mxu0 %v884
    %1241 = vmatprep.subr.mxu0 %v893
    %1242 = vmatpush1.msra.mxu0 %v892
    %1243 = vmatprep.subr.mxu0 %v901
    %1244 = vmatpush1.msra.mxu0 %v900
    %1245 = vmatprep.subr.mxu0 %v909
    %1246 = vmatpush1.msra.mxu0 %v908
    %1247 = vmatprep.subr.mxu0 %v917
    %1248 = vmatpush1.msra.mxu0 %v916
    %1249 = vmatprep.subr.mxu0 %v925
    %1250 = vmatpush1.msra.mxu0 %v924
    %1251 = vmatprep.subr.mxu0 %v933
    %1252 = vmatpush1.msra.mxu0 %v932
    %1253 = vmatprep.subr.mxu0 %v941
    %1254 = vmatpush1.msra.mxu0 %v940
    %1255 = vmatprep.subr.mxu0 %v949
    %1256 = vmatpush1.msra.mxu0 %v948
    %1257 = vmatprep.subr.mxu0 %v957
    %1258 = vmatpush1.msra.mxu0 %v956
    %1259 = vmatprep.subr.mxu0 %v965
    %1260 = vmatpush1.msra.mxu0 %v964
    %1261 = vmatprep.subr.mxu0 %v973
    %1262 = vmatpush1.msra.mxu0 %v972
    %1263 = vmatprep.subr.mxu0 %v981
    %1264 = vmatpush1.msra.mxu0 %v980
    %1265 = vmatprep.subr.mxu0 %v989
    %1266 = vmatpush1.msra.mxu0 %v988
    %1267 = vmatprep.mubr.f32.mxu0 0.0
    %1268 = vmatmul.mubr.f32.gmra.mrb[0].mxu0 0.0
    %v1269 = vpop.f32.mrb[0].mxu0
    %v1270 = vadd.f32 0.0, %v1269
    %v1271 = vpop.f32.mrb[0].mxu0
    %v1272 = vadd.f32 0.0, %v1271
    %1273 = vdwg.mxu0
    %v1274 = vadd.f32 %v726, %v1057
    %v1275 = vadd.f32 %v727, %v1059
    %v1276 = vadd.f32 %v728, %v1128
    %v1277 = vadd.f32 %v729, %v1130
    %v1278 = vadd.f32 %v730, %v1199
    %v1279 = vadd.f32 %v731, %v1201
    %v1280 = vadd.f32 %v732, %v1270
    %v1281 = vadd.f32 %v733, %v1272
    %v1282 = vxor.u32 %v1274, 2147483648
    %v1283 = vxor.u32 %v1275, 2147483648
    %v1284 = vmul.f32 %v1282, 1.442695
    %v1285 = vpow.pop %v1284
    %v1286 = vmul.f32 %v1283, 1.442695
    %v1287 = vpow.pop %v1286
    %v1288 = vadd.f32 %v1285, 1.0
    %v1289 = vadd.f32 %v1287, 1.0
    %v1290 = vrcp.pop %v1288
    %v1291 = vmul.f32 1.0, %v1290
    %v1292 = vrcp.pop %v1289
    %v1293 = vmul.f32 1.0, %v1292
    %v1294 = vxor.u32 %v1276, 2147483648
    %v1295 = vxor.u32 %v1277, 2147483648
    %v1296 = vmul.f32 %v1294, 1.442695
    %v1297 = vpow.pop %v1296
    %v1298 = vmul.f32 %v1295, 1.442695
    %v1299 = vpow.pop %v1298
    %v1300 = vadd.f32 %v1297, 1.0
    %v1301 = vadd.f32 %v1299, 1.0
    %v1302 = vrcp.pop %v1300
    %v1303 = vmul.f32 1.0, %v1302
    %v1304 = vrcp.pop %v1301
    %v1305 = vmul.f32 1.0, %v1304
    %v1306 = vtanh.pop %v1278
    %v1307 = vtanh.pop %v1279
    %v1308 = vxor.u32 %v1280, 2147483648
    %v1309 = vxor.u32 %v1281, 2147483648
    %v1310 = vmul.f32 %v1308, 1.442695
    %v1311 = vpow.pop %v1310
    %v1312 = vmul.f32 %v1309, 1.442695
    %v1313 = vpow.pop %v1312
    %v1314 = vadd.f32 %v1311, 1.0
    %v1315 = vadd.f32 %v1313, 1.0
    %v1316 = vrcp.pop %v1314
    %v1317 = vmul.f32 1.0, %v1316
    %v1318 = vrcp.pop %v1315
    %v1319 = vmul.f32 1.0, %v1318
    %v1320 = vmul.f32 %v1303, 0.0
    %v1321 = vmul.f32 %v1305, 0.0
    %v1322 = vmul.f32 %v1291, %v1306
    %v1323 = vmul.f32 %v1293, %v1307
    %v1324 = vadd.f32 %v1320, %v1322
    %v1325 = vadd.f32 %v1321, %v1323
    %v1326 = vtanh.pop %v1324
    %v1327 = vtanh.pop %v1325
    %v1328 = vmul.f32 %v1317, %v1326
    %v1329 = vmul.f32 %v1319, %v1327
    %1330 = vst [vmem:[#allocation3] sm:$0xff] %v1328
    %1331 = vst [vmem:[#allocation3 + $0x78] sm:$0xff] %v1329
    %v1332 = vld [vmem:[#allocation2 + $0x40] sm:$0xff]
    %v1333 = vld [vmem:[#allocation2 + $0x48] sm:$0xff]
    %v1334 = vld [vmem:[#allocation2 + $0x50] sm:$0xff]
    %v1335 = vld [vmem:[#allocation2 + $0x58] sm:$0xff]
    %v1336 = vld [vmem:[#allocation2 + $0x60] sm:$0xff]
    %v1337 = vld [vmem:[#allocation2 + $0x68] sm:$0xff]
    %v1338 = vld [vmem:[#allocation2 + $0x70] sm:$0xff]
    %v1339 = vld [vmem:[#allocation2 + $0x78] sm:$0xff]
    %v1340 = vld [vmem:[#allocation4] sm:$0xff]
    %v1341 = vld [vmem:[#allocation4 + $0x8] sm:$0xff]
    %v1342 = vld [vmem:[#allocation4 + $0x10] sm:$0xff]
    %v1343 = vld [vmem:[#allocation4 + $0x18] sm:$0xff]
    %v1344 = vld [vmem:[#allocation4 + $0x20] sm:$0xff]
    %v1345 = vld [vmem:[#allocation4 + $0x28] sm:$0xff]
    %v1346 = vld [vmem:[#allocation4 + $0x30] sm:$0xff]
    %v1347 = vld [vmem:[#allocation4 + $0x38] sm:$0xff]
    %v1348 = vld [vmem:[#allocation4 + $0x40] sm:$0xff]
    %v1349 = vld [vmem:[#allocation4 + $0x48] sm:$0xff]
    %v1350 = vld [vmem:[#allocation4 + $0x50] sm:$0xff]
    %v1351 = vld [vmem:[#allocation4 + $0x58] sm:$0xff]
    %v1352 = vld [vmem:[#allocation4 + $0x60] sm:$0xff]
    %v1353 = vld [vmem:[#allocation4 + $0x68] sm:$0xff]
    %v1354 = vld [vmem:[#allocation4 + $0x70] sm:$0xff]
    %v1355 = vld [vmem:[#allocation4 + $0x78] sm:$0xff]
    %v1356 = vld [vmem:[#allocation4 + $0x80] sm:$0xff]
    %v1357 = vld [vmem:[#allocation4 + $0x88] sm:$0xff]
    %v1358 = vld [vmem:[#allocation4 + $0x90] sm:$0xff]
    %v1359 = vld [vmem:[#allocation4 + $0x98] sm:$0xff]
    %v1360 = vld [vmem:[#allocation4 + $0xa0] sm:$0xff]
    %v1361 = vld [vmem:[#allocation4 + $0xa8] sm:$0xff]
    %v1362 = vld [vmem:[#allocation4 + $0xb0] sm:$0xff]
    %v1363 = vld [vmem:[#allocation4 + $0xb8] sm:$0xff]
    %v1364 = vld [vmem:[#allocation4 + $0xc0] sm:$0xff]
    %v1365 = vld [vmem:[#allocation4 + $0xc8] sm:$0xff]
    %v1366 = vld [vmem:[#allocation4 + $0xd0] sm:$0xff]
    %v1367 = vld [vmem:[#allocation4 + $0xd8] sm:$0xff]
    %v1368 = vld [vmem:[#allocation4 + $0xe0] sm:$0xff]
    %v1369 = vld [vmem:[#allocation4 + $0xe8] sm:$0xff]
    %v1370 = vld [vmem:[#allocation4 + $0xf0] sm:$0xff]
    %v1371 = vld [vmem:[#allocation4 + $0xf8] sm:$0xff]
    %v1372 = vld [vmem:[#allocation4 + $0x100] sm:$0xff]
    %v1373 = vld [vmem:[#allocation4 + $0x108] sm:$0xff]
    %v1374 = vld [vmem:[#allocation4 + $0x110] sm:$0xff]
    %v1375 = vld [vmem:[#allocation4 + $0x118] sm:$0xff]
    %v1376 = vld [vmem:[#allocation4 + $0x120] sm:$0xff]
    %v1377 = vld [vmem:[#allocation4 + $0x128] sm:$0xff]
    %v1378 = vld [vmem:[#allocation4 + $0x130] sm:$0xff]
    %v1379 = vld [vmem:[#allocation4 + $0x138] sm:$0xff]
    %v1380 = vld [vmem:[#allocation4 + $0x140] sm:$0xff]
    %v1381 = vld [vmem:[#allocation4 + $0x148] sm:$0xff]
    %v1382 = vld [vmem:[#allocation4 + $0x150] sm:$0xff]
    %v1383 = vld [vmem:[#allocation4 + $0x158] sm:$0xff]
    %v1384 = vld [vmem:[#allocation4 + $0x160] sm:$0xff]
    %v1385 = vld [vmem:[#allocation4 + $0x168] sm:$0xff]
    %v1386 = vld [vmem:[#allocation4 + $0x170] sm:$0xff]
    %v1387 = vld [vmem:[#allocation4 + $0x178] sm:$0xff]
    %v1388 = vld [vmem:[#allocation4 + $0x180] sm:$0xff]
    %v1389 = vld [vmem:[#allocation4 + $0x188] sm:$0xff]
    %v1390 = vld [vmem:[#allocation4 + $0x190] sm:$0xff]
    %v1391 = vld [vmem:[#allocation4 + $0x198] sm:$0xff]
    %v1392 = vld [vmem:[#allocation4 + $0x1a0] sm:$0xff]
    %v1393 = vld [vmem:[#allocation4 + $0x1a8] sm:$0xff]
    %v1394 = vld [vmem:[#allocation4 + $0x1b0] sm:$0xff]
    %v1395 = vld [vmem:[#allocation4 + $0x1b8] sm:$0xff]
    %v1396 = vld [vmem:[#allocation4 + $0x1c0] sm:$0xff]
    %v1397 = vld [vmem:[#allocation4 + $0x1c8] sm:$0xff]
    %v1398 = vld [vmem:[#allocation4 + $0x1d0] sm:$0xff]
    %v1399 = vld [vmem:[#allocation4 + $0x1d8] sm:$0xff]
    %v1400 = vld [vmem:[#allocation4 + $0x1e0] sm:$0xff]
    %v1401 = vld [vmem:[#allocation4 + $0x1e8] sm:$0xff]
    %v1402 = vld [vmem:[#allocation4 + $0x1f0] sm:$0xff]
    %v1403 = vld [vmem:[#allocation4 + $0x1f8] sm:$0xff]
    %v1404 = vld [vmem:[#allocation4 + $0x200] sm:$0xff]
    %v1405 = vld [vmem:[#allocation4 + $0x208] sm:$0xff]
    %v1406 = vld [vmem:[#allocation4 + $0x210] sm:$0xff]
    %v1407 = vld [vmem:[#allocation4 + $0x218] sm:$0xff]
    %v1408 = vld [vmem:[#allocation4 + $0x220] sm:$0xff]
    %v1409 = vld [vmem:[#allocation4 + $0x228] sm:$0xff]
    %v1410 = vld [vmem:[#allocation4 + $0x230] sm:$0xff]
    %v1411 = vld [vmem:[#allocation4 + $0x238] sm:$0xff]
    %v1412 = vld [vmem:[#allocation4 + $0x240] sm:$0xff]
    %v1413 = vld [vmem:[#allocation4 + $0x248] sm:$0xff]
    %v1414 = vld [vmem:[#allocation4 + $0x250] sm:$0xff]
    %v1415 = vld [vmem:[#allocation4 + $0x258] sm:$0xff]
    %v1416 = vld [vmem:[#allocation4 + $0x260] sm:$0xff]
    %v1417 = vld [vmem:[#allocation4 + $0x268] sm:$0xff]
    %v1418 = vld [vmem:[#allocation4 + $0x270] sm:$0xff]
    %v1419 = vld [vmem:[#allocation4 + $0x278] sm:$0xff]
    %v1420 = vld [vmem:[#allocation4 + $0x280] sm:$0xff]
    %v1421 = vld [vmem:[#allocation4 + $0x288] sm:$0xff]
    %v1422 = vld [vmem:[#allocation4 + $0x290] sm:$0xff]
    %v1423 = vld [vmem:[#allocation4 + $0x298] sm:$0xff]
    %v1424 = vld [vmem:[#allocation4 + $0x2a0] sm:$0xff]
    %v1425 = vld [vmem:[#allocation4 + $0x2a8] sm:$0xff]
    %v1426 = vld [vmem:[#allocation4 + $0x2b0] sm:$0xff]
    %v1427 = vld [vmem:[#allocation4 + $0x2b8] sm:$0xff]
    %v1428 = vld [vmem:[#allocation4 + $0x2c0] sm:$0xff]
    %v1429 = vld [vmem:[#allocation4 + $0x2c8] sm:$0xff]
    %v1430 = vld [vmem:[#allocation4 + $0x2d0] sm:$0xff]
    %v1431 = vld [vmem:[#allocation4 + $0x2d8] sm:$0xff]
    %v1432 = vld [vmem:[#allocation4 + $0x2e0] sm:$0xff]
    %v1433 = vld [vmem:[#allocation4 + $0x2e8] sm:$0xff]
    %v1434 = vld [vmem:[#allocation4 + $0x2f0] sm:$0xff]
    %v1435 = vld [vmem:[#allocation4 + $0x2f8] sm:$0xff]
    %v1436 = vld [vmem:[#allocation4 + $0x300] sm:$0xff]
    %v1437 = vld [vmem:[#allocation4 + $0x308] sm:$0xff]
    %v1438 = vld [vmem:[#allocation4 + $0x310] sm:$0xff]
    %v1439 = vld [vmem:[#allocation4 + $0x318] sm:$0xff]
    %v1440 = vld [vmem:[#allocation4 + $0x320] sm:$0xff]
    %v1441 = vld [vmem:[#allocation4 + $0x328] sm:$0xff]
    %v1442 = vld [vmem:[#allocation4 + $0x330] sm:$0xff]
    %v1443 = vld [vmem:[#allocation4 + $0x338] sm:$0xff]
    %v1444 = vld [vmem:[#allocation4 + $0x340] sm:$0xff]
    %v1445 = vld [vmem:[#allocation4 + $0x348] sm:$0xff]
    %v1446 = vld [vmem:[#allocation4 + $0x350] sm:$0xff]
    %v1447 = vld [vmem:[#allocation4 + $0x358] sm:$0xff]
    %v1448 = vld [vmem:[#allocation4 + $0x360] sm:$0xff]
    %v1449 = vld [vmem:[#allocation4 + $0x368] sm:$0xff]
    %v1450 = vld [vmem:[#allocation4 + $0x370] sm:$0xff]
    %v1451 = vld [vmem:[#allocation4 + $0x378] sm:$0xff]
    %v1452 = vld [vmem:[#allocation4 + $0x380] sm:$0xff]
    %v1453 = vld [vmem:[#allocation4 + $0x388] sm:$0xff]
    %v1454 = vld [vmem:[#allocation4 + $0x390] sm:$0xff]
    %v1455 = vld [vmem:[#allocation4 + $0x398] sm:$0xff]
    %v1456 = vld [vmem:[#allocation4 + $0x3a0] sm:$0xff]
    %v1457 = vld [vmem:[#allocation4 + $0x3a8] sm:$0xff]
    %v1458 = vld [vmem:[#allocation4 + $0x3b0] sm:$0xff]
    %v1459 = vld [vmem:[#allocation4 + $0x3b8] sm:$0xff]
    %v1460 = vld [vmem:[#allocation4 + $0x3c0] sm:$0xff]
    %v1461 = vld [vmem:[#allocation4 + $0x3c8] sm:$0xff]
    %v1462 = vld [vmem:[#allocation4 + $0x3d0] sm:$0xff]
    %v1463 = vld [vmem:[#allocation4 + $0x3d8] sm:$0xff]
    %v1464 = vld [vmem:[#allocation4 + $0x3e0] sm:$0xff]
    %v1465 = vld [vmem:[#allocation4 + $0x3e8] sm:$0xff]
    %v1466 = vld [vmem:[#allocation4 + $0x3f0] sm:$0xff]
    %v1467 = vld [vmem:[#allocation4 + $0x3f8] sm:$0xff]
    %v1468 = vld [vmem:[#allocation4 + $0x400] sm:$0xff]
    %v1469 = vld [vmem:[#allocation4 + $0x408] sm:$0xff]
    %v1470 = vld [vmem:[#allocation4 + $0x410] sm:$0xff]
    %v1471 = vld [vmem:[#allocation4 + $0x418] sm:$0xff]
    %v1472 = vld [vmem:[#allocation4 + $0x420] sm:$0xff]
    %v1473 = vld [vmem:[#allocation4 + $0x428] sm:$0xff]
    %v1474 = vld [vmem:[#allocation4 + $0x430] sm:$0xff]
    %v1475 = vld [vmem:[#allocation4 + $0x438] sm:$0xff]
    %v1476 = vld [vmem:[#allocation4 + $0x440] sm:$0xff]
    %v1477 = vld [vmem:[#allocation4 + $0x448] sm:$0xff]
    %v1478 = vld [vmem:[#allocation4 + $0x450] sm:$0xff]
    %v1479 = vld [vmem:[#allocation4 + $0x458] sm:$0xff]
    %v1480 = vld [vmem:[#allocation4 + $0x460] sm:$0xff]
    %v1481 = vld [vmem:[#allocation4 + $0x468] sm:$0xff]
    %v1482 = vld [vmem:[#allocation4 + $0x470] sm:$0xff]
    %v1483 = vld [vmem:[#allocation4 + $0x478] sm:$0xff]
    %v1484 = vld [vmem:[#allocation4 + $0x480] sm:$0xff]
    %v1485 = vld [vmem:[#allocation4 + $0x488] sm:$0xff]
    %v1486 = vld [vmem:[#allocation4 + $0x490] sm:$0xff]
    %v1487 = vld [vmem:[#allocation4 + $0x498] sm:$0xff]
    %v1488 = vld [vmem:[#allocation4 + $0x4a0] sm:$0xff]
    %v1489 = vld [vmem:[#allocation4 + $0x4a8] sm:$0xff]
    %v1490 = vld [vmem:[#allocation4 + $0x4b0] sm:$0xff]
    %v1491 = vld [vmem:[#allocation4 + $0x4b8] sm:$0xff]
    %v1492 = vld [vmem:[#allocation4 + $0x4c0] sm:$0xff]
    %v1493 = vld [vmem:[#allocation4 + $0x4c8] sm:$0xff]
    %v1494 = vld [vmem:[#allocation4 + $0x4d0] sm:$0xff]
    %v1495 = vld [vmem:[#allocation4 + $0x4d8] sm:$0xff]
    %v1496 = vld [vmem:[#allocation4 + $0x4e0] sm:$0xff]
    %v1497 = vld [vmem:[#allocation4 + $0x4e8] sm:$0xff]
    %v1498 = vld [vmem:[#allocation4 + $0x4f0] sm:$0xff]
    %v1499 = vld [vmem:[#allocation4 + $0x4f8] sm:$0xff]
    %v1500 = vld [vmem:[#allocation4 + $0x500] sm:$0xff]
    %v1501 = vld [vmem:[#allocation4 + $0x508] sm:$0xff]
    %v1502 = vld [vmem:[#allocation4 + $0x510] sm:$0xff]
    %v1503 = vld [vmem:[#allocation4 + $0x518] sm:$0xff]
    %v1504 = vld [vmem:[#allocation4 + $0x520] sm:$0xff]
    %v1505 = vld [vmem:[#allocation4 + $0x528] sm:$0xff]
    %v1506 = vld [vmem:[#allocation4 + $0x530] sm:$0xff]
    %v1507 = vld [vmem:[#allocation4 + $0x538] sm:$0xff]
    %v1508 = vld [vmem:[#allocation4 + $0x540] sm:$0xff]
    %v1509 = vld [vmem:[#allocation4 + $0x548] sm:$0xff]
    %v1510 = vld [vmem:[#allocation4 + $0x550] sm:$0xff]
    %v1511 = vld [vmem:[#allocation4 + $0x558] sm:$0xff]
    %v1512 = vld [vmem:[#allocation4 + $0x560] sm:$0xff]
    %v1513 = vld [vmem:[#allocation4 + $0x568] sm:$0xff]
    %v1514 = vld [vmem:[#allocation4 + $0x570] sm:$0xff]
    %v1515 = vld [vmem:[#allocation4 + $0x578] sm:$0xff]
    %v1516 = vld [vmem:[#allocation4 + $0x580] sm:$0xff]
    %v1517 = vld [vmem:[#allocation4 + $0x588] sm:$0xff]
    %v1518 = vld [vmem:[#allocation4 + $0x590] sm:$0xff]
    %v1519 = vld [vmem:[#allocation4 + $0x598] sm:$0xff]
    %v1520 = vld [vmem:[#allocation4 + $0x5a0] sm:$0xff]
    %v1521 = vld [vmem:[#allocation4 + $0x5a8] sm:$0xff]
    %v1522 = vld [vmem:[#allocation4 + $0x5b0] sm:$0xff]
    %v1523 = vld [vmem:[#allocation4 + $0x5b8] sm:$0xff]
    %v1524 = vld [vmem:[#allocation4 + $0x5c0] sm:$0xff]
    %v1525 = vld [vmem:[#allocation4 + $0x5c8] sm:$0xff]
    %v1526 = vld [vmem:[#allocation4 + $0x5d0] sm:$0xff]
    %v1527 = vld [vmem:[#allocation4 + $0x5d8] sm:$0xff]
    %v1528 = vld [vmem:[#allocation4 + $0x5e0] sm:$0xff]
    %v1529 = vld [vmem:[#allocation4 + $0x5e8] sm:$0xff]
    %v1530 = vld [vmem:[#allocation4 + $0x5f0] sm:$0xff]
    %v1531 = vld [vmem:[#allocation4 + $0x5f8] sm:$0xff]
    %v1532 = vld [vmem:[#allocation4 + $0x600] sm:$0xff]
    %v1533 = vld [vmem:[#allocation4 + $0x608] sm:$0xff]
    %v1534 = vld [vmem:[#allocation4 + $0x610] sm:$0xff]
    %v1535 = vld [vmem:[#allocation4 + $0x618] sm:$0xff]
    %v1536 = vld [vmem:[#allocation4 + $0x620] sm:$0xff]
    %v1537 = vld [vmem:[#allocation4 + $0x628] sm:$0xff]
    %v1538 = vld [vmem:[#allocation4 + $0x630] sm:$0xff]
    %v1539 = vld [vmem:[#allocation4 + $0x638] sm:$0xff]
    %v1540 = vld [vmem:[#allocation4 + $0x640] sm:$0xff]
    %v1541 = vld [vmem:[#allocation4 + $0x648] sm:$0xff]
    %v1542 = vld [vmem:[#allocation4 + $0x650] sm:$0xff]
    %v1543 = vld [vmem:[#allocation4 + $0x658] sm:$0xff]
    %v1544 = vld [vmem:[#allocation4 + $0x660] sm:$0xff]
    %v1545 = vld [vmem:[#allocation4 + $0x668] sm:$0xff]
    %v1546 = vld [vmem:[#allocation4 + $0x670] sm:$0xff]
    %v1547 = vld [vmem:[#allocation4 + $0x678] sm:$0xff]
    %v1548 = vld [vmem:[#allocation4 + $0x680] sm:$0xff]
    %v1549 = vld [vmem:[#allocation4 + $0x688] sm:$0xff]
    %v1550 = vld [vmem:[#allocation4 + $0x690] sm:$0xff]
    %v1551 = vld [vmem:[#allocation4 + $0x698] sm:$0xff]
    %v1552 = vld [vmem:[#allocation4 + $0x6a0] sm:$0xff]
    %v1553 = vld [vmem:[#allocation4 + $0x6a8] sm:$0xff]
    %v1554 = vld [vmem:[#allocation4 + $0x6b0] sm:$0xff]
    %v1555 = vld [vmem:[#allocation4 + $0x6b8] sm:$0xff]
    %v1556 = vld [vmem:[#allocation4 + $0x6c0] sm:$0xff]
    %v1557 = vld [vmem:[#allocation4 + $0x6c8] sm:$0xff]
    %v1558 = vld [vmem:[#allocation4 + $0x6d0] sm:$0xff]
    %v1559 = vld [vmem:[#allocation4 + $0x6d8] sm:$0xff]
    %v1560 = vld [vmem:[#allocation4 + $0x6e0] sm:$0xff]
    %v1561 = vld [vmem:[#allocation4 + $0x6e8] sm:$0xff]
    %v1562 = vld [vmem:[#allocation4 + $0x6f0] sm:$0xff]
    %v1563 = vld [vmem:[#allocation4 + $0x6f8] sm:$0xff]
    %v1564 = vld [vmem:[#allocation4 + $0x700] sm:$0xff]
    %v1565 = vld [vmem:[#allocation4 + $0x708] sm:$0xff]
    %v1566 = vld [vmem:[#allocation4 + $0x710] sm:$0xff]
    %v1567 = vld [vmem:[#allocation4 + $0x718] sm:$0xff]
    %v1568 = vld [vmem:[#allocation4 + $0x720] sm:$0xff]
    %v1569 = vld [vmem:[#allocation4 + $0x728] sm:$0xff]
    %v1570 = vld [vmem:[#allocation4 + $0x730] sm:$0xff]
    %v1571 = vld [vmem:[#allocation4 + $0x738] sm:$0xff]
    %v1572 = vld [vmem:[#allocation4 + $0x740] sm:$0xff]
    %v1573 = vld [vmem:[#allocation4 + $0x748] sm:$0xff]
    %v1574 = vld [vmem:[#allocation4 + $0x750] sm:$0xff]
    %v1575 = vld [vmem:[#allocation4 + $0x758] sm:$0xff]
    %v1576 = vld [vmem:[#allocation4 + $0x760] sm:$0xff]
    %v1577 = vld [vmem:[#allocation4 + $0x768] sm:$0xff]
    %v1578 = vld [vmem:[#allocation4 + $0x770] sm:$0xff]
    %v1579 = vld [vmem:[#allocation4 + $0x778] sm:$0xff]
    %v1580 = vld [vmem:[#allocation4 + $0x780] sm:$0xff]
    %v1581 = vld [vmem:[#allocation4 + $0x788] sm:$0xff]
    %v1582 = vld [vmem:[#allocation4 + $0x790] sm:$0xff]
    %v1583 = vld [vmem:[#allocation4 + $0x798] sm:$0xff]
    %v1584 = vld [vmem:[#allocation4 + $0x7a0] sm:$0xff]
    %v1585 = vld [vmem:[#allocation4 + $0x7a8] sm:$0xff]
    %v1586 = vld [vmem:[#allocation4 + $0x7b0] sm:$0xff]
    %v1587 = vld [vmem:[#allocation4 + $0x7b8] sm:$0xff]
    %v1588 = vld [vmem:[#allocation4 + $0x7c0] sm:$0xff]
    %v1589 = vld [vmem:[#allocation4 + $0x7c8] sm:$0xff]
    %v1590 = vld [vmem:[#allocation4 + $0x7d0] sm:$0xff]
    %v1591 = vld [vmem:[#allocation4 + $0x7d8] sm:$0xff]
    %v1592 = vld [vmem:[#allocation4 + $0x7e0] sm:$0xff]
    %v1593 = vld [vmem:[#allocation4 + $0x7e8] sm:$0xff]
    %v1594 = vld [vmem:[#allocation4 + $0x7f0] sm:$0xff]
    %v1595 = vld [vmem:[#allocation4 + $0x7f8] sm:$0xff]
    %1596 = vmatprep.subr.mxu0 %v1341
    %1597 = vmatpush1.msra.mxu0 %v1340
    %1598 = vmatprep.subr.mxu0 %v1349
    %1599 = vmatpush1.msra.mxu0 %v1348
    %1600 = vmatprep.subr.mxu0 %v1357
    %1601 = vmatpush1.msra.mxu0 %v1356
    %1602 = vmatprep.subr.mxu0 %v1365
    %1603 = vmatpush1.msra.mxu0 %v1364
    %1604 = vmatprep.subr.mxu0 %v1373
    %1605 = vmatpush1.msra.mxu0 %v1372
    %1606 = vmatprep.subr.mxu0 %v1381
    %1607 = vmatpush1.msra.mxu0 %v1380
    %1608 = vmatprep.subr.mxu0 %v1389
    %1609 = vmatpush1.msra.mxu0 %v1388
    %1610 = vmatprep.subr.mxu0 %v1397
    %1611 = vmatpush1.msra.mxu0 %v1396
    %1612 = vmatprep.subr.mxu0 %v1405
    %1613 = vmatpush1.msra.mxu0 %v1404
    %1614 = vmatprep.subr.mxu0 %v1413
    %1615 = vmatpush1.msra.mxu0 %v1412
    %1616 = vmatprep.subr.mxu0 %v1421
    %1617 = vmatpush1.msra.mxu0 %v1420
    %1618 = vmatprep.subr.mxu0 %v1429
    %1619 = vmatpush1.msra.mxu0 %v1428
    %1620 = vmatprep.subr.mxu0 %v1437
    %1621 = vmatpush1.msra.mxu0 %v1436
    %1622 = vmatprep.subr.mxu0 %v1445
    %1623 = vmatpush1.msra.mxu0 %v1444
    %1624 = vmatprep.subr.mxu0 %v1453
    %1625 = vmatpush1.msra.mxu0 %v1452
    %1626 = vmatprep.subr.mxu0 %v1461
    %1627 = vmatpush1.msra.mxu0 %v1460
    %1628 = vmatprep.subr.mxu0 %v1469
    %1629 = vmatpush1.msra.mxu0 %v1468
    %1630 = vmatprep.subr.mxu0 %v1477
    %1631 = vmatpush1.msra.mxu0 %v1476
    %1632 = vmatprep.subr.mxu0 %v1485
    %1633 = vmatpush1.msra.mxu0 %v1484
    %1634 = vmatprep.subr.mxu0 %v1493
    %1635 = vmatpush1.msra.mxu0 %v1492
    %1636 = vmatprep.subr.mxu0 %v1501
    %1637 = vmatpush1.msra.mxu0 %v1500
    %1638 = vmatprep.subr.mxu0 %v1509
    %1639 = vmatpush1.msra.mxu0 %v1508
    %1640 = vmatprep.subr.mxu0 %v1517
    %1641 = vmatpush1.msra.mxu0 %v1516
    %1642 = vmatprep.subr.mxu0 %v1525
    %1643 = vmatpush1.msra.mxu0 %v1524
    %1644 = vmatprep.subr.mxu0 %v1533
    %1645 = vmatpush1.msra.mxu0 %v1532
    %1646 = vmatprep.subr.mxu0 %v1541
    %1647 = vmatpush1.msra.mxu0 %v1540
    %1648 = vmatprep.subr.mxu0 %v1549
    %1649 = vmatpush1.msra.mxu0 %v1548
    %1650 = vmatprep.subr.mxu0 %v1557
    %1651 = vmatpush1.msra.mxu0 %v1556
    %1652 = vmatprep.subr.mxu0 %v1565
    %1653 = vmatpush1.msra.mxu0 %v1564
    %1654 = vmatprep.subr.mxu0 %v1573
    %1655 = vmatpush1.msra.mxu0 %v1572
    %1656 = vmatprep.subr.mxu0 %v1581
    %1657 = vmatpush1.msra.mxu0 %v1580
    %1658 = vmatprep.subr.mxu0 %v1589
    %1659 = vmatpush1.msra.mxu0 %v1588
    %1660 = vmatprep.mubr.f32.mxu0 %v1329
    %1661 = vmatmul.mubr.f32.gmra.mrb[0].mxu0 %v1328
    %v1662 = vpop.f32.mrb[0].mxu0
    %v1663 = vadd.f32 0.0, %v1662
    %v1664 = vpop.f32.mrb[0].mxu0
    %v1665 = vadd.f32 0.0, %v1664
    %1666 = vdwg.mxu0
    %1667 = vmatprep.subr.mxu0 %v1343
    %1668 = vmatpush1.msra.mxu0 %v1342
    %1669 = vmatprep.subr.mxu0 %v1351
    %1670 = vmatpush1.msra.mxu0 %v1350
    %1671 = vmatprep.subr.mxu0 %v1359
    %1672 = vmatpush1.msra.mxu0 %v1358
    %1673 = vmatprep.subr.mxu0 %v1367
    %1674 = vmatpush1.msra.mxu0 %v1366
    %1675 = vmatprep.subr.mxu0 %v1375
    %1676 = vmatpush1.msra.mxu0 %v1374
    %1677 = vmatprep.subr.mxu0 %v1383
    %1678 = vmatpush1.msra.mxu0 %v1382
    %1679 = vmatprep.subr.mxu0 %v1391
    %1680 = vmatpush1.msra.mxu0 %v1390
    %1681 = vmatprep.subr.mxu0 %v1399
    %1682 = vmatpush1.msra.mxu0 %v1398
    %1683 = vmatprep.subr.mxu0 %v1407
    %1684 = vmatpush1.msra.mxu0 %v1406
    %1685 = vmatprep.subr.mxu0 %v1415
    %1686 = vmatpush1.msra.mxu0 %v1414
    %1687 = vmatprep.subr.mxu0 %v1423
    %1688 = vmatpush1.msra.mxu0 %v1422
    %1689 = vmatprep.subr.mxu0 %v1431
    %1690 = vmatpush1.msra.mxu0 %v1430
    %1691 = vmatprep.subr.mxu0 %v1439
    %1692 = vmatpush1.msra.mxu0 %v1438
    %1693 = vmatprep.subr.mxu0 %v1447
    %1694 = vmatpush1.msra.mxu0 %v1446
    %1695 = vmatprep.subr.mxu0 %v1455
    %1696 = vmatpush1.msra.mxu0 %v1454
    %1697 = vmatprep.subr.mxu0 %v1463
    %1698 = vmatpush1.msra.mxu0 %v1462
    %1699 = vmatprep.subr.mxu0 %v1471
    %1700 = vmatpush1.msra.mxu0 %v1470
    %1701 = vmatprep.subr.mxu0 %v1479
    %1702 = vmatpush1.msra.mxu0 %v1478
    %1703 = vmatprep.subr.mxu0 %v1487
    %1704 = vmatpush1.msra.mxu0 %v1486
    %1705 = vmatprep.subr.mxu0 %v1495
    %1706 = vmatpush1.msra.mxu0 %v1494
    %1707 = vmatprep.subr.mxu0 %v1503
    %1708 = vmatpush1.msra.mxu0 %v1502
    %1709 = vmatprep.subr.mxu0 %v1511
    %1710 = vmatpush1.msra.mxu0 %v1510
    %1711 = vmatprep.subr.mxu0 %v1519
    %1712 = vmatpush1.msra.mxu0 %v1518
    %1713 = vmatprep.subr.mxu0 %v1527
    %1714 = vmatpush1.msra.mxu0 %v1526
    %1715 = vmatprep.subr.mxu0 %v1535
    %1716 = vmatpush1.msra.mxu0 %v1534
    %1717 = vmatprep.subr.mxu0 %v1543
    %1718 = vmatpush1.msra.mxu0 %v1542
    %1719 = vmatprep.subr.mxu0 %v1551
    %1720 = vmatpush1.msra.mxu0 %v1550
    %1721 = vmatprep.subr.mxu0 %v1559
    %1722 = vmatpush1.msra.mxu0 %v1558
    %1723 = vmatprep.subr.mxu0 %v1567
    %1724 = vmatpush1.msra.mxu0 %v1566
    %1725 = vmatprep.subr.mxu0 %v1575
    %1726 = vmatpush1.msra.mxu0 %v1574
    %1727 = vmatprep.subr.mxu0 %v1583
    %1728 = vmatpush1.msra.mxu0 %v1582
    %1729 = vmatprep.subr.mxu0 %v1591
    %1730 = vmatpush1.msra.mxu0 %v1590
    %1731 = vmatprep.mubr.f32.mxu0 %v1329
    %1732 = vmatmul.mubr.f32.gmra.mrb[0].mxu0 %v1328
    %v1733 = vpop.f32.mrb[0].mxu0
    %v1734 = vadd.f32 0.0, %v1733
    %v1735 = vpop.f32.mrb[0].mxu0
    %v1736 = vadd.f32 0.0, %v1735
    %1737 = vdwg.mxu0
    %1738 = vmatprep.subr.mxu0 %v1345
    %1739 = vmatpush1.msra.mxu0 %v1344
    %1740 = vmatprep.subr.mxu0 %v1353
    %1741 = vmatpush1.msra.mxu0 %v1352
    %1742 = vmatprep.subr.mxu0 %v1361
    %1743 = vmatpush1.msra.mxu0 %v1360
    %1744 = vmatprep.subr.mxu0 %v1369
    %1745 = vmatpush1.msra.mxu0 %v1368
    %1746 = vmatprep.subr.mxu0 %v1377
    %1747 = vmatpush1.msra.mxu0 %v1376
    %1748 = vmatprep.subr.mxu0 %v1385
    %1749 = vmatpush1.msra.mxu0 %v1384
    %1750 = vmatprep.subr.mxu0 %v1393
    %1751 = vmatpush1.msra.mxu0 %v1392
    %1752 = vmatprep.subr.mxu0 %v1401
    %1753 = vmatpush1.msra.mxu0 %v1400
    %1754 = vmatprep.subr.mxu0 %v1409
    %1755 = vmatpush1.msra.mxu0 %v1408
    %1756 = vmatprep.subr.mxu0 %v1417
    %1757 = vmatpush1.msra.mxu0 %v1416
    %1758 = vmatprep.subr.mxu0 %v1425
    %1759 = vmatpush1.msra.mxu0 %v1424
    %1760 = vmatprep.subr.mxu0 %v1433
    %1761 = vmatpush1.msra.mxu0 %v1432
    %1762 = vmatprep.subr.mxu0 %v1441
    %1763 = vmatpush1.msra.mxu0 %v1440
    %1764 = vmatprep.subr.mxu0 %v1449
    %1765 = vmatpush1.msra.mxu0 %v1448
    %1766 = vmatprep.subr.mxu0 %v1457
    %1767 = vmatpush1.msra.mxu0 %v1456
    %1768 = vmatprep.subr.mxu0 %v1465
    %1769 = vmatpush1.msra.mxu0 %v1464
    %1770 = vmatprep.subr.mxu0 %v1473
    %1771 = vmatpush1.msra.mxu0 %v1472
    %1772 = vmatprep.subr.mxu0 %v1481
    %1773 = vmatpush1.msra.mxu0 %v1480
    %1774 = vmatprep.subr.mxu0 %v1489
    %1775 = vmatpush1.msra.mxu0 %v1488
    %1776 = vmatprep.subr.mxu0 %v1497
    %1777 = vmatpush1.msra.mxu0 %v1496
    %1778 = vmatprep.subr.mxu0 %v1505
    %1779 = vmatpush1.msra.mxu0 %v1504
    %1780 = vmatprep.subr.mxu0 %v1513
    %1781 = vmatpush1.msra.mxu0 %v1512
    %1782 = vmatprep.subr.mxu0 %v1521
    %1783 = vmatpush1.msra.mxu0 %v1520
    %1784 = vmatprep.subr.mxu0 %v1529
    %1785 = vmatpush1.msra.mxu0 %v1528
    %1786 = vmatprep.subr.mxu0 %v1537
    %1787 = vmatpush1.msra.mxu0 %v1536
    %1788 = vmatprep.subr.mxu0 %v1545
    %1789 = vmatpush1.msra.mxu0 %v1544
    %1790 = vmatprep.subr.mxu0 %v1553
    %1791 = vmatpush1.msra.mxu0 %v1552
    %1792 = vmatprep.subr.mxu0 %v1561
    %1793 = vmatpush1.msra.mxu0 %v1560
    %1794 = vmatprep.subr.mxu0 %v1569
    %1795 = vmatpush1.msra.mxu0 %v1568
    %1796 = vmatprep.subr.mxu0 %v1577
    %1797 = vmatpush1.msra.mxu0 %v1576
    %1798 = vmatprep.subr.mxu0 %v1585
    %1799 = vmatpush1.msra.mxu0 %v1584
    %1800 = vmatprep.subr.mxu0 %v1593
    %1801 = vmatpush1.msra.mxu0 %v1592
    %1802 = vmatprep.mubr.f32.mxu0 %v1329
    %1803 = vmatmul.mubr.f32.gmra.mrb[0].mxu0 %v1328
    %v1804 = vpop.f32.mrb[0].mxu0
    %v1805 = vadd.f32 0.0, %v1804
    %v1806 = vpop.f32.mrb[0].mxu0
    %v1807 = vadd.f32 0.0, %v1806
    %1808 = vdwg.mxu0
    %1809 = vmatprep.subr.mxu0 %v1347
    %1810 = vmatpush1.msra.mxu0 %v1346
    %1811 = vmatprep.subr.mxu0 %v1355
    %1812 = vmatpush1.msra.mxu0 %v1354
    %1813 = vmatprep.subr.mxu0 %v1363
    %1814 = vmatpush1.msra.mxu0 %v1362
    %1815 = vmatprep.subr.mxu0 %v1371
    %1816 = vmatpush1.msra.mxu0 %v1370
    %1817 = vmatprep.subr.mxu0 %v1379
    %1818 = vmatpush1.msra.mxu0 %v1378
    %1819 = vmatprep.subr.mxu0 %v1387
    %1820 = vmatpush1.msra.mxu0 %v1386
    %1821 = vmatprep.subr.mxu0 %v1395
    %1822 = vmatpush1.msra.mxu0 %v1394
    %1823 = vmatprep.subr.mxu0 %v1403
    %1824 = vmatpush1.msra.mxu0 %v1402
    %1825 = vmatprep.subr.mxu0 %v1411
    %1826 = vmatpush1.msra.mxu0 %v1410
    %1827 = vmatprep.subr.mxu0 %v1419
    %1828 = vmatpush1.msra.mxu0 %v1418
    %1829 = vmatprep.subr.mxu0 %v1427
    %1830 = vmatpush1.msra.mxu0 %v1426
    %1831 = vmatprep.subr.mxu0 %v1435
    %1832 = vmatpush1.msra.mxu0 %v1434
    %1833 = vmatprep.subr.mxu0 %v1443
    %1834 = vmatpush1.msra.mxu0 %v1442
    %1835 = vmatprep.subr.mxu0 %v1451
    %1836 = vmatpush1.msra.mxu0 %v1450
    %1837 = vmatprep.subr.mxu0 %v1459
    %1838 = vmatpush1.msra.mxu0 %v1458
    %1839 = vmatprep.subr.mxu0 %v1467
    %1840 = vmatpush1.msra.mxu0 %v1466
    %1841 = vmatprep.subr.mxu0 %v1475
    %1842 = vmatpush1.msra.mxu0 %v1474
    %1843 = vmatprep.subr.mxu0 %v1483
    %1844 = vmatpush1.msra.mxu0 %v1482
    %1845 = vmatprep.subr.mxu0 %v1491
    %1846 = vmatpush1.msra.mxu0 %v1490
    %1847 = vmatprep.subr.mxu0 %v1499
    %1848 = vmatpush1.msra.mxu0 %v1498
    %1849 = vmatprep.subr.mxu0 %v1507
    %1850 = vmatpush1.msra.mxu0 %v1506
    %1851 = vmatprep.subr.mxu0 %v1515
    %1852 = vmatpush1.msra.mxu0 %v1514
    %1853 = vmatprep.subr.mxu0 %v1523
    %1854 = vmatpush1.msra.mxu0 %v1522
    %1855 = vmatprep.subr.mxu0 %v1531
    %1856 = vmatpush1.msra.mxu0 %v1530
    %1857 = vmatprep.subr.mxu0 %v1539
    %1858 = vmatpush1.msra.mxu0 %v1538
    %1859 = vmatprep.subr.mxu0 %v1547
    %1860 = vmatpush1.msra.mxu0 %v1546
    %1861 = vmatprep.subr.mxu0 %v1555
    %1862 = vmatpush1.msra.mxu0 %v1554
    %1863 = vmatprep.subr.mxu0 %v1563
    %1864 = vmatpush1.msra.mxu0 %v1562
    %1865 = vmatprep.subr.mxu0 %v1571
    %1866 = vmatpush1.msra.mxu0 %v1570
    %1867 = vmatprep.subr.mxu0 %v1579
    %1868 = vmatpush1.msra.mxu0 %v1578
    %1869 = vmatprep.subr.mxu0 %v1587
    %1870 = vmatpush1.msra.mxu0 %v1586
    %1871 = vmatprep.subr.mxu0 %v1595
    %1872 = vmatpush1.msra.mxu0 %v1594
    %1873 = vmatprep.mubr.f32.mxu0 %v1329
    %1874 = vmatmul.mubr.f32.gmra.mrb[0].mxu0 %v1328
    %v1875 = vpop.f32.mrb[0].mxu0
    %v1876 = vadd.f32 0.0, %v1875
    %v1877 = vpop.f32.mrb[0].mxu0
    %v1878 = vadd.f32 0.0, %v1877
    %1879 = vdwg.mxu0
    %v1880 = vadd.f32 %v1332, %v1663
    %v1881 = vadd.f32 %v1333, %v1665
    %v1882 = vadd.f32 %v1334, %v1734
    %v1883 = vadd.f32 %v1335, %v1736
    %v1884 = vadd.f32 %v1336, %v1805
    %v1885 = vadd.f32 %v1337, %v1807
    %v1886 = vadd.f32 %v1338, %v1876
    %v1887 = vadd.f32 %v1339, %v1878
    %v1888 = vxor.u32 %v1880, 2147483648
    %v1889 = vxor.u32 %v1881, 2147483648
    %v1890 = vmul.f32 %v1888, 1.442695
    %v1891 = vpow.pop %v1890
    %v1892 = vmul.f32 %v1889, 1.442695
    %v1893 = vpow.pop %v1892
    %v1894 = vadd.f32 %v1891, 1.0
    %v1895 = vadd.f32 %v1893, 1.0
    %v1896 = vrcp.pop %v1894
    %v1897 = vmul.f32 1.0, %v1896
    %v1898 = vrcp.pop %v1895
    %v1899 = vmul.f32 1.0, %v1898
    %v1900 = vxor.u32 %v1882, 2147483648
    %v1901 = vxor.u32 %v1883, 2147483648
    %v1902 = vmul.f32 %v1900, 1.442695
    %v1903 = vpow.pop %v1902
    %v1904 = vmul.f32 %v1901, 1.442695
    %v1905 = vpow.pop %v1904
    %v1906 = vadd.f32 %v1903, 1.0
    %v1907 = vadd.f32 %v1905, 1.0
    %v1908 = vrcp.pop %v1906
    %v1909 = vmul.f32 1.0, %v1908
    %v1910 = vrcp.pop %v1907
    %v1911 = vmul.f32 1.0, %v1910
    %v1912 = vtanh.pop %v1884
    %v1913 = vtanh.pop %v1885
    %v1914 = vxor.u32 %v1886, 2147483648
    %v1915 = vxor.u32 %v1887, 2147483648
    %v1916 = vmul.f32 %v1914, 1.442695
    %v1917 = vpow.pop %v1916
    %v1918 = vmul.f32 %v1915, 1.442695
    %v1919 = vpow.pop %v1918
    %v1920 = vadd.f32 %v1917, 1.0
    %v1921 = vadd.f32 %v1919, 1.0
    %v1922 = vrcp.pop %v1920
    %v1923 = vmul.f32 1.0, %v1922
    %v1924 = vrcp.pop %v1921
    %v1925 = vmul.f32 1.0, %v1924
    %v1926 = vmul.f32 %v1909, %v1324
    %v1927 = vmul.f32 %v1911, %v1325
    %v1928 = vmul.f32 %v1897, %v1912
    %v1929 = vmul.f32 %v1899, %v1913
    %v1930 = vadd.f32 %v1926, %v1928
    %v1931 = vadd.f32 %v1927, %v1929
    %v1932 = vtanh.pop %v1930
    %v1933 = vtanh.pop %v1931
    %v1934 = vmul.f32 %v1923, %v1932
    %v1935 = vmul.f32 %v1925, %v1933
    %1936 = vst [vmem:[#allocation3 + $0x10] sm:$0xff] %v1934
    %1937 = vst [vmem:[#allocation3 + $0x68] sm:$0xff] %v1935
    %v1938 = vld [vmem:[#allocation2 + $0x80] sm:$0xff]
    %v1939 = vld [vmem:[#allocation2 + $0x88] sm:$0xff]
    %v1940 = vld [vmem:[#allocation2 + $0x90] sm:$0xff]
    %v1941 = vld [vmem:[#allocation2 + $0x98] sm:$0xff]
    %v1942 = vld [vmem:[#allocation2 + $0xa0] sm:$0xff]
    %v1943 = vld [vmem:[#allocation2 + $0xa8] sm:$0xff]
    %v1944 = vld [vmem:[#allocation2 + $0xb0] sm:$0xff]
    %v1945 = vld [vmem:[#allocation2 + $0xb8] sm:$0xff]
    %v1946 = vld [vmem:[#allocation4] sm:$0xff]
    %v1947 = vld [vmem:[#allocation4 + $0x8] sm:$0xff]
    %v1948 = vld [vmem:[#allocation4 + $0x10] sm:$0xff]
    %v1949 = vld [vmem:[#allocation4 + $0x18] sm:$0xff]
    %v1950 = vld [vmem:[#allocation4 + $0x20] sm:$0xff]
    %v1951 = vld [vmem:[#allocation4 + $0x28] sm:$0xff]
    %v1952 = vld [vmem:[#allocation4 + $0x30] sm:$0xff]
    %v1953 = vld [vmem:[#allocation4 + $0x38] sm:$0xff]
    %v1954 = vld [vmem:[#allocation4 + $0x40] sm:$0xff]
    %v1955 = vld [vmem:[#allocation4 + $0x48] sm:$0xff]
    %v1956 = vld [vmem:[#allocation4 + $0x50] sm:$0xff]
    %v1957 = vld [vmem:[#allocation4 + $0x58] sm:$0xff]
    %v1958 = vld [vmem:[#allocation4 + $0x60] sm:$0xff]
    %v1959 = vld [vmem:[#allocation4 + $0x68] sm:$0xff]
    %v1960 = vld [vmem:[#allocation4 + $0x70] sm:$0xff]
    %v1961 = vld [vmem:[#allocation4 + $0x78] sm:$0xff]
    %v1962 = vld [vmem:[#allocation4 + $0x80] sm:$0xff]
    %v1963 = vld [vmem:[#allocation4 + $0x88] sm:$0xff]
    %v1964 = vld [vmem:[#allocation4 + $0x90] sm:$0xff]
    %v1965 = vld [vmem:[#allocation4 + $0x98] sm:$0xff]
    %v1966 = vld [vmem:[#allocation4 + $0xa0] sm:$0xff]
    %v1967 = vld [vmem:[#allocation4 + $0xa8] sm:$0xff]
    %v1968 = vld [vmem:[#allocation4 + $0xb0] sm:$0xff]
    %v1969 = vld [vmem:[#allocation4 + $0xb8] sm:$0xff]
    %v1970 = vld [vmem:[#allocation4 + $0xc0] sm:$0xff]
    %v1971 = vld [vmem:[#allocation4 + $0xc8] sm:$0xff]
    %v1972 = vld [vmem:[#allocation4 + $0xd0] sm:$0xff]
    %v1973 = vld [vmem:[#allocation4 + $0xd8] sm:$0xff]
    %v1974 = vld [vmem:[#allocation4 + $0xe0] sm:$0xff]
    %v1975 = vld [vmem:[#allocation4 + $0xe8] sm:$0xff]
    %v1976 = vld [vmem:[#allocation4 + $0xf0] sm:$0xff]
    %v1977 = vld [vmem:[#allocation4 + $0xf8] sm:$0xff]
    %v1978 = vld [vmem:[#allocation4 + $0x100] sm:$0xff]
    %v1979 = vld [vmem:[#allocation4 + $0x108] sm:$0xff]
    %v1980 = vld [vmem:[#allocation4 + $0x110] sm:$0xff]
    %v1981 = vld [vmem:[#allocation4 + $0x118] sm:$0xff]
    %v1982 = vld [vmem:[#allocation4 + $0x120] sm:$0xff]
    %v1983 = vld [vmem:[#allocation4 + $0x128] sm:$0xff]
    %v1984 = vld [vmem:[#allocation4 + $0x130] sm:$0xff]
    %v1985 = vld [vmem:[#allocation4 + $0x138] sm:$0xff]
    %v1986 = vld [vmem:[#allocation4 + $0x140] sm:$0xff]
    %v1987 = vld [vmem:[#allocation4 + $0x148] sm:$0xff]
    %v1988 = vld [vmem:[#allocation4 + $0x150] sm:$0xff]
    %v1989 = vld [vmem:[#allocation4 + $0x158] sm:$0xff]
    %v1990 = vld [vmem:[#allocation4 + $0x160] sm:$0xff]
    %v1991 = vld [vmem:[#allocation4 + $0x168] sm:$0xff]
    %v1992 = vld [vmem:[#allocation4 + $0x170] sm:$0xff]
    %v1993 = vld [vmem:[#allocation4 + $0x178] sm:$0xff]
    %v1994 = vld [vmem:[#allocation4 + $0x180] sm:$0xff]
    %v1995 = vld [vmem:[#allocation4 + $0x188] sm:$0xff]
    %v1996 = vld [vmem:[#allocation4 + $0x190] sm:$0xff]
    %v1997 = vld [vmem:[#allocation4 + $0x198] sm:$0xff]
    %v1998 = vld [vmem:[#allocation4 + $0x1a0] sm:$0xff]
    %v1999 = vld [vmem:[#allocation4 + $0x1a8] sm:$0xff]
    %v2000 = vld [vmem:[#allocation4 + $0x1b0] sm:$0xff]
    %v2001 = vld [vmem:[#allocation4 + $0x1b8] sm:$0xff]
    %v2002 = vld [vmem:[#allocation4 + $0x1c0] sm:$0xff]
    %v2003 = vld [vmem:[#allocation4 + $0x1c8] sm:$0xff]
    %v2004 = vld [vmem:[#allocation4 + $0x1d0] sm:$0xff]
    %v2005 = vld [vmem:[#allocation4 + $0x1d8] sm:$0xff]
    %v2006 = vld [vmem:[#allocation4 + $0x1e0] sm:$0xff]
    %v2007 = vld [vmem:[#allocation4 + $0x1e8] sm:$0xff]
    %v2008 = vld [vmem:[#allocation4 + $0x1f0] sm:$0xff]
    %v2009 = vld [vmem:[#allocation4 + $0x1f8] sm:$0xff]
    %v2010 = vld [vmem:[#allocation4 + $0x200] sm:$0xff]
    %v2011 = vld [vmem:[#allocation4 + $0x208] sm:$0xff]
    %v2012 = vld [vmem:[#allocation4 + $0x210] sm:$0xff]
    %v2013 = vld [vmem:[#allocation4 + $0x218] sm:$0xff]
    %v2014 = vld [vmem:[#allocation4 + $0x220] sm:$0xff]
    %v2015 = vld [vmem:[#allocation4 + $0x228] sm:$0xff]
    %v2016 = vld [vmem:[#allocation4 + $0x230] sm:$0xff]
    %v2017 = vld [vmem:[#allocation4 + $0x238] sm:$0xff]
    %v2018 = vld [vmem:[#allocation4 + $0x240] sm:$0xff]
    %v2019 = vld [vmem:[#allocation4 + $0x248] sm:$0xff]
    %v2020 = vld [vmem:[#allocation4 + $0x250] sm:$0xff]
    %v2021 = vld [vmem:[#allocation4 + $0x258] sm:$0xff]
    %v2022 = vld [vmem:[#allocation4 + $0x260] sm:$0xff]
    %v2023 = vld [vmem:[#allocation4 + $0x268] sm:$0xff]
    %v2024 = vld [vmem:[#allocation4 + $0x270] sm:$0xff]
    %v2025 = vld [vmem:[#allocation4 + $0x278] sm:$0xff]
    %v2026 = vld [vmem:[#allocation4 + $0x280] sm:$0xff]
    %v2027 = vld [vmem:[#allocation4 + $0x288] sm:$0xff]
    %v2028 = vld [vmem:[#allocation4 + $0x290] sm:$0xff]
    %v2029 = vld [vmem:[#allocation4 + $0x298] sm:$0xff]
    %v2030 = vld [vmem:[#allocation4 + $0x2a0] sm:$0xff]
    %v2031 = vld [vmem:[#allocation4 + $0x2a8] sm:$0xff]
    %v2032 = vld [vmem:[#allocation4 + $0x2b0] sm:$0xff]
    %v2033 = vld [vmem:[#allocation4 + $0x2b8] sm:$0xff]
    %v2034 = vld [vmem:[#allocation4 + $0x2c0] sm:$0xff]
    %v2035 = vld [vmem:[#allocation4 + $0x2c8] sm:$0xff]
    %v2036 = vld [vmem:[#allocation4 + $0x2d0] sm:$0xff]
    %v2037 = vld [vmem:[#allocation4 + $0x2d8] sm:$0xff]
    %v2038 = vld [vmem:[#allocation4 + $0x2e0] sm:$0xff]
    %v2039 = vld [vmem:[#allocation4 + $0x2e8] sm:$0xff]
    %v2040 = vld [vmem:[#allocation4 + $0x2f0] sm:$0xff]
    %v2041 = vld [vmem:[#allocation4 + $0x2f8] sm:$0xff]
    %v2042 = vld [vmem:[#allocation4 + $0x300] sm:$0xff]
    %v2043 = vld [vmem:[#allocation4 + $0x308] sm:$0xff]
    %v2044 = vld [vmem:[#allocation4 + $0x310] sm:$0xff]
    %v2045 = vld [vmem:[#allocation4 + $0x318] sm:$0xff]
    %v2046 = vld [vmem:[#allocation4 + $0x320] sm:$0xff]
    %v2047 = vld [vmem:[#allocation4 + $0x328] sm:$0xff]
    %v2048 = vld [vmem:[#allocation4 + $0x330] sm:$0xff]
    %v2049 = vld [vmem:[#allocation4 + $0x338] sm:$0xff]
    %v2050 = vld [vmem:[#allocation4 + $0x340] sm:$0xff]
    %v2051 = vld [vmem:[#allocation4 + $0x348] sm:$0xff]
    %v2052 = vld [vmem:[#allocation4 + $0x350] sm:$0xff]
    %v2053 = vld [vmem:[#allocation4 + $0x358] sm:$0xff]
    %v2054 = vld [vmem:[#allocation4 + $0x360] sm:$0xff]
    %v2055 = vld [vmem:[#allocation4 + $0x368] sm:$0xff]
    %v2056 = vld [vmem:[#allocation4 + $0x370] sm:$0xff]
    %v2057 = vld [vmem:[#allocation4 + $0x378] sm:$0xff]
    %v2058 = vld [vmem:[#allocation4 + $0x380] sm:$0xff]
    %v2059 = vld [vmem:[#allocation4 + $0x388] sm:$0xff]
    %v2060 = vld [vmem:[#allocation4 + $0x390] sm:$0xff]
    %v2061 = vld [vmem:[#allocation4 + $0x398] sm:$0xff]
    %v2062 = vld [vmem:[#allocation4 + $0x3a0] sm:$0xff]
    %v2063 = vld [vmem:[#allocation4 + $0x3a8] sm:$0xff]
    %v2064 = vld [vmem:[#allocation4 + $0x3b0] sm:$0xff]
    %v2065 = vld [vmem:[#allocation4 + $0x3b8] sm:$0xff]
    %v2066 = vld [vmem:[#allocation4 + $0x3c0] sm:$0xff]
    %v2067 = vld [vmem:[#allocation4 + $0x3c8] sm:$0xff]
    %v2068 = vld [vmem:[#allocation4 + $0x3d0] sm:$0xff]
    %v2069 = vld [vmem:[#allocation4 + $0x3d8] sm:$0xff]
    %v2070 = vld [vmem:[#allocation4 + $0x3e0] sm:$0xff]
    %v2071 = vld [vmem:[#allocation4 + $0x3e8] sm:$0xff]
    %v2072 = vld [vmem:[#allocation4 + $0x3f0] sm:$0xff]
    %v2073 = vld [vmem:[#allocation4 + $0x3f8] sm:$0xff]
    %v2074 = vld [vmem:[#allocation4 + $0x400] sm:$0xff]
    %v2075 = vld [vmem:[#allocation4 + $0x408] sm:$0xff]
    %v2076 = vld [vmem:[#allocation4 + $0x410] sm:$0xff]
    %v2077 = vld [vmem:[#allocation4 + $0x418] sm:$0xff]
    %v2078 = vld [vmem:[#allocation4 + $0x420] sm:$0xff]
    %v2079 = vld [vmem:[#allocation4 + $0x428] sm:$0xff]
    %v2080 = vld [vmem:[#allocation4 + $0x430] sm:$0xff]
    %v2081 = vld [vmem:[#allocation4 + $0x438] sm:$0xff]
    %v2082 = vld [vmem:[#allocation4 + $0x440] sm:$0xff]
    %v2083 = vld [vmem:[#allocation4 + $0x448] sm:$0xff]
    %v2084 = vld [vmem:[#allocation4 + $0x450] sm:$0xff]
    %v2085 = vld [vmem:[#allocation4 + $0x458] sm:$0xff]
    %v2086 = vld [vmem:[#allocation4 + $0x460] sm:$0xff]
    %v2087 = vld [vmem:[#allocation4 + $0x468] sm:$0xff]
    %v2088 = vld [vmem:[#allocation4 + $0x470] sm:$0xff]
    %v2089 = vld [vmem:[#allocation4 + $0x478] sm:$0xff]
    %v2090 = vld [vmem:[#allocation4 + $0x480] sm:$0xff]
    %v2091 = vld [vmem:[#allocation4 + $0x488] sm:$0xff]
    %v2092 = vld [vmem:[#allocation4 + $0x490] sm:$0xff]
    %v2093 = vld [vmem:[#allocation4 + $0x498] sm:$0xff]
    %v2094 = vld [vmem:[#allocation4 + $0x4a0] sm:$0xff]
    %v2095 = vld [vmem:[#allocation4 + $0x4a8] sm:$0xff]
    %v2096 = vld [vmem:[#allocation4 + $0x4b0] sm:$0xff]
    %v2097 = vld [vmem:[#allocation4 + $0x4b8] sm:$0xff]
    %v2098 = vld [vmem:[#allocation4 + $0x4c0] sm:$0xff]
    %v2099 = vld [vmem:[#allocation4 + $0x4c8] sm:$0xff]
    %v2100 = vld [vmem:[#allocation4 + $0x4d0] sm:$0xff]
    %v2101 = vld [vmem:[#allocation4 + $0x4d8] sm:$0xff]
    %v2102 = vld [vmem:[#allocation4 + $0x4e0] sm:$0xff]
    %v2103 = vld [vmem:[#allocation4 + $0x4e8] sm:$0xff]
    %v2104 = vld [vmem:[#allocation4 + $0x4f0] sm:$0xff]
    %v2105 = vld [vmem:[#allocation4 + $0x4f8] sm:$0xff]
    %v2106 = vld [vmem:[#allocation4 + $0x500] sm:$0xff]
    %v2107 = vld [vmem:[#allocation4 + $0x508] sm:$0xff]
    %v2108 = vld [vmem:[#allocation4 + $0x510] sm:$0xff]
    %v2109 = vld [vmem:[#allocation4 + $0x518] sm:$0xff]
    %v2110 = vld [vmem:[#allocation4 + $0x520] sm:$0xff]
    %v2111 = vld [vmem:[#allocation4 + $0x528] sm:$0xff]
    %v2112 = vld [vmem:[#allocation4 + $0x530] sm:$0xff]
    %v2113 = vld [vmem:[#allocation4 + $0x538] sm:$0xff]
    %v2114 = vld [vmem:[#allocation4 + $0x540] sm:$0xff]
    %v2115 = vld [vmem:[#allocation4 + $0x548] sm:$0xff]
    %v2116 = vld [vmem:[#allocation4 + $0x550] sm:$0xff]
    %v2117 = vld [vmem:[#allocation4 + $0x558] sm:$0xff]
    %v2118 = vld [vmem:[#allocation4 + $0x560] sm:$0xff]
    %v2119 = vld [vmem:[#allocation4 + $0x568] sm:$0xff]
    %v2120 = vld [vmem:[#allocation4 + $0x570] sm:$0xff]
    %v2121 = vld [vmem:[#allocation4 + $0x578] sm:$0xff]
    %v2122 = vld [vmem:[#allocation4 + $0x580] sm:$0xff]
    %v2123 = vld [vmem:[#allocation4 + $0x588] sm:$0xff]
    %v2124 = vld [vmem:[#allocation4 + $0x590] sm:$0xff]
    %v2125 = vld [vmem:[#allocation4 + $0x598] sm:$0xff]
    %v2126 = vld [vmem:[#allocation4 + $0x5a0] sm:$0xff]
    %v2127 = vld [vmem:[#allocation4 + $0x5a8] sm:$0xff]
    %v2128 = vld [vmem:[#allocation4 + $0x5b0] sm:$0xff]
    %v2129 = vld [vmem:[#allocation4 + $0x5b8] sm:$0xff]
    %v2130 = vld [vmem:[#allocation4 + $0x5c0] sm:$0xff]
    %v2131 = vld [vmem:[#allocation4 + $0x5c8] sm:$0xff]
    %v2132 = vld [vmem:[#allocation4 + $0x5d0] sm:$0xff]
    %v2133 = vld [vmem:[#allocation4 + $0x5d8] sm:$0xff]
    %v2134 = vld [vmem:[#allocation4 + $0x5e0] sm:$0xff]
    %v2135 = vld [vmem:[#allocation4 + $0x5e8] sm:$0xff]
    %v2136 = vld [vmem:[#allocation4 + $0x5f0] sm:$0xff]
    %v2137 = vld [vmem:[#allocation4 + $0x5f8] sm:$0xff]
    %v2138 = vld [vmem:[#allocation4 + $0x600] sm:$0xff]
    %v2139 = vld [vmem:[#allocation4 + $0x608] sm:$0xff]
    %v2140 = vld [vmem:[#allocation4 + $0x610] sm:$0xff]
    %v2141 = vld [vmem:[#allocation4 + $0x618] sm:$0xff]
    %v2142 = vld [vmem:[#allocation4 + $0x620] sm:$0xff]
    %v2143 = vld [vmem:[#allocation4 + $0x628] sm:$0xff]
    %v2144 = vld [vmem:[#allocation4 + $0x630] sm:$0xff]
    %v2145 = vld [vmem:[#allocation4 + $0x638] sm:$0xff]
    %v2146 = vld [vmem:[#allocation4 + $0x640] sm:$0xff]
    %v2147 = vld [vmem:[#allocation4 + $0x648] sm:$0xff]
    %v2148 = vld [vmem:[#allocation4 + $0x650] sm:$0xff]
    %v2149 = vld [vmem:[#allocation4 + $0x658] sm:$0xff]
    %v2150 = vld [vmem:[#allocation4 + $0x660] sm:$0xff]
    %v2151 = vld [vmem:[#allocation4 + $0x668] sm:$0xff]
    %v2152 = vld [vmem:[#allocation4 + $0x670] sm:$0xff]
    %v2153 = vld [vmem:[#allocation4 + $0x678] sm:$0xff]
    %v2154 = vld [vmem:[#allocation4 + $0x680] sm:$0xff]
    %v2155 = vld [vmem:[#allocation4 + $0x688] sm:$0xff]
    %v2156 = vld [vmem:[#allocation4 + $0x690] sm:$0xff]
    %v2157 = vld [vmem:[#allocation4 + $0x698] sm:$0xff]
    %v2158 = vld [vmem:[#allocation4 + $0x6a0] sm:$0xff]
    %v2159 = vld [vmem:[#allocation4 + $0x6a8] sm:$0xff]
    %v2160 = vld [vmem:[#allocation4 + $0x6b0] sm:$0xff]
    %v2161 = vld [vmem:[#allocation4 + $0x6b8] sm:$0xff]
    %v2162 = vld [vmem:[#allocation4 + $0x6c0] sm:$0xff]
    %v2163 = vld [vmem:[#allocation4 + $0x6c8] sm:$0xff]
    %v2164 = vld [vmem:[#allocation4 + $0x6d0] sm:$0xff]
    %v2165 = vld [vmem:[#allocation4 + $0x6d8] sm:$0xff]
    %v2166 = vld [vmem:[#allocation4 + $0x6e0] sm:$0xff]
    %v2167 = vld [vmem:[#allocation4 + $0x6e8] sm:$0xff]
    %v2168 = vld [vmem:[#allocation4 + $0x6f0] sm:$0xff]
    %v2169 = vld [vmem:[#allocation4 + $0x6f8] sm:$0xff]
    %v2170 = vld [vmem:[#allocation4 + $0x700] sm:$0xff]
    %v2171 = vld [vmem:[#allocation4 + $0x708] sm:$0xff]
    %v2172 = vld [vmem:[#allocation4 + $0x710] sm:$0xff]
    %v2173 = vld [vmem:[#allocation4 + $0x718] sm:$0xff]
    %v2174 = vld [vmem:[#allocation4 + $0x720] sm:$0xff]
    %v2175 = vld [vmem:[#allocation4 + $0x728] sm:$0xff]
    %v2176 = vld [vmem:[#allocation4 + $0x730] sm:$0xff]
    %v2177 = vld [vmem:[#allocation4 + $0x738] sm:$0xff]
    %v2178 = vld [vmem:[#allocation4 + $0x740] sm:$0xff]
    %v2179 = vld [vmem:[#allocation4 + $0x748] sm:$0xff]
    %v2180 = vld [vmem:[#allocation4 + $0x750] sm:$0xff]
    %v2181 = vld [vmem:[#allocation4 + $0x758] sm:$0xff]
    %v2182 = vld [vmem:[#allocation4 + $0x760] sm:$0xff]
    %v2183 = vld [vmem:[#allocation4 + $0x768] sm:$0xff]
    %v2184 = vld [vmem:[#allocation4 + $0x770] sm:$0xff]
    %v2185 = vld [vmem:[#allocation4 + $0x778] sm:$0xff]
    %v2186 = vld [vmem:[#allocation4 + $0x780] sm:$0xff]
    %v2187 = vld [vmem:[#allocation4 + $0x788] sm:$0xff]
    %v2188 = vld [vmem:[#allocation4 + $0x790] sm:$0xff]
    %v2189 = vld [vmem:[#allocation4 + $0x798] sm:$0xff]
    %v2190 = vld [vmem:[#allocation4 + $0x7a0] sm:$0xff]
    %v2191 = vld [vmem:[#allocation4 + $0x7a8] sm:$0xff]
    %v2192 = vld [vmem:[#allocation4 + $0x7b0] sm:$0xff]
    %v2193 = vld [vmem:[#allocation4 + $0x7b8] sm:$0xff]
    %v2194 = vld [vmem:[#allocation4 + $0x7c0] sm:$0xff]
    %v2195 = vld [vmem:[#allocation4 + $0x7c8] sm:$0xff]
    %v2196 = vld [vmem:[#allocation4 + $0x7d0] sm:$0xff]
    %v2197 = vld [vmem:[#allocation4 + $0x7d8] sm:$0xff]
    %v2198 = vld [vmem:[#allocation4 + $0x7e0] sm:$0xff]
    %v2199 = vld [vmem:[#allocation4 + $0x7e8] sm:$0xff]
    %v2200 = vld [vmem:[#allocation4 + $0x7f0] sm:$0xff]
    %v2201 = vld [vmem:[#allocation4 + $0x7f8] sm:$0xff]
    %2202 = vmatprep.subr.mxu0 %v1947
    %2203 = vmatpush1.msra.mxu0 %v1946
    %2204 = vmatprep.subr.mxu0 %v1955
    %2205 = vmatpush1.msra.mxu0 %v1954
    %2206 = vmatprep.subr.mxu0 %v1963
    %2207 = vmatpush1.msra.mxu0 %v1962
    %2208 = vmatprep.subr.mxu0 %v1971
    %2209 = vmatpush1.msra.mxu0 %v1970
    %2210 = vmatprep.subr.mxu0 %v1979
    %2211 = vmatpush1.msra.mxu0 %v1978
    %2212 = vmatprep.subr.mxu0 %v1987
    %2213 = vmatpush1.msra.mxu0 %v1986
    %2214 = vmatprep.subr.mxu0 %v1995
    %2215 = vmatpush1.msra.mxu0 %v1994
    %2216 = vmatprep.subr.mxu0 %v2003
    %2217 = vmatpush1.msra.mxu0 %v2002
    %2218 = vmatprep.subr.mxu0 %v2011
    %2219 = vmatpush1.msra.mxu0 %v2010
    %2220 = vmatprep.subr.mxu0 %v2019
    %2221 = vmatpush1.msra.mxu0 %v2018
    %2222 = vmatprep.subr.mxu0 %v2027
    %2223 = vmatpush1.msra.mxu0 %v2026
    %2224 = vmatprep.subr.mxu0 %v2035
    %2225 = vmatpush1.msra.mxu0 %v2034
    %2226 = vmatprep.subr.mxu0 %v2043
    %2227 = vmatpush1.msra.mxu0 %v2042
    %2228 = vmatprep.subr.mxu0 %v2051
    %2229 = vmatpush1.msra.mxu0 %v2050
    %2230 = vmatprep.subr.mxu0 %v2059
    %2231 = vmatpush1.msra.mxu0 %v2058
    %2232 = vmatprep.subr.mxu0 %v2067
    %2233 = vmatpush1.msra.mxu0 %v2066
    %2234 = vmatprep.subr.mxu0 %v2075
    %2235 = vmatpush1.msra.mxu0 %v2074
    %2236 = vmatprep.subr.mxu0 %v2083
    %2237 = vmatpush1.msra.mxu0 %v2082
    %2238 = vmatprep.subr.mxu0 %v2091
    %2239 = vmatpush1.msra.mxu0 %v2090
    %2240 = vmatprep.subr.mxu0 %v2099
    %2241 = vmatpush1.msra.mxu0 %v2098
    %2242 = vmatprep.subr.mxu0 %v2107
    %2243 = vmatpush1.msra.mxu0 %v2106
    %2244 = vmatprep.subr.mxu0 %v2115
    %2245 = vmatpush1.msra.mxu0 %v2114
    %2246 = vmatprep.subr.mxu0 %v2123
    %2247 = vmatpush1.msra.mxu0 %v2122
    %2248 = vmatprep.subr.mxu0 %v2131
    %2249 = vmatpush1.msra.mxu0 %v2130
    %2250 = vmatprep.subr.mxu0 %v2139
    %2251 = vmatpush1.msra.mxu0 %v2138
    %2252 = vmatprep.subr.mxu0 %v2147
    %2253 = vmatpush1.msra.mxu0 %v2146
    %2254 = vmatprep.subr.mxu0 %v2155
    %2255 = vmatpush1.msra.mxu0 %v2154
    %2256 = vmatprep.subr.mxu0 %v2163
    %2257 = vmatpush1.msra.mxu0 %v2162
    %2258 = vmatprep.subr.mxu0 %v2171
    %2259 = vmatpush1.msra.mxu0 %v2170
    %2260 = vmatprep.subr.mxu0 %v2179
    %2261 = vmatpush1.msra.mxu0 %v2178
    %2262 = vmatprep.subr.mxu0 %v2187
    %2263 = vmatpush1.msra.mxu0 %v2186
    %2264 = vmatprep.subr.mxu0 %v2195
    %2265 = vmatpush1.msra.mxu0 %v2194
    %2266 = vmatprep.mubr.f32.mxu0 %v1935
    %2267 = vmatmul.mubr.f32.gmra.mrb[0].mxu0 %v1934
    %v2268 = vpop.f32.mrb[0].mxu0
    %v2269 = vadd.f32 0.0, %v2268
    %v2270 = vpop.f32.mrb[0].mxu0
    %v2271 = vadd.f32 0.0, %v2270
    %2272 = vdwg.mxu0
    %2273 = vmatprep.subr.mxu0 %v1949
    %2274 = vmatpush1.msra.mxu0 %v1948
    %2275 = vmatprep.subr.mxu0 %v1957
    %2276 = vmatpush1.msra.mxu0 %v1956
    %2277 = vmatprep.subr.mxu0 %v1965
    %2278 = vmatpush1.msra.mxu0 %v1964
    %2279 = vmatprep.subr.mxu0 %v1973
    %2280 = vmatpush1.msra.mxu0 %v1972
    %2281 = vmatprep.subr.mxu0 %v1981
    %2282 = vmatpush1.msra.mxu0 %v1980
    %2283 = vmatprep.subr.mxu0 %v1989
    %2284 = vmatpush1.msra.mxu0 %v1988
    %2285 = vmatprep.subr.mxu0 %v1997
    %2286 = vmatpush1.msra.mxu0 %v1996
    %2287 = vmatprep.subr.mxu0 %v2005
    %2288 = vmatpush1.msra.mxu0 %v2004
    %2289 = vmatprep.subr.mxu0 %v2013
    %2290 = vmatpush1.msra.mxu0 %v2012
    %2291 = vmatprep.subr.mxu0 %v2021
    %2292 = vmatpush1.msra.mxu0 %v2020
    %2293 = vmatprep.subr.mxu0 %v2029
    %2294 = vmatpush1.msra.mxu0 %v2028
    %2295 = vmatprep.subr.mxu0 %v2037
    %2296 = vmatpush1.msra.mxu0 %v2036
    %2297 = vmatprep.subr.mxu0 %v2045
    %2298 = vmatpush1.msra.mxu0 %v2044
    %2299 = vmatprep.subr.mxu0 %v2053
    %2300 = vmatpush1.msra.mxu0 %v2052
    %2301 = vmatprep.subr.mxu0 %v2061
    %2302 = vmatpush1.msra.mxu0 %v2060
    %2303 = vmatprep.subr.mxu0 %v2069
    %2304 = vmatpush1.msra.mxu0 %v2068
    %2305 = vmatprep.subr.mxu0 %v2077
    %2306 = vmatpush1.msra.mxu0 %v2076
    %2307 = vmatprep.subr.mxu0 %v2085
    %2308 = vmatpush1.msra.mxu0 %v2084
    %2309 = vmatprep.subr.mxu0 %v2093
    %2310 = vmatpush1.msra.mxu0 %v2092
    %2311 = vmatprep.subr.mxu0 %v2101
    %2312 = vmatpush1.msra.mxu0 %v2100
    %2313 = vmatprep.subr.mxu0 %v2109
    %2314 = vmatpush1.msra.mxu0 %v2108
    %2315 = vmatprep.subr.mxu0 %v2117
    %2316 = vmatpush1.msra.mxu0 %v2116
    %2317 = vmatprep.subr.mxu0 %v2125
    %2318 = vmatpush1.msra.mxu0 %v2124
    %2319 = vmatprep.subr.mxu0 %v2133
    %2320 = vmatpush1.msra.mxu0 %v2132
    %2321 = vmatprep.subr.mxu0 %v2141
    %2322 = vmatpush1.msra.mxu0 %v2140
    %2323 = vmatprep.subr.mxu0 %v2149
    %2324 = vmatpush1.msra.mxu0 %v2148
    %2325 = vmatprep.subr.mxu0 %v2157
    %2326 = vmatpush1.msra.mxu0 %v2156
    %2327 = vmatprep.subr.mxu0 %v2165
    %2328 = vmatpush1.msra.mxu0 %v2164
    %2329 = vmatprep.subr.mxu0 %v2173
    %2330 = vmatpush1.msra.mxu0 %v2172
    %2331 = vmatprep.subr.mxu0 %v2181
    %2332 = vmatpush1.msra.mxu0 %v2180
    %2333 = vmatprep.subr.mxu0 %v2189
    %2334 = vmatpush1.msra.mxu0 %v2188
    %2335 = vmatprep.subr.mxu0 %v2197
    %2336 = vmatpush1.msra.mxu0 %v2196
    %2337 = vmatprep.mubr.f32.mxu0 %v1935
    %2338 = vmatmul.mubr.f32.gmra.mrb[0].mxu0 %v1934
    %v2339 = vpop.f32.mrb[0].mxu0
    %v2340 = vadd.f32 0.0, %v2339
    %v2341 = vpop.f32.mrb[0].mxu0
    %v2342 = vadd.f32 0.0, %v2341
    %2343 = vdwg.mxu0
    %2344 = vmatprep.subr.mxu0 %v1951
    %2345 = vmatpush1.msra.mxu0 %v1950
    %2346 = vmatprep.subr.mxu0 %v1959
    %2347 = vmatpush1.msra.mxu0 %v1958
    %2348 = vmatprep.subr.mxu0 %v1967
    %2349 = vmatpush1.msra.mxu0 %v1966
    %2350 = vmatprep.subr.mxu0 %v1975
    %2351 = vmatpush1.msra.mxu0 %v1974
    %2352 = vmatprep.subr.mxu0 %v1983
    %2353 = vmatpush1.msra.mxu0 %v1982
    %2354 = vmatprep.subr.mxu0 %v1991
    %2355 = vmatpush1.msra.mxu0 %v1990
    %2356 = vmatprep.subr.mxu0 %v1999
    %2357 = vmatpush1.msra.mxu0 %v1998
    %2358 = vmatprep.subr.mxu0 %v2007
    %2359 = vmatpush1.msra.mxu0 %v2006
    %2360 = vmatprep.subr.mxu0 %v2015
    %2361 = vmatpush1.msra.mxu0 %v2014
    %2362 = vmatprep.subr.mxu0 %v2023
    %2363 = vmatpush1.msra.mxu0 %v2022
    %2364 = vmatprep.subr.mxu0 %v2031
    %2365 = vmatpush1.msra.mxu0 %v2030
    %2366 = vmatprep.subr.mxu0 %v2039
    %2367 = vmatpush1.msra.mxu0 %v2038
    %2368 = vmatprep.subr.mxu0 %v2047
    %2369 = vmatpush1.msra.mxu0 %v2046
    %2370 = vmatprep.subr.mxu0 %v2055
    %2371 = vmatpush1.msra.mxu0 %v2054
    %2372 = vmatprep.subr.mxu0 %v2063
    %2373 = vmatpush1.msra.mxu0 %v2062
    %2374 = vmatprep.subr.mxu0 %v2071
    %2375 = vmatpush1.msra.mxu0 %v2070
    %2376 = vmatprep.subr.mxu0 %v2079
    %2377 = vmatpush1.msra.mxu0 %v2078
    %2378 = vmatprep.subr.mxu0 %v2087
    %2379 = vmatpush1.msra.mxu0 %v2086
    %2380 = vmatprep.subr.mxu0 %v2095
    %2381 = vmatpush1.msra.mxu0 %v2094
    %2382 = vmatprep.subr.mxu0 %v2103
    %2383 = vmatpush1.msra.mxu0 %v2102
    %2384 = vmatprep.subr.mxu0 %v2111
    %2385 = vmatpush1.msra.mxu0 %v2110
    %2386 = vmatprep.subr.mxu0 %v2119
    %2387 = vmatpush1.msra.mxu0 %v2118
    %2388 = vmatprep.subr.mxu0 %v2127
    %2389 = vmatpush1.msra.mxu0 %v2126
    %2390 = vmatprep.subr.mxu0 %v2135
    %2391 = vmatpush1.msra.mxu0 %v2134
    %2392 = vmatprep.subr.mxu0 %v2143
    %2393 = vmatpush1.msra.mxu0 %v2142
    %2394 = vmatprep.subr.mxu0 %v2151
    %2395 = vmatpush1.msra.mxu0 %v2150
    %2396 = vmatprep.subr.mxu0 %v2159
    %2397 = vmatpush1.msra.mxu0 %v2158
    %2398 = vmatprep.subr.mxu0 %v2167
    %2399 = vmatpush1.msra.mxu0 %v2166
    %2400 = vmatprep.subr.mxu0 %v2175
    %2401 = vmatpush1.msra.mxu0 %v2174
    %2402 = vmatprep.subr.mxu0 %v2183
    %2403 = vmatpush1.msra.mxu0 %v2182
    %2404 = vmatprep.subr.mxu0 %v2191
    %2405 = vmatpush1.msra.mxu0 %v2190
    %2406 = vmatprep.subr.mxu0 %v2199
    %2407 = vmatpush1.msra.mxu0 %v2198
    %2408 = vmatprep.mubr.f32.mxu0 %v1935
    %2409 = vmatmul.mubr.f32.gmra.mrb[0].mxu0 %v1934
    %v2410 = vpop.f32.mrb[0].mxu0
    %v2411 = vadd.f32 0.0, %v2410
    %v2412 = vpop.f32.mrb[0].mxu0
    %v2413 = vadd.f32 0.0, %v2412
    %2414 = vdwg.mxu0
    %2415 = vmatprep.subr.mxu0 %v1953
    %2416 = vmatpush1.msra.mxu0 %v1952
    %2417 = vmatprep.subr.mxu0 %v1961
    %2418 = vmatpush1.msra.mxu0 %v1960
    %2419 = vmatprep.subr.mxu0 %v1969
    %2420 = vmatpush1.msra.mxu0 %v1968
    %2421 = vmatprep.subr.mxu0 %v1977
    %2422 = vmatpush1.msra.mxu0 %v1976
    %2423 = vmatprep.subr.mxu0 %v1985
    %2424 = vmatpush1.msra.mxu0 %v1984
    %2425 = vmatprep.subr.mxu0 %v1993
    %2426 = vmatpush1.msra.mxu0 %v1992
    %2427 = vmatprep.subr.mxu0 %v2001
    %2428 = vmatpush1.msra.mxu0 %v2000
    %2429 = vmatprep.subr.mxu0 %v2009
    %2430 = vmatpush1.msra.mxu0 %v2008
    %2431 = vmatprep.subr.mxu0 %v2017
    %2432 = vmatpush1.msra.mxu0 %v2016
    %2433 = vmatprep.subr.mxu0 %v2025
    %2434 = vmatpush1.msra.mxu0 %v2024
    %2435 = vmatprep.subr.mxu0 %v2033
    %2436 = vmatpush1.msra.mxu0 %v2032
    %2437 = vmatprep.subr.mxu0 %v2041
    %2438 = vmatpush1.msra.mxu0 %v2040
    %2439 = vmatprep.subr.mxu0 %v2049
    %2440 = vmatpush1.msra.mxu0 %v2048
    %2441 = vmatprep.subr.mxu0 %v2057
    %2442 = vmatpush1.msra.mxu0 %v2056
    %2443 = vmatprep.subr.mxu0 %v2065
    %2444 = vmatpush1.msra.mxu0 %v2064
    %2445 = vmatprep.subr.mxu0 %v2073
    %2446 = vmatpush1.msra.mxu0 %v2072
    %2447 = vmatprep.subr.mxu0 %v2081
    %2448 = vmatpush1.msra.mxu0 %v2080
    %2449 = vmatprep.subr.mxu0 %v2089
    %2450 = vmatpush1.msra.mxu0 %v2088
    %2451 = vmatprep.subr.mxu0 %v2097
    %2452 = vmatpush1.msra.mxu0 %v2096
    %2453 = vmatprep.subr.mxu0 %v2105
    %2454 = vmatpush1.msra.mxu0 %v2104
    %2455 = vmatprep.subr.mxu0 %v2113
    %2456 = vmatpush1.msra.mxu0 %v2112
    %2457 = vmatprep.subr.mxu0 %v2121
    %2458 = vmatpush1.msra.mxu0 %v2120
    %2459 = vmatprep.subr.mxu0 %v2129
    %2460 = vmatpush1.msra.mxu0 %v2128
    %2461 = vmatprep.subr.mxu0 %v2137
    %2462 = vmatpush1.msra.mxu0 %v2136
    %2463 = vmatprep.subr.mxu0 %v2145
    %2464 = vmatpush1.msra.mxu0 %v2144
    %2465 = vmatprep.subr.mxu0 %v2153
    %2466 = vmatpush1.msra.mxu0 %v2152
    %2467 = vmatprep.subr.mxu0 %v2161
    %2468 = vmatpush1.msra.mxu0 %v2160
    %2469 = vmatprep.subr.mxu0 %v2169
    %2470 = vmatpush1.msra.mxu0 %v2168
    %2471 = vmatprep.subr.mxu0 %v2177
    %2472 = vmatpush1.msra.mxu0 %v2176
    %2473 = vmatprep.subr.mxu0 %v2185
    %2474 = vmatpush1.msra.mxu0 %v2184
    %2475 = vmatprep.subr.mxu0 %v2193
    %2476 = vmatpush1.msra.mxu0 %v2192
    %2477 = vmatprep.subr.mxu0 %v2201
    %2478 = vmatpush1.msra.mxu0 %v2200
    %2479 = vmatprep.mubr.f32.mxu0 %v1935
    %2480 = vmatmul.mubr.f32.gmra.mrb[0].mxu0 %v1934
    %v2481 = vpop.f32.mrb[0].mxu0
    %v2482 = vadd.f32 0.0, %v2481
    %v2483 = vpop.f32.mrb[0].mxu0
    %v2484 = vadd.f32 0.0, %v2483
    %2485 = vdwg.mxu0
    %v2486 = vadd.f32 %v1938, %v2269
    %v2487 = vadd.f32 %v1939, %v2271
    %v2488 = vadd.f32 %v1940, %v2340
    %v2489 = vadd.f32 %v1941, %v2342
    %v2490 = vadd.f32 %v1942, %v2411
    %v2491 = vadd.f32 %v1943, %v2413
    %v2492 = vadd.f32 %v1944, %v2482
    %v2493 = vadd.f32 %v1945, %v2484
    %v2494 = vxor.u32 %v2486, 2147483648
    %v2495 = vxor.u32 %v2487, 2147483648
    %v2496 = vmul.f32 %v2494, 1.442695
    %v2497 = vpow.pop %v2496
    %v2498 = vmul.f32 %v2495, 1.442695
    %v2499 = vpow.pop %v2498
    %v2500 = vadd.f32 %v2497, 1.0
    %v2501 = vadd.f32 %v2499, 1.0
    %v2502 = vrcp.pop %v2500
    %v2503 = vmul.f32 1.0, %v2502
    %v2504 = vrcp.pop %v2501
    %v2505 = vmul.f32 1.0, %v2504
    %v2506 = vxor.u32 %v2488, 2147483648
    %v2507 = vxor.u32 %v2489, 2147483648
    %v2508 = vmul.f32 %v2506, 1.442695
    %v2509 = vpow.pop %v2508
    %v2510 = vmul.f32 %v2507, 1.442695
    %v2511 = vpow.pop %v2510
    %v2512 = vadd.f32 %v2509, 1.0
    %v2513 = vadd.f32 %v2511, 1.0
    %v2514 = vrcp.pop %v2512
    %v2515 = vmul.f32 1.0, %v2514
    %v2516 = vrcp.pop %v2513
    %v2517 = vmul.f32 1.0, %v2516
    %v2518 = vtanh.pop %v2490
    %v2519 = vtanh.pop %v2491
    %v2520 = vxor.u32 %v2492, 2147483648
    %v2521 = vxor.u32 %v2493, 2147483648
    %v2522 = vmul.f32 %v2520, 1.442695
    %v2523 = vpow.pop %v2522
    %v2524 = vmul.f32 %v2521, 1.442695
    %v2525 = vpow.pop %v2524
    %v2526 = vadd.f32 %v2523, 1.0
    %v2527 = vadd.f32 %v2525, 1.0
    %v2528 = vrcp.pop %v2526
    %v2529 = vmul.f32 1.0, %v2528
    %v2530 = vrcp.pop %v2527
    %v2531 = vmul.f32 1.0, %v2530
    %v2532 = vmul.f32 %v2515, %v1930
    %v2533 = vmul.f32 %v2517, %v1931
    %v2534 = vmul.f32 %v2503, %v2518
    %v2535 = vmul.f32 %v2505, %v2519
    %v2536 = vadd.f32 %v2532, %v2534
    %v2537 = vadd.f32 %v2533, %v2535
    %v2538 = vtanh.pop %v2536
    %v2539 = vtanh.pop %v2537
    %v2540 = vmul.f32 %v2529, %v2538
    %v2541 = vmul.f32 %v2531, %v2539
    %2542 = vst [vmem:[#allocation3 + $0x20] sm:$0xff] %v2540
    %2543 = vst [vmem:[#allocation3 + $0x58] sm:$0xff] %v2541
    %v2544 = vld [vmem:[#allocation2 + $0xc0] sm:$0xff]
    %v2545 = vld [vmem:[#allocation2 + $0xc8] sm:$0xff]
    %v2546 = vld [vmem:[#allocation2 + $0xd0] sm:$0xff]
    %v2547 = vld [vmem:[#allocation2 + $0xd8] sm:$0xff]
    %v2548 = vld [vmem:[#allocation2 + $0xe0] sm:$0xff]
    %v2549 = vld [vmem:[#allocation2 + $0xe8] sm:$0xff]
    %v2550 = vld [vmem:[#allocation2 + $0xf0] sm:$0xff]
    %v2551 = vld [vmem:[#allocation2 + $0xf8] sm:$0xff]
    %v2552 = vld [vmem:[#allocation4] sm:$0xff]
    %v2553 = vld [vmem:[#allocation4 + $0x8] sm:$0xff]
    %v2554 = vld [vmem:[#allocation4 + $0x10] sm:$0xff]
    %v2555 = vld [vmem:[#allocation4 + $0x18] sm:$0xff]
    %v2556 = vld [vmem:[#allocation4 + $0x20] sm:$0xff]
    %v2557 = vld [vmem:[#allocation4 + $0x28] sm:$0xff]
    %v2558 = vld [vmem:[#allocation4 + $0x30] sm:$0xff]
    %v2559 = vld [vmem:[#allocation4 + $0x38] sm:$0xff]
    %v2560 = vld [vmem:[#allocation4 + $0x40] sm:$0xff]
    %v2561 = vld [vmem:[#allocation4 + $0x48] sm:$0xff]
    %v2562 = vld [vmem:[#allocation4 + $0x50] sm:$0xff]
    %v2563 = vld [vmem:[#allocation4 + $0x58] sm:$0xff]
    %v2564 = vld [vmem:[#allocation4 + $0x60] sm:$0xff]
    %v2565 = vld [vmem:[#allocation4 + $0x68] sm:$0xff]
    %v2566 = vld [vmem:[#allocation4 + $0x70] sm:$0xff]
    %v2567 = vld [vmem:[#allocation4 + $0x78] sm:$0xff]
    %v2568 = vld [vmem:[#allocation4 + $0x80] sm:$0xff]
    %v2569 = vld [vmem:[#allocation4 + $0x88] sm:$0xff]
    %v2570 = vld [vmem:[#allocation4 + $0x90] sm:$0xff]
    %v2571 = vld [vmem:[#allocation4 + $0x98] sm:$0xff]
    %v2572 = vld [vmem:[#allocation4 + $0xa0] sm:$0xff]
    %v2573 = vld [vmem:[#allocation4 + $0xa8] sm:$0xff]
    %v2574 = vld [vmem:[#allocation4 + $0xb0] sm:$0xff]
    %v2575 = vld [vmem:[#allocation4 + $0xb8] sm:$0xff]
    %v2576 = vld [vmem:[#allocation4 + $0xc0] sm:$0xff]
    %v2577 = vld [vmem:[#allocation4 + $0xc8] sm:$0xff]
    %v2578 = vld [vmem:[#allocation4 + $0xd0] sm:$0xff]
    %v2579 = vld [vmem:[#allocation4 + $0xd8] sm:$0xff]
    %v2580 = vld [vmem:[#allocation4 + $0xe0] sm:$0xff]
    %v2581 = vld [vmem:[#allocation4 + $0xe8] sm:$0xff]
    %v2582 = vld [vmem:[#allocation4 + $0xf0] sm:$0xff]
    %v2583 = vld [vmem:[#allocation4 + $0xf8] sm:$0xff]
    %v2584 = vld [vmem:[#allocation4 + $0x100] sm:$0xff]
    %v2585 = vld [vmem:[#allocation4 + $0x108] sm:$0xff]
    %v2586 = vld [vmem:[#allocation4 + $0x110] sm:$0xff]
    %v2587 = vld [vmem:[#allocation4 + $0x118] sm:$0xff]
    %v2588 = vld [vmem:[#allocation4 + $0x120] sm:$0xff]
    %v2589 = vld [vmem:[#allocation4 + $0x128] sm:$0xff]
    %v2590 = vld [vmem:[#allocation4 + $0x130] sm:$0xff]
    %v2591 = vld [vmem:[#allocation4 + $0x138] sm:$0xff]
    %v2592 = vld [vmem:[#allocation4 + $0x140] sm:$0xff]
    %v2593 = vld [vmem:[#allocation4 + $0x148] sm:$0xff]
    %v2594 = vld [vmem:[#allocation4 + $0x150] sm:$0xff]
    %v2595 = vld [vmem:[#allocation4 + $0x158] sm:$0xff]
    %v2596 = vld [vmem:[#allocation4 + $0x160] sm:$0xff]
    %v2597 = vld [vmem:[#allocation4 + $0x168] sm:$0xff]
    %v2598 = vld [vmem:[#allocation4 + $0x170] sm:$0xff]
    %v2599 = vld [vmem:[#allocation4 + $0x178] sm:$0xff]
    %v2600 = vld [vmem:[#allocation4 + $0x180] sm:$0xff]
    %v2601 = vld [vmem:[#allocation4 + $0x188] sm:$0xff]
    %v2602 = vld [vmem:[#allocation4 + $0x190] sm:$0xff]
    %v2603 = vld [vmem:[#allocation4 + $0x198] sm:$0xff]
    %v2604 = vld [vmem:[#allocation4 + $0x1a0] sm:$0xff]
    %v2605 = vld [vmem:[#allocation4 + $0x1a8] sm:$0xff]
    %v2606 = vld [vmem:[#allocation4 + $0x1b0] sm:$0xff]
    %v2607 = vld [vmem:[#allocation4 + $0x1b8] sm:$0xff]
    %v2608 = vld [vmem:[#allocation4 + $0x1c0] sm:$0xff]
    %v2609 = vld [vmem:[#allocation4 + $0x1c8] sm:$0xff]
    %v2610 = vld [vmem:[#allocation4 + $0x1d0] sm:$0xff]
    %v2611 = vld [vmem:[#allocation4 + $0x1d8] sm:$0xff]
    %v2612 = vld [vmem:[#allocation4 + $0x1e0] sm:$0xff]
    %v2613 = vld [vmem:[#allocation4 + $0x1e8] sm:$0xff]
    %v2614 = vld [vmem:[#allocation4 + $0x1f0] sm:$0xff]
    %v2615 = vld [vmem:[#allocation4 + $0x1f8] sm:$0xff]
    %v2616 = vld [vmem:[#allocation4 + $0x200] sm:$0xff]
    %v2617 = vld [vmem:[#allocation4 + $0x208] sm:$0xff]
    %v2618 = vld [vmem:[#allocation4 + $0x210] sm:$0xff]
    %v2619 = vld [vmem:[#allocation4 + $0x218] sm:$0xff]
    %v2620 = vld [vmem:[#allocation4 + $0x220] sm:$0xff]
    %v2621 = vld [vmem:[#allocation4 + $0x228] sm:$0xff]
    %v2622 = vld [vmem:[#allocation4 + $0x230] sm:$0xff]
    %v2623 = vld [vmem:[#allocation4 + $0x238] sm:$0xff]
    %v2624 = vld [vmem:[#allocation4 + $0x240] sm:$0xff]
    %v2625 = vld [vmem:[#allocation4 + $0x248] sm:$0xff]
    %v2626 = vld [vmem:[#allocation4 + $0x250] sm:$0xff]
    %v2627 = vld [vmem:[#allocation4 + $0x258] sm:$0xff]
    %v2628 = vld [vmem:[#allocation4 + $0x260] sm:$0xff]
    %v2629 = vld [vmem:[#allocation4 + $0x268] sm:$0xff]
    %v2630 = vld [vmem:[#allocation4 + $0x270] sm:$0xff]
    %v2631 = vld [vmem:[#allocation4 + $0x278] sm:$0xff]
    %v2632 = vld [vmem:[#allocation4 + $0x280] sm:$0xff]
    %v2633 = vld [vmem:[#allocation4 + $0x288] sm:$0xff]
    %v2634 = vld [vmem:[#allocation4 + $0x290] sm:$0xff]
    %v2635 = vld [vmem:[#allocation4 + $0x298] sm:$0xff]
    %v2636 = vld [vmem:[#allocation4 + $0x2a0] sm:$0xff]
    %v2637 = vld [vmem:[#allocation4 + $0x2a8] sm:$0xff]
    %v2638 = vld [vmem:[#allocation4 + $0x2b0] sm:$0xff]
    %v2639 = vld [vmem:[#allocation4 + $0x2b8] sm:$0xff]
    %v2640 = vld [vmem:[#allocation4 + $0x2c0] sm:$0xff]
    %v2641 = vld [vmem:[#allocation4 + $0x2c8] sm:$0xff]
    %v2642 = vld [vmem:[#allocation4 + $0x2d0] sm:$0xff]
    %v2643 = vld [vmem:[#allocation4 + $0x2d8] sm:$0xff]
    %v2644 = vld [vmem:[#allocation4 + $0x2e0] sm:$0xff]
    %v2645 = vld [vmem:[#allocation4 + $0x2e8] sm:$0xff]
    %v2646 = vld [vmem:[#allocation4 + $0x2f0] sm:$0xff]
    %v2647 = vld [vmem:[#allocation4 + $0x2f8] sm:$0xff]
    %v2648 = vld [vmem:[#allocation4 + $0x300] sm:$0xff]
    %v2649 = vld [vmem:[#allocation4 + $0x308] sm:$0xff]
    %v2650 = vld [vmem:[#allocation4 + $0x310] sm:$0xff]
    %v2651 = vld [vmem:[#allocation4 + $0x318] sm:$0xff]
    %v2652 = vld [vmem:[#allocation4 + $0x320] sm:$0xff]
    %v2653 = vld [vmem:[#allocation4 + $0x328] sm:$0xff]
    %v2654 = vld [vmem:[#allocation4 + $0x330] sm:$0xff]
    %v2655 = vld [vmem:[#allocation4 + $0x338] sm:$0xff]
    %v2656 = vld [vmem:[#allocation4 + $0x340] sm:$0xff]
    %v2657 = vld [vmem:[#allocation4 + $0x348] sm:$0xff]
    %v2658 = vld [vmem:[#allocation4 + $0x350] sm:$0xff]
    %v2659 = vld [vmem:[#allocation4 + $0x358] sm:$0xff]
    %v2660 = vld [vmem:[#allocation4 + $0x360] sm:$0xff]
    %v2661 = vld [vmem:[#allocation4 + $0x368] sm:$0xff]
    %v2662 = vld [vmem:[#allocation4 + $0x370] sm:$0xff]
    %v2663 = vld [vmem:[#allocation4 + $0x378] sm:$0xff]
    %v2664 = vld [vmem:[#allocation4 + $0x380] sm:$0xff]
    %v2665 = vld [vmem:[#allocation4 + $0x388] sm:$0xff]
    %v2666 = vld [vmem:[#allocation4 + $0x390] sm:$0xff]
    %v2667 = vld [vmem:[#allocation4 + $0x398] sm:$0xff]
    %v2668 = vld [vmem:[#allocation4 + $0x3a0] sm:$0xff]
    %v2669 = vld [vmem:[#allocation4 + $0x3a8] sm:$0xff]
    %v2670 = vld [vmem:[#allocation4 + $0x3b0] sm:$0xff]
    %v2671 = vld [vmem:[#allocation4 + $0x3b8] sm:$0xff]
    %v2672 = vld [vmem:[#allocation4 + $0x3c0] sm:$0xff]
    %v2673 = vld [vmem:[#allocation4 + $0x3c8] sm:$0xff]
    %v2674 = vld [vmem:[#allocation4 + $0x3d0] sm:$0xff]
    %v2675 = vld [vmem:[#allocation4 + $0x3d8] sm:$0xff]
    %v2676 = vld [vmem:[#allocation4 + $0x3e0] sm:$0xff]
    %v2677 = vld [vmem:[#allocation4 + $0x3e8] sm:$0xff]
    %v2678 = vld [vmem:[#allocation4 + $0x3f0] sm:$0xff]
    %v2679 = vld [vmem:[#allocation4 + $0x3f8] sm:$0xff]
    %v2680 = vld [vmem:[#allocation4 + $0x400] sm:$0xff]
    %v2681 = vld [vmem:[#allocation4 + $0x408] sm:$0xff]
    %v2682 = vld [vmem:[#allocation4 + $0x410] sm:$0xff]
    %v2683 = vld [vmem:[#allocation4 + $0x418] sm:$0xff]
    %v2684 = vld [vmem:[#allocation4 + $0x420] sm:$0xff]
    %v2685 = vld [vmem:[#allocation4 + $0x428] sm:$0xff]
    %v2686 = vld [vmem:[#allocation4 + $0x430] sm:$0xff]
    %v2687 = vld [vmem:[#allocation4 + $0x438] sm:$0xff]
    %v2688 = vld [vmem:[#allocation4 + $0x440] sm:$0xff]
    %v2689 = vld [vmem:[#allocation4 + $0x448] sm:$0xff]
    %v2690 = vld [vmem:[#allocation4 + $0x450] sm:$0xff]
    %v2691 = vld [vmem:[#allocation4 + $0x458] sm:$0xff]
    %v2692 = vld [vmem:[#allocation4 + $0x460] sm:$0xff]
    %v2693 = vld [vmem:[#allocation4 + $0x468] sm:$0xff]
    %v2694 = vld [vmem:[#allocation4 + $0x470] sm:$0xff]
    %v2695 = vld [vmem:[#allocation4 + $0x478] sm:$0xff]
    %v2696 = vld [vmem:[#allocation4 + $0x480] sm:$0xff]
    %v2697 = vld [vmem:[#allocation4 + $0x488] sm:$0xff]
    %v2698 = vld [vmem:[#allocation4 + $0x490] sm:$0xff]
    %v2699 = vld [vmem:[#allocation4 + $0x498] sm:$0xff]
    %v2700 = vld [vmem:[#allocation4 + $0x4a0] sm:$0xff]
    %v2701 = vld [vmem:[#allocation4 + $0x4a8] sm:$0xff]
    %v2702 = vld [vmem:[#allocation4 + $0x4b0] sm:$0xff]
    %v2703 = vld [vmem:[#allocation4 + $0x4b8] sm:$0xff]
    %v2704 = vld [vmem:[#allocation4 + $0x4c0] sm:$0xff]
    %v2705 = vld [vmem:[#allocation4 + $0x4c8] sm:$0xff]
    %v2706 = vld [vmem:[#allocation4 + $0x4d0] sm:$0xff]
    %v2707 = vld [vmem:[#allocation4 + $0x4d8] sm:$0xff]
    %v2708 = vld [vmem:[#allocation4 + $0x4e0] sm:$0xff]
    %v2709 = vld [vmem:[#allocation4 + $0x4e8] sm:$0xff]
    %v2710 = vld [vmem:[#allocation4 + $0x4f0] sm:$0xff]
    %v2711 = vld [vmem:[#allocation4 + $0x4f8] sm:$0xff]
    %v2712 = vld [vmem:[#allocation4 + $0x500] sm:$0xff]
    %v2713 = vld [vmem:[#allocation4 + $0x508] sm:$0xff]
    %v2714 = vld [vmem:[#allocation4 + $0x510] sm:$0xff]
    %v2715 = vld [vmem:[#allocation4 + $0x518] sm:$0xff]
    %v2716 = vld [vmem:[#allocation4 + $0x520] sm:$0xff]
    %v2717 = vld [vmem:[#allocation4 + $0x528] sm:$0xff]
    %v2718 = vld [vmem:[#allocation4 + $0x530] sm:$0xff]
    %v2719 = vld [vmem:[#allocation4 + $0x538] sm:$0xff]
    %v2720 = vld [vmem:[#allocation4 + $0x540] sm:$0xff]
    %v2721 = vld [vmem:[#allocation4 + $0x548] sm:$0xff]
    %v2722 = vld [vmem:[#allocation4 + $0x550] sm:$0xff]
    %v2723 = vld [vmem:[#allocation4 + $0x558] sm:$0xff]
    %v2724 = vld [vmem:[#allocation4 + $0x560] sm:$0xff]
    %v2725 = vld [vmem:[#allocation4 + $0x568] sm:$0xff]
    %v2726 = vld [vmem:[#allocation4 + $0x570] sm:$0xff]
    %v2727 = vld [vmem:[#allocation4 + $0x578] sm:$0xff]
    %v2728 = vld [vmem:[#allocation4 + $0x580] sm:$0xff]
    %v2729 = vld [vmem:[#allocation4 + $0x588] sm:$0xff]
    %v2730 = vld [vmem:[#allocation4 + $0x590] sm:$0xff]
    %v2731 = vld [vmem:[#allocation4 + $0x598] sm:$0xff]
    %v2732 = vld [vmem:[#allocation4 + $0x5a0] sm:$0xff]
    %v2733 = vld [vmem:[#allocation4 + $0x5a8] sm:$0xff]
    %v2734 = vld [vmem:[#allocation4 + $0x5b0] sm:$0xff]
    %v2735 = vld [vmem:[#allocation4 + $0x5b8] sm:$0xff]
    %v2736 = vld [vmem:[#allocation4 + $0x5c0] sm:$0xff]
    %v2737 = vld [vmem:[#allocation4 + $0x5c8] sm:$0xff]
    %v2738 = vld [vmem:[#allocation4 + $0x5d0] sm:$0xff]
    %v2739 = vld [vmem:[#allocation4 + $0x5d8] sm:$0xff]
    %v2740 = vld [vmem:[#allocation4 + $0x5e0] sm:$0xff]
    %v2741 = vld [vmem:[#allocation4 + $0x5e8] sm:$0xff]
    %v2742 = vld [vmem:[#allocation4 + $0x5f0] sm:$0xff]
    %v2743 = vld [vmem:[#allocation4 + $0x5f8] sm:$0xff]
    %v2744 = vld [vmem:[#allocation4 + $0x600] sm:$0xff]
    %v2745 = vld [vmem:[#allocation4 + $0x608] sm:$0xff]
    %v2746 = vld [vmem:[#allocation4 + $0x610] sm:$0xff]
    %v2747 = vld [vmem:[#allocation4 + $0x618] sm:$0xff]
    %v2748 = vld [vmem:[#allocation4 + $0x620] sm:$0xff]
    %v2749 = vld [vmem:[#allocation4 + $0x628] sm:$0xff]
    %v2750 = vld [vmem:[#allocation4 + $0x630] sm:$0xff]
    %v2751 = vld [vmem:[#allocation4 + $0x638] sm:$0xff]
    %v2752 = vld [vmem:[#allocation4 + $0x640] sm:$0xff]
    %v2753 = vld [vmem:[#allocation4 + $0x648] sm:$0xff]
    %v2754 = vld [vmem:[#allocation4 + $0x650] sm:$0xff]
    %v2755 = vld [vmem:[#allocation4 + $0x658] sm:$0xff]
    %v2756 = vld [vmem:[#allocation4 + $0x660] sm:$0xff]
    %v2757 = vld [vmem:[#allocation4 + $0x668] sm:$0xff]
    %v2758 = vld [vmem:[#allocation4 + $0x670] sm:$0xff]
    %v2759 = vld [vmem:[#allocation4 + $0x678] sm:$0xff]
    %v2760 = vld [vmem:[#allocation4 + $0x680] sm:$0xff]
    %v2761 = vld [vmem:[#allocation4 + $0x688] sm:$0xff]
    %v2762 = vld [vmem:[#allocation4 + $0x690] sm:$0xff]
    %v2763 = vld [vmem:[#allocation4 + $0x698] sm:$0xff]
    %v2764 = vld [vmem:[#allocation4 + $0x6a0] sm:$0xff]
    %v2765 = vld [vmem:[#allocation4 + $0x6a8] sm:$0xff]
    %v2766 = vld [vmem:[#allocation4 + $0x6b0] sm:$0xff]
    %v2767 = vld [vmem:[#allocation4 + $0x6b8] sm:$0xff]
    %v2768 = vld [vmem:[#allocation4 + $0x6c0] sm:$0xff]
    %v2769 = vld [vmem:[#allocation4 + $0x6c8] sm:$0xff]
    %v2770 = vld [vmem:[#allocation4 + $0x6d0] sm:$0xff]
    %v2771 = vld [vmem:[#allocation4 + $0x6d8] sm:$0xff]
    %v2772 = vld [vmem:[#allocation4 + $0x6e0] sm:$0xff]
    %v2773 = vld [vmem:[#allocation4 + $0x6e8] sm:$0xff]
    %v2774 = vld [vmem:[#allocation4 + $0x6f0] sm:$0xff]
    %v2775 = vld [vmem:[#allocation4 + $0x6f8] sm:$0xff]
    %v2776 = vld [vmem:[#allocation4 + $0x700] sm:$0xff]
    %v2777 = vld [vmem:[#allocation4 + $0x708] sm:$0xff]
    %v2778 = vld [vmem:[#allocation4 + $0x710] sm:$0xff]
    %v2779 = vld [vmem:[#allocation4 + $0x718] sm:$0xff]
    %v2780 = vld [vmem:[#allocation4 + $0x720] sm:$0xff]
    %v2781 = vld [vmem:[#allocation4 + $0x728] sm:$0xff]
    %v2782 = vld [vmem:[#allocation4 + $0x730] sm:$0xff]
    %v2783 = vld [vmem:[#allocation4 + $0x738] sm:$0xff]
    %v2784 = vld [vmem:[#allocation4 + $0x740] sm:$0xff]
    %v2785 = vld [vmem:[#allocation4 + $0x748] sm:$0xff]
    %v2786 = vld [vmem:[#allocation4 + $0x750] sm:$0xff]
    %v2787 = vld [vmem:[#allocation4 + $0x758] sm:$0xff]
    %v2788 = vld [vmem:[#allocation4 + $0x760] sm:$0xff]
    %v2789 = vld [vmem:[#allocation4 + $0x768] sm:$0xff]
    %v2790 = vld [vmem:[#allocation4 + $0x770] sm:$0xff]
    %v2791 = vld [vmem:[#allocation4 + $0x778] sm:$0xff]
    %v2792 = vld [vmem:[#allocation4 + $0x780] sm:$0xff]
    %v2793 = vld [vmem:[#allocation4 + $0x788] sm:$0xff]
    %v2794 = vld [vmem:[#allocation4 + $0x790] sm:$0xff]
    %v2795 = vld [vmem:[#allocation4 + $0x798] sm:$0xff]
    %v2796 = vld [vmem:[#allocation4 + $0x7a0] sm:$0xff]
    %v2797 = vld [vmem:[#allocation4 + $0x7a8] sm:$0xff]
    %v2798 = vld [vmem:[#allocation4 + $0x7b0] sm:$0xff]
    %v2799 = vld [vmem:[#allocation4 + $0x7b8] sm:$0xff]
    %v2800 = vld [vmem:[#allocation4 + $0x7c0] sm:$0xff]
    %v2801 = vld [vmem:[#allocation4 + $0x7c8] sm:$0xff]
    %v2802 = vld [vmem:[#allocation4 + $0x7d0] sm:$0xff]
    %v2803 = vld [vmem:[#allocation4 + $0x7d8] sm:$0xff]
    %v2804 = vld [vmem:[#allocation4 + $0x7e0] sm:$0xff]
    %v2805 = vld [vmem:[#allocation4 + $0x7e8] sm:$0xff]
    %v2806 = vld [vmem:[#allocation4 + $0x7f0] sm:$0xff]
    %v2807 = vld [vmem:[#allocation4 + $0x7f8] sm:$0xff]
    %2808 = vmatprep.subr.mxu0 %v2553
    %2809 = vmatpush1.msra.mxu0 %v2552
    %2810 = vmatprep.subr.mxu0 %v2561
    %2811 = vmatpush1.msra.mxu0 %v2560
    %2812 = vmatprep.subr.mxu0 %v2569
    %2813 = vmatpush1.msra.mxu0 %v2568
    %2814 = vmatprep.subr.mxu0 %v2577
    %2815 = vmatpush1.msra.mxu0 %v2576
    %2816 = vmatprep.subr.mxu0 %v2585
    %2817 = vmatpush1.msra.mxu0 %v2584
    %2818 = vmatprep.subr.mxu0 %v2593
    %2819 = vmatpush1.msra.mxu0 %v2592
    %2820 = vmatprep.subr.mxu0 %v2601
    %2821 = vmatpush1.msra.mxu0 %v2600
    %2822 = vmatprep.subr.mxu0 %v2609
    %2823 = vmatpush1.msra.mxu0 %v2608
    %2824 = vmatprep.subr.mxu0 %v2617
    %2825 = vmatpush1.msra.mxu0 %v2616
    %2826 = vmatprep.subr.mxu0 %v2625
    %2827 = vmatpush1.msra.mxu0 %v2624
    %2828 = vmatprep.subr.mxu0 %v2633
    %2829 = vmatpush1.msra.mxu0 %v2632
    %2830 = vmatprep.subr.mxu0 %v2641
    %2831 = vmatpush1.msra.mxu0 %v2640
    %2832 = vmatprep.subr.mxu0 %v2649
    %2833 = vmatpush1.msra.mxu0 %v2648
    %2834 = vmatprep.subr.mxu0 %v2657
    %2835 = vmatpush1.msra.mxu0 %v2656
    %2836 = vmatprep.subr.mxu0 %v2665
    %2837 = vmatpush1.msra.mxu0 %v2664
    %2838 = vmatprep.subr.mxu0 %v2673
    %2839 = vmatpush1.msra.mxu0 %v2672
    %2840 = vmatprep.subr.mxu0 %v2681
    %2841 = vmatpush1.msra.mxu0 %v2680
    %2842 = vmatprep.subr.mxu0 %v2689
    %2843 = vmatpush1.msra.mxu0 %v2688
    %2844 = vmatprep.subr.mxu0 %v2697
    %2845 = vmatpush1.msra.mxu0 %v2696
    %2846 = vmatprep.subr.mxu0 %v2705
    %2847 = vmatpush1.msra.mxu0 %v2704
    %2848 = vmatprep.subr.mxu0 %v2713
    %2849 = vmatpush1.msra.mxu0 %v2712
    %2850 = vmatprep.subr.mxu0 %v2721
    %2851 = vmatpush1.msra.mxu0 %v2720
    %2852 = vmatprep.subr.mxu0 %v2729
    %2853 = vmatpush1.msra.mxu0 %v2728
    %2854 = vmatprep.subr.mxu0 %v2737
    %2855 = vmatpush1.msra.mxu0 %v2736
    %2856 = vmatprep.subr.mxu0 %v2745
    %2857 = vmatpush1.msra.mxu0 %v2744
    %2858 = vmatprep.subr.mxu0 %v2753
    %2859 = vmatpush1.msra.mxu0 %v2752
    %2860 = vmatprep.subr.mxu0 %v2761
    %2861 = vmatpush1.msra.mxu0 %v2760
    %2862 = vmatprep.subr.mxu0 %v2769
    %2863 = vmatpush1.msra.mxu0 %v2768
    %2864 = vmatprep.subr.mxu0 %v2777
    %2865 = vmatpush1.msra.mxu0 %v2776
    %2866 = vmatprep.subr.mxu0 %v2785
    %2867 = vmatpush1.msra.mxu0 %v2784
    %2868 = vmatprep.subr.mxu0 %v2793
    %2869 = vmatpush1.msra.mxu0 %v2792
    %2870 = vmatprep.subr.mxu0 %v2801
    %2871 = vmatpush1.msra.mxu0 %v2800
    %2872 = vmatprep.mubr.f32.mxu0 %v2541
    %2873 = vmatmul.mubr.f32.gmra.mrb[0].mxu0 %v2540
    %v2874 = vpop.f32.mrb[0].mxu0
    %v2875 = vadd.f32 0.0, %v2874
    %v2876 = vpop.f32.mrb[0].mxu0
    %v2877 = vadd.f32 0.0, %v2876
    %2878 = vdwg.mxu0
    %2879 = vmatprep.subr.mxu0 %v2555
    %2880 = vmatpush1.msra.mxu0 %v2554
    %2881 = vmatprep.subr.mxu0 %v2563
    %2882 = vmatpush1.msra.mxu0 %v2562
    %2883 = vmatprep.subr.mxu0 %v2571
    %2884 = vmatpush1.msra.mxu0 %v2570
    %2885 = vmatprep.subr.mxu0 %v2579
    %2886 = vmatpush1.msra.mxu0 %v2578
    %2887 = vmatprep.subr.mxu0 %v2587
    %2888 = vmatpush1.msra.mxu0 %v2586
    %2889 = vmatprep.subr.mxu0 %v2595
    %2890 = vmatpush1.msra.mxu0 %v2594
    %2891 = vmatprep.subr.mxu0 %v2603
    %2892 = vmatpush1.msra.mxu0 %v2602
    %2893 = vmatprep.subr.mxu0 %v2611
    %2894 = vmatpush1.msra.mxu0 %v2610
    %2895 = vmatprep.subr.mxu0 %v2619
    %2896 = vmatpush1.msra.mxu0 %v2618
    %2897 = vmatprep.subr.mxu0 %v2627
    %2898 = vmatpush1.msra.mxu0 %v2626
    %2899 = vmatprep.subr.mxu0 %v2635
    %2900 = vmatpush1.msra.mxu0 %v2634
    %2901 = vmatprep.subr.mxu0 %v2643
    %2902 = vmatpush1.msra.mxu0 %v2642
    %2903 = vmatprep.subr.mxu0 %v2651
    %2904 = vmatpush1.msra.mxu0 %v2650
    %2905 = vmatprep.subr.mxu0 %v2659
    %2906 = vmatpush1.msra.mxu0 %v2658
    %2907 = vmatprep.subr.mxu0 %v2667
    %2908 = vmatpush1.msra.mxu0 %v2666
    %2909 = vmatprep.subr.mxu0 %v2675
    %2910 = vmatpush1.msra.mxu0 %v2674
    %2911 = vmatprep.subr.mxu0 %v2683
    %2912 = vmatpush1.msra.mxu0 %v2682
    %2913 = vmatprep.subr.mxu0 %v2691
    %2914 = vmatpush1.msra.mxu0 %v2690
    %2915 = vmatprep.subr.mxu0 %v2699
    %2916 = vmatpush1.msra.mxu0 %v2698
    %2917 = vmatprep.subr.mxu0 %v2707
    %2918 = vmatpush1.msra.mxu0 %v2706
    %2919 = vmatprep.subr.mxu0 %v2715
    %2920 = vmatpush1.msra.mxu0 %v2714
    %2921 = vmatprep.subr.mxu0 %v2723
    %2922 = vmatpush1.msra.mxu0 %v2722
    %2923 = vmatprep.subr.mxu0 %v2731
    %2924 = vmatpush1.msra.mxu0 %v2730
    %2925 = vmatprep.subr.mxu0 %v2739
    %2926 = vmatpush1.msra.mxu0 %v2738
    %2927 = vmatprep.subr.mxu0 %v2747
    %2928 = vmatpush1.msra.mxu0 %v2746
    %2929 = vmatprep.subr.mxu0 %v2755
    %2930 = vmatpush1.msra.mxu0 %v2754
    %2931 = vmatprep.subr.mxu0 %v2763
    %2932 = vmatpush1.msra.mxu0 %v2762
    %2933 = vmatprep.subr.mxu0 %v2771
    %2934 = vmatpush1.msra.mxu0 %v2770
    %2935 = vmatprep.subr.mxu0 %v2779
    %2936 = vmatpush1.msra.mxu0 %v2778
    %2937 = vmatprep.subr.mxu0 %v2787
    %2938 = vmatpush1.msra.mxu0 %v2786
    %2939 = vmatprep.subr.mxu0 %v2795
    %2940 = vmatpush1.msra.mxu0 %v2794
    %2941 = vmatprep.subr.mxu0 %v2803
    %2942 = vmatpush1.msra.mxu0 %v2802
    %2943 = vmatprep.mubr.f32.mxu0 %v2541
    %2944 = vmatmul.mubr.f32.gmra.mrb[0].mxu0 %v2540
    %v2945 = vpop.f32.mrb[0].mxu0
    %v2946 = vadd.f32 0.0, %v2945
    %v2947 = vpop.f32.mrb[0].mxu0
    %v2948 = vadd.f32 0.0, %v2947
    %2949 = vdwg.mxu0
    %2950 = vmatprep.subr.mxu0 %v2557
    %2951 = vmatpush1.msra.mxu0 %v2556
    %2952 = vmatprep.subr.mxu0 %v2565
    %2953 = vmatpush1.msra.mxu0 %v2564
    %2954 = vmatprep.subr.mxu0 %v2573
    %2955 = vmatpush1.msra.mxu0 %v2572
    %2956 = vmatprep.subr.mxu0 %v2581
    %2957 = vmatpush1.msra.mxu0 %v2580
    %2958 = vmatprep.subr.mxu0 %v2589
    %2959 = vmatpush1.msra.mxu0 %v2588
    %2960 = vmatprep.subr.mxu0 %v2597
    %2961 = vmatpush1.msra.mxu0 %v2596
    %2962 = vmatprep.subr.mxu0 %v2605
    %2963 = vmatpush1.msra.mxu0 %v2604
    %2964 = vmatprep.subr.mxu0 %v2613
    %2965 = vmatpush1.msra.mxu0 %v2612
    %2966 = vmatprep.subr.mxu0 %v2621
    %2967 = vmatpush1.msra.mxu0 %v2620
    %2968 = vmatprep.subr.mxu0 %v2629
    %2969 = vmatpush1.msra.mxu0 %v2628
    %2970 = vmatprep.subr.mxu0 %v2637
    %2971 = vmatpush1.msra.mxu0 %v2636
    %2972 = vmatprep.subr.mxu0 %v2645
    %2973 = vmatpush1.msra.mxu0 %v2644
    %2974 = vmatprep.subr.mxu0 %v2653
    %2975 = vmatpush1.msra.mxu0 %v2652
    %2976 = vmatprep.subr.mxu0 %v2661
    %2977 = vmatpush1.msra.mxu0 %v2660
    %2978 = vmatprep.subr.mxu0 %v2669
    %2979 = vmatpush1.msra.mxu0 %v2668
    %2980 = vmatprep.subr.mxu0 %v2677
    %2981 = vmatpush1.msra.mxu0 %v2676
    %2982 = vmatprep.subr.mxu0 %v2685
    %2983 = vmatpush1.msra.mxu0 %v2684
    %2984 = vmatprep.subr.mxu0 %v2693
    %2985 = vmatpush1.msra.mxu0 %v2692
    %2986 = vmatprep.subr.mxu0 %v2701
    %2987 = vmatpush1.msra.mxu0 %v2700
    %2988 = vmatprep.subr.mxu0 %v2709
    %2989 = vmatpush1.msra.mxu0 %v2708
    %2990 = vmatprep.subr.mxu0 %v2717
    %2991 = vmatpush1.msra.mxu0 %v2716
    %2992 = vmatprep.subr.mxu0 %v2725
    %2993 = vmatpush1.msra.mxu0 %v2724
    %2994 = vmatprep.subr.mxu0 %v2733
    %2995 = vmatpush1.msra.mxu0 %v2732
    %2996 = vmatprep.subr.mxu0 %v2741
    %2997 = vmatpush1.msra.mxu0 %v2740
    %2998 = vmatprep.subr.mxu0 %v2749
    %2999 = vmatpush1.msra.mxu0 %v2748
    %3000 = vmatprep.subr.mxu0 %v2757
    %3001 = vmatpush1.msra.mxu0 %v2756
    %3002 = vmatprep.subr.mxu0 %v2765
    %3003 = vmatpush1.msra.mxu0 %v2764
    %3004 = vmatprep.subr.mxu0 %v2773
    %3005 = vmatpush1.msra.mxu0 %v2772
    %3006 = vmatprep.subr.mxu0 %v2781
    %3007 = vmatpush1.msra.mxu0 %v2780
    %3008 = vmatprep.subr.mxu0 %v2789
    %3009 = vmatpush1.msra.mxu0 %v2788
    %3010 = vmatprep.subr.mxu0 %v2797
    %3011 = vmatpush1.msra.mxu0 %v2796
    %3012 = vmatprep.subr.mxu0 %v2805
    %3013 = vmatpush1.msra.mxu0 %v2804
    %3014 = vmatprep.mubr.f32.mxu0 %v2541
    %3015 = vmatmul.mubr.f32.gmra.mrb[0].mxu0 %v2540
    %v3016 = vpop.f32.mrb[0].mxu0
    %v3017 = vadd.f32 0.0, %v3016
    %v3018 = vpop.f32.mrb[0].mxu0
    %v3019 = vadd.f32 0.0, %v3018
    %3020 = vdwg.mxu0
    %3021 = vmatprep.subr.mxu0 %v2559
    %3022 = vmatpush1.msra.mxu0 %v2558
    %3023 = vmatprep.subr.mxu0 %v2567
    %3024 = vmatpush1.msra.mxu0 %v2566
    %3025 = vmatprep.subr.mxu0 %v2575
    %3026 = vmatpush1.msra.mxu0 %v2574
    %3027 = vmatprep.subr.mxu0 %v2583
    %3028 = vmatpush1.msra.mxu0 %v2582
    %3029 = vmatprep.subr.mxu0 %v2591
    %3030 = vmatpush1.msra.mxu0 %v2590
    %3031 = vmatprep.subr.mxu0 %v2599
    %3032 = vmatpush1.msra.mxu0 %v2598
    %3033 = vmatprep.subr.mxu0 %v2607
    %3034 = vmatpush1.msra.mxu0 %v2606
    %3035 = vmatprep.subr.mxu0 %v2615
    %3036 = vmatpush1.msra.mxu0 %v2614
    %3037 = vmatprep.subr.mxu0 %v2623
    %3038 = vmatpush1.msra.mxu0 %v2622
    %3039 = vmatprep.subr.mxu0 %v2631
    %3040 = vmatpush1.msra.mxu0 %v2630
    %3041 = vmatprep.subr.mxu0 %v2639
    %3042 = vmatpush1.msra.mxu0 %v2638
    %3043 = vmatprep.subr.mxu0 %v2647
    %3044 = vmatpush1.msra.mxu0 %v2646
    %3045 = vmatprep.subr.mxu0 %v2655
    %3046 = vmatpush1.msra.mxu0 %v2654
    %3047 = vmatprep.subr.mxu0 %v2663
    %3048 = vmatpush1.msra.mxu0 %v2662
    %3049 = vmatprep.subr.mxu0 %v2671
    %3050 = vmatpush1.msra.mxu0 %v2670
    %3051 = vmatprep.subr.mxu0 %v2679
    %3052 = vmatpush1.msra.mxu0 %v2678
    %3053 = vmatprep.subr.mxu0 %v2687
    %3054 = vmatpush1.msra.mxu0 %v2686
    %3055 = vmatprep.subr.mxu0 %v2695
    %3056 = vmatpush1.msra.mxu0 %v2694
    %3057 = vmatprep.subr.mxu0 %v2703
    %3058 = vmatpush1.msra.mxu0 %v2702
    %3059 = vmatprep.subr.mxu0 %v2711
    %3060 = vmatpush1.msra.mxu0 %v2710
    %3061 = vmatprep.subr.mxu0 %v2719
    %3062 = vmatpush1.msra.mxu0 %v2718
    %3063 = vmatprep.subr.mxu0 %v2727
    %3064 = vmatpush1.msra.mxu0 %v2726
    %3065 = vmatprep.subr.mxu0 %v2735
    %3066 = vmatpush1.msra.mxu0 %v2734
    %3067 = vmatprep.subr.mxu0 %v2743
    %3068 = vmatpush1.msra.mxu0 %v2742
    %3069 = vmatprep.subr.mxu0 %v2751
    %3070 = vmatpush1.msra.mxu0 %v2750
    %3071 = vmatprep.subr.mxu0 %v2759
    %3072 = vmatpush1.msra.mxu0 %v2758
    %3073 = vmatprep.subr.mxu0 %v2767
    %3074 = vmatpush1.msra.mxu0 %v2766
    %3075 = vmatprep.subr.mxu0 %v2775
    %3076 = vmatpush1.msra.mxu0 %v2774
    %3077 = vmatprep.subr.mxu0 %v2783
    %3078 = vmatpush1.msra.mxu0 %v2782
    %3079 = vmatprep.subr.mxu0 %v2791
    %3080 = vmatpush1.msra.mxu0 %v2790
    %3081 = vmatprep.subr.mxu0 %v2799
    %3082 = vmatpush1.msra.mxu0 %v2798
    %3083 = vmatprep.subr.mxu0 %v2807
    %3084 = vmatpush1.msra.mxu0 %v2806
    %3085 = vmatprep.mubr.f32.mxu0 %v2541
    %3086 = vmatmul.mubr.f32.gmra.mrb[0].mxu0 %v2540
    %v3087 = vpop.f32.mrb[0].mxu0
    %v3088 = vadd.f32 0.0, %v3087
    %v3089 = vpop.f32.mrb[0].mxu0
    %v3090 = vadd.f32 0.0, %v3089
    %3091 = vdwg.mxu0
    %v3092 = vadd.f32 %v2544, %v2875
    %v3093 = vadd.f32 %v2545, %v2877
    %v3094 = vadd.f32 %v2546, %v2946
    %v3095 = vadd.f32 %v2547, %v2948
    %v3096 = vadd.f32 %v2548, %v3017
    %v3097 = vadd.f32 %v2549, %v3019
    %v3098 = vadd.f32 %v2550, %v3088
    %v3099 = vadd.f32 %v2551, %v3090
    %v3100 = vxor.u32 %v3092, 2147483648
    %v3101 = vxor.u32 %v3093, 2147483648
    %v3102 = vmul.f32 %v3100, 1.442695
    %v3103 = vpow.pop %v3102
    %v3104 = vmul.f32 %v3101, 1.442695
    %v3105 = vpow.pop %v3104
    %v3106 = vadd.f32 %v3103, 1.0
    %v3107 = vadd.f32 %v3105, 1.0
    %v3108 = vrcp.pop %v3106
    %v3109 = vmul.f32 1.0, %v3108
    %v3110 = vrcp.pop %v3107
    %v3111 = vmul.f32 1.0, %v3110
    %v3112 = vxor.u32 %v3094, 2147483648
    %v3113 = vxor.u32 %v3095, 2147483648
    %v3114 = vmul.f32 %v3112, 1.442695
    %v3115 = vpow.pop %v3114
    %v3116 = vmul.f32 %v3113, 1.442695
    %v3117 = vpow.pop %v3116
    %v3118 = vadd.f32 %v3115, 1.0
    %v3119 = vadd.f32 %v3117, 1.0
    %v3120 = vrcp.pop %v3118
    %v3121 = vmul.f32 1.0, %v3120
    %v3122 = vrcp.pop %v3119
    %v3123 = vmul.f32 1.0, %v3122
    %v3124 = vtanh.pop %v3096
    %v3125 = vtanh.pop %v3097
    %v3126 = vxor.u32 %v3098, 2147483648
    %v3127 = vxor.u32 %v3099, 2147483648
    %v3128 = vmul.f32 %v3126, 1.442695
    %v3129 = vpow.pop %v3128
    %v3130 = vmul.f32 %v3127, 1.442695
    %v3131 = vpow.pop %v3130
    %v3132 = vadd.f32 %v3129, 1.0
    %v3133 = vadd.f32 %v3131, 1.0
    %v3134 = vrcp.pop %v3132
    %v3135 = vmul.f32 1.0, %v3134
    %v3136 = vrcp.pop %v3133
    %v3137 = vmul.f32 1.0, %v3136
    %v3138 = vmul.f32 %v3121, %v2536
    %v3139 = vmul.f32 %v3123, %v2537
    %v3140 = vmul.f32 %v3109, %v3124
    %v3141 = vmul.f32 %v3111, %v3125
    %v3142 = vadd.f32 %v3138, %v3140
    %v3143 = vadd.f32 %v3139, %v3141
    %v3144 = vtanh.pop %v3142
    %v3145 = vtanh.pop %v3143
    %v3146 = vmul.f32 %v3135, %v3144
    %v3147 = vmul.f32 %v3137, %v3145
    %3148 = vst [vmem:[#allocation3 + $0x30] sm:$0xff] %v3146
    %3149 = vst [vmem:[#allocation3 + $0x48] sm:$0xff] %v3147
    %v3150 = vld [vmem:[#allocation2 + $0x100] sm:$0xff]
    %v3151 = vld [vmem:[#allocation2 + $0x108] sm:$0xff]
    %v3152 = vld [vmem:[#allocation2 + $0x110] sm:$0xff]
    %v3153 = vld [vmem:[#allocation2 + $0x118] sm:$0xff]
    %v3154 = vld [vmem:[#allocation2 + $0x120] sm:$0xff]
    %v3155 = vld [vmem:[#allocation2 + $0x128] sm:$0xff]
    %v3156 = vld [vmem:[#allocation2 + $0x130] sm:$0xff]
    %v3157 = vld [vmem:[#allocation2 + $0x138] sm:$0xff]
    %v3158 = vld [vmem:[#allocation4] sm:$0xff]
    %v3159 = vld [vmem:[#allocation4 + $0x8] sm:$0xff]
    %v3160 = vld [vmem:[#allocation4 + $0x10] sm:$0xff]
    %v3161 = vld [vmem:[#allocation4 + $0x18] sm:$0xff]
    %v3162 = vld [vmem:[#allocation4 + $0x20] sm:$0xff]
    %v3163 = vld [vmem:[#allocation4 + $0x28] sm:$0xff]
    %v3164 = vld [vmem:[#allocation4 + $0x30] sm:$0xff]
    %v3165 = vld [vmem:[#allocation4 + $0x38] sm:$0xff]
    %v3166 = vld [vmem:[#allocation4 + $0x40] sm:$0xff]
    %v3167 = vld [vmem:[#allocation4 + $0x48] sm:$0xff]
    %v3168 = vld [vmem:[#allocation4 + $0x50] sm:$0xff]
    %v3169 = vld [vmem:[#allocation4 + $0x58] sm:$0xff]
    %v3170 = vld [vmem:[#allocation4 + $0x60] sm:$0xff]
    %v3171 = vld [vmem:[#allocation4 + $0x68] sm:$0xff]
    %v3172 = vld [vmem:[#allocation4 + $0x70] sm:$0xff]
    %v3173 = vld [vmem:[#allocation4 + $0x78] sm:$0xff]
    %v3174 = vld [vmem:[#allocation4 + $0x80] sm:$0xff]
    %v3175 = vld [vmem:[#allocation4 + $0x88] sm:$0xff]
    %v3176 = vld [vmem:[#allocation4 + $0x90] sm:$0xff]
    %v3177 = vld [vmem:[#allocation4 + $0x98] sm:$0xff]
    %v3178 = vld [vmem:[#allocation4 + $0xa0] sm:$0xff]
    %v3179 = vld [vmem:[#allocation4 + $0xa8] sm:$0xff]
    %v3180 = vld [vmem:[#allocation4 + $0xb0] sm:$0xff]
    %v3181 = vld [vmem:[#allocation4 + $0xb8] sm:$0xff]
    %v3182 = vld [vmem:[#allocation4 + $0xc0] sm:$0xff]
    %v3183 = vld [vmem:[#allocation4 + $0xc8] sm:$0xff]
    %v3184 = vld [vmem:[#allocation4 + $0xd0] sm:$0xff]
    %v3185 = vld [vmem:[#allocation4 + $0xd8] sm:$0xff]
    %v3186 = vld [vmem:[#allocation4 + $0xe0] sm:$0xff]
    %v3187 = vld [vmem:[#allocation4 + $0xe8] sm:$0xff]
    %v3188 = vld [vmem:[#allocation4 + $0xf0] sm:$0xff]
    %v3189 = vld [vmem:[#allocation4 + $0xf8] sm:$0xff]
    %v3190 = vld [vmem:[#allocation4 + $0x100] sm:$0xff]
    %v3191 = vld [vmem:[#allocation4 + $0x108] sm:$0xff]
    %v3192 = vld [vmem:[#allocation4 + $0x110] sm:$0xff]
    %v3193 = vld [vmem:[#allocation4 + $0x118] sm:$0xff]
    %v3194 = vld [vmem:[#allocation4 + $0x120] sm:$0xff]
    %v3195 = vld [vmem:[#allocation4 + $0x128] sm:$0xff]
    %v3196 = vld [vmem:[#allocation4 + $0x130] sm:$0xff]
    %v3197 = vld [vmem:[#allocation4 + $0x138] sm:$0xff]
    %v3198 = vld [vmem:[#allocation4 + $0x140] sm:$0xff]
    %v3199 = vld [vmem:[#allocation4 + $0x148] sm:$0xff]
    %v3200 = vld [vmem:[#allocation4 + $0x150] sm:$0xff]
    %v3201 = vld [vmem:[#allocation4 + $0x158] sm:$0xff]
    %v3202 = vld [vmem:[#allocation4 + $0x160] sm:$0xff]
    %v3203 = vld [vmem:[#allocation4 + $0x168] sm:$0xff]
    %v3204 = vld [vmem:[#allocation4 + $0x170] sm:$0xff]
    %v3205 = vld [vmem:[#allocation4 + $0x178] sm:$0xff]
    %v3206 = vld [vmem:[#allocation4 + $0x180] sm:$0xff]
    %v3207 = vld [vmem:[#allocation4 + $0x188] sm:$0xff]
    %v3208 = vld [vmem:[#allocation4 + $0x190] sm:$0xff]
    %v3209 = vld [vmem:[#allocation4 + $0x198] sm:$0xff]
    %v3210 = vld [vmem:[#allocation4 + $0x1a0] sm:$0xff]
    %v3211 = vld [vmem:[#allocation4 + $0x1a8] sm:$0xff]
    %v3212 = vld [vmem:[#allocation4 + $0x1b0] sm:$0xff]
    %v3213 = vld [vmem:[#allocation4 + $0x1b8] sm:$0xff]
    %v3214 = vld [vmem:[#allocation4 + $0x1c0] sm:$0xff]
    %v3215 = vld [vmem:[#allocation4 + $0x1c8] sm:$0xff]
    %v3216 = vld [vmem:[#allocation4 + $0x1d0] sm:$0xff]
    %v3217 = vld [vmem:[#allocation4 + $0x1d8] sm:$0xff]
    %v3218 = vld [vmem:[#allocation4 + $0x1e0] sm:$0xff]
    %v3219 = vld [vmem:[#allocation4 + $0x1e8] sm:$0xff]
    %v3220 = vld [vmem:[#allocation4 + $0x1f0] sm:$0xff]
    %v3221 = vld [vmem:[#allocation4 + $0x1f8] sm:$0xff]
    %v3222 = vld [vmem:[#allocation4 + $0x200] sm:$0xff]
    %v3223 = vld [vmem:[#allocation4 + $0x208] sm:$0xff]
    %v3224 = vld [vmem:[#allocation4 + $0x210] sm:$0xff]
    %v3225 = vld [vmem:[#allocation4 + $0x218] sm:$0xff]
    %v3226 = vld [vmem:[#allocation4 + $0x220] sm:$0xff]
    %v3227 = vld [vmem:[#allocation4 + $0x228] sm:$0xff]
    %v3228 = vld [vmem:[#allocation4 + $0x230] sm:$0xff]
    %v3229 = vld [vmem:[#allocation4 + $0x238] sm:$0xff]
    %v3230 = vld [vmem:[#allocation4 + $0x240] sm:$0xff]
    %v3231 = vld [vmem:[#allocation4 + $0x248] sm:$0xff]
    %v3232 = vld [vmem:[#allocation4 + $0x250] sm:$0xff]
    %v3233 = vld [vmem:[#allocation4 + $0x258] sm:$0xff]
    %v3234 = vld [vmem:[#allocation4 + $0x260] sm:$0xff]
    %v3235 = vld [vmem:[#allocation4 + $0x268] sm:$0xff]
    %v3236 = vld [vmem:[#allocation4 + $0x270] sm:$0xff]
    %v3237 = vld [vmem:[#allocation4 + $0x278] sm:$0xff]
    %v3238 = vld [vmem:[#allocation4 + $0x280] sm:$0xff]
    %v3239 = vld [vmem:[#allocation4 + $0x288] sm:$0xff]
    %v3240 = vld [vmem:[#allocation4 + $0x290] sm:$0xff]
    %v3241 = vld [vmem:[#allocation4 + $0x298] sm:$0xff]
    %v3242 = vld [vmem:[#allocation4 + $0x2a0] sm:$0xff]
    %v3243 = vld [vmem:[#allocation4 + $0x2a8] sm:$0xff]
    %v3244 = vld [vmem:[#allocation4 + $0x2b0] sm:$0xff]
    %v3245 = vld [vmem:[#allocation4 + $0x2b8] sm:$0xff]
    %v3246 = vld [vmem:[#allocation4 + $0x2c0] sm:$0xff]
    %v3247 = vld [vmem:[#allocation4 + $0x2c8] sm:$0xff]
    %v3248 = vld [vmem:[#allocation4 + $0x2d0] sm:$0xff]
    %v3249 = vld [vmem:[#allocation4 + $0x2d8] sm:$0xff]
    %v3250 = vld [vmem:[#allocation4 + $0x2e0] sm:$0xff]
    %v3251 = vld [vmem:[#allocation4 + $0x2e8] sm:$0xff]
    %v3252 = vld [vmem:[#allocation4 + $0x2f0] sm:$0xff]
    %v3253 = vld [vmem:[#allocation4 + $0x2f8] sm:$0xff]
    %v3254 = vld [vmem:[#allocation4 + $0x300] sm:$0xff]
    %v3255 = vld [vmem:[#allocation4 + $0x308] sm:$0xff]
    %v3256 = vld [vmem:[#allocation4 + $0x310] sm:$0xff]
    %v3257 = vld [vmem:[#allocation4 + $0x318] sm:$0xff]
    %v3258 = vld [vmem:[#allocation4 + $0x320] sm:$0xff]
    %v3259 = vld [vmem:[#allocation4 + $0x328] sm:$0xff]
    %v3260 = vld [vmem:[#allocation4 + $0x330] sm:$0xff]
    %v3261 = vld [vmem:[#allocation4 + $0x338] sm:$0xff]
    %v3262 = vld [vmem:[#allocation4 + $0x340] sm:$0xff]
    %v3263 = vld [vmem:[#allocation4 + $0x348] sm:$0xff]
    %v3264 = vld [vmem:[#allocation4 + $0x350] sm:$0xff]
    %v3265 = vld [vmem:[#allocation4 + $0x358] sm:$0xff]
    %v3266 = vld [vmem:[#allocation4 + $0x360] sm:$0xff]
    %v3267 = vld [vmem:[#allocation4 + $0x368] sm:$0xff]
    %v3268 = vld [vmem:[#allocation4 + $0x370] sm:$0xff]
    %v3269 = vld [vmem:[#allocation4 + $0x378] sm:$0xff]
    %v3270 = vld [vmem:[#allocation4 + $0x380] sm:$0xff]
    %v3271 = vld [vmem:[#allocation4 + $0x388] sm:$0xff]
    %v3272 = vld [vmem:[#allocation4 + $0x390] sm:$0xff]
    %v3273 = vld [vmem:[#allocation4 + $0x398] sm:$0xff]
    %v3274 = vld [vmem:[#allocation4 + $0x3a0] sm:$0xff]
    %v3275 = vld [vmem:[#allocation4 + $0x3a8] sm:$0xff]
    %v3276 = vld [vmem:[#allocation4 + $0x3b0] sm:$0xff]
    %v3277 = vld [vmem:[#allocation4 + $0x3b8] sm:$0xff]
    %v3278 = vld [vmem:[#allocation4 + $0x3c0] sm:$0xff]
    %v3279 = vld [vmem:[#allocation4 + $0x3c8] sm:$0xff]
    %v3280 = vld [vmem:[#allocation4 + $0x3d0] sm:$0xff]
    %v3281 = vld [vmem:[#allocation4 + $0x3d8] sm:$0xff]
    %v3282 = vld [vmem:[#allocation4 + $0x3e0] sm:$0xff]
    %v3283 = vld [vmem:[#allocation4 + $0x3e8] sm:$0xff]
    %v3284 = vld [vmem:[#allocation4 + $0x3f0] sm:$0xff]
    %v3285 = vld [vmem:[#allocation4 + $0x3f8] sm:$0xff]
    %v3286 = vld [vmem:[#allocation4 + $0x400] sm:$0xff]
    %v3287 = vld [vmem:[#allocation4 + $0x408] sm:$0xff]
    %v3288 = vld [vmem:[#allocation4 + $0x410] sm:$0xff]
    %v3289 = vld [vmem:[#allocation4 + $0x418] sm:$0xff]
    %v3290 = vld [vmem:[#allocation4 + $0x420] sm:$0xff]
    %v3291 = vld [vmem:[#allocation4 + $0x428] sm:$0xff]
    %v3292 = vld [vmem:[#allocation4 + $0x430] sm:$0xff]
    %v3293 = vld [vmem:[#allocation4 + $0x438] sm:$0xff]
    %v3294 = vld [vmem:[#allocation4 + $0x440] sm:$0xff]
    %v3295 = vld [vmem:[#allocation4 + $0x448] sm:$0xff]
    %v3296 = vld [vmem:[#allocation4 + $0x450] sm:$0xff]
    %v3297 = vld [vmem:[#allocation4 + $0x458] sm:$0xff]
    %v3298 = vld [vmem:[#allocation4 + $0x460] sm:$0xff]
    %v3299 = vld [vmem:[#allocation4 + $0x468] sm:$0xff]
    %v3300 = vld [vmem:[#allocation4 + $0x470] sm:$0xff]
    %v3301 = vld [vmem:[#allocation4 + $0x478] sm:$0xff]
    %v3302 = vld [vmem:[#allocation4 + $0x480] sm:$0xff]
    %v3303 = vld [vmem:[#allocation4 + $0x488] sm:$0xff]
    %v3304 = vld [vmem:[#allocation4 + $0x490] sm:$0xff]
    %v3305 = vld [vmem:[#allocation4 + $0x498] sm:$0xff]
    %v3306 = vld [vmem:[#allocation4 + $0x4a0] sm:$0xff]
    %v3307 = vld [vmem:[#allocation4 + $0x4a8] sm:$0xff]
    %v3308 = vld [vmem:[#allocation4 + $0x4b0] sm:$0xff]
    %v3309 = vld [vmem:[#allocation4 + $0x4b8] sm:$0xff]
    %v3310 = vld [vmem:[#allocation4 + $0x4c0] sm:$0xff]
    %v3311 = vld [vmem:[#allocation4 + $0x4c8] sm:$0xff]
    %v3312 = vld [vmem:[#allocation4 + $0x4d0] sm:$0xff]
    %v3313 = vld [vmem:[#allocation4 + $0x4d8] sm:$0xff]
    %v3314 = vld [vmem:[#allocation4 + $0x4e0] sm:$0xff]
    %v3315 = vld [vmem:[#allocation4 + $0x4e8] sm:$0xff]
    %v3316 = vld [vmem:[#allocation4 + $0x4f0] sm:$0xff]
    %v3317 = vld [vmem:[#allocation4 + $0x4f8] sm:$0xff]
    %v3318 = vld [vmem:[#allocation4 + $0x500] sm:$0xff]
    %v3319 = vld [vmem:[#allocation4 + $0x508] sm:$0xff]
    %v3320 = vld [vmem:[#allocation4 + $0x510] sm:$0xff]
    %v3321 = vld [vmem:[#allocation4 + $0x518] sm:$0xff]
    %v3322 = vld [vmem:[#allocation4 + $0x520] sm:$0xff]
    %v3323 = vld [vmem:[#allocation4 + $0x528] sm:$0xff]
    %v3324 = vld [vmem:[#allocation4 + $0x530] sm:$0xff]
    %v3325 = vld [vmem:[#allocation4 + $0x538] sm:$0xff]
    %v3326 = vld [vmem:[#allocation4 + $0x540] sm:$0xff]
    %v3327 = vld [vmem:[#allocation4 + $0x548] sm:$0xff]
    %v3328 = vld [vmem:[#allocation4 + $0x550] sm:$0xff]
    %v3329 = vld [vmem:[#allocation4 + $0x558] sm:$0xff]
    %v3330 = vld [vmem:[#allocation4 + $0x560] sm:$0xff]
    %v3331 = vld [vmem:[#allocation4 + $0x568] sm:$0xff]
    %v3332 = vld [vmem:[#allocation4 + $0x570] sm:$0xff]
    %v3333 = vld [vmem:[#allocation4 + $0x578] sm:$0xff]
    %v3334 = vld [vmem:[#allocation4 + $0x580] sm:$0xff]
    %v3335 = vld [vmem:[#allocation4 + $0x588] sm:$0xff]
    %v3336 = vld [vmem:[#allocation4 + $0x590] sm:$0xff]
    %v3337 = vld [vmem:[#allocation4 + $0x598] sm:$0xff]
    %v3338 = vld [vmem:[#allocation4 + $0x5a0] sm:$0xff]
    %v3339 = vld [vmem:[#allocation4 + $0x5a8] sm:$0xff]
    %v3340 = vld [vmem:[#allocation4 + $0x5b0] sm:$0xff]
    %v3341 = vld [vmem:[#allocation4 + $0x5b8] sm:$0xff]
    %v3342 = vld [vmem:[#allocation4 + $0x5c0] sm:$0xff]
    %v3343 = vld [vmem:[#allocation4 + $0x5c8] sm:$0xff]
    %v3344 = vld [vmem:[#allocation4 + $0x5d0] sm:$0xff]
    %v3345 = vld [vmem:[#allocation4 + $0x5d8] sm:$0xff]
    %v3346 = vld [vmem:[#allocation4 + $0x5e0] sm:$0xff]
    %v3347 = vld [vmem:[#allocation4 + $0x5e8] sm:$0xff]
    %v3348 = vld [vmem:[#allocation4 + $0x5f0] sm:$0xff]
    %v3349 = vld [vmem:[#allocation4 + $0x5f8] sm:$0xff]
    %v3350 = vld [vmem:[#allocation4 + $0x600] sm:$0xff]
    %v3351 = vld [vmem:[#allocation4 + $0x608] sm:$0xff]
    %v3352 = vld [vmem:[#allocation4 + $0x610] sm:$0xff]
    %v3353 = vld [vmem:[#allocation4 + $0x618] sm:$0xff]
    %v3354 = vld [vmem:[#allocation4 + $0x620] sm:$0xff]
    %v3355 = vld [vmem:[#allocation4 + $0x628] sm:$0xff]
    %v3356 = vld [vmem:[#allocation4 + $0x630] sm:$0xff]
    %v3357 = vld [vmem:[#allocation4 + $0x638] sm:$0xff]
    %v3358 = vld [vmem:[#allocation4 + $0x640] sm:$0xff]
    %v3359 = vld [vmem:[#allocation4 + $0x648] sm:$0xff]
    %v3360 = vld [vmem:[#allocation4 + $0x650] sm:$0xff]
    %v3361 = vld [vmem:[#allocation4 + $0x658] sm:$0xff]
    %v3362 = vld [vmem:[#allocation4 + $0x660] sm:$0xff]
    %v3363 = vld [vmem:[#allocation4 + $0x668] sm:$0xff]
    %v3364 = vld [vmem:[#allocation4 + $0x670] sm:$0xff]
    %v3365 = vld [vmem:[#allocation4 + $0x678] sm:$0xff]
    %v3366 = vld [vmem:[#allocation4 + $0x680] sm:$0xff]
    %v3367 = vld [vmem:[#allocation4 + $0x688] sm:$0xff]
    %v3368 = vld [vmem:[#allocation4 + $0x690] sm:$0xff]
    %v3369 = vld [vmem:[#allocation4 + $0x698] sm:$0xff]
    %v3370 = vld [vmem:[#allocation4 + $0x6a0] sm:$0xff]
    %v3371 = vld [vmem:[#allocation4 + $0x6a8] sm:$0xff]
    %v3372 = vld [vmem:[#allocation4 + $0x6b0] sm:$0xff]
    %v3373 = vld [vmem:[#allocation4 + $0x6b8] sm:$0xff]
    %v3374 = vld [vmem:[#allocation4 + $0x6c0] sm:$0xff]
    %v3375 = vld [vmem:[#allocation4 + $0x6c8] sm:$0xff]
    %v3376 = vld [vmem:[#allocation4 + $0x6d0] sm:$0xff]
    %v3377 = vld [vmem:[#allocation4 + $0x6d8] sm:$0xff]
    %v3378 = vld [vmem:[#allocation4 + $0x6e0] sm:$0xff]
    %v3379 = vld [vmem:[#allocation4 + $0x6e8] sm:$0xff]
    %v3380 = vld [vmem:[#allocation4 + $0x6f0] sm:$0xff]
    %v3381 = vld [vmem:[#allocation4 + $0x6f8] sm:$0xff]
    %v3382 = vld [vmem:[#allocation4 + $0x700] sm:$0xff]
    %v3383 = vld [vmem:[#allocation4 + $0x708] sm:$0xff]
    %v3384 = vld [vmem:[#allocation4 + $0x710] sm:$0xff]
    %v3385 = vld [vmem:[#allocation4 + $0x718] sm:$0xff]
    %v3386 = vld [vmem:[#allocation4 + $0x720] sm:$0xff]
    %v3387 = vld [vmem:[#allocation4 + $0x728] sm:$0xff]
    %v3388 = vld [vmem:[#allocation4 + $0x730] sm:$0xff]
    %v3389 = vld [vmem:[#allocation4 + $0x738] sm:$0xff]
    %v3390 = vld [vmem:[#allocation4 + $0x740] sm:$0xff]
    %v3391 = vld [vmem:[#allocation4 + $0x748] sm:$0xff]
    %v3392 = vld [vmem:[#allocation4 + $0x750] sm:$0xff]
    %v3393 = vld [vmem:[#allocation4 + $0x758] sm:$0xff]
    %v3394 = vld [vmem:[#allocation4 + $0x760] sm:$0xff]
    %v3395 = vld [vmem:[#allocation4 + $0x768] sm:$0xff]
    %v3396 = vld [vmem:[#allocation4 + $0x770] sm:$0xff]
    %v3397 = vld [vmem:[#allocation4 + $0x778] sm:$0xff]
    %v3398 = vld [vmem:[#allocation4 + $0x780] sm:$0xff]
    %v3399 = vld [vmem:[#allocation4 + $0x788] sm:$0xff]
    %v3400 = vld [vmem:[#allocation4 + $0x790] sm:$0xff]
    %v3401 = vld [vmem:[#allocation4 + $0x798] sm:$0xff]
    %v3402 = vld [vmem:[#allocation4 + $0x7a0] sm:$0xff]
    %v3403 = vld [vmem:[#allocation4 + $0x7a8] sm:$0xff]
    %v3404 = vld [vmem:[#allocation4 + $0x7b0] sm:$0xff]
    %v3405 = vld [vmem:[#allocation4 + $0x7b8] sm:$0xff]
    %v3406 = vld [vmem:[#allocation4 + $0x7c0] sm:$0xff]
    %v3407 = vld [vmem:[#allocation4 + $0x7c8] sm:$0xff]
    %v3408 = vld [vmem:[#allocation4 + $0x7d0] sm:$0xff]
    %v3409 = vld [vmem:[#allocation4 + $0x7d8] sm:$0xff]
    %v3410 = vld [vmem:[#allocation4 + $0x7e0] sm:$0xff]
    %v3411 = vld [vmem:[#allocation4 + $0x7e8] sm:$0xff]
    %v3412 = vld [vmem:[#allocation4 + $0x7f0] sm:$0xff]
    %v3413 = vld [vmem:[#allocation4 + $0x7f8] sm:$0xff]
    %3414 = vmatprep.subr.mxu0 %v3159
    %3415 = vmatpush1.msra.mxu0 %v3158
    %3416 = vmatprep.subr.mxu0 %v3167
    %3417 = vmatpush1.msra.mxu0 %v3166
    %3418 = vmatprep.subr.mxu0 %v3175
    %3419 = vmatpush1.msra.mxu0 %v3174
    %3420 = vmatprep.subr.mxu0 %v3183
    %3421 = vmatpush1.msra.mxu0 %v3182
    %3422 = vmatprep.subr.mxu0 %v3191
    %3423 = vmatpush1.msra.mxu0 %v3190
    %3424 = vmatprep.subr.mxu0 %v3199
    %3425 = vmatpush1.msra.mxu0 %v3198
    %3426 = vmatprep.subr.mxu0 %v3207
    %3427 = vmatpush1.msra.mxu0 %v3206
    %3428 = vmatprep.subr.mxu0 %v3215
    %3429 = vmatpush1.msra.mxu0 %v3214
    %3430 = vmatprep.subr.mxu0 %v3223
    %3431 = vmatpush1.msra.mxu0 %v3222
    %3432 = vmatprep.subr.mxu0 %v3231
    %3433 = vmatpush1.msra.mxu0 %v3230
    %3434 = vmatprep.subr.mxu0 %v3239
    %3435 = vmatpush1.msra.mxu0 %v3238
    %3436 = vmatprep.subr.mxu0 %v3247
    %3437 = vmatpush1.msra.mxu0 %v3246
    %3438 = vmatprep.subr.mxu0 %v3255
    %3439 = vmatpush1.msra.mxu0 %v3254
    %3440 = vmatprep.subr.mxu0 %v3263
    %3441 = vmatpush1.msra.mxu0 %v3262
    %3442 = vmatprep.subr.mxu0 %v3271
    %3443 = vmatpush1.msra.mxu0 %v3270
    %3444 = vmatprep.subr.mxu0 %v3279
    %3445 = vmatpush1.msra.mxu0 %v3278
    %3446 = vmatprep.subr.mxu0 %v3287
    %3447 = vmatpush1.msra.mxu0 %v3286
    %3448 = vmatprep.subr.mxu0 %v3295
    %3449 = vmatpush1.msra.mxu0 %v3294
    %3450 = vmatprep.subr.mxu0 %v3303
    %3451 = vmatpush1.msra.mxu0 %v3302
    %3452 = vmatprep.subr.mxu0 %v3311
    %3453 = vmatpush1.msra.mxu0 %v3310
    %3454 = vmatprep.subr.mxu0 %v3319
    %3455 = vmatpush1.msra.mxu0 %v3318
    %3456 = vmatprep.subr.mxu0 %v3327
    %3457 = vmatpush1.msra.mxu0 %v3326
    %3458 = vmatprep.subr.mxu0 %v3335
    %3459 = vmatpush1.msra.mxu0 %v3334
    %3460 = vmatprep.subr.mxu0 %v3343
    %3461 = vmatpush1.msra.mxu0 %v3342
    %3462 = vmatprep.subr.mxu0 %v3351
    %3463 = vmatpush1.msra.mxu0 %v3350
    %3464 = vmatprep.subr.mxu0 %v3359
    %3465 = vmatpush1.msra.mxu0 %v3358
    %3466 = vmatprep.subr.mxu0 %v3367
    %3467 = vmatpush1.msra.mxu0 %v3366
    %3468 = vmatprep.subr.mxu0 %v3375
    %3469 = vmatpush1.msra.mxu0 %v3374
    %3470 = vmatprep.subr.mxu0 %v3383
    %3471 = vmatpush1.msra.mxu0 %v3382
    %3472 = vmatprep.subr.mxu0 %v3391
    %3473 = vmatpush1.msra.mxu0 %v3390
    %3474 = vmatprep.subr.mxu0 %v3399
    %3475 = vmatpush1.msra.mxu0 %v3398
    %3476 = vmatprep.subr.mxu0 %v3407
    %3477 = vmatpush1.msra.mxu0 %v3406
    %3478 = vmatprep.mubr.f32.mxu0 %v3147
    %3479 = vmatmul.mubr.f32.gmra.mrb[0].mxu0 %v3146
    %v3480 = vpop.f32.mrb[0].mxu0
    %v3481 = vadd.f32 0.0, %v3480
    %v3482 = vpop.f32.mrb[0].mxu0
    %v3483 = vadd.f32 0.0, %v3482
    %3484 = vdwg.mxu0
    %3485 = vmatprep.subr.mxu0 %v3161
    %3486 = vmatpush1.msra.mxu0 %v3160
    %3487 = vmatprep.subr.mxu0 %v3169
    %3488 = vmatpush1.msra.mxu0 %v3168
    %3489 = vmatprep.subr.mxu0 %v3177
    %3490 = vmatpush1.msra.mxu0 %v3176
    %3491 = vmatprep.subr.mxu0 %v3185
    %3492 = vmatpush1.msra.mxu0 %v3184
    %3493 = vmatprep.subr.mxu0 %v3193
    %3494 = vmatpush1.msra.mxu0 %v3192
    %3495 = vmatprep.subr.mxu0 %v3201
    %3496 = vmatpush1.msra.mxu0 %v3200
    %3497 = vmatprep.subr.mxu0 %v3209
    %3498 = vmatpush1.msra.mxu0 %v3208
    %3499 = vmatprep.subr.mxu0 %v3217
    %3500 = vmatpush1.msra.mxu0 %v3216
    %3501 = vmatprep.subr.mxu0 %v3225
    %3502 = vmatpush1.msra.mxu0 %v3224
    %3503 = vmatprep.subr.mxu0 %v3233
    %3504 = vmatpush1.msra.mxu0 %v3232
    %3505 = vmatprep.subr.mxu0 %v3241
    %3506 = vmatpush1.msra.mxu0 %v3240
    %3507 = vmatprep.subr.mxu0 %v3249
    %3508 = vmatpush1.msra.mxu0 %v3248
    %3509 = vmatprep.subr.mxu0 %v3257
    %3510 = vmatpush1.msra.mxu0 %v3256
    %3511 = vmatprep.subr.mxu0 %v3265
    %3512 = vmatpush1.msra.mxu0 %v3264
    %3513 = vmatprep.subr.mxu0 %v3273
    %3514 = vmatpush1.msra.mxu0 %v3272
    %3515 = vmatprep.subr.mxu0 %v3281
    %3516 = vmatpush1.msra.mxu0 %v3280
    %3517 = vmatprep.subr.mxu0 %v3289
    %3518 = vmatpush1.msra.mxu0 %v3288
    %3519 = vmatprep.subr.mxu0 %v3297
    %3520 = vmatpush1.msra.mxu0 %v3296
    %3521 = vmatprep.subr.mxu0 %v3305
    %3522 = vmatpush1.msra.mxu0 %v3304
    %3523 = vmatprep.subr.mxu0 %v3313
    %3524 = vmatpush1.msra.mxu0 %v3312
    %3525 = vmatprep.subr.mxu0 %v3321
    %3526 = vmatpush1.msra.mxu0 %v3320
    %3527 = vmatprep.subr.mxu0 %v3329
    %3528 = vmatpush1.msra.mxu0 %v3328
    %3529 = vmatprep.subr.mxu0 %v3337
    %3530 = vmatpush1.msra.mxu0 %v3336
    %3531 = vmatprep.subr.mxu0 %v3345
    %3532 = vmatpush1.msra.mxu0 %v3344
    %3533 = vmatprep.subr.mxu0 %v3353
    %3534 = vmatpush1.msra.mxu0 %v3352
    %3535 = vmatprep.subr.mxu0 %v3361
    %3536 = vmatpush1.msra.mxu0 %v3360
    %3537 = vmatprep.subr.mxu0 %v3369
    %3538 = vmatpush1.msra.mxu0 %v3368
    %3539 = vmatprep.subr.mxu0 %v3377
    %3540 = vmatpush1.msra.mxu0 %v3376
    %3541 = vmatprep.subr.mxu0 %v3385
    %3542 = vmatpush1.msra.mxu0 %v3384
    %3543 = vmatprep.subr.mxu0 %v3393
    %3544 = vmatpush1.msra.mxu0 %v3392
    %3545 = vmatprep.subr.mxu0 %v3401
    %3546 = vmatpush1.msra.mxu0 %v3400
    %3547 = vmatprep.subr.mxu0 %v3409
    %3548 = vmatpush1.msra.mxu0 %v3408
    %3549 = vmatprep.mubr.f32.mxu0 %v3147
    %3550 = vmatmul.mubr.f32.gmra.mrb[0].mxu0 %v3146
    %v3551 = vpop.f32.mrb[0].mxu0
    %v3552 = vadd.f32 0.0, %v3551
    %v3553 = vpop.f32.mrb[0].mxu0
    %v3554 = vadd.f32 0.0, %v3553
    %3555 = vdwg.mxu0
    %3556 = vmatprep.subr.mxu0 %v3163
    %3557 = vmatpush1.msra.mxu0 %v3162
    %3558 = vmatprep.subr.mxu0 %v3171
    %3559 = vmatpush1.msra.mxu0 %v3170
    %3560 = vmatprep.subr.mxu0 %v3179
    %3561 = vmatpush1.msra.mxu0 %v3178
    %3562 = vmatprep.subr.mxu0 %v3187
    %3563 = vmatpush1.msra.mxu0 %v3186
    %3564 = vmatprep.subr.mxu0 %v3195
    %3565 = vmatpush1.msra.mxu0 %v3194
    %3566 = vmatprep.subr.mxu0 %v3203
    %3567 = vmatpush1.msra.mxu0 %v3202
    %3568 = vmatprep.subr.mxu0 %v3211
    %3569 = vmatpush1.msra.mxu0 %v3210
    %3570 = vmatprep.subr.mxu0 %v3219
    %3571 = vmatpush1.msra.mxu0 %v3218
    %3572 = vmatprep.subr.mxu0 %v3227
    %3573 = vmatpush1.msra.mxu0 %v3226
    %3574 = vmatprep.subr.mxu0 %v3235
    %3575 = vmatpush1.msra.mxu0 %v3234
    %3576 = vmatprep.subr.mxu0 %v3243
    %3577 = vmatpush1.msra.mxu0 %v3242
    %3578 = vmatprep.subr.mxu0 %v3251
    %3579 = vmatpush1.msra.mxu0 %v3250
    %3580 = vmatprep.subr.mxu0 %v3259
    %3581 = vmatpush1.msra.mxu0 %v3258
    %3582 = vmatprep.subr.mxu0 %v3267
    %3583 = vmatpush1.msra.mxu0 %v3266
    %3584 = vmatprep.subr.mxu0 %v3275
    %3585 = vmatpush1.msra.mxu0 %v3274
    %3586 = vmatprep.subr.mxu0 %v3283
    %3587 = vmatpush1.msra.mxu0 %v3282
    %3588 = vmatprep.subr.mxu0 %v3291
    %3589 = vmatpush1.msra.mxu0 %v3290
    %3590 = vmatprep.subr.mxu0 %v3299
    %3591 = vmatpush1.msra.mxu0 %v3298
    %3592 = vmatprep.subr.mxu0 %v3307
    %3593 = vmatpush1.msra.mxu0 %v3306
    %3594 = vmatprep.subr.mxu0 %v3315
    %3595 = vmatpush1.msra.mxu0 %v3314
    %3596 = vmatprep.subr.mxu0 %v3323
    %3597 = vmatpush1.msra.mxu0 %v3322
    %3598 = vmatprep.subr.mxu0 %v3331
    %3599 = vmatpush1.msra.mxu0 %v3330
    %3600 = vmatprep.subr.mxu0 %v3339
    %3601 = vmatpush1.msra.mxu0 %v3338
    %3602 = vmatprep.subr.mxu0 %v3347
    %3603 = vmatpush1.msra.mxu0 %v3346
    %3604 = vmatprep.subr.mxu0 %v3355
    %3605 = vmatpush1.msra.mxu0 %v3354
    %3606 = vmatprep.subr.mxu0 %v3363
    %3607 = vmatpush1.msra.mxu0 %v3362
    %3608 = vmatprep.subr.mxu0 %v3371
    %3609 = vmatpush1.msra.mxu0 %v3370
    %3610 = vmatprep.subr.mxu0 %v3379
    %3611 = vmatpush1.msra.mxu0 %v3378
    %3612 = vmatprep.subr.mxu0 %v3387
    %3613 = vmatpush1.msra.mxu0 %v3386
    %3614 = vmatprep.subr.mxu0 %v3395
    %3615 = vmatpush1.msra.mxu0 %v3394
    %3616 = vmatprep.subr.mxu0 %v3403
    %3617 = vmatpush1.msra.mxu0 %v3402
    %3618 = vmatprep.subr.mxu0 %v3411
    %3619 = vmatpush1.msra.mxu0 %v3410
    %3620 = vmatprep.mubr.f32.mxu0 %v3147
    %3621 = vmatmul.mubr.f32.gmra.mrb[0].mxu0 %v3146
    %v3622 = vpop.f32.mrb[0].mxu0
    %v3623 = vadd.f32 0.0, %v3622
    %v3624 = vpop.f32.mrb[0].mxu0
    %v3625 = vadd.f32 0.0, %v3624
    %3626 = vdwg.mxu0
    %3627 = vmatprep.subr.mxu0 %v3165
    %3628 = vmatpush1.msra.mxu0 %v3164
    %3629 = vmatprep.subr.mxu0 %v3173
    %3630 = vmatpush1.msra.mxu0 %v3172
    %3631 = vmatprep.subr.mxu0 %v3181
    %3632 = vmatpush1.msra.mxu0 %v3180
    %3633 = vmatprep.subr.mxu0 %v3189
    %3634 = vmatpush1.msra.mxu0 %v3188
    %3635 = vmatprep.subr.mxu0 %v3197
    %3636 = vmatpush1.msra.mxu0 %v3196
    %3637 = vmatprep.subr.mxu0 %v3205
    %3638 = vmatpush1.msra.mxu0 %v3204
    %3639 = vmatprep.subr.mxu0 %v3213
    %3640 = vmatpush1.msra.mxu0 %v3212
    %3641 = vmatprep.subr.mxu0 %v3221
    %3642 = vmatpush1.msra.mxu0 %v3220
    %3643 = vmatprep.subr.mxu0 %v3229
    %3644 = vmatpush1.msra.mxu0 %v3228
    %3645 = vmatprep.subr.mxu0 %v3237
    %3646 = vmatpush1.msra.mxu0 %v3236
    %3647 = vmatprep.subr.mxu0 %v3245
    %3648 = vmatpush1.msra.mxu0 %v3244
    %3649 = vmatprep.subr.mxu0 %v3253
    %3650 = vmatpush1.msra.mxu0 %v3252
    %3651 = vmatprep.subr.mxu0 %v3261
    %3652 = vmatpush1.msra.mxu0 %v3260
    %3653 = vmatprep.subr.mxu0 %v3269
    %3654 = vmatpush1.msra.mxu0 %v3268
    %3655 = vmatprep.subr.mxu0 %v3277
    %3656 = vmatpush1.msra.mxu0 %v3276
    %3657 = vmatprep.subr.mxu0 %v3285
    %3658 = vmatpush1.msra.mxu0 %v3284
    %3659 = vmatprep.subr.mxu0 %v3293
    %3660 = vmatpush1.msra.mxu0 %v3292
    %3661 = vmatprep.subr.mxu0 %v3301
    %3662 = vmatpush1.msra.mxu0 %v3300
    %3663 = vmatprep.subr.mxu0 %v3309
    %3664 = vmatpush1.msra.mxu0 %v3308
    %3665 = vmatprep.subr.mxu0 %v3317
    %3666 = vmatpush1.msra.mxu0 %v3316
    %3667 = vmatprep.subr.mxu0 %v3325
    %3668 = vmatpush1.msra.mxu0 %v3324
    %3669 = vmatprep.subr.mxu0 %v3333
    %3670 = vmatpush1.msra.mxu0 %v3332
    %3671 = vmatprep.subr.mxu0 %v3341
    %3672 = vmatpush1.msra.mxu0 %v3340
    %3673 = vmatprep.subr.mxu0 %v3349
    %3674 = vmatpush1.msra.mxu0 %v3348
    %3675 = vmatprep.subr.mxu0 %v3357
    %3676 = vmatpush1.msra.mxu0 %v3356
    %3677 = vmatprep.subr.mxu0 %v3365
    %3678 = vmatpush1.msra.mxu0 %v3364
    %3679 = vmatprep.subr.mxu0 %v3373
    %3680 = vmatpush1.msra.mxu0 %v3372
    %3681 = vmatprep.subr.mxu0 %v3381
    %3682 = vmatpush1.msra.mxu0 %v3380
    %3683 = vmatprep.subr.mxu0 %v3389
    %3684 = vmatpush1.msra.mxu0 %v3388
    %3685 = vmatprep.subr.mxu0 %v3397
    %3686 = vmatpush1.msra.mxu0 %v3396
    %3687 = vmatprep.subr.mxu0 %v3405
    %3688 = vmatpush1.msra.mxu0 %v3404
    %3689 = vmatprep.subr.mxu0 %v3413
    %3690 = vmatpush1.msra.mxu0 %v3412
    %3691 = vmatprep.mubr.f32.mxu0 %v3147
    %3692 = vmatmul.mubr.f32.gmra.mrb[0].mxu0 %v3146
    %v3693 = vpop.f32.mrb[0].mxu0
    %v3694 = vadd.f32 0.0, %v3693
    %v3695 = vpop.f32.mrb[0].mxu0
    %v3696 = vadd.f32 0.0, %v3695
    %3697 = vdwg.mxu0
    %v3698 = vadd.f32 %v3150, %v3481
    %v3699 = vadd.f32 %v3151, %v3483
    %v3700 = vadd.f32 %v3152, %v3552
    %v3701 = vadd.f32 %v3153, %v3554
    %v3702 = vadd.f32 %v3154, %v3623
    %v3703 = vadd.f32 %v3155, %v3625
    %v3704 = vadd.f32 %v3156, %v3694
    %v3705 = vadd.f32 %v3157, %v3696
    %v3706 = vxor.u32 %v3698, 2147483648
    %v3707 = vxor.u32 %v3699, 2147483648
    %v3708 = vmul.f32 %v3706, 1.442695
    %v3709 = vpow.pop %v3708
    %v3710 = vmul.f32 %v3707, 1.442695
    %v3711 = vpow.pop %v3710
    %v3712 = vadd.f32 %v3709, 1.0
    %v3713 = vadd.f32 %v3711, 1.0
    %v3714 = vrcp.pop %v3712
    %v3715 = vmul.f32 1.0, %v3714
    %v3716 = vrcp.pop %v3713
    %v3717 = vmul.f32 1.0, %v3716
    %v3718 = vxor.u32 %v3700, 2147483648
    %v3719 = vxor.u32 %v3701, 2147483648
    %v3720 = vmul.f32 %v3718, 1.442695
    %v3721 = vpow.pop %v3720
    %v3722 = vmul.f32 %v3719, 1.442695
    %v3723 = vpow.pop %v3722
    %v3724 = vadd.f32 %v3721, 1.0
    %v3725 = vadd.f32 %v3723, 1.0
    %v3726 = vrcp.pop %v3724
    %v3727 = vmul.f32 1.0, %v3726
    %v3728 = vrcp.pop %v3725
    %v3729 = vmul.f32 1.0, %v3728
    %v3730 = vtanh.pop %v3702
    %v3731 = vtanh.pop %v3703
    %v3732 = vxor.u32 %v3704, 2147483648
    %v3733 = vxor.u32 %v3705, 2147483648
    %v3734 = vmul.f32 %v3732, 1.442695
    %v3735 = vpow.pop %v3734
    %v3736 = vmul.f32 %v3733, 1.442695
    %v3737 = vpow.pop %v3736
    %v3738 = vadd.f32 %v3735, 1.0
    %v3739 = vadd.f32 %v3737, 1.0
    %v3740 = vrcp.pop %v3738
    %v3741 = vmul.f32 1.0, %v3740
    %v3742 = vrcp.pop %v3739
    %v3743 = vmul.f32 1.0, %v3742
    %v3744 = vmul.f32 %v3727, %v3142
    %v3745 = vmul.f32 %v3729, %v3143
    %v3746 = vmul.f32 %v3715, %v3730
    %v3747 = vmul.f32 %v3717, %v3731
    %v3748 = vadd.f32 %v3744, %v3746
    %v3749 = vadd.f32 %v3745, %v3747
    %v3750 = vtanh.pop %v3748
    %v3751 = vtanh.pop %v3749
    %v3752 = vmul.f32 %v3741, %v3750
    %v3753 = vmul.f32 %v3743, %v3751
    %3754 = vst [vmem:[#allocation3 + $0x40] sm:$0xff] %v3752
    %3755 = vst [vmem:[#allocation3 + $0x38] sm:$0xff] %v3753
    %v3756 = vld [vmem:[#allocation2 + $0x140] sm:$0xff]
    %v3757 = vld [vmem:[#allocation2 + $0x148] sm:$0xff]
    %v3758 = vld [vmem:[#allocation2 + $0x150] sm:$0xff]
    %v3759 = vld [vmem:[#allocation2 + $0x158] sm:$0xff]
    %v3760 = vld [vmem:[#allocation2 + $0x160] sm:$0xff]
    %v3761 = vld [vmem:[#allocation2 + $0x168] sm:$0xff]
    %v3762 = vld [vmem:[#allocation2 + $0x170] sm:$0xff]
    %v3763 = vld [vmem:[#allocation2 + $0x178] sm:$0xff]
    %v3764 = vld [vmem:[#allocation4] sm:$0xff]
    %v3765 = vld [vmem:[#allocation4 + $0x8] sm:$0xff]
    %v3766 = vld [vmem:[#allocation4 + $0x10] sm:$0xff]
    %v3767 = vld [vmem:[#allocation4 + $0x18] sm:$0xff]
    %v3768 = vld [vmem:[#allocation4 + $0x20] sm:$0xff]
    %v3769 = vld [vmem:[#allocation4 + $0x28] sm:$0xff]
    %v3770 = vld [vmem:[#allocation4 + $0x30] sm:$0xff]
    %v3771 = vld [vmem:[#allocation4 + $0x38] sm:$0xff]
    %v3772 = vld [vmem:[#allocation4 + $0x40] sm:$0xff]
    %v3773 = vld [vmem:[#allocation4 + $0x48] sm:$0xff]
    %v3774 = vld [vmem:[#allocation4 + $0x50] sm:$0xff]
    %v3775 = vld [vmem:[#allocation4 + $0x58] sm:$0xff]
    %v3776 = vld [vmem:[#allocation4 + $0x60] sm:$0xff]
    %v3777 = vld [vmem:[#allocation4 + $0x68] sm:$0xff]
    %v3778 = vld [vmem:[#allocation4 + $0x70] sm:$0xff]
    %v3779 = vld [vmem:[#allocation4 + $0x78] sm:$0xff]
    %v3780 = vld [vmem:[#allocation4 + $0x80] sm:$0xff]
    %v3781 = vld [vmem:[#allocation4 + $0x88] sm:$0xff]
    %v3782 = vld [vmem:[#allocation4 + $0x90] sm:$0xff]
    %v3783 = vld [vmem:[#allocation4 + $0x98] sm:$0xff]
    %v3784 = vld [vmem:[#allocation4 + $0xa0] sm:$0xff]
    %v3785 = vld [vmem:[#allocation4 + $0xa8] sm:$0xff]
    %v3786 = vld [vmem:[#allocation4 + $0xb0] sm:$0xff]
    %v3787 = vld [vmem:[#allocation4 + $0xb8] sm:$0xff]
    %v3788 = vld [vmem:[#allocation4 + $0xc0] sm:$0xff]
    %v3789 = vld [vmem:[#allocation4 + $0xc8] sm:$0xff]
    %v3790 = vld [vmem:[#allocation4 + $0xd0] sm:$0xff]
    %v3791 = vld [vmem:[#allocation4 + $0xd8] sm:$0xff]
    %v3792 = vld [vmem:[#allocation4 + $0xe0] sm:$0xff]
    %v3793 = vld [vmem:[#allocation4 + $0xe8] sm:$0xff]
    %v3794 = vld [vmem:[#allocation4 + $0xf0] sm:$0xff]
    %v3795 = vld [vmem:[#allocation4 + $0xf8] sm:$0xff]
    %v3796 = vld [vmem:[#allocation4 + $0x100] sm:$0xff]
    %v3797 = vld [vmem:[#allocation4 + $0x108] sm:$0xff]
    %v3798 = vld [vmem:[#allocation4 + $0x110] sm:$0xff]
    %v3799 = vld [vmem:[#allocation4 + $0x118] sm:$0xff]
    %v3800 = vld [vmem:[#allocation4 + $0x120] sm:$0xff]
    %v3801 = vld [vmem:[#allocation4 + $0x128] sm:$0xff]
    %v3802 = vld [vmem:[#allocation4 + $0x130] sm:$0xff]
    %v3803 = vld [vmem:[#allocation4 + $0x138] sm:$0xff]
    %v3804 = vld [vmem:[#allocation4 + $0x140] sm:$0xff]
    %v3805 = vld [vmem:[#allocation4 + $0x148] sm:$0xff]
    %v3806 = vld [vmem:[#allocation4 + $0x150] sm:$0xff]
    %v3807 = vld [vmem:[#allocation4 + $0x158] sm:$0xff]
    %v3808 = vld [vmem:[#allocation4 + $0x160] sm:$0xff]
    %v3809 = vld [vmem:[#allocation4 + $0x168] sm:$0xff]
    %v3810 = vld [vmem:[#allocation4 + $0x170] sm:$0xff]
    %v3811 = vld [vmem:[#allocation4 + $0x178] sm:$0xff]
    %v3812 = vld [vmem:[#allocation4 + $0x180] sm:$0xff]
    %v3813 = vld [vmem:[#allocation4 + $0x188] sm:$0xff]
    %v3814 = vld [vmem:[#allocation4 + $0x190] sm:$0xff]
    %v3815 = vld [vmem:[#allocation4 + $0x198] sm:$0xff]
    %v3816 = vld [vmem:[#allocation4 + $0x1a0] sm:$0xff]
    %v3817 = vld [vmem:[#allocation4 + $0x1a8] sm:$0xff]
    %v3818 = vld [vmem:[#allocation4 + $0x1b0] sm:$0xff]
    %v3819 = vld [vmem:[#allocation4 + $0x1b8] sm:$0xff]
    %v3820 = vld [vmem:[#allocation4 + $0x1c0] sm:$0xff]
    %v3821 = vld [vmem:[#allocation4 + $0x1c8] sm:$0xff]
    %v3822 = vld [vmem:[#allocation4 + $0x1d0] sm:$0xff]
    %v3823 = vld [vmem:[#allocation4 + $0x1d8] sm:$0xff]
    %v3824 = vld [vmem:[#allocation4 + $0x1e0] sm:$0xff]
    %v3825 = vld [vmem:[#allocation4 + $0x1e8] sm:$0xff]
    %v3826 = vld [vmem:[#allocation4 + $0x1f0] sm:$0xff]
    %v3827 = vld [vmem:[#allocation4 + $0x1f8] sm:$0xff]
    %v3828 = vld [vmem:[#allocation4 + $0x200] sm:$0xff]
    %v3829 = vld [vmem:[#allocation4 + $0x208] sm:$0xff]
    %v3830 = vld [vmem:[#allocation4 + $0x210] sm:$0xff]
    %v3831 = vld [vmem:[#allocation4 + $0x218] sm:$0xff]
    %v3832 = vld [vmem:[#allocation4 + $0x220] sm:$0xff]
    %v3833 = vld [vmem:[#allocation4 + $0x228] sm:$0xff]
    %v3834 = vld [vmem:[#allocation4 + $0x230] sm:$0xff]
    %v3835 = vld [vmem:[#allocation4 + $0x238] sm:$0xff]
    %v3836 = vld [vmem:[#allocation4 + $0x240] sm:$0xff]
    %v3837 = vld [vmem:[#allocation4 + $0x248] sm:$0xff]
    %v3838 = vld [vmem:[#allocation4 + $0x250] sm:$0xff]
    %v3839 = vld [vmem:[#allocation4 + $0x258] sm:$0xff]
    %v3840 = vld [vmem:[#allocation4 + $0x260] sm:$0xff]
    %v3841 = vld [vmem:[#allocation4 + $0x268] sm:$0xff]
    %v3842 = vld [vmem:[#allocation4 + $0x270] sm:$0xff]
    %v3843 = vld [vmem:[#allocation4 + $0x278] sm:$0xff]
    %v3844 = vld [vmem:[#allocation4 + $0x280] sm:$0xff]
    %v3845 = vld [vmem:[#allocation4 + $0x288] sm:$0xff]
    %v3846 = vld [vmem:[#allocation4 + $0x290] sm:$0xff]
    %v3847 = vld [vmem:[#allocation4 + $0x298] sm:$0xff]
    %v3848 = vld [vmem:[#allocation4 + $0x2a0] sm:$0xff]
    %v3849 = vld [vmem:[#allocation4 + $0x2a8] sm:$0xff]
    %v3850 = vld [vmem:[#allocation4 + $0x2b0] sm:$0xff]
    %v3851 = vld [vmem:[#allocation4 + $0x2b8] sm:$0xff]
    %v3852 = vld [vmem:[#allocation4 + $0x2c0] sm:$0xff]
    %v3853 = vld [vmem:[#allocation4 + $0x2c8] sm:$0xff]
    %v3854 = vld [vmem:[#allocation4 + $0x2d0] sm:$0xff]
    %v3855 = vld [vmem:[#allocation4 + $0x2d8] sm:$0xff]
    %v3856 = vld [vmem:[#allocation4 + $0x2e0] sm:$0xff]
    %v3857 = vld [vmem:[#allocation4 + $0x2e8] sm:$0xff]
    %v3858 = vld [vmem:[#allocation4 + $0x2f0] sm:$0xff]
    %v3859 = vld [vmem:[#allocation4 + $0x2f8] sm:$0xff]
    %v3860 = vld [vmem:[#allocation4 + $0x300] sm:$0xff]
    %v3861 = vld [vmem:[#allocation4 + $0x308] sm:$0xff]
    %v3862 = vld [vmem:[#allocation4 + $0x310] sm:$0xff]
    %v3863 = vld [vmem:[#allocation4 + $0x318] sm:$0xff]
    %v3864 = vld [vmem:[#allocation4 + $0x320] sm:$0xff]
    %v3865 = vld [vmem:[#allocation4 + $0x328] sm:$0xff]
    %v3866 = vld [vmem:[#allocation4 + $0x330] sm:$0xff]
    %v3867 = vld [vmem:[#allocation4 + $0x338] sm:$0xff]
    %v3868 = vld [vmem:[#allocation4 + $0x340] sm:$0xff]
    %v3869 = vld [vmem:[#allocation4 + $0x348] sm:$0xff]
    %v3870 = vld [vmem:[#allocation4 + $0x350] sm:$0xff]
    %v3871 = vld [vmem:[#allocation4 + $0x358] sm:$0xff]
    %v3872 = vld [vmem:[#allocation4 + $0x360] sm:$0xff]
    %v3873 = vld [vmem:[#allocation4 + $0x368] sm:$0xff]
    %v3874 = vld [vmem:[#allocation4 + $0x370] sm:$0xff]
    %v3875 = vld [vmem:[#allocation4 + $0x378] sm:$0xff]
    %v3876 = vld [vmem:[#allocation4 + $0x380] sm:$0xff]
    %v3877 = vld [vmem:[#allocation4 + $0x388] sm:$0xff]
    %v3878 = vld [vmem:[#allocation4 + $0x390] sm:$0xff]
    %v3879 = vld [vmem:[#allocation4 + $0x398] sm:$0xff]
    %v3880 = vld [vmem:[#allocation4 + $0x3a0] sm:$0xff]
    %v3881 = vld [vmem:[#allocation4 + $0x3a8] sm:$0xff]
    %v3882 = vld [vmem:[#allocation4 + $0x3b0] sm:$0xff]
    %v3883 = vld [vmem:[#allocation4 + $0x3b8] sm:$0xff]
    %v3884 = vld [vmem:[#allocation4 + $0x3c0] sm:$0xff]
    %v3885 = vld [vmem:[#allocation4 + $0x3c8] sm:$0xff]
    %v3886 = vld [vmem:[#allocation4 + $0x3d0] sm:$0xff]
    %v3887 = vld [vmem:[#allocation4 + $0x3d8] sm:$0xff]
    %v3888 = vld [vmem:[#allocation4 + $0x3e0] sm:$0xff]
    %v3889 = vld [vmem:[#allocation4 + $0x3e8] sm:$0xff]
    %v3890 = vld [vmem:[#allocation4 + $0x3f0] sm:$0xff]
    %v3891 = vld [vmem:[#allocation4 + $0x3f8] sm:$0xff]
    %v3892 = vld [vmem:[#allocation4 + $0x400] sm:$0xff]
    %v3893 = vld [vmem:[#allocation4 + $0x408] sm:$0xff]
    %v3894 = vld [vmem:[#allocation4 + $0x410] sm:$0xff]
    %v3895 = vld [vmem:[#allocation4 + $0x418] sm:$0xff]
    %v3896 = vld [vmem:[#allocation4 + $0x420] sm:$0xff]
    %v3897 = vld [vmem:[#allocation4 + $0x428] sm:$0xff]
    %v3898 = vld [vmem:[#allocation4 + $0x430] sm:$0xff]
    %v3899 = vld [vmem:[#allocation4 + $0x438] sm:$0xff]
    %v3900 = vld [vmem:[#allocation4 + $0x440] sm:$0xff]
    %v3901 = vld [vmem:[#allocation4 + $0x448] sm:$0xff]
    %v3902 = vld [vmem:[#allocation4 + $0x450] sm:$0xff]
    %v3903 = vld [vmem:[#allocation4 + $0x458] sm:$0xff]
    %v3904 = vld [vmem:[#allocation4 + $0x460] sm:$0xff]
    %v3905 = vld [vmem:[#allocation4 + $0x468] sm:$0xff]
    %v3906 = vld [vmem:[#allocation4 + $0x470] sm:$0xff]
    %v3907 = vld [vmem:[#allocation4 + $0x478] sm:$0xff]
    %v3908 = vld [vmem:[#allocation4 + $0x480] sm:$0xff]
    %v3909 = vld [vmem:[#allocation4 + $0x488] sm:$0xff]
    %v3910 = vld [vmem:[#allocation4 + $0x490] sm:$0xff]
    %v3911 = vld [vmem:[#allocation4 + $0x498] sm:$0xff]
    %v3912 = vld [vmem:[#allocation4 + $0x4a0] sm:$0xff]
    %v3913 = vld [vmem:[#allocation4 + $0x4a8] sm:$0xff]
    %v3914 = vld [vmem:[#allocation4 + $0x4b0] sm:$0xff]
    %v3915 = vld [vmem:[#allocation4 + $0x4b8] sm:$0xff]
    %v3916 = vld [vmem:[#allocation4 + $0x4c0] sm:$0xff]
    %v3917 = vld [vmem:[#allocation4 + $0x4c8] sm:$0xff]
    %v3918 = vld [vmem:[#allocation4 + $0x4d0] sm:$0xff]
    %v3919 = vld [vmem:[#allocation4 + $0x4d8] sm:$0xff]
    %v3920 = vld [vmem:[#allocation4 + $0x4e0] sm:$0xff]
    %v3921 = vld [vmem:[#allocation4 + $0x4e8] sm:$0xff]
    %v3922 = vld [vmem:[#allocation4 + $0x4f0] sm:$0xff]
    %v3923 = vld [vmem:[#allocation4 + $0x4f8] sm:$0xff]
    %v3924 = vld [vmem:[#allocation4 + $0x500] sm:$0xff]
    %v3925 = vld [vmem:[#allocation4 + $0x508] sm:$0xff]
    %v3926 = vld [vmem:[#allocation4 + $0x510] sm:$0xff]
    %v3927 = vld [vmem:[#allocation4 + $0x518] sm:$0xff]
    %v3928 = vld [vmem:[#allocation4 + $0x520] sm:$0xff]
    %v3929 = vld [vmem:[#allocation4 + $0x528] sm:$0xff]
    %v3930 = vld [vmem:[#allocation4 + $0x530] sm:$0xff]
    %v3931 = vld [vmem:[#allocation4 + $0x538] sm:$0xff]
    %v3932 = vld [vmem:[#allocation4 + $0x540] sm:$0xff]
    %v3933 = vld [vmem:[#allocation4 + $0x548] sm:$0xff]
    %v3934 = vld [vmem:[#allocation4 + $0x550] sm:$0xff]
    %v3935 = vld [vmem:[#allocation4 + $0x558] sm:$0xff]
    %v3936 = vld [vmem:[#allocation4 + $0x560] sm:$0xff]
    %v3937 = vld [vmem:[#allocation4 + $0x568] sm:$0xff]
    %v3938 = vld [vmem:[#allocation4 + $0x570] sm:$0xff]
    %v3939 = vld [vmem:[#allocation4 + $0x578] sm:$0xff]
    %v3940 = vld [vmem:[#allocation4 + $0x580] sm:$0xff]
    %v3941 = vld [vmem:[#allocation4 + $0x588] sm:$0xff]
    %v3942 = vld [vmem:[#allocation4 + $0x590] sm:$0xff]
    %v3943 = vld [vmem:[#allocation4 + $0x598] sm:$0xff]
    %v3944 = vld [vmem:[#allocation4 + $0x5a0] sm:$0xff]
    %v3945 = vld [vmem:[#allocation4 + $0x5a8] sm:$0xff]
    %v3946 = vld [vmem:[#allocation4 + $0x5b0] sm:$0xff]
    %v3947 = vld [vmem:[#allocation4 + $0x5b8] sm:$0xff]
    %v3948 = vld [vmem:[#allocation4 + $0x5c0] sm:$0xff]
    %v3949 = vld [vmem:[#allocation4 + $0x5c8] sm:$0xff]
    %v3950 = vld [vmem:[#allocation4 + $0x5d0] sm:$0xff]
    %v3951 = vld [vmem:[#allocation4 + $0x5d8] sm:$0xff]
    %v3952 = vld [vmem:[#allocation4 + $0x5e0] sm:$0xff]
    %v3953 = vld [vmem:[#allocation4 + $0x5e8] sm:$0xff]
    %v3954 = vld [vmem:[#allocation4 + $0x5f0] sm:$0xff]
    %v3955 = vld [vmem:[#allocation4 + $0x5f8] sm:$0xff]
    %v3956 = vld [vmem:[#allocation4 + $0x600] sm:$0xff]
    %v3957 = vld [vmem:[#allocation4 + $0x608] sm:$0xff]
    %v3958 = vld [vmem:[#allocation4 + $0x610] sm:$0xff]
    %v3959 = vld [vmem:[#allocation4 + $0x618] sm:$0xff]
    %v3960 = vld [vmem:[#allocation4 + $0x620] sm:$0xff]
    %v3961 = vld [vmem:[#allocation4 + $0x628] sm:$0xff]
    %v3962 = vld [vmem:[#allocation4 + $0x630] sm:$0xff]
    %v3963 = vld [vmem:[#allocation4 + $0x638] sm:$0xff]
    %v3964 = vld [vmem:[#allocation4 + $0x640] sm:$0xff]
    %v3965 = vld [vmem:[#allocation4 + $0x648] sm:$0xff]
    %v3966 = vld [vmem:[#allocation4 + $0x650] sm:$0xff]
    %v3967 = vld [vmem:[#allocation4 + $0x658] sm:$0xff]
    %v3968 = vld [vmem:[#allocation4 + $0x660] sm:$0xff]
    %v3969 = vld [vmem:[#allocation4 + $0x668] sm:$0xff]
    %v3970 = vld [vmem:[#allocation4 + $0x670] sm:$0xff]
    %v3971 = vld [vmem:[#allocation4 + $0x678] sm:$0xff]
    %v3972 = vld [vmem:[#allocation4 + $0x680] sm:$0xff]
    %v3973 = vld [vmem:[#allocation4 + $0x688] sm:$0xff]
    %v3974 = vld [vmem:[#allocation4 + $0x690] sm:$0xff]
    %v3975 = vld [vmem:[#allocation4 + $0x698] sm:$0xff]
    %v3976 = vld [vmem:[#allocation4 + $0x6a0] sm:$0xff]
    %v3977 = vld [vmem:[#allocation4 + $0x6a8] sm:$0xff]
    %v3978 = vld [vmem:[#allocation4 + $0x6b0] sm:$0xff]
    %v3979 = vld [vmem:[#allocation4 + $0x6b8] sm:$0xff]
    %v3980 = vld [vmem:[#allocation4 + $0x6c0] sm:$0xff]
    %v3981 = vld [vmem:[#allocation4 + $0x6c8] sm:$0xff]
    %v3982 = vld [vmem:[#allocation4 + $0x6d0] sm:$0xff]
    %v3983 = vld [vmem:[#allocation4 + $0x6d8] sm:$0xff]
    %v3984 = vld [vmem:[#allocation4 + $0x6e0] sm:$0xff]
    %v3985 = vld [vmem:[#allocation4 + $0x6e8] sm:$0xff]
    %v3986 = vld [vmem:[#allocation4 + $0x6f0] sm:$0xff]
    %v3987 = vld [vmem:[#allocation4 + $0x6f8] sm:$0xff]
    %v3988 = vld [vmem:[#allocation4 + $0x700] sm:$0xff]
    %v3989 = vld [vmem:[#allocation4 + $0x708] sm:$0xff]
    %v3990 = vld [vmem:[#allocation4 + $0x710] sm:$0xff]
    %v3991 = vld [vmem:[#allocation4 + $0x718] sm:$0xff]
    %v3992 = vld [vmem:[#allocation4 + $0x720] sm:$0xff]
    %v3993 = vld [vmem:[#allocation4 + $0x728] sm:$0xff]
    %v3994 = vld [vmem:[#allocation4 + $0x730] sm:$0xff]
    %v3995 = vld [vmem:[#allocation4 + $0x738] sm:$0xff]
    %v3996 = vld [vmem:[#allocation4 + $0x740] sm:$0xff]
    %v3997 = vld [vmem:[#allocation4 + $0x748] sm:$0xff]
    %v3998 = vld [vmem:[#allocation4 + $0x750] sm:$0xff]
    %v3999 = vld [vmem:[#allocation4 + $0x758] sm:$0xff]
    %v4000 = vld [vmem:[#allocation4 + $0x760] sm:$0xff]
    %v4001 = vld [vmem:[#allocation4 + $0x768] sm:$0xff]
    %v4002 = vld [vmem:[#allocation4 + $0x770] sm:$0xff]
    %v4003 = vld [vmem:[#allocation4 + $0x778] sm:$0xff]
    %v4004 = vld [vmem:[#allocation4 + $0x780] sm:$0xff]
    %v4005 = vld [vmem:[#allocation4 + $0x788] sm:$0xff]
    %v4006 = vld [vmem:[#allocation4 + $0x790] sm:$0xff]
    %v4007 = vld [vmem:[#allocation4 + $0x798] sm:$0xff]
    %v4008 = vld [vmem:[#allocation4 + $0x7a0] sm:$0xff]
    %v4009 = vld [vmem:[#allocation4 + $0x7a8] sm:$0xff]
    %v4010 = vld [vmem:[#allocation4 + $0x7b0] sm:$0xff]
    %v4011 = vld [vmem:[#allocation4 + $0x7b8] sm:$0xff]
    %v4012 = vld [vmem:[#allocation4 + $0x7c0] sm:$0xff]
    %v4013 = vld [vmem:[#allocation4 + $0x7c8] sm:$0xff]
    %v4014 = vld [vmem:[#allocation4 + $0x7d0] sm:$0xff]
    %v4015 = vld [vmem:[#allocation4 + $0x7d8] sm:$0xff]
    %v4016 = vld [vmem:[#allocation4 + $0x7e0] sm:$0xff]
    %v4017 = vld [vmem:[#allocation4 + $0x7e8] sm:$0xff]
    %v4018 = vld [vmem:[#allocation4 + $0x7f0] sm:$0xff]
    %v4019 = vld [vmem:[#allocation4 + $0x7f8] sm:$0xff]
    %4020 = vmatprep.subr.mxu0 %v3765
    %4021 = vmatpush1.msra.mxu0 %v3764
    %4022 = vmatprep.subr.mxu0 %v3773
    %4023 = vmatpush1.msra.mxu0 %v3772
    %4024 = vmatprep.subr.mxu0 %v3781
    %4025 = vmatpush1.msra.mxu0 %v3780
    %4026 = vmatprep.subr.mxu0 %v3789
    %4027 = vmatpush1.msra.mxu0 %v3788
    %4028 = vmatprep.subr.mxu0 %v3797
    %4029 = vmatpush1.msra.mxu0 %v3796
    %4030 = vmatprep.subr.mxu0 %v3805
    %4031 = vmatpush1.msra.mxu0 %v3804
    %4032 = vmatprep.subr.mxu0 %v3813
    %4033 = vmatpush1.msra.mxu0 %v3812
    %4034 = vmatprep.subr.mxu0 %v3821
    %4035 = vmatpush1.msra.mxu0 %v3820
    %4036 = vmatprep.subr.mxu0 %v3829
    %4037 = vmatpush1.msra.mxu0 %v3828
    %4038 = vmatprep.subr.mxu0 %v3837
    %4039 = vmatpush1.msra.mxu0 %v3836
    %4040 = vmatprep.subr.mxu0 %v3845
    %4041 = vmatpush1.msra.mxu0 %v3844
    %4042 = vmatprep.subr.mxu0 %v3853
    %4043 = vmatpush1.msra.mxu0 %v3852
    %4044 = vmatprep.subr.mxu0 %v3861
    %4045 = vmatpush1.msra.mxu0 %v3860
    %4046 = vmatprep.subr.mxu0 %v3869
    %4047 = vmatpush1.msra.mxu0 %v3868
    %4048 = vmatprep.subr.mxu0 %v3877
    %4049 = vmatpush1.msra.mxu0 %v3876
    %4050 = vmatprep.subr.mxu0 %v3885
    %4051 = vmatpush1.msra.mxu0 %v3884
    %4052 = vmatprep.subr.mxu0 %v3893
    %4053 = vmatpush1.msra.mxu0 %v3892
    %4054 = vmatprep.subr.mxu0 %v3901
    %4055 = vmatpush1.msra.mxu0 %v3900
    %4056 = vmatprep.subr.mxu0 %v3909
    %4057 = vmatpush1.msra.mxu0 %v3908
    %4058 = vmatprep.subr.mxu0 %v3917
    %4059 = vmatpush1.msra.mxu0 %v3916
    %4060 = vmatprep.subr.mxu0 %v3925
    %4061 = vmatpush1.msra.mxu0 %v3924
    %4062 = vmatprep.subr.mxu0 %v3933
    %4063 = vmatpush1.msra.mxu0 %v3932
    %4064 = vmatprep.subr.mxu0 %v3941
    %4065 = vmatpush1.msra.mxu0 %v3940
    %4066 = vmatprep.subr.mxu0 %v3949
    %4067 = vmatpush1.msra.mxu0 %v3948
    %4068 = vmatprep.subr.mxu0 %v3957
    %4069 = vmatpush1.msra.mxu0 %v3956
    %4070 = vmatprep.subr.mxu0 %v3965
    %4071 = vmatpush1.msra.mxu0 %v3964
    %4072 = vmatprep.subr.mxu0 %v3973
    %4073 = vmatpush1.msra.mxu0 %v3972
    %4074 = vmatprep.subr.mxu0 %v3981
    %4075 = vmatpush1.msra.mxu0 %v3980
    %4076 = vmatprep.subr.mxu0 %v3989
    %4077 = vmatpush1.msra.mxu0 %v3988
    %4078 = vmatprep.subr.mxu0 %v3997
    %4079 = vmatpush1.msra.mxu0 %v3996
    %4080 = vmatprep.subr.mxu0 %v4005
    %4081 = vmatpush1.msra.mxu0 %v4004
    %4082 = vmatprep.subr.mxu0 %v4013
    %4083 = vmatpush1.msra.mxu0 %v4012
    %4084 = vmatprep.mubr.f32.mxu0 %v3753
    %4085 = vmatmul.mubr.f32.gmra.mrb[0].mxu0 %v3752
    %v4086 = vpop.f32.mrb[0].mxu0
    %v4087 = vadd.f32 0.0, %v4086
    %v4088 = vpop.f32.mrb[0].mxu0
    %v4089 = vadd.f32 0.0, %v4088
    %4090 = vdwg.mxu0
    %4091 = vmatprep.subr.mxu0 %v3767
    %4092 = vmatpush1.msra.mxu0 %v3766
    %4093 = vmatprep.subr.mxu0 %v3775
    %4094 = vmatpush1.msra.mxu0 %v3774
    %4095 = vmatprep.subr.mxu0 %v3783
    %4096 = vmatpush1.msra.mxu0 %v3782
    %4097 = vmatprep.subr.mxu0 %v3791
    %4098 = vmatpush1.msra.mxu0 %v3790
    %4099 = vmatprep.subr.mxu0 %v3799
    %4100 = vmatpush1.msra.mxu0 %v3798
    %4101 = vmatprep.subr.mxu0 %v3807
    %4102 = vmatpush1.msra.mxu0 %v3806
    %4103 = vmatprep.subr.mxu0 %v3815
    %4104 = vmatpush1.msra.mxu0 %v3814
    %4105 = vmatprep.subr.mxu0 %v3823
    %4106 = vmatpush1.msra.mxu0 %v3822
    %4107 = vmatprep.subr.mxu0 %v3831
    %4108 = vmatpush1.msra.mxu0 %v3830
    %4109 = vmatprep.subr.mxu0 %v3839
    %4110 = vmatpush1.msra.mxu0 %v3838
    %4111 = vmatprep.subr.mxu0 %v3847
    %4112 = vmatpush1.msra.mxu0 %v3846
    %4113 = vmatprep.subr.mxu0 %v3855
    %4114 = vmatpush1.msra.mxu0 %v3854
    %4115 = vmatprep.subr.mxu0 %v3863
    %4116 = vmatpush1.msra.mxu0 %v3862
    %4117 = vmatprep.subr.mxu0 %v3871
    %4118 = vmatpush1.msra.mxu0 %v3870
    %4119 = vmatprep.subr.mxu0 %v3879
    %4120 = vmatpush1.msra.mxu0 %v3878
    %4121 = vmatprep.subr.mxu0 %v3887
    %4122 = vmatpush1.msra.mxu0 %v3886
    %4123 = vmatprep.subr.mxu0 %v3895
    %4124 = vmatpush1.msra.mxu0 %v3894
    %4125 = vmatprep.subr.mxu0 %v3903
    %4126 = vmatpush1.msra.mxu0 %v3902
    %4127 = vmatprep.subr.mxu0 %v3911
    %4128 = vmatpush1.msra.mxu0 %v3910
    %4129 = vmatprep.subr.mxu0 %v3919
    %4130 = vmatpush1.msra.mxu0 %v3918
    %4131 = vmatprep.subr.mxu0 %v3927
    %4132 = vmatpush1.msra.mxu0 %v3926
    %4133 = vmatprep.subr.mxu0 %v3935
    %4134 = vmatpush1.msra.mxu0 %v3934
    %4135 = vmatprep.subr.mxu0 %v3943
    %4136 = vmatpush1.msra.mxu0 %v3942
    %4137 = vmatprep.subr.mxu0 %v3951
    %4138 = vmatpush1.msra.mxu0 %v3950
    %4139 = vmatprep.subr.mxu0 %v3959
    %4140 = vmatpush1.msra.mxu0 %v3958
    %4141 = vmatprep.subr.mxu0 %v3967
    %4142 = vmatpush1.msra.mxu0 %v3966
    %4143 = vmatprep.subr.mxu0 %v3975
    %4144 = vmatpush1.msra.mxu0 %v3974
    %4145 = vmatprep.subr.mxu0 %v3983
    %4146 = vmatpush1.msra.mxu0 %v3982
    %4147 = vmatprep.subr.mxu0 %v3991
    %4148 = vmatpush1.msra.mxu0 %v3990
    %4149 = vmatprep.subr.mxu0 %v3999
    %4150 = vmatpush1.msra.mxu0 %v3998
    %4151 = vmatprep.subr.mxu0 %v4007
    %4152 = vmatpush1.msra.mxu0 %v4006
    %4153 = vmatprep.subr.mxu0 %v4015
    %4154 = vmatpush1.msra.mxu0 %v4014
    %4155 = vmatprep.mubr.f32.mxu0 %v3753
    %4156 = vmatmul.mubr.f32.gmra.mrb[0].mxu0 %v3752
    %v4157 = vpop.f32.mrb[0].mxu0
    %v4158 = vadd.f32 0.0, %v4157
    %v4159 = vpop.f32.mrb[0].mxu0
    %v4160 = vadd.f32 0.0, %v4159
    %4161 = vdwg.mxu0
    %4162 = vmatprep.subr.mxu0 %v3769
    %4163 = vmatpush1.msra.mxu0 %v3768
    %4164 = vmatprep.subr.mxu0 %v3777
    %4165 = vmatpush1.msra.mxu0 %v3776
    %4166 = vmatprep.subr.mxu0 %v3785
    %4167 = vmatpush1.msra.mxu0 %v3784
    %4168 = vmatprep.subr.mxu0 %v3793
    %4169 = vmatpush1.msra.mxu0 %v3792
    %4170 = vmatprep.subr.mxu0 %v3801
    %4171 = vmatpush1.msra.mxu0 %v3800
    %4172 = vmatprep.subr.mxu0 %v3809
    %4173 = vmatpush1.msra.mxu0 %v3808
    %4174 = vmatprep.subr.mxu0 %v3817
    %4175 = vmatpush1.msra.mxu0 %v3816
    %4176 = vmatprep.subr.mxu0 %v3825
    %4177 = vmatpush1.msra.mxu0 %v3824
    %4178 = vmatprep.subr.mxu0 %v3833
    %4179 = vmatpush1.msra.mxu0 %v3832
    %4180 = vmatprep.subr.mxu0 %v3841
    %4181 = vmatpush1.msra.mxu0 %v3840
    %4182 = vmatprep.subr.mxu0 %v3849
    %4183 = vmatpush1.msra.mxu0 %v3848
    %4184 = vmatprep.subr.mxu0 %v3857
    %4185 = vmatpush1.msra.mxu0 %v3856
    %4186 = vmatprep.subr.mxu0 %v3865
    %4187 = vmatpush1.msra.mxu0 %v3864
    %4188 = vmatprep.subr.mxu0 %v3873
    %4189 = vmatpush1.msra.mxu0 %v3872
    %4190 = vmatprep.subr.mxu0 %v3881
    %4191 = vmatpush1.msra.mxu0 %v3880
    %4192 = vmatprep.subr.mxu0 %v3889
    %4193 = vmatpush1.msra.mxu0 %v3888
    %4194 = vmatprep.subr.mxu0 %v3897
    %4195 = vmatpush1.msra.mxu0 %v3896
    %4196 = vmatprep.subr.mxu0 %v3905
    %4197 = vmatpush1.msra.mxu0 %v3904
    %4198 = vmatprep.subr.mxu0 %v3913
    %4199 = vmatpush1.msra.mxu0 %v3912
    %4200 = vmatprep.subr.mxu0 %v3921
    %4201 = vmatpush1.msra.mxu0 %v3920
    %4202 = vmatprep.subr.mxu0 %v3929
    %4203 = vmatpush1.msra.mxu0 %v3928
    %4204 = vmatprep.subr.mxu0 %v3937
    %4205 = vmatpush1.msra.mxu0 %v3936
    %4206 = vmatprep.subr.mxu0 %v3945
    %4207 = vmatpush1.msra.mxu0 %v3944
    %4208 = vmatprep.subr.mxu0 %v3953
    %4209 = vmatpush1.msra.mxu0 %v3952
    %4210 = vmatprep.subr.mxu0 %v3961
    %4211 = vmatpush1.msra.mxu0 %v3960
    %4212 = vmatprep.subr.mxu0 %v3969
    %4213 = vmatpush1.msra.mxu0 %v3968
    %4214 = vmatprep.subr.mxu0 %v3977
    %4215 = vmatpush1.msra.mxu0 %v3976
    %4216 = vmatprep.subr.mxu0 %v3985
    %4217 = vmatpush1.msra.mxu0 %v3984
    %4218 = vmatprep.subr.mxu0 %v3993
    %4219 = vmatpush1.msra.mxu0 %v3992
    %4220 = vmatprep.subr.mxu0 %v4001
    %4221 = vmatpush1.msra.mxu0 %v4000
    %4222 = vmatprep.subr.mxu0 %v4009
    %4223 = vmatpush1.msra.mxu0 %v4008
    %4224 = vmatprep.subr.mxu0 %v4017
    %4225 = vmatpush1.msra.mxu0 %v4016
    %4226 = vmatprep.mubr.f32.mxu0 %v3753
    %4227 = vmatmul.mubr.f32.gmra.mrb[0].mxu0 %v3752
    %v4228 = vpop.f32.mrb[0].mxu0
    %v4229 = vadd.f32 0.0, %v4228
    %v4230 = vpop.f32.mrb[0].mxu0
    %v4231 = vadd.f32 0.0, %v4230
    %4232 = vdwg.mxu0
    %4233 = vmatprep.subr.mxu0 %v3771
    %4234 = vmatpush1.msra.mxu0 %v3770
    %4235 = vmatprep.subr.mxu0 %v3779
    %4236 = vmatpush1.msra.mxu0 %v3778
    %4237 = vmatprep.subr.mxu0 %v3787
    %4238 = vmatpush1.msra.mxu0 %v3786
    %4239 = vmatprep.subr.mxu0 %v3795
    %4240 = vmatpush1.msra.mxu0 %v3794
    %4241 = vmatprep.subr.mxu0 %v3803
    %4242 = vmatpush1.msra.mxu0 %v3802
    %4243 = vmatprep.subr.mxu0 %v3811
    %4244 = vmatpush1.msra.mxu0 %v3810
    %4245 = vmatprep.subr.mxu0 %v3819
    %4246 = vmatpush1.msra.mxu0 %v3818
    %4247 = vmatprep.subr.mxu0 %v3827
    %4248 = vmatpush1.msra.mxu0 %v3826
    %4249 = vmatprep.subr.mxu0 %v3835
    %4250 = vmatpush1.msra.mxu0 %v3834
    %4251 = vmatprep.subr.mxu0 %v3843
    %4252 = vmatpush1.msra.mxu0 %v3842
    %4253 = vmatprep.subr.mxu0 %v3851
    %4254 = vmatpush1.msra.mxu0 %v3850
    %4255 = vmatprep.subr.mxu0 %v3859
    %4256 = vmatpush1.msra.mxu0 %v3858
    %4257 = vmatprep.subr.mxu0 %v3867
    %4258 = vmatpush1.msra.mxu0 %v3866
    %4259 = vmatprep.subr.mxu0 %v3875
    %4260 = vmatpush1.msra.mxu0 %v3874
    %4261 = vmatprep.subr.mxu0 %v3883
    %4262 = vmatpush1.msra.mxu0 %v3882
    %4263 = vmatprep.subr.mxu0 %v3891
    %4264 = vmatpush1.msra.mxu0 %v3890
    %4265 = vmatprep.subr.mxu0 %v3899
    %4266 = vmatpush1.msra.mxu0 %v3898
    %4267 = vmatprep.subr.mxu0 %v3907
    %4268 = vmatpush1.msra.mxu0 %v3906
    %4269 = vmatprep.subr.mxu0 %v3915
    %4270 = vmatpush1.msra.mxu0 %v3914
    %4271 = vmatprep.subr.mxu0 %v3923
    %4272 = vmatpush1.msra.mxu0 %v3922
    %4273 = vmatprep.subr.mxu0 %v3931
    %4274 = vmatpush1.msra.mxu0 %v3930
    %4275 = vmatprep.subr.mxu0 %v3939
    %4276 = vmatpush1.msra.mxu0 %v3938
    %4277 = vmatprep.subr.mxu0 %v3947
    %4278 = vmatpush1.msra.mxu0 %v3946
    %4279 = vmatprep.subr.mxu0 %v3955
    %4280 = vmatpush1.msra.mxu0 %v3954
    %4281 = vmatprep.subr.mxu0 %v3963
    %4282 = vmatpush1.msra.mxu0 %v3962
    %4283 = vmatprep.subr.mxu0 %v3971
    %4284 = vmatpush1.msra.mxu0 %v3970
    %4285 = vmatprep.subr.mxu0 %v3979
    %4286 = vmatpush1.msra.mxu0 %v3978
    %4287 = vmatprep.subr.mxu0 %v3987
    %4288 = vmatpush1.msra.mxu0 %v3986
    %4289 = vmatprep.subr.mxu0 %v3995
    %4290 = vmatpush1.msra.mxu0 %v3994
    %4291 = vmatprep.subr.mxu0 %v4003
    %4292 = vmatpush1.msra.mxu0 %v4002
    %4293 = vmatprep.subr.mxu0 %v4011
    %4294 = vmatpush1.msra.mxu0 %v4010
    %4295 = vmatprep.subr.mxu0 %v4019
    %4296 = vmatpush1.msra.mxu0 %v4018
    %4297 = vmatprep.mubr.f32.mxu0 %v3753
    %4298 = vmatmul.mubr.f32.gmra.mrb[0].mxu0 %v3752
    %v4299 = vpop.f32.mrb[0].mxu0
    %v4300 = vadd.f32 0.0, %v4299
    %v4301 = vpop.f32.mrb[0].mxu0
    %v4302 = vadd.f32 0.0, %v4301
    %4303 = vdwg.mxu0
    %v4304 = vadd.f32 %v3756, %v4087
    %v4305 = vadd.f32 %v3757, %v4089
    %v4306 = vadd.f32 %v3758, %v4158
    %v4307 = vadd.f32 %v3759, %v4160
    %v4308 = vadd.f32 %v3760, %v4229
    %v4309 = vadd.f32 %v3761, %v4231
    %v4310 = vadd.f32 %v3762, %v4300
    %v4311 = vadd.f32 %v3763, %v4302
    %v4312 = vxor.u32 %v4304, 2147483648
    %v4313 = vxor.u32 %v4305, 2147483648
    %v4314 = vmul.f32 %v4312, 1.442695
    %v4315 = vpow.pop %v4314
    %v4316 = vmul.f32 %v4313, 1.442695
    %v4317 = vpow.pop %v4316
    %v4318 = vadd.f32 %v4315, 1.0
    %v4319 = vadd.f32 %v4317, 1.0
    %v4320 = vrcp.pop %v4318
    %v4321 = vmul.f32 1.0, %v4320
    %v4322 = vrcp.pop %v4319
    %v4323 = vmul.f32 1.0, %v4322
    %v4324 = vxor.u32 %v4306, 2147483648
    %v4325 = vxor.u32 %v4307, 2147483648
    %v4326 = vmul.f32 %v4324, 1.442695
    %v4327 = vpow.pop %v4326
    %v4328 = vmul.f32 %v4325, 1.442695
    %v4329 = vpow.pop %v4328
    %v4330 = vadd.f32 %v4327, 1.0
    %v4331 = vadd.f32 %v4329, 1.0
    %v4332 = vrcp.pop %v4330
    %v4333 = vmul.f32 1.0, %v4332
    %v4334 = vrcp.pop %v4331
    %v4335 = vmul.f32 1.0, %v4334
    %v4336 = vtanh.pop %v4308
    %v4337 = vtanh.pop %v4309
    %v4338 = vxor.u32 %v4310, 2147483648
    %v4339 = vxor.u32 %v4311, 2147483648
    %v4340 = vmul.f32 %v4338, 1.442695
    %v4341 = vpow.pop %v4340
    %v4342 = vmul.f32 %v4339, 1.442695
    %v4343 = vpow.pop %v4342
    %v4344 = vadd.f32 %v4341, 1.0
    %v4345 = vadd.f32 %v4343, 1.0
    %v4346 = vrcp.pop %v4344
    %v4347 = vmul.f32 1.0, %v4346
    %v4348 = vrcp.pop %v4345
    %v4349 = vmul.f32 1.0, %v4348
    %v4350 = vmul.f32 %v4333, %v3748
    %v4351 = vmul.f32 %v4335, %v3749
    %v4352 = vmul.f32 %v4321, %v4336
    %v4353 = vmul.f32 %v4323, %v4337
    %v4354 = vadd.f32 %v4350, %v4352
    %v4355 = vadd.f32 %v4351, %v4353
    %v4356 = vtanh.pop %v4354
    %v4357 = vtanh.pop %v4355
    %v4358 = vmul.f32 %v4347, %v4356
    %v4359 = vmul.f32 %v4349, %v4357
    %4360 = vst [vmem:[#allocation3 + $0x50] sm:$0xff] %v4358
    %4361 = vst [vmem:[#allocation3 + $0x28] sm:$0xff] %v4359
    %v4362 = vld [vmem:[#allocation2 + $0x180] sm:$0xff]
    %v4363 = vld [vmem:[#allocation2 + $0x188] sm:$0xff]
    %v4364 = vld [vmem:[#allocation2 + $0x190] sm:$0xff]
    %v4365 = vld [vmem:[#allocation2 + $0x198] sm:$0xff]
    %v4366 = vld [vmem:[#allocation2 + $0x1a0] sm:$0xff]
    %v4367 = vld [vmem:[#allocation2 + $0x1a8] sm:$0xff]
    %v4368 = vld [vmem:[#allocation2 + $0x1b0] sm:$0xff]
    %v4369 = vld [vmem:[#allocation2 + $0x1b8] sm:$0xff]
    %v4370 = vld [vmem:[#allocation4] sm:$0xff]
    %v4371 = vld [vmem:[#allocation4 + $0x8] sm:$0xff]
    %v4372 = vld [vmem:[#allocation4 + $0x10] sm:$0xff]
    %v4373 = vld [vmem:[#allocation4 + $0x18] sm:$0xff]
    %v4374 = vld [vmem:[#allocation4 + $0x20] sm:$0xff]
    %v4375 = vld [vmem:[#allocation4 + $0x28] sm:$0xff]
    %v4376 = vld [vmem:[#allocation4 + $0x30] sm:$0xff]
    %v4377 = vld [vmem:[#allocation4 + $0x38] sm:$0xff]
    %v4378 = vld [vmem:[#allocation4 + $0x40] sm:$0xff]
    %v4379 = vld [vmem:[#allocation4 + $0x48] sm:$0xff]
    %v4380 = vld [vmem:[#allocation4 + $0x50] sm:$0xff]
    %v4381 = vld [vmem:[#allocation4 + $0x58] sm:$0xff]
    %v4382 = vld [vmem:[#allocation4 + $0x60] sm:$0xff]
    %v4383 = vld [vmem:[#allocation4 + $0x68] sm:$0xff]
    %v4384 = vld [vmem:[#allocation4 + $0x70] sm:$0xff]
    %v4385 = vld [vmem:[#allocation4 + $0x78] sm:$0xff]
    %v4386 = vld [vmem:[#allocation4 + $0x80] sm:$0xff]
    %v4387 = vld [vmem:[#allocation4 + $0x88] sm:$0xff]
    %v4388 = vld [vmem:[#allocation4 + $0x90] sm:$0xff]
    %v4389 = vld [vmem:[#allocation4 + $0x98] sm:$0xff]
    %v4390 = vld [vmem:[#allocation4 + $0xa0] sm:$0xff]
    %v4391 = vld [vmem:[#allocation4 + $0xa8] sm:$0xff]
    %v4392 = vld [vmem:[#allocation4 + $0xb0] sm:$0xff]
    %v4393 = vld [vmem:[#allocation4 + $0xb8] sm:$0xff]
    %v4394 = vld [vmem:[#allocation4 + $0xc0] sm:$0xff]
    %v4395 = vld [vmem:[#allocation4 + $0xc8] sm:$0xff]
    %v4396 = vld [vmem:[#allocation4 + $0xd0] sm:$0xff]
    %v4397 = vld [vmem:[#allocation4 + $0xd8] sm:$0xff]
    %v4398 = vld [vmem:[#allocation4 + $0xe0] sm:$0xff]
    %v4399 = vld [vmem:[#allocation4 + $0xe8] sm:$0xff]
    %v4400 = vld [vmem:[#allocation4 + $0xf0] sm:$0xff]
    %v4401 = vld [vmem:[#allocation4 + $0xf8] sm:$0xff]
    %v4402 = vld [vmem:[#allocation4 + $0x100] sm:$0xff]
    %v4403 = vld [vmem:[#allocation4 + $0x108] sm:$0xff]
    %v4404 = vld [vmem:[#allocation4 + $0x110] sm:$0xff]
    %v4405 = vld [vmem:[#allocation4 + $0x118] sm:$0xff]
    %v4406 = vld [vmem:[#allocation4 + $0x120] sm:$0xff]
    %v4407 = vld [vmem:[#allocation4 + $0x128] sm:$0xff]
    %v4408 = vld [vmem:[#allocation4 + $0x130] sm:$0xff]
    %v4409 = vld [vmem:[#allocation4 + $0x138] sm:$0xff]
    %v4410 = vld [vmem:[#allocation4 + $0x140] sm:$0xff]
    %v4411 = vld [vmem:[#allocation4 + $0x148] sm:$0xff]
    %v4412 = vld [vmem:[#allocation4 + $0x150] sm:$0xff]
    %v4413 = vld [vmem:[#allocation4 + $0x158] sm:$0xff]
    %v4414 = vld [vmem:[#allocation4 + $0x160] sm:$0xff]
    %v4415 = vld [vmem:[#allocation4 + $0x168] sm:$0xff]
    %v4416 = vld [vmem:[#allocation4 + $0x170] sm:$0xff]
    %v4417 = vld [vmem:[#allocation4 + $0x178] sm:$0xff]
    %v4418 = vld [vmem:[#allocation4 + $0x180] sm:$0xff]
    %v4419 = vld [vmem:[#allocation4 + $0x188] sm:$0xff]
    %v4420 = vld [vmem:[#allocation4 + $0x190] sm:$0xff]
    %v4421 = vld [vmem:[#allocation4 + $0x198] sm:$0xff]
    %v4422 = vld [vmem:[#allocation4 + $0x1a0] sm:$0xff]
    %v4423 = vld [vmem:[#allocation4 + $0x1a8] sm:$0xff]
    %v4424 = vld [vmem:[#allocation4 + $0x1b0] sm:$0xff]
    %v4425 = vld [vmem:[#allocation4 + $0x1b8] sm:$0xff]
    %v4426 = vld [vmem:[#allocation4 + $0x1c0] sm:$0xff]
    %v4427 = vld [vmem:[#allocation4 + $0x1c8] sm:$0xff]
    %v4428 = vld [vmem:[#allocation4 + $0x1d0] sm:$0xff]
    %v4429 = vld [vmem:[#allocation4 + $0x1d8] sm:$0xff]
    %v4430 = vld [vmem:[#allocation4 + $0x1e0] sm:$0xff]
    %v4431 = vld [vmem:[#allocation4 + $0x1e8] sm:$0xff]
    %v4432 = vld [vmem:[#allocation4 + $0x1f0] sm:$0xff]
    %v4433 = vld [vmem:[#allocation4 + $0x1f8] sm:$0xff]
    %v4434 = vld [vmem:[#allocation4 + $0x200] sm:$0xff]
    %v4435 = vld [vmem:[#allocation4 + $0x208] sm:$0xff]
    %v4436 = vld [vmem:[#allocation4 + $0x210] sm:$0xff]
    %v4437 = vld [vmem:[#allocation4 + $0x218] sm:$0xff]
    %v4438 = vld [vmem:[#allocation4 + $0x220] sm:$0xff]
    %v4439 = vld [vmem:[#allocation4 + $0x228] sm:$0xff]
    %v4440 = vld [vmem:[#allocation4 + $0x230] sm:$0xff]
    %v4441 = vld [vmem:[#allocation4 + $0x238] sm:$0xff]
    %v4442 = vld [vmem:[#allocation4 + $0x240] sm:$0xff]
    %v4443 = vld [vmem:[#allocation4 + $0x248] sm:$0xff]
    %v4444 = vld [vmem:[#allocation4 + $0x250] sm:$0xff]
    %v4445 = vld [vmem:[#allocation4 + $0x258] sm:$0xff]
    %v4446 = vld [vmem:[#allocation4 + $0x260] sm:$0xff]
    %v4447 = vld [vmem:[#allocation4 + $0x268] sm:$0xff]
    %v4448 = vld [vmem:[#allocation4 + $0x270] sm:$0xff]
    %v4449 = vld [vmem:[#allocation4 + $0x278] sm:$0xff]
    %v4450 = vld [vmem:[#allocation4 + $0x280] sm:$0xff]
    %v4451 = vld [vmem:[#allocation4 + $0x288] sm:$0xff]
    %v4452 = vld [vmem:[#allocation4 + $0x290] sm:$0xff]
    %v4453 = vld [vmem:[#allocation4 + $0x298] sm:$0xff]
    %v4454 = vld [vmem:[#allocation4 + $0x2a0] sm:$0xff]
    %v4455 = vld [vmem:[#allocation4 + $0x2a8] sm:$0xff]
    %v4456 = vld [vmem:[#allocation4 + $0x2b0] sm:$0xff]
    %v4457 = vld [vmem:[#allocation4 + $0x2b8] sm:$0xff]
    %v4458 = vld [vmem:[#allocation4 + $0x2c0] sm:$0xff]
    %v4459 = vld [vmem:[#allocation4 + $0x2c8] sm:$0xff]
    %v4460 = vld [vmem:[#allocation4 + $0x2d0] sm:$0xff]
    %v4461 = vld [vmem:[#allocation4 + $0x2d8] sm:$0xff]
    %v4462 = vld [vmem:[#allocation4 + $0x2e0] sm:$0xff]
    %v4463 = vld [vmem:[#allocation4 + $0x2e8] sm:$0xff]
    %v4464 = vld [vmem:[#allocation4 + $0x2f0] sm:$0xff]
    %v4465 = vld [vmem:[#allocation4 + $0x2f8] sm:$0xff]
    %v4466 = vld [vmem:[#allocation4 + $0x300] sm:$0xff]
    %v4467 = vld [vmem:[#allocation4 + $0x308] sm:$0xff]
    %v4468 = vld [vmem:[#allocation4 + $0x310] sm:$0xff]
    %v4469 = vld [vmem:[#allocation4 + $0x318] sm:$0xff]
    %v4470 = vld [vmem:[#allocation4 + $0x320] sm:$0xff]
    %v4471 = vld [vmem:[#allocation4 + $0x328] sm:$0xff]
    %v4472 = vld [vmem:[#allocation4 + $0x330] sm:$0xff]
    %v4473 = vld [vmem:[#allocation4 + $0x338] sm:$0xff]
    %v4474 = vld [vmem:[#allocation4 + $0x340] sm:$0xff]
    %v4475 = vld [vmem:[#allocation4 + $0x348] sm:$0xff]
    %v4476 = vld [vmem:[#allocation4 + $0x350] sm:$0xff]
    %v4477 = vld [vmem:[#allocation4 + $0x358] sm:$0xff]
    %v4478 = vld [vmem:[#allocation4 + $0x360] sm:$0xff]
    %v4479 = vld [vmem:[#allocation4 + $0x368] sm:$0xff]
    %v4480 = vld [vmem:[#allocation4 + $0x370] sm:$0xff]
    %v4481 = vld [vmem:[#allocation4 + $0x378] sm:$0xff]
    %v4482 = vld [vmem:[#allocation4 + $0x380] sm:$0xff]
    %v4483 = vld [vmem:[#allocation4 + $0x388] sm:$0xff]
    %v4484 = vld [vmem:[#allocation4 + $0x390] sm:$0xff]
    %v4485 = vld [vmem:[#allocation4 + $0x398] sm:$0xff]
    %v4486 = vld [vmem:[#allocation4 + $0x3a0] sm:$0xff]
    %v4487 = vld [vmem:[#allocation4 + $0x3a8] sm:$0xff]
    %v4488 = vld [vmem:[#allocation4 + $0x3b0] sm:$0xff]
    %v4489 = vld [vmem:[#allocation4 + $0x3b8] sm:$0xff]
    %v4490 = vld [vmem:[#allocation4 + $0x3c0] sm:$0xff]
    %v4491 = vld [vmem:[#allocation4 + $0x3c8] sm:$0xff]
    %v4492 = vld [vmem:[#allocation4 + $0x3d0] sm:$0xff]
    %v4493 = vld [vmem:[#allocation4 + $0x3d8] sm:$0xff]
    %v4494 = vld [vmem:[#allocation4 + $0x3e0] sm:$0xff]
    %v4495 = vld [vmem:[#allocation4 + $0x3e8] sm:$0xff]
    %v4496 = vld [vmem:[#allocation4 + $0x3f0] sm:$0xff]
    %v4497 = vld [vmem:[#allocation4 + $0x3f8] sm:$0xff]
    %v4498 = vld [vmem:[#allocation4 + $0x400] sm:$0xff]
    %v4499 = vld [vmem:[#allocation4 + $0x408] sm:$0xff]
    %v4500 = vld [vmem:[#allocation4 + $0x410] sm:$0xff]
    %v4501 = vld [vmem:[#allocation4 + $0x418] sm:$0xff]
    %v4502 = vld [vmem:[#allocation4 + $0x420] sm:$0xff]
    %v4503 = vld [vmem:[#allocation4 + $0x428] sm:$0xff]
    %v4504 = vld [vmem:[#allocation4 + $0x430] sm:$0xff]
    %v4505 = vld [vmem:[#allocation4 + $0x438] sm:$0xff]
    %v4506 = vld [vmem:[#allocation4 + $0x440] sm:$0xff]
    %v4507 = vld [vmem:[#allocation4 + $0x448] sm:$0xff]
    %v4508 = vld [vmem:[#allocation4 + $0x450] sm:$0xff]
    %v4509 = vld [vmem:[#allocation4 + $0x458] sm:$0xff]
    %v4510 = vld [vmem:[#allocation4 + $0x460] sm:$0xff]
    %v4511 = vld [vmem:[#allocation4 + $0x468] sm:$0xff]
    %v4512 = vld [vmem:[#allocation4 + $0x470] sm:$0xff]
    %v4513 = vld [vmem:[#allocation4 + $0x478] sm:$0xff]
    %v4514 = vld [vmem:[#allocation4 + $0x480] sm:$0xff]
    %v4515 = vld [vmem:[#allocation4 + $0x488] sm:$0xff]
    %v4516 = vld [vmem:[#allocation4 + $0x490] sm:$0xff]
    %v4517 = vld [vmem:[#allocation4 + $0x498] sm:$0xff]
    %v4518 = vld [vmem:[#allocation4 + $0x4a0] sm:$0xff]
    %v4519 = vld [vmem:[#allocation4 + $0x4a8] sm:$0xff]
    %v4520 = vld [vmem:[#allocation4 + $0x4b0] sm:$0xff]
    %v4521 = vld [vmem:[#allocation4 + $0x4b8] sm:$0xff]
    %v4522 = vld [vmem:[#allocation4 + $0x4c0] sm:$0xff]
    %v4523 = vld [vmem:[#allocation4 + $0x4c8] sm:$0xff]
    %v4524 = vld [vmem:[#allocation4 + $0x4d0] sm:$0xff]
    %v4525 = vld [vmem:[#allocation4 + $0x4d8] sm:$0xff]
    %v4526 = vld [vmem:[#allocation4 + $0x4e0] sm:$0xff]
    %v4527 = vld [vmem:[#allocation4 + $0x4e8] sm:$0xff]
    %v4528 = vld [vmem:[#allocation4 + $0x4f0] sm:$0xff]
    %v4529 = vld [vmem:[#allocation4 + $0x4f8] sm:$0xff]
    %v4530 = vld [vmem:[#allocation4 + $0x500] sm:$0xff]
    %v4531 = vld [vmem:[#allocation4 + $0x508] sm:$0xff]
    %v4532 = vld [vmem:[#allocation4 + $0x510] sm:$0xff]
    %v4533 = vld [vmem:[#allocation4 + $0x518] sm:$0xff]
    %v4534 = vld [vmem:[#allocation4 + $0x520] sm:$0xff]
    %v4535 = vld [vmem:[#allocation4 + $0x528] sm:$0xff]
    %v4536 = vld [vmem:[#allocation4 + $0x530] sm:$0xff]
    %v4537 = vld [vmem:[#allocation4 + $0x538] sm:$0xff]
    %v4538 = vld [vmem:[#allocation4 + $0x540] sm:$0xff]
    %v4539 = vld [vmem:[#allocation4 + $0x548] sm:$0xff]
    %v4540 = vld [vmem:[#allocation4 + $0x550] sm:$0xff]
    %v4541 = vld [vmem:[#allocation4 + $0x558] sm:$0xff]
    %v4542 = vld [vmem:[#allocation4 + $0x560] sm:$0xff]
    %v4543 = vld [vmem:[#allocation4 + $0x568] sm:$0xff]
    %v4544 = vld [vmem:[#allocation4 + $0x570] sm:$0xff]
    %v4545 = vld [vmem:[#allocation4 + $0x578] sm:$0xff]
    %v4546 = vld [vmem:[#allocation4 + $0x580] sm:$0xff]
    %v4547 = vld [vmem:[#allocation4 + $0x588] sm:$0xff]
    %v4548 = vld [vmem:[#allocation4 + $0x590] sm:$0xff]
    %v4549 = vld [vmem:[#allocation4 + $0x598] sm:$0xff]
    %v4550 = vld [vmem:[#allocation4 + $0x5a0] sm:$0xff]
    %v4551 = vld [vmem:[#allocation4 + $0x5a8] sm:$0xff]
    %v4552 = vld [vmem:[#allocation4 + $0x5b0] sm:$0xff]
    %v4553 = vld [vmem:[#allocation4 + $0x5b8] sm:$0xff]
    %v4554 = vld [vmem:[#allocation4 + $0x5c0] sm:$0xff]
    %v4555 = vld [vmem:[#allocation4 + $0x5c8] sm:$0xff]
    %v4556 = vld [vmem:[#allocation4 + $0x5d0] sm:$0xff]
    %v4557 = vld [vmem:[#allocation4 + $0x5d8] sm:$0xff]
    %v4558 = vld [vmem:[#allocation4 + $0x5e0] sm:$0xff]
    %v4559 = vld [vmem:[#allocation4 + $0x5e8] sm:$0xff]
    %v4560 = vld [vmem:[#allocation4 + $0x5f0] sm:$0xff]
    %v4561 = vld [vmem:[#allocation4 + $0x5f8] sm:$0xff]
    %v4562 = vld [vmem:[#allocation4 + $0x600] sm:$0xff]
    %v4563 = vld [vmem:[#allocation4 + $0x608] sm:$0xff]
    %v4564 = vld [vmem:[#allocation4 + $0x610] sm:$0xff]
    %v4565 = vld [vmem:[#allocation4 + $0x618] sm:$0xff]
    %v4566 = vld [vmem:[#allocation4 + $0x620] sm:$0xff]
    %v4567 = vld [vmem:[#allocation4 + $0x628] sm:$0xff]
    %v4568 = vld [vmem:[#allocation4 + $0x630] sm:$0xff]
    %v4569 = vld [vmem:[#allocation4 + $0x638] sm:$0xff]
    %v4570 = vld [vmem:[#allocation4 + $0x640] sm:$0xff]
    %v4571 = vld [vmem:[#allocation4 + $0x648] sm:$0xff]
    %v4572 = vld [vmem:[#allocation4 + $0x650] sm:$0xff]
    %v4573 = vld [vmem:[#allocation4 + $0x658] sm:$0xff]
    %v4574 = vld [vmem:[#allocation4 + $0x660] sm:$0xff]
    %v4575 = vld [vmem:[#allocation4 + $0x668] sm:$0xff]
    %v4576 = vld [vmem:[#allocation4 + $0x670] sm:$0xff]
    %v4577 = vld [vmem:[#allocation4 + $0x678] sm:$0xff]
    %v4578 = vld [vmem:[#allocation4 + $0x680] sm:$0xff]
    %v4579 = vld [vmem:[#allocation4 + $0x688] sm:$0xff]
    %v4580 = vld [vmem:[#allocation4 + $0x690] sm:$0xff]
    %v4581 = vld [vmem:[#allocation4 + $0x698] sm:$0xff]
    %v4582 = vld [vmem:[#allocation4 + $0x6a0] sm:$0xff]
    %v4583 = vld [vmem:[#allocation4 + $0x6a8] sm:$0xff]
    %v4584 = vld [vmem:[#allocation4 + $0x6b0] sm:$0xff]
    %v4585 = vld [vmem:[#allocation4 + $0x6b8] sm:$0xff]
    %v4586 = vld [vmem:[#allocation4 + $0x6c0] sm:$0xff]
    %v4587 = vld [vmem:[#allocation4 + $0x6c8] sm:$0xff]
    %v4588 = vld [vmem:[#allocation4 + $0x6d0] sm:$0xff]
    %v4589 = vld [vmem:[#allocation4 + $0x6d8] sm:$0xff]
    %v4590 = vld [vmem:[#allocation4 + $0x6e0] sm:$0xff]
    %v4591 = vld [vmem:[#allocation4 + $0x6e8] sm:$0xff]
    %v4592 = vld [vmem:[#allocation4 + $0x6f0] sm:$0xff]
    %v4593 = vld [vmem:[#allocation4 + $0x6f8] sm:$0xff]
    %v4594 = vld [vmem:[#allocation4 + $0x700] sm:$0xff]
    %v4595 = vld [vmem:[#allocation4 + $0x708] sm:$0xff]
    %v4596 = vld [vmem:[#allocation4 + $0x710] sm:$0xff]
    %v4597 = vld [vmem:[#allocation4 + $0x718] sm:$0xff]
    %v4598 = vld [vmem:[#allocation4 + $0x720] sm:$0xff]
    %v4599 = vld [vmem:[#allocation4 + $0x728] sm:$0xff]
    %v4600 = vld [vmem:[#allocation4 + $0x730] sm:$0xff]
    %v4601 = vld [vmem:[#allocation4 + $0x738] sm:$0xff]
    %v4602 = vld [vmem:[#allocation4 + $0x740] sm:$0xff]
    %v4603 = vld [vmem:[#allocation4 + $0x748] sm:$0xff]
    %v4604 = vld [vmem:[#allocation4 + $0x750] sm:$0xff]
    %v4605 = vld [vmem:[#allocation4 + $0x758] sm:$0xff]
    %v4606 = vld [vmem:[#allocation4 + $0x760] sm:$0xff]
    %v4607 = vld [vmem:[#allocation4 + $0x768] sm:$0xff]
    %v4608 = vld [vmem:[#allocation4 + $0x770] sm:$0xff]
    %v4609 = vld [vmem:[#allocation4 + $0x778] sm:$0xff]
    %v4610 = vld [vmem:[#allocation4 + $0x780] sm:$0xff]
    %v4611 = vld [vmem:[#allocation4 + $0x788] sm:$0xff]
    %v4612 = vld [vmem:[#allocation4 + $0x790] sm:$0xff]
    %v4613 = vld [vmem:[#allocation4 + $0x798] sm:$0xff]
    %v4614 = vld [vmem:[#allocation4 + $0x7a0] sm:$0xff]
    %v4615 = vld [vmem:[#allocation4 + $0x7a8] sm:$0xff]
    %v4616 = vld [vmem:[#allocation4 + $0x7b0] sm:$0xff]
    %v4617 = vld [vmem:[#allocation4 + $0x7b8] sm:$0xff]
    %v4618 = vld [vmem:[#allocation4 + $0x7c0] sm:$0xff]
    %v4619 = vld [vmem:[#allocation4 + $0x7c8] sm:$0xff]
    %v4620 = vld [vmem:[#allocation4 + $0x7d0] sm:$0xff]
    %v4621 = vld [vmem:[#allocation4 + $0x7d8] sm:$0xff]
    %v4622 = vld [vmem:[#allocation4 + $0x7e0] sm:$0xff]
    %v4623 = vld [vmem:[#allocation4 + $0x7e8] sm:$0xff]
    %v4624 = vld [vmem:[#allocation4 + $0x7f0] sm:$0xff]
    %v4625 = vld [vmem:[#allocation4 + $0x7f8] sm:$0xff]
    %4626 = vmatprep.subr.mxu0 %v4371
    %4627 = vmatpush1.msra.mxu0 %v4370
    %4628 = vmatprep.subr.mxu0 %v4379
    %4629 = vmatpush1.msra.mxu0 %v4378
    %4630 = vmatprep.subr.mxu0 %v4387
    %4631 = vmatpush1.msra.mxu0 %v4386
    %4632 = vmatprep.subr.mxu0 %v4395
    %4633 = vmatpush1.msra.mxu0 %v4394
    %4634 = vmatprep.subr.mxu0 %v4403
    %4635 = vmatpush1.msra.mxu0 %v4402
    %4636 = vmatprep.subr.mxu0 %v4411
    %4637 = vmatpush1.msra.mxu0 %v4410
    %4638 = vmatprep.subr.mxu0 %v4419
    %4639 = vmatpush1.msra.mxu0 %v4418
    %4640 = vmatprep.subr.mxu0 %v4427
    %4641 = vmatpush1.msra.mxu0 %v4426
    %4642 = vmatprep.subr.mxu0 %v4435
    %4643 = vmatpush1.msra.mxu0 %v4434
    %4644 = vmatprep.subr.mxu0 %v4443
    %4645 = vmatpush1.msra.mxu0 %v4442
    %4646 = vmatprep.subr.mxu0 %v4451
    %4647 = vmatpush1.msra.mxu0 %v4450
    %4648 = vmatprep.subr.mxu0 %v4459
    %4649 = vmatpush1.msra.mxu0 %v4458
    %4650 = vmatprep.subr.mxu0 %v4467
    %4651 = vmatpush1.msra.mxu0 %v4466
    %4652 = vmatprep.subr.mxu0 %v4475
    %4653 = vmatpush1.msra.mxu0 %v4474
    %4654 = vmatprep.subr.mxu0 %v4483
    %4655 = vmatpush1.msra.mxu0 %v4482
    %4656 = vmatprep.subr.mxu0 %v4491
    %4657 = vmatpush1.msra.mxu0 %v4490
    %4658 = vmatprep.subr.mxu0 %v4499
    %4659 = vmatpush1.msra.mxu0 %v4498
    %4660 = vmatprep.subr.mxu0 %v4507
    %4661 = vmatpush1.msra.mxu0 %v4506
    %4662 = vmatprep.subr.mxu0 %v4515
    %4663 = vmatpush1.msra.mxu0 %v4514
    %4664 = vmatprep.subr.mxu0 %v4523
    %4665 = vmatpush1.msra.mxu0 %v4522
    %4666 = vmatprep.subr.mxu0 %v4531
    %4667 = vmatpush1.msra.mxu0 %v4530
    %4668 = vmatprep.subr.mxu0 %v4539
    %4669 = vmatpush1.msra.mxu0 %v4538
    %4670 = vmatprep.subr.mxu0 %v4547
    %4671 = vmatpush1.msra.mxu0 %v4546
    %4672 = vmatprep.subr.mxu0 %v4555
    %4673 = vmatpush1.msra.mxu0 %v4554
    %4674 = vmatprep.subr.mxu0 %v4563
    %4675 = vmatpush1.msra.mxu0 %v4562
    %4676 = vmatprep.subr.mxu0 %v4571
    %4677 = vmatpush1.msra.mxu0 %v4570
    %4678 = vmatprep.subr.mxu0 %v4579
    %4679 = vmatpush1.msra.mxu0 %v4578
    %4680 = vmatprep.subr.mxu0 %v4587
    %4681 = vmatpush1.msra.mxu0 %v4586
    %4682 = vmatprep.subr.mxu0 %v4595
    %4683 = vmatpush1.msra.mxu0 %v4594
    %4684 = vmatprep.subr.mxu0 %v4603
    %4685 = vmatpush1.msra.mxu0 %v4602
    %4686 = vmatprep.subr.mxu0 %v4611
    %4687 = vmatpush1.msra.mxu0 %v4610
    %4688 = vmatprep.subr.mxu0 %v4619
    %4689 = vmatpush1.msra.mxu0 %v4618
    %4690 = vmatprep.mubr.f32.mxu0 %v4359
    %4691 = vmatmul.mubr.f32.gmra.mrb[0].mxu0 %v4358
    %v4692 = vpop.f32.mrb[0].mxu0
    %v4693 = vadd.f32 0.0, %v4692
    %v4694 = vpop.f32.mrb[0].mxu0
    %v4695 = vadd.f32 0.0, %v4694
    %4696 = vdwg.mxu0
    %4697 = vmatprep.subr.mxu0 %v4373
    %4698 = vmatpush1.msra.mxu0 %v4372
    %4699 = vmatprep.subr.mxu0 %v4381
    %4700 = vmatpush1.msra.mxu0 %v4380
    %4701 = vmatprep.subr.mxu0 %v4389
    %4702 = vmatpush1.msra.mxu0 %v4388
    %4703 = vmatprep.subr.mxu0 %v4397
    %4704 = vmatpush1.msra.mxu0 %v4396
    %4705 = vmatprep.subr.mxu0 %v4405
    %4706 = vmatpush1.msra.mxu0 %v4404
    %4707 = vmatprep.subr.mxu0 %v4413
    %4708 = vmatpush1.msra.mxu0 %v4412
    %4709 = vmatprep.subr.mxu0 %v4421
    %4710 = vmatpush1.msra.mxu0 %v4420
    %4711 = vmatprep.subr.mxu0 %v4429
    %4712 = vmatpush1.msra.mxu0 %v4428
    %4713 = vmatprep.subr.mxu0 %v4437
    %4714 = vmatpush1.msra.mxu0 %v4436
    %4715 = vmatprep.subr.mxu0 %v4445
    %4716 = vmatpush1.msra.mxu0 %v4444
    %4717 = vmatprep.subr.mxu0 %v4453
    %4718 = vmatpush1.msra.mxu0 %v4452
    %4719 = vmatprep.subr.mxu0 %v4461
    %4720 = vmatpush1.msra.mxu0 %v4460
    %4721 = vmatprep.subr.mxu0 %v4469
    %4722 = vmatpush1.msra.mxu0 %v4468
    %4723 = vmatprep.subr.mxu0 %v4477
    %4724 = vmatpush1.msra.mxu0 %v4476
    %4725 = vmatprep.subr.mxu0 %v4485
    %4726 = vmatpush1.msra.mxu0 %v4484
    %4727 = vmatprep.subr.mxu0 %v4493
    %4728 = vmatpush1.msra.mxu0 %v4492
    %4729 = vmatprep.subr.mxu0 %v4501
    %4730 = vmatpush1.msra.mxu0 %v4500
    %4731 = vmatprep.subr.mxu0 %v4509
    %4732 = vmatpush1.msra.mxu0 %v4508
    %4733 = vmatprep.subr.mxu0 %v4517
    %4734 = vmatpush1.msra.mxu0 %v4516
    %4735 = vmatprep.subr.mxu0 %v4525
    %4736 = vmatpush1.msra.mxu0 %v4524
    %4737 = vmatprep.subr.mxu0 %v4533
    %4738 = vmatpush1.msra.mxu0 %v4532
    %4739 = vmatprep.subr.mxu0 %v4541
    %4740 = vmatpush1.msra.mxu0 %v4540
    %4741 = vmatprep.subr.mxu0 %v4549
    %4742 = vmatpush1.msra.mxu0 %v4548
    %4743 = vmatprep.subr.mxu0 %v4557
    %4744 = vmatpush1.msra.mxu0 %v4556
    %4745 = vmatprep.subr.mxu0 %v4565
    %4746 = vmatpush1.msra.mxu0 %v4564
    %4747 = vmatprep.subr.mxu0 %v4573
    %4748 = vmatpush1.msra.mxu0 %v4572
    %4749 = vmatprep.subr.mxu0 %v4581
    %4750 = vmatpush1.msra.mxu0 %v4580
    %4751 = vmatprep.subr.mxu0 %v4589
    %4752 = vmatpush1.msra.mxu0 %v4588
    %4753 = vmatprep.subr.mxu0 %v4597
    %4754 = vmatpush1.msra.mxu0 %v4596
    %4755 = vmatprep.subr.mxu0 %v4605
    %4756 = vmatpush1.msra.mxu0 %v4604
    %4757 = vmatprep.subr.mxu0 %v4613
    %4758 = vmatpush1.msra.mxu0 %v4612
    %4759 = vmatprep.subr.mxu0 %v4621
    %4760 = vmatpush1.msra.mxu0 %v4620
    %4761 = vmatprep.mubr.f32.mxu0 %v4359
    %4762 = vmatmul.mubr.f32.gmra.mrb[0].mxu0 %v4358
    %v4763 = vpop.f32.mrb[0].mxu0
    %v4764 = vadd.f32 0.0, %v4763
    %v4765 = vpop.f32.mrb[0].mxu0
    %v4766 = vadd.f32 0.0, %v4765
    %4767 = vdwg.mxu0
    %4768 = vmatprep.subr.mxu0 %v4375
    %4769 = vmatpush1.msra.mxu0 %v4374
    %4770 = vmatprep.subr.mxu0 %v4383
    %4771 = vmatpush1.msra.mxu0 %v4382
    %4772 = vmatprep.subr.mxu0 %v4391
    %4773 = vmatpush1.msra.mxu0 %v4390
    %4774 = vmatprep.subr.mxu0 %v4399
    %4775 = vmatpush1.msra.mxu0 %v4398
    %4776 = vmatprep.subr.mxu0 %v4407
    %4777 = vmatpush1.msra.mxu0 %v4406
    %4778 = vmatprep.subr.mxu0 %v4415
    %4779 = vmatpush1.msra.mxu0 %v4414
    %4780 = vmatprep.subr.mxu0 %v4423
    %4781 = vmatpush1.msra.mxu0 %v4422
    %4782 = vmatprep.subr.mxu0 %v4431
    %4783 = vmatpush1.msra.mxu0 %v4430
    %4784 = vmatprep.subr.mxu0 %v4439
    %4785 = vmatpush1.msra.mxu0 %v4438
    %4786 = vmatprep.subr.mxu0 %v4447
    %4787 = vmatpush1.msra.mxu0 %v4446
    %4788 = vmatprep.subr.mxu0 %v4455
    %4789 = vmatpush1.msra.mxu0 %v4454
    %4790 = vmatprep.subr.mxu0 %v4463
    %4791 = vmatpush1.msra.mxu0 %v4462
    %4792 = vmatprep.subr.mxu0 %v4471
    %4793 = vmatpush1.msra.mxu0 %v4470
    %4794 = vmatprep.subr.mxu0 %v4479
    %4795 = vmatpush1.msra.mxu0 %v4478
    %4796 = vmatprep.subr.mxu0 %v4487
    %4797 = vmatpush1.msra.mxu0 %v4486
    %4798 = vmatprep.subr.mxu0 %v4495
    %4799 = vmatpush1.msra.mxu0 %v4494
    %4800 = vmatprep.subr.mxu0 %v4503
    %4801 = vmatpush1.msra.mxu0 %v4502
    %4802 = vmatprep.subr.mxu0 %v4511
    %4803 = vmatpush1.msra.mxu0 %v4510
    %4804 = vmatprep.subr.mxu0 %v4519
    %4805 = vmatpush1.msra.mxu0 %v4518
    %4806 = vmatprep.subr.mxu0 %v4527
    %4807 = vmatpush1.msra.mxu0 %v4526
    %4808 = vmatprep.subr.mxu0 %v4535
    %4809 = vmatpush1.msra.mxu0 %v4534
    %4810 = vmatprep.subr.mxu0 %v4543
    %4811 = vmatpush1.msra.mxu0 %v4542
    %4812 = vmatprep.subr.mxu0 %v4551
    %4813 = vmatpush1.msra.mxu0 %v4550
    %4814 = vmatprep.subr.mxu0 %v4559
    %4815 = vmatpush1.msra.mxu0 %v4558
    %4816 = vmatprep.subr.mxu0 %v4567
    %4817 = vmatpush1.msra.mxu0 %v4566
    %4818 = vmatprep.subr.mxu0 %v4575
    %4819 = vmatpush1.msra.mxu0 %v4574
    %4820 = vmatprep.subr.mxu0 %v4583
    %4821 = vmatpush1.msra.mxu0 %v4582
    %4822 = vmatprep.subr.mxu0 %v4591
    %4823 = vmatpush1.msra.mxu0 %v4590
    %4824 = vmatprep.subr.mxu0 %v4599
    %4825 = vmatpush1.msra.mxu0 %v4598
    %4826 = vmatprep.subr.mxu0 %v4607
    %4827 = vmatpush1.msra.mxu0 %v4606
    %4828 = vmatprep.subr.mxu0 %v4615
    %4829 = vmatpush1.msra.mxu0 %v4614
    %4830 = vmatprep.subr.mxu0 %v4623
    %4831 = vmatpush1.msra.mxu0 %v4622
    %4832 = vmatprep.mubr.f32.mxu0 %v4359
    %4833 = vmatmul.mubr.f32.gmra.mrb[0].mxu0 %v4358
    %v4834 = vpop.f32.mrb[0].mxu0
    %v4835 = vadd.f32 0.0, %v4834
    %v4836 = vpop.f32.mrb[0].mxu0
    %v4837 = vadd.f32 0.0, %v4836
    %4838 = vdwg.mxu0
    %4839 = vmatprep.subr.mxu0 %v4377
    %4840 = vmatpush1.msra.mxu0 %v4376
    %4841 = vmatprep.subr.mxu0 %v4385
    %4842 = vmatpush1.msra.mxu0 %v4384
    %4843 = vmatprep.subr.mxu0 %v4393
    %4844 = vmatpush1.msra.mxu0 %v4392
    %4845 = vmatprep.subr.mxu0 %v4401
    %4846 = vmatpush1.msra.mxu0 %v4400
    %4847 = vmatprep.subr.mxu0 %v4409
    %4848 = vmatpush1.msra.mxu0 %v4408
    %4849 = vmatprep.subr.mxu0 %v4417
    %4850 = vmatpush1.msra.mxu0 %v4416
    %4851 = vmatprep.subr.mxu0 %v4425
    %4852 = vmatpush1.msra.mxu0 %v4424
    %4853 = vmatprep.subr.mxu0 %v4433
    %4854 = vmatpush1.msra.mxu0 %v4432
    %4855 = vmatprep.subr.mxu0 %v4441
    %4856 = vmatpush1.msra.mxu0 %v4440
    %4857 = vmatprep.subr.mxu0 %v4449
    %4858 = vmatpush1.msra.mxu0 %v4448
    %4859 = vmatprep.subr.mxu0 %v4457
    %4860 = vmatpush1.msra.mxu0 %v4456
    %4861 = vmatprep.subr.mxu0 %v4465
    %4862 = vmatpush1.msra.mxu0 %v4464
    %4863 = vmatprep.subr.mxu0 %v4473
    %4864 = vmatpush1.msra.mxu0 %v4472
    %4865 = vmatprep.subr.mxu0 %v4481
    %4866 = vmatpush1.msra.mxu0 %v4480
    %4867 = vmatprep.subr.mxu0 %v4489
    %4868 = vmatpush1.msra.mxu0 %v4488
    %4869 = vmatprep.subr.mxu0 %v4497
    %4870 = vmatpush1.msra.mxu0 %v4496
    %4871 = vmatprep.subr.mxu0 %v4505
    %4872 = vmatpush1.msra.mxu0 %v4504
    %4873 = vmatprep.subr.mxu0 %v4513
    %4874 = vmatpush1.msra.mxu0 %v4512
    %4875 = vmatprep.subr.mxu0 %v4521
    %4876 = vmatpush1.msra.mxu0 %v4520
    %4877 = vmatprep.subr.mxu0 %v4529
    %4878 = vmatpush1.msra.mxu0 %v4528
    %4879 = vmatprep.subr.mxu0 %v4537
    %4880 = vmatpush1.msra.mxu0 %v4536
    %4881 = vmatprep.subr.mxu0 %v4545
    %4882 = vmatpush1.msra.mxu0 %v4544
    %4883 = vmatprep.subr.mxu0 %v4553
    %4884 = vmatpush1.msra.mxu0 %v4552
    %4885 = vmatprep.subr.mxu0 %v4561
    %4886 = vmatpush1.msra.mxu0 %v4560
    %4887 = vmatprep.subr.mxu0 %v4569
    %4888 = vmatpush1.msra.mxu0 %v4568
    %4889 = vmatprep.subr.mxu0 %v4577
    %4890 = vmatpush1.msra.mxu0 %v4576
    %4891 = vmatprep.subr.mxu0 %v4585
    %4892 = vmatpush1.msra.mxu0 %v4584
    %4893 = vmatprep.subr.mxu0 %v4593
    %4894 = vmatpush1.msra.mxu0 %v4592
    %4895 = vmatprep.subr.mxu0 %v4601
    %4896 = vmatpush1.msra.mxu0 %v4600
    %4897 = vmatprep.subr.mxu0 %v4609
    %4898 = vmatpush1.msra.mxu0 %v4608
    %4899 = vmatprep.subr.mxu0 %v4617
    %4900 = vmatpush1.msra.mxu0 %v4616
    %4901 = vmatprep.subr.mxu0 %v4625
    %4902 = vmatpush1.msra.mxu0 %v4624
    %4903 = vmatprep.mubr.f32.mxu0 %v4359
    %4904 = vmatmul.mubr.f32.gmra.mrb[0].mxu0 %v4358
    %v4905 = vpop.f32.mrb[0].mxu0
    %v4906 = vadd.f32 0.0, %v4905
    %v4907 = vpop.f32.mrb[0].mxu0
    %v4908 = vadd.f32 0.0, %v4907
    %4909 = vdwg.mxu0
    %v4910 = vadd.f32 %v4362, %v4693
    %v4911 = vadd.f32 %v4363, %v4695
    %v4912 = vadd.f32 %v4364, %v4764
    %v4913 = vadd.f32 %v4365, %v4766
    %v4914 = vadd.f32 %v4366, %v4835
    %v4915 = vadd.f32 %v4367, %v4837
    %v4916 = vadd.f32 %v4368, %v4906
    %v4917 = vadd.f32 %v4369, %v4908
    %v4918 = vxor.u32 %v4910, 2147483648
    %v4919 = vxor.u32 %v4911, 2147483648
    %v4920 = vmul.f32 %v4918, 1.442695
    %v4921 = vpow.pop %v4920
    %v4922 = vmul.f32 %v4919, 1.442695
    %v4923 = vpow.pop %v4922
    %v4924 = vadd.f32 %v4921, 1.0
    %v4925 = vadd.f32 %v4923, 1.0
    %v4926 = vrcp.pop %v4924
    %v4927 = vmul.f32 1.0, %v4926
    %v4928 = vrcp.pop %v4925
    %v4929 = vmul.f32 1.0, %v4928
    %v4930 = vxor.u32 %v4912, 2147483648
    %v4931 = vxor.u32 %v4913, 2147483648
    %v4932 = vmul.f32 %v4930, 1.442695
    %v4933 = vpow.pop %v4932
    %v4934 = vmul.f32 %v4931, 1.442695
    %v4935 = vpow.pop %v4934
    %v4936 = vadd.f32 %v4933, 1.0
    %v4937 = vadd.f32 %v4935, 1.0
    %v4938 = vrcp.pop %v4936
    %v4939 = vmul.f32 1.0, %v4938
    %v4940 = vrcp.pop %v4937
    %v4941 = vmul.f32 1.0, %v4940
    %v4942 = vtanh.pop %v4914
    %v4943 = vtanh.pop %v4915
    %v4944 = vxor.u32 %v4916, 2147483648
    %v4945 = vxor.u32 %v4917, 2147483648
    %v4946 = vmul.f32 %v4944, 1.442695
    %v4947 = vpow.pop %v4946
    %v4948 = vmul.f32 %v4945, 1.442695
    %v4949 = vpow.pop %v4948
    %v4950 = vadd.f32 %v4947, 1.0
    %v4951 = vadd.f32 %v4949, 1.0
    %v4952 = vrcp.pop %v4950
    %v4953 = vmul.f32 1.0, %v4952
    %v4954 = vrcp.pop %v4951
    %v4955 = vmul.f32 1.0, %v4954
    %v4956 = vmul.f32 %v4939, %v4354
    %v4957 = vmul.f32 %v4941, %v4355
    %v4958 = vmul.f32 %v4927, %v4942
    %v4959 = vmul.f32 %v4929, %v4943
    %v4960 = vadd.f32 %v4956, %v4958
    %v4961 = vadd.f32 %v4957, %v4959
    %v4962 = vtanh.pop %v4960
    %v4963 = vtanh.pop %v4961
    %v4964 = vmul.f32 %v4953, %v4962
    %v4965 = vmul.f32 %v4955, %v4963
    %4966 = vst [vmem:[#allocation3 + $0x60] sm:$0xff] %v4964
    %4967 = vst [vmem:[#allocation3 + $0x18] sm:$0xff] %v4965
    %v4968 = vld [vmem:[#allocation2 + $0x1c0] sm:$0xff]
    %v4969 = vld [vmem:[#allocation2 + $0x1c8] sm:$0xff]
    %v4970 = vld [vmem:[#allocation2 + $0x1d0] sm:$0xff]
    %v4971 = vld [vmem:[#allocation2 + $0x1d8] sm:$0xff]
    %v4972 = vld [vmem:[#allocation2 + $0x1e0] sm:$0xff]
    %v4973 = vld [vmem:[#allocation2 + $0x1e8] sm:$0xff]
    %v4974 = vld [vmem:[#allocation2 + $0x1f0] sm:$0xff]
    %v4975 = vld [vmem:[#allocation2 + $0x1f8] sm:$0xff]
    %v4976 = vld [vmem:[#allocation4] sm:$0xff]
    %v4977 = vld [vmem:[#allocation4 + $0x8] sm:$0xff]
    %v4978 = vld [vmem:[#allocation4 + $0x10] sm:$0xff]
    %v4979 = vld [vmem:[#allocation4 + $0x18] sm:$0xff]
    %v4980 = vld [vmem:[#allocation4 + $0x20] sm:$0xff]
    %v4981 = vld [vmem:[#allocation4 + $0x28] sm:$0xff]
    %v4982 = vld [vmem:[#allocation4 + $0x30] sm:$0xff]
    %v4983 = vld [vmem:[#allocation4 + $0x38] sm:$0xff]
    %v4984 = vld [vmem:[#allocation4 + $0x40] sm:$0xff]
    %v4985 = vld [vmem:[#allocation4 + $0x48] sm:$0xff]
    %v4986 = vld [vmem:[#allocation4 + $0x50] sm:$0xff]
    %v4987 = vld [vmem:[#allocation4 + $0x58] sm:$0xff]
    %v4988 = vld [vmem:[#allocation4 + $0x60] sm:$0xff]
    %v4989 = vld [vmem:[#allocation4 + $0x68] sm:$0xff]
    %v4990 = vld [vmem:[#allocation4 + $0x70] sm:$0xff]
    %v4991 = vld [vmem:[#allocation4 + $0x78] sm:$0xff]
    %v4992 = vld [vmem:[#allocation4 + $0x80] sm:$0xff]
    %v4993 = vld [vmem:[#allocation4 + $0x88] sm:$0xff]
    %v4994 = vld [vmem:[#allocation4 + $0x90] sm:$0xff]
    %v4995 = vld [vmem:[#allocation4 + $0x98] sm:$0xff]
    %v4996 = vld [vmem:[#allocation4 + $0xa0] sm:$0xff]
    %v4997 = vld [vmem:[#allocation4 + $0xa8] sm:$0xff]
    %v4998 = vld [vmem:[#allocation4 + $0xb0] sm:$0xff]
    %v4999 = vld [vmem:[#allocation4 + $0xb8] sm:$0xff]
    %v5000 = vld [vmem:[#allocation4 + $0xc0] sm:$0xff]
    %v5001 = vld [vmem:[#allocation4 + $0xc8] sm:$0xff]
    %v5002 = vld [vmem:[#allocation4 + $0xd0] sm:$0xff]
    %v5003 = vld [vmem:[#allocation4 + $0xd8] sm:$0xff]
    %v5004 = vld [vmem:[#allocation4 + $0xe0] sm:$0xff]
    %v5005 = vld [vmem:[#allocation4 + $0xe8] sm:$0xff]
    %v5006 = vld [vmem:[#allocation4 + $0xf0] sm:$0xff]
    %v5007 = vld [vmem:[#allocation4 + $0xf8] sm:$0xff]
    %v5008 = vld [vmem:[#allocation4 + $0x100] sm:$0xff]
    %v5009 = vld [vmem:[#allocation4 + $0x108] sm:$0xff]
    %v5010 = vld [vmem:[#allocation4 + $0x110] sm:$0xff]
    %v5011 = vld [vmem:[#allocation4 + $0x118] sm:$0xff]
    %v5012 = vld [vmem:[#allocation4 + $0x120] sm:$0xff]
    %v5013 = vld [vmem:[#allocation4 + $0x128] sm:$0xff]
    %v5014 = vld [vmem:[#allocation4 + $0x130] sm:$0xff]
    %v5015 = vld [vmem:[#allocation4 + $0x138] sm:$0xff]
    %v5016 = vld [vmem:[#allocation4 + $0x140] sm:$0xff]
    %v5017 = vld [vmem:[#allocation4 + $0x148] sm:$0xff]
    %v5018 = vld [vmem:[#allocation4 + $0x150] sm:$0xff]
    %v5019 = vld [vmem:[#allocation4 + $0x158] sm:$0xff]
    %v5020 = vld [vmem:[#allocation4 + $0x160] sm:$0xff]
    %v5021 = vld [vmem:[#allocation4 + $0x168] sm:$0xff]
    %v5022 = vld [vmem:[#allocation4 + $0x170] sm:$0xff]
    %v5023 = vld [vmem:[#allocation4 + $0x178] sm:$0xff]
    %v5024 = vld [vmem:[#allocation4 + $0x180] sm:$0xff]
    %v5025 = vld [vmem:[#allocation4 + $0x188] sm:$0xff]
    %v5026 = vld [vmem:[#allocation4 + $0x190] sm:$0xff]
    %v5027 = vld [vmem:[#allocation4 + $0x198] sm:$0xff]
    %v5028 = vld [vmem:[#allocation4 + $0x1a0] sm:$0xff]
    %v5029 = vld [vmem:[#allocation4 + $0x1a8] sm:$0xff]
    %v5030 = vld [vmem:[#allocation4 + $0x1b0] sm:$0xff]
    %v5031 = vld [vmem:[#allocation4 + $0x1b8] sm:$0xff]
    %v5032 = vld [vmem:[#allocation4 + $0x1c0] sm:$0xff]
    %v5033 = vld [vmem:[#allocation4 + $0x1c8] sm:$0xff]
    %v5034 = vld [vmem:[#allocation4 + $0x1d0] sm:$0xff]
    %v5035 = vld [vmem:[#allocation4 + $0x1d8] sm:$0xff]
    %v5036 = vld [vmem:[#allocation4 + $0x1e0] sm:$0xff]
    %v5037 = vld [vmem:[#allocation4 + $0x1e8] sm:$0xff]
    %v5038 = vld [vmem:[#allocation4 + $0x1f0] sm:$0xff]
    %v5039 = vld [vmem:[#allocation4 + $0x1f8] sm:$0xff]
    %v5040 = vld [vmem:[#allocation4 + $0x200] sm:$0xff]
    %v5041 = vld [vmem:[#allocation4 + $0x208] sm:$0xff]
    %v5042 = vld [vmem:[#allocation4 + $0x210] sm:$0xff]
    %v5043 = vld [vmem:[#allocation4 + $0x218] sm:$0xff]
    %v5044 = vld [vmem:[#allocation4 + $0x220] sm:$0xff]
    %v5045 = vld [vmem:[#allocation4 + $0x228] sm:$0xff]
    %v5046 = vld [vmem:[#allocation4 + $0x230] sm:$0xff]
    %v5047 = vld [vmem:[#allocation4 + $0x238] sm:$0xff]
    %v5048 = vld [vmem:[#allocation4 + $0x240] sm:$0xff]
    %v5049 = vld [vmem:[#allocation4 + $0x248] sm:$0xff]
    %v5050 = vld [vmem:[#allocation4 + $0x250] sm:$0xff]
    %v5051 = vld [vmem:[#allocation4 + $0x258] sm:$0xff]
    %v5052 = vld [vmem:[#allocation4 + $0x260] sm:$0xff]
    %v5053 = vld [vmem:[#allocation4 + $0x268] sm:$0xff]
    %v5054 = vld [vmem:[#allocation4 + $0x270] sm:$0xff]
    %v5055 = vld [vmem:[#allocation4 + $0x278] sm:$0xff]
    %v5056 = vld [vmem:[#allocation4 + $0x280] sm:$0xff]
    %v5057 = vld [vmem:[#allocation4 + $0x288] sm:$0xff]
    %v5058 = vld [vmem:[#allocation4 + $0x290] sm:$0xff]
    %v5059 = vld [vmem:[#allocation4 + $0x298] sm:$0xff]
    %v5060 = vld [vmem:[#allocation4 + $0x2a0] sm:$0xff]
    %v5061 = vld [vmem:[#allocation4 + $0x2a8] sm:$0xff]
    %v5062 = vld [vmem:[#allocation4 + $0x2b0] sm:$0xff]
    %v5063 = vld [vmem:[#allocation4 + $0x2b8] sm:$0xff]
    %v5064 = vld [vmem:[#allocation4 + $0x2c0] sm:$0xff]
    %v5065 = vld [vmem:[#allocation4 + $0x2c8] sm:$0xff]
    %v5066 = vld [vmem:[#allocation4 + $0x2d0] sm:$0xff]
    %v5067 = vld [vmem:[#allocation4 + $0x2d8] sm:$0xff]
    %v5068 = vld [vmem:[#allocation4 + $0x2e0] sm:$0xff]
    %v5069 = vld [vmem:[#allocation4 + $0x2e8] sm:$0xff]
    %v5070 = vld [vmem:[#allocation4 + $0x2f0] sm:$0xff]
    %v5071 = vld [vmem:[#allocation4 + $0x2f8] sm:$0xff]
    %v5072 = vld [vmem:[#allocation4 + $0x300] sm:$0xff]
    %v5073 = vld [vmem:[#allocation4 + $0x308] sm:$0xff]
    %v5074 = vld [vmem:[#allocation4 + $0x310] sm:$0xff]
    %v5075 = vld [vmem:[#allocation4 + $0x318] sm:$0xff]
    %v5076 = vld [vmem:[#allocation4 + $0x320] sm:$0xff]
    %v5077 = vld [vmem:[#allocation4 + $0x328] sm:$0xff]
    %v5078 = vld [vmem:[#allocation4 + $0x330] sm:$0xff]
    %v5079 = vld [vmem:[#allocation4 + $0x338] sm:$0xff]
    %v5080 = vld [vmem:[#allocation4 + $0x340] sm:$0xff]
    %v5081 = vld [vmem:[#allocation4 + $0x348] sm:$0xff]
    %v5082 = vld [vmem:[#allocation4 + $0x350] sm:$0xff]
    %v5083 = vld [vmem:[#allocation4 + $0x358] sm:$0xff]
    %v5084 = vld [vmem:[#allocation4 + $0x360] sm:$0xff]
    %v5085 = vld [vmem:[#allocation4 + $0x368] sm:$0xff]
    %v5086 = vld [vmem:[#allocation4 + $0x370] sm:$0xff]
    %v5087 = vld [vmem:[#allocation4 + $0x378] sm:$0xff]
    %v5088 = vld [vmem:[#allocation4 + $0x380] sm:$0xff]
    %v5089 = vld [vmem:[#allocation4 + $0x388] sm:$0xff]
    %v5090 = vld [vmem:[#allocation4 + $0x390] sm:$0xff]
    %v5091 = vld [vmem:[#allocation4 + $0x398] sm:$0xff]
    %v5092 = vld [vmem:[#allocation4 + $0x3a0] sm:$0xff]
    %v5093 = vld [vmem:[#allocation4 + $0x3a8] sm:$0xff]
    %v5094 = vld [vmem:[#allocation4 + $0x3b0] sm:$0xff]
    %v5095 = vld [vmem:[#allocation4 + $0x3b8] sm:$0xff]
    %v5096 = vld [vmem:[#allocation4 + $0x3c0] sm:$0xff]
    %v5097 = vld [vmem:[#allocation4 + $0x3c8] sm:$0xff]
    %v5098 = vld [vmem:[#allocation4 + $0x3d0] sm:$0xff]
    %v5099 = vld [vmem:[#allocation4 + $0x3d8] sm:$0xff]
    %v5100 = vld [vmem:[#allocation4 + $0x3e0] sm:$0xff]
    %v5101 = vld [vmem:[#allocation4 + $0x3e8] sm:$0xff]
    %v5102 = vld [vmem:[#allocation4 + $0x3f0] sm:$0xff]
    %v5103 = vld [vmem:[#allocation4 + $0x3f8] sm:$0xff]
    %v5104 = vld [vmem:[#allocation4 + $0x400] sm:$0xff]
    %v5105 = vld [vmem:[#allocation4 + $0x408] sm:$0xff]
    %v5106 = vld [vmem:[#allocation4 + $0x410] sm:$0xff]
    %v5107 = vld [vmem:[#allocation4 + $0x418] sm:$0xff]
    %v5108 = vld [vmem:[#allocation4 + $0x420] sm:$0xff]
    %v5109 = vld [vmem:[#allocation4 + $0x428] sm:$0xff]
    %v5110 = vld [vmem:[#allocation4 + $0x430] sm:$0xff]
    %v5111 = vld [vmem:[#allocation4 + $0x438] sm:$0xff]
    %v5112 = vld [vmem:[#allocation4 + $0x440] sm:$0xff]
    %v5113 = vld [vmem:[#allocation4 + $0x448] sm:$0xff]
    %v5114 = vld [vmem:[#allocation4 + $0x450] sm:$0xff]
    %v5115 = vld [vmem:[#allocation4 + $0x458] sm:$0xff]
    %v5116 = vld [vmem:[#allocation4 + $0x460] sm:$0xff]
    %v5117 = vld [vmem:[#allocation4 + $0x468] sm:$0xff]
    %v5118 = vld [vmem:[#allocation4 + $0x470] sm:$0xff]
    %v5119 = vld [vmem:[#allocation4 + $0x478] sm:$0xff]
    %v5120 = vld [vmem:[#allocation4 + $0x480] sm:$0xff]
    %v5121 = vld [vmem:[#allocation4 + $0x488] sm:$0xff]
    %v5122 = vld [vmem:[#allocation4 + $0x490] sm:$0xff]
    %v5123 = vld [vmem:[#allocation4 + $0x498] sm:$0xff]
    %v5124 = vld [vmem:[#allocation4 + $0x4a0] sm:$0xff]
    %v5125 = vld [vmem:[#allocation4 + $0x4a8] sm:$0xff]
    %v5126 = vld [vmem:[#allocation4 + $0x4b0] sm:$0xff]
    %v5127 = vld [vmem:[#allocation4 + $0x4b8] sm:$0xff]
    %v5128 = vld [vmem:[#allocation4 + $0x4c0] sm:$0xff]
    %v5129 = vld [vmem:[#allocation4 + $0x4c8] sm:$0xff]
    %v5130 = vld [vmem:[#allocation4 + $0x4d0] sm:$0xff]
    %v5131 = vld [vmem:[#allocation4 + $0x4d8] sm:$0xff]
    %v5132 = vld [vmem:[#allocation4 + $0x4e0] sm:$0xff]
    %v5133 = vld [vmem:[#allocation4 + $0x4e8] sm:$0xff]
    %v5134 = vld [vmem:[#allocation4 + $0x4f0] sm:$0xff]
    %v5135 = vld [vmem:[#allocation4 + $0x4f8] sm:$0xff]
    %v5136 = vld [vmem:[#allocation4 + $0x500] sm:$0xff]
    %v5137 = vld [vmem:[#allocation4 + $0x508] sm:$0xff]
    %v5138 = vld [vmem:[#allocation4 + $0x510] sm:$0xff]
    %v5139 = vld [vmem:[#allocation4 + $0x518] sm:$0xff]
    %v5140 = vld [vmem:[#allocation4 + $0x520] sm:$0xff]
    %v5141 = vld [vmem:[#allocation4 + $0x528] sm:$0xff]
    %v5142 = vld [vmem:[#allocation4 + $0x530] sm:$0xff]
    %v5143 = vld [vmem:[#allocation4 + $0x538] sm:$0xff]
    %v5144 = vld [vmem:[#allocation4 + $0x540] sm:$0xff]
    %v5145 = vld [vmem:[#allocation4 + $0x548] sm:$0xff]
    %v5146 = vld [vmem:[#allocation4 + $0x550] sm:$0xff]
    %v5147 = vld [vmem:[#allocation4 + $0x558] sm:$0xff]
    %v5148 = vld [vmem:[#allocation4 + $0x560] sm:$0xff]
    %v5149 = vld [vmem:[#allocation4 + $0x568] sm:$0xff]
    %v5150 = vld [vmem:[#allocation4 + $0x570] sm:$0xff]
    %v5151 = vld [vmem:[#allocation4 + $0x578] sm:$0xff]
    %v5152 = vld [vmem:[#allocation4 + $0x580] sm:$0xff]
    %v5153 = vld [vmem:[#allocation4 + $0x588] sm:$0xff]
    %v5154 = vld [vmem:[#allocation4 + $0x590] sm:$0xff]
    %v5155 = vld [vmem:[#allocation4 + $0x598] sm:$0xff]
    %v5156 = vld [vmem:[#allocation4 + $0x5a0] sm:$0xff]
    %v5157 = vld [vmem:[#allocation4 + $0x5a8] sm:$0xff]
    %v5158 = vld [vmem:[#allocation4 + $0x5b0] sm:$0xff]
    %v5159 = vld [vmem:[#allocation4 + $0x5b8] sm:$0xff]
    %v5160 = vld [vmem:[#allocation4 + $0x5c0] sm:$0xff]
    %v5161 = vld [vmem:[#allocation4 + $0x5c8] sm:$0xff]
    %v5162 = vld [vmem:[#allocation4 + $0x5d0] sm:$0xff]
    %v5163 = vld [vmem:[#allocation4 + $0x5d8] sm:$0xff]
    %v5164 = vld [vmem:[#allocation4 + $0x5e0] sm:$0xff]
    %v5165 = vld [vmem:[#allocation4 + $0x5e8] sm:$0xff]
    %v5166 = vld [vmem:[#allocation4 + $0x5f0] sm:$0xff]
    %v5167 = vld [vmem:[#allocation4 + $0x5f8] sm:$0xff]
    %v5168 = vld [vmem:[#allocation4 + $0x600] sm:$0xff]
    %v5169 = vld [vmem:[#allocation4 + $0x608] sm:$0xff]
    %v5170 = vld [vmem:[#allocation4 + $0x610] sm:$0xff]
    %v5171 = vld [vmem:[#allocation4 + $0x618] sm:$0xff]
    %v5172 = vld [vmem:[#allocation4 + $0x620] sm:$0xff]
    %v5173 = vld [vmem:[#allocation4 + $0x628] sm:$0xff]
    %v5174 = vld [vmem:[#allocation4 + $0x630] sm:$0xff]
    %v5175 = vld [vmem:[#allocation4 + $0x638] sm:$0xff]
    %v5176 = vld [vmem:[#allocation4 + $0x640] sm:$0xff]
    %v5177 = vld [vmem:[#allocation4 + $0x648] sm:$0xff]
    %v5178 = vld [vmem:[#allocation4 + $0x650] sm:$0xff]
    %v5179 = vld [vmem:[#allocation4 + $0x658] sm:$0xff]
    %v5180 = vld [vmem:[#allocation4 + $0x660] sm:$0xff]
    %v5181 = vld [vmem:[#allocation4 + $0x668] sm:$0xff]
    %v5182 = vld [vmem:[#allocation4 + $0x670] sm:$0xff]
    %v5183 = vld [vmem:[#allocation4 + $0x678] sm:$0xff]
    %v5184 = vld [vmem:[#allocation4 + $0x680] sm:$0xff]
    %v5185 = vld [vmem:[#allocation4 + $0x688] sm:$0xff]
    %v5186 = vld [vmem:[#allocation4 + $0x690] sm:$0xff]
    %v5187 = vld [vmem:[#allocation4 + $0x698] sm:$0xff]
    %v5188 = vld [vmem:[#allocation4 + $0x6a0] sm:$0xff]
    %v5189 = vld [vmem:[#allocation4 + $0x6a8] sm:$0xff]
    %v5190 = vld [vmem:[#allocation4 + $0x6b0] sm:$0xff]
    %v5191 = vld [vmem:[#allocation4 + $0x6b8] sm:$0xff]
    %v5192 = vld [vmem:[#allocation4 + $0x6c0] sm:$0xff]
    %v5193 = vld [vmem:[#allocation4 + $0x6c8] sm:$0xff]
    %v5194 = vld [vmem:[#allocation4 + $0x6d0] sm:$0xff]
    %v5195 = vld [vmem:[#allocation4 + $0x6d8] sm:$0xff]
    %v5196 = vld [vmem:[#allocation4 + $0x6e0] sm:$0xff]
    %v5197 = vld [vmem:[#allocation4 + $0x6e8] sm:$0xff]
    %v5198 = vld [vmem:[#allocation4 + $0x6f0] sm:$0xff]
    %v5199 = vld [vmem:[#allocation4 + $0x6f8] sm:$0xff]
    %v5200 = vld [vmem:[#allocation4 + $0x700] sm:$0xff]
    %v5201 = vld [vmem:[#allocation4 + $0x708] sm:$0xff]
    %v5202 = vld [vmem:[#allocation4 + $0x710] sm:$0xff]
    %v5203 = vld [vmem:[#allocation4 + $0x718] sm:$0xff]
    %v5204 = vld [vmem:[#allocation4 + $0x720] sm:$0xff]
    %v5205 = vld [vmem:[#allocation4 + $0x728] sm:$0xff]
    %v5206 = vld [vmem:[#allocation4 + $0x730] sm:$0xff]
    %v5207 = vld [vmem:[#allocation4 + $0x738] sm:$0xff]
    %v5208 = vld [vmem:[#allocation4 + $0x740] sm:$0xff]
    %v5209 = vld [vmem:[#allocation4 + $0x748] sm:$0xff]
    %v5210 = vld [vmem:[#allocation4 + $0x750] sm:$0xff]
    %v5211 = vld [vmem:[#allocation4 + $0x758] sm:$0xff]
    %v5212 = vld [vmem:[#allocation4 + $0x760] sm:$0xff]
    %v5213 = vld [vmem:[#allocation4 + $0x768] sm:$0xff]
    %v5214 = vld [vmem:[#allocation4 + $0x770] sm:$0xff]
    %v5215 = vld [vmem:[#allocation4 + $0x778] sm:$0xff]
    %v5216 = vld [vmem:[#allocation4 + $0x780] sm:$0xff]
    %v5217 = vld [vmem:[#allocation4 + $0x788] sm:$0xff]
    %v5218 = vld [vmem:[#allocation4 + $0x790] sm:$0xff]
    %v5219 = vld [vmem:[#allocation4 + $0x798] sm:$0xff]
    %v5220 = vld [vmem:[#allocation4 + $0x7a0] sm:$0xff]
    %v5221 = vld [vmem:[#allocation4 + $0x7a8] sm:$0xff]
    %v5222 = vld [vmem:[#allocation4 + $0x7b0] sm:$0xff]
    %v5223 = vld [vmem:[#allocation4 + $0x7b8] sm:$0xff]
    %v5224 = vld [vmem:[#allocation4 + $0x7c0] sm:$0xff]
    %v5225 = vld [vmem:[#allocation4 + $0x7c8] sm:$0xff]
    %v5226 = vld [vmem:[#allocation4 + $0x7d0] sm:$0xff]
    %v5227 = vld [vmem:[#allocation4 + $0x7d8] sm:$0xff]
    %v5228 = vld [vmem:[#allocation4 + $0x7e0] sm:$0xff]
    %v5229 = vld [vmem:[#allocation4 + $0x7e8] sm:$0xff]
    %v5230 = vld [vmem:[#allocation4 + $0x7f0] sm:$0xff]
    %v5231 = vld [vmem:[#allocation4 + $0x7f8] sm:$0xff]
    %5232 = vmatprep.subr.mxu0 %v4977
    %5233 = vmatpush1.msra.mxu0 %v4976
    %5234 = vmatprep.subr.mxu0 %v4985
    %5235 = vmatpush1.msra.mxu0 %v4984
    %5236 = vmatprep.subr.mxu0 %v4993
    %5237 = vmatpush1.msra.mxu0 %v4992
    %5238 = vmatprep.subr.mxu0 %v5001
    %5239 = vmatpush1.msra.mxu0 %v5000
    %5240 = vmatprep.subr.mxu0 %v5009
    %5241 = vmatpush1.msra.mxu0 %v5008
    %5242 = vmatprep.subr.mxu0 %v5017
    %5243 = vmatpush1.msra.mxu0 %v5016
    %5244 = vmatprep.subr.mxu0 %v5025
    %5245 = vmatpush1.msra.mxu0 %v5024
    %5246 = vmatprep.subr.mxu0 %v5033
    %5247 = vmatpush1.msra.mxu0 %v5032
    %5248 = vmatprep.subr.mxu0 %v5041
    %5249 = vmatpush1.msra.mxu0 %v5040
    %5250 = vmatprep.subr.mxu0 %v5049
    %5251 = vmatpush1.msra.mxu0 %v5048
    %5252 = vmatprep.subr.mxu0 %v5057
    %5253 = vmatpush1.msra.mxu0 %v5056
    %5254 = vmatprep.subr.mxu0 %v5065
    %5255 = vmatpush1.msra.mxu0 %v5064
    %5256 = vmatprep.subr.mxu0 %v5073
    %5257 = vmatpush1.msra.mxu0 %v5072
    %5258 = vmatprep.subr.mxu0 %v5081
    %5259 = vmatpush1.msra.mxu0 %v5080
    %5260 = vmatprep.subr.mxu0 %v5089
    %5261 = vmatpush1.msra.mxu0 %v5088
    %5262 = vmatprep.subr.mxu0 %v5097
    %5263 = vmatpush1.msra.mxu0 %v5096
    %5264 = vmatprep.subr.mxu0 %v5105
    %5265 = vmatpush1.msra.mxu0 %v5104
    %5266 = vmatprep.subr.mxu0 %v5113
    %5267 = vmatpush1.msra.mxu0 %v5112
    %5268 = vmatprep.subr.mxu0 %v5121
    %5269 = vmatpush1.msra.mxu0 %v5120
    %5270 = vmatprep.subr.mxu0 %v5129
    %5271 = vmatpush1.msra.mxu0 %v5128
    %5272 = vmatprep.subr.mxu0 %v5137
    %5273 = vmatpush1.msra.mxu0 %v5136
    %5274 = vmatprep.subr.mxu0 %v5145
    %5275 = vmatpush1.msra.mxu0 %v5144
    %5276 = vmatprep.subr.mxu0 %v5153
    %5277 = vmatpush1.msra.mxu0 %v5152
    %5278 = vmatprep.subr.mxu0 %v5161
    %5279 = vmatpush1.msra.mxu0 %v5160
    %5280 = vmatprep.subr.mxu0 %v5169
    %5281 = vmatpush1.msra.mxu0 %v5168
    %5282 = vmatprep.subr.mxu0 %v5177
    %5283 = vmatpush1.msra.mxu0 %v5176
    %5284 = vmatprep.subr.mxu0 %v5185
    %5285 = vmatpush1.msra.mxu0 %v5184
    %5286 = vmatprep.subr.mxu0 %v5193
    %5287 = vmatpush1.msra.mxu0 %v5192
    %5288 = vmatprep.subr.mxu0 %v5201
    %5289 = vmatpush1.msra.mxu0 %v5200
    %5290 = vmatprep.subr.mxu0 %v5209
    %5291 = vmatpush1.msra.mxu0 %v5208
    %5292 = vmatprep.subr.mxu0 %v5217
    %5293 = vmatpush1.msra.mxu0 %v5216
    %5294 = vmatprep.subr.mxu0 %v5225
    %5295 = vmatpush1.msra.mxu0 %v5224
    %5296 = vmatprep.mubr.f32.mxu0 %v4965
    %5297 = vmatmul.mubr.f32.gmra.mrb[0].mxu0 %v4964
    %v5298 = vpop.f32.mrb[0].mxu0
    %v5299 = vadd.f32 0.0, %v5298
    %v5300 = vpop.f32.mrb[0].mxu0
    %v5301 = vadd.f32 0.0, %v5300
    %5302 = vdwg.mxu0
    %5303 = vmatprep.subr.mxu0 %v4979
    %5304 = vmatpush1.msra.mxu0 %v4978
    %5305 = vmatprep.subr.mxu0 %v4987
    %5306 = vmatpush1.msra.mxu0 %v4986
    %5307 = vmatprep.subr.mxu0 %v4995
    %5308 = vmatpush1.msra.mxu0 %v4994
    %5309 = vmatprep.subr.mxu0 %v5003
    %5310 = vmatpush1.msra.mxu0 %v5002
    %5311 = vmatprep.subr.mxu0 %v5011
    %5312 = vmatpush1.msra.mxu0 %v5010
    %5313 = vmatprep.subr.mxu0 %v5019
    %5314 = vmatpush1.msra.mxu0 %v5018
    %5315 = vmatprep.subr.mxu0 %v5027
    %5316 = vmatpush1.msra.mxu0 %v5026
    %5317 = vmatprep.subr.mxu0 %v5035
    %5318 = vmatpush1.msra.mxu0 %v5034
    %5319 = vmatprep.subr.mxu0 %v5043
    %5320 = vmatpush1.msra.mxu0 %v5042
    %5321 = vmatprep.subr.mxu0 %v5051
    %5322 = vmatpush1.msra.mxu0 %v5050
    %5323 = vmatprep.subr.mxu0 %v5059
    %5324 = vmatpush1.msra.mxu0 %v5058
    %5325 = vmatprep.subr.mxu0 %v5067
    %5326 = vmatpush1.msra.mxu0 %v5066
    %5327 = vmatprep.subr.mxu0 %v5075
    %5328 = vmatpush1.msra.mxu0 %v5074
    %5329 = vmatprep.subr.mxu0 %v5083
    %5330 = vmatpush1.msra.mxu0 %v5082
    %5331 = vmatprep.subr.mxu0 %v5091
    %5332 = vmatpush1.msra.mxu0 %v5090
    %5333 = vmatprep.subr.mxu0 %v5099
    %5334 = vmatpush1.msra.mxu0 %v5098
    %5335 = vmatprep.subr.mxu0 %v5107
    %5336 = vmatpush1.msra.mxu0 %v5106
    %5337 = vmatprep.subr.mxu0 %v5115
    %5338 = vmatpush1.msra.mxu0 %v5114
    %5339 = vmatprep.subr.mxu0 %v5123
    %5340 = vmatpush1.msra.mxu0 %v5122
    %5341 = vmatprep.subr.mxu0 %v5131
    %5342 = vmatpush1.msra.mxu0 %v5130
    %5343 = vmatprep.subr.mxu0 %v5139
    %5344 = vmatpush1.msra.mxu0 %v5138
    %5345 = vmatprep.subr.mxu0 %v5147
    %5346 = vmatpush1.msra.mxu0 %v5146
    %5347 = vmatprep.subr.mxu0 %v5155
    %5348 = vmatpush1.msra.mxu0 %v5154
    %5349 = vmatprep.subr.mxu0 %v5163
    %5350 = vmatpush1.msra.mxu0 %v5162
    %5351 = vmatprep.subr.mxu0 %v5171
    %5352 = vmatpush1.msra.mxu0 %v5170
    %5353 = vmatprep.subr.mxu0 %v5179
    %5354 = vmatpush1.msra.mxu0 %v5178
    %5355 = vmatprep.subr.mxu0 %v5187
    %5356 = vmatpush1.msra.mxu0 %v5186
    %5357 = vmatprep.subr.mxu0 %v5195
    %5358 = vmatpush1.msra.mxu0 %v5194
    %5359 = vmatprep.subr.mxu0 %v5203
    %5360 = vmatpush1.msra.mxu0 %v5202
    %5361 = vmatprep.subr.mxu0 %v5211
    %5362 = vmatpush1.msra.mxu0 %v5210
    %5363 = vmatprep.subr.mxu0 %v5219
    %5364 = vmatpush1.msra.mxu0 %v5218
    %5365 = vmatprep.subr.mxu0 %v5227
    %5366 = vmatpush1.msra.mxu0 %v5226
    %5367 = vmatprep.mubr.f32.mxu0 %v4965
    %5368 = vmatmul.mubr.f32.gmra.mrb[0].mxu0 %v4964
    %v5369 = vpop.f32.mrb[0].mxu0
    %v5370 = vadd.f32 0.0, %v5369
    %v5371 = vpop.f32.mrb[0].mxu0
    %v5372 = vadd.f32 0.0, %v5371
    %5373 = vdwg.mxu0
    %5374 = vmatprep.subr.mxu0 %v4981
    %5375 = vmatpush1.msra.mxu0 %v4980
    %5376 = vmatprep.subr.mxu0 %v4989
    %5377 = vmatpush1.msra.mxu0 %v4988
    %5378 = vmatprep.subr.mxu0 %v4997
    %5379 = vmatpush1.msra.mxu0 %v4996
    %5380 = vmatprep.subr.mxu0 %v5005
    %5381 = vmatpush1.msra.mxu0 %v5004
    %5382 = vmatprep.subr.mxu0 %v5013
    %5383 = vmatpush1.msra.mxu0 %v5012
    %5384 = vmatprep.subr.mxu0 %v5021
    %5385 = vmatpush1.msra.mxu0 %v5020
    %5386 = vmatprep.subr.mxu0 %v5029
    %5387 = vmatpush1.msra.mxu0 %v5028
    %5388 = vmatprep.subr.mxu0 %v5037
    %5389 = vmatpush1.msra.mxu0 %v5036
    %5390 = vmatprep.subr.mxu0 %v5045
    %5391 = vmatpush1.msra.mxu0 %v5044
    %5392 = vmatprep.subr.mxu0 %v5053
    %5393 = vmatpush1.msra.mxu0 %v5052
    %5394 = vmatprep.subr.mxu0 %v5061
    %5395 = vmatpush1.msra.mxu0 %v5060
    %5396 = vmatprep.subr.mxu0 %v5069
    %5397 = vmatpush1.msra.mxu0 %v5068
    %5398 = vmatprep.subr.mxu0 %v5077
    %5399 = vmatpush1.msra.mxu0 %v5076
    %5400 = vmatprep.subr.mxu0 %v5085
    %5401 = vmatpush1.msra.mxu0 %v5084
    %5402 = vmatprep.subr.mxu0 %v5093
    %5403 = vmatpush1.msra.mxu0 %v5092
    %5404 = vmatprep.subr.mxu0 %v5101
    %5405 = vmatpush1.msra.mxu0 %v5100
    %5406 = vmatprep.subr.mxu0 %v5109
    %5407 = vmatpush1.msra.mxu0 %v5108
    %5408 = vmatprep.subr.mxu0 %v5117
    %5409 = vmatpush1.msra.mxu0 %v5116
    %5410 = vmatprep.subr.mxu0 %v5125
    %5411 = vmatpush1.msra.mxu0 %v5124
    %5412 = vmatprep.subr.mxu0 %v5133
    %5413 = vmatpush1.msra.mxu0 %v5132
    %5414 = vmatprep.subr.mxu0 %v5141
    %5415 = vmatpush1.msra.mxu0 %v5140
    %5416 = vmatprep.subr.mxu0 %v5149
    %5417 = vmatpush1.msra.mxu0 %v5148
    %5418 = vmatprep.subr.mxu0 %v5157
    %5419 = vmatpush1.msra.mxu0 %v5156
    %5420 = vmatprep.subr.mxu0 %v5165
    %5421 = vmatpush1.msra.mxu0 %v5164
    %5422 = vmatprep.subr.mxu0 %v5173
    %5423 = vmatpush1.msra.mxu0 %v5172
    %5424 = vmatprep.subr.mxu0 %v5181
    %5425 = vmatpush1.msra.mxu0 %v5180
    %5426 = vmatprep.subr.mxu0 %v5189
    %5427 = vmatpush1.msra.mxu0 %v5188
    %5428 = vmatprep.subr.mxu0 %v5197
    %5429 = vmatpush1.msra.mxu0 %v5196
    %5430 = vmatprep.subr.mxu0 %v5205
    %5431 = vmatpush1.msra.mxu0 %v5204
    %5432 = vmatprep.subr.mxu0 %v5213
    %5433 = vmatpush1.msra.mxu0 %v5212
    %5434 = vmatprep.subr.mxu0 %v5221
    %5435 = vmatpush1.msra.mxu0 %v5220
    %5436 = vmatprep.subr.mxu0 %v5229
    %5437 = vmatpush1.msra.mxu0 %v5228
    %5438 = vmatprep.mubr.f32.mxu0 %v4965
    %5439 = vmatmul.mubr.f32.gmra.mrb[0].mxu0 %v4964
    %v5440 = vpop.f32.mrb[0].mxu0
    %v5441 = vadd.f32 0.0, %v5440
    %v5442 = vpop.f32.mrb[0].mxu0
    %v5443 = vadd.f32 0.0, %v5442
    %5444 = vdwg.mxu0
    %5445 = vmatprep.subr.mxu0 %v4983
    %5446 = vmatpush1.msra.mxu0 %v4982
    %5447 = vmatprep.subr.mxu0 %v4991
    %5448 = vmatpush1.msra.mxu0 %v4990
    %5449 = vmatprep.subr.mxu0 %v4999
    %5450 = vmatpush1.msra.mxu0 %v4998
    %5451 = vmatprep.subr.mxu0 %v5007
    %5452 = vmatpush1.msra.mxu0 %v5006
    %5453 = vmatprep.subr.mxu0 %v5015
    %5454 = vmatpush1.msra.mxu0 %v5014
    %5455 = vmatprep.subr.mxu0 %v5023
    %5456 = vmatpush1.msra.mxu0 %v5022
    %5457 = vmatprep.subr.mxu0 %v5031
    %5458 = vmatpush1.msra.mxu0 %v5030
    %5459 = vmatprep.subr.mxu0 %v5039
    %5460 = vmatpush1.msra.mxu0 %v5038
    %5461 = vmatprep.subr.mxu0 %v5047
    %5462 = vmatpush1.msra.mxu0 %v5046
    %5463 = vmatprep.subr.mxu0 %v5055
    %5464 = vmatpush1.msra.mxu0 %v5054
    %5465 = vmatprep.subr.mxu0 %v5063
    %5466 = vmatpush1.msra.mxu0 %v5062
    %5467 = vmatprep.subr.mxu0 %v5071
    %5468 = vmatpush1.msra.mxu0 %v5070
    %5469 = vmatprep.subr.mxu0 %v5079
    %5470 = vmatpush1.msra.mxu0 %v5078
    %5471 = vmatprep.subr.mxu0 %v5087
    %5472 = vmatpush1.msra.mxu0 %v5086
    %5473 = vmatprep.subr.mxu0 %v5095
    %5474 = vmatpush1.msra.mxu0 %v5094
    %5475 = vmatprep.subr.mxu0 %v5103
    %5476 = vmatpush1.msra.mxu0 %v5102
    %5477 = vmatprep.subr.mxu0 %v5111
    %5478 = vmatpush1.msra.mxu0 %v5110
    %5479 = vmatprep.subr.mxu0 %v5119
    %5480 = vmatpush1.msra.mxu0 %v5118
    %5481 = vmatprep.subr.mxu0 %v5127
    %5482 = vmatpush1.msra.mxu0 %v5126
    %5483 = vmatprep.subr.mxu0 %v5135
    %5484 = vmatpush1.msra.mxu0 %v5134
    %5485 = vmatprep.subr.mxu0 %v5143
    %5486 = vmatpush1.msra.mxu0 %v5142
    %5487 = vmatprep.subr.mxu0 %v5151
    %5488 = vmatpush1.msra.mxu0 %v5150
    %5489 = vmatprep.subr.mxu0 %v5159
    %5490 = vmatpush1.msra.mxu0 %v5158
    %5491 = vmatprep.subr.mxu0 %v5167
    %5492 = vmatpush1.msra.mxu0 %v5166
    %5493 = vmatprep.subr.mxu0 %v5175
    %5494 = vmatpush1.msra.mxu0 %v5174
    %5495 = vmatprep.subr.mxu0 %v5183
    %5496 = vmatpush1.msra.mxu0 %v5182
    %5497 = vmatprep.subr.mxu0 %v5191
    %5498 = vmatpush1.msra.mxu0 %v5190
    %5499 = vmatprep.subr.mxu0 %v5199
    %5500 = vmatpush1.msra.mxu0 %v5198
    %5501 = vmatprep.subr.mxu0 %v5207
    %5502 = vmatpush1.msra.mxu0 %v5206
    %5503 = vmatprep.subr.mxu0 %v5215
    %5504 = vmatpush1.msra.mxu0 %v5214
    %5505 = vmatprep.subr.mxu0 %v5223
    %5506 = vmatpush1.msra.mxu0 %v5222
    %5507 = vmatprep.subr.mxu0 %v5231
    %5508 = vmatpush1.msra.mxu0 %v5230
    %5509 = vmatprep.mubr.f32.mxu0 %v4965
    %5510 = vmatmul.mubr.f32.gmra.mrb[0].mxu0 %v4964
    %v5511 = vpop.f32.mrb[0].mxu0
    %v5512 = vadd.f32 0.0, %v5511
    %v5513 = vpop.f32.mrb[0].mxu0
    %v5514 = vadd.f32 0.0, %v5513
    %5515 = vdwg.mxu0
    %v5516 = vadd.f32 %v4968, %v5299
    %v5517 = vadd.f32 %v4969, %v5301
    %v5518 = vadd.f32 %v4970, %v5370
    %v5519 = vadd.f32 %v4971, %v5372
    %v5520 = vadd.f32 %v4972, %v5441
    %v5521 = vadd.f32 %v4973, %v5443
    %v5522 = vadd.f32 %v4974, %v5512
    %v5523 = vadd.f32 %v4975, %v5514
    %v5524 = vxor.u32 %v5516, 2147483648
    %v5525 = vxor.u32 %v5517, 2147483648
    %v5526 = vmul.f32 %v5524, 1.442695
    %v5527 = vpow.pop %v5526
    %v5528 = vmul.f32 %v5525, 1.442695
    %v5529 = vpow.pop %v5528
    %v5530 = vadd.f32 %v5527, 1.0
    %v5531 = vadd.f32 %v5529, 1.0
    %v5532 = vrcp.pop %v5530
    %v5533 = vmul.f32 1.0, %v5532
    %v5534 = vrcp.pop %v5531
    %v5535 = vmul.f32 1.0, %v5534
    %v5536 = vxor.u32 %v5518, 2147483648
    %v5537 = vxor.u32 %v5519, 2147483648
    %v5538 = vmul.f32 %v5536, 1.442695
    %v5539 = vpow.pop %v5538
    %v5540 = vmul.f32 %v5537, 1.442695
    %v5541 = vpow.pop %v5540
    %v5542 = vadd.f32 %v5539, 1.0
    %v5543 = vadd.f32 %v5541, 1.0
    %v5544 = vrcp.pop %v5542
    %v5545 = vmul.f32 1.0, %v5544
    %v5546 = vrcp.pop %v5543
    %v5547 = vmul.f32 1.0, %v5546
    %v5548 = vtanh.pop %v5520
    %v5549 = vtanh.pop %v5521
    %v5550 = vxor.u32 %v5522, 2147483648
    %v5551 = vxor.u32 %v5523, 2147483648
    %v5552 = vmul.f32 %v5550, 1.442695
    %v5553 = vpow.pop %v5552
    %v5554 = vmul.f32 %v5551, 1.442695
    %v5555 = vpow.pop %v5554
    %v5556 = vadd.f32 %v5553, 1.0
    %v5557 = vadd.f32 %v5555, 1.0
    %v5558 = vrcp.pop %v5556
    %v5559 = vmul.f32 1.0, %v5558
    %v5560 = vrcp.pop %v5557
    %v5561 = vmul.f32 1.0, %v5560
    %v5562 = vmul.f32 %v5545, %v4960
    %v5563 = vmul.f32 %v5547, %v4961
    %v5564 = vmul.f32 %v5533, %v5548
    %v5565 = vmul.f32 %v5535, %v5549
    %v5566 = vadd.f32 %v5562, %v5564
    %v5567 = vadd.f32 %v5563, %v5565
    %v5568 = vtanh.pop %v5566
    %v5569 = vtanh.pop %v5567
    %v5570 = vmul.f32 %v5559, %v5568
    %v5571 = vmul.f32 %v5561, %v5569
    %5572 = vst [vmem:[#allocation3 + $0x70] sm:$0xff] %v5570
    %5573 = vst [vmem:[#allocation3 + $0x8] sm:$0xff] %v5571
    %v5574 = vld [vmem:[#allocation3] sm:$0xff]
    %v5575 = vld [vmem:[#allocation3 + $0x8] sm:$0xff]
    %v5576 = vld [vmem:[#allocation3 + $0x10] sm:$0xff]
    %v5577 = vld [vmem:[#allocation3 + $0x18] sm:$0xff]
    %v5578 = vld [vmem:[#allocation3 + $0x20] sm:$0xff]
    %v5579 = vld [vmem:[#allocation3 + $0x28] sm:$0xff]
    %v5580 = vld [vmem:[#allocation3 + $0x30] sm:$0xff]
    %v5581 = vld [vmem:[#allocation3 + $0x38] sm:$0xff]
    %v5582 = vld [vmem:[#allocation3 + $0x40] sm:$0xff]
    %v5583 = vld [vmem:[#allocation3 + $0x48] sm:$0xff]
    %v5584 = vld [vmem:[#allocation3 + $0x50] sm:$0xff]
    %v5585 = vld [vmem:[#allocation3 + $0x58] sm:$0xff]
    %v5586 = vld [vmem:[#allocation3 + $0x60] sm:$0xff]
    %v5587 = vld [vmem:[#allocation3 + $0x68] sm:$0xff]
    %v5588 = vld [vmem:[#allocation3 + $0x70] sm:$0xff]
    %v5589 = vld [vmem:[#allocation3 + $0x78] sm:$0xff]
    %v5590 = vld [vmem:[#allocation6] sm:$0xff]
    %v5591 = vld [vmem:[#allocation6 + $0x8] sm:$0xff]
    %v5592 = vld [vmem:[#allocation6 + $0x10] sm:$0xff]
    %v5593 = vld [vmem:[#allocation6 + $0x18] sm:$0xff]
    %v5594 = vld [vmem:[#allocation6 + $0x20] sm:$0xff]
    %v5595 = vld [vmem:[#allocation6 + $0x28] sm:$0xff]
    %v5596 = vld [vmem:[#allocation6 + $0x30] sm:$0xff]
    %v5597 = vld [vmem:[#allocation6 + $0x38] sm:$0xff]
    %v5598 = vld [vmem:[#allocation6 + $0x40] sm:$0xff]
    %v5599 = vld [vmem:[#allocation6 + $0x48] sm:$0xff]
    %v5600 = vld [vmem:[#allocation6 + $0x50] sm:$0xff]
    %v5601 = vld [vmem:[#allocation6 + $0x58] sm:$0xff]
    %v5602 = vld [vmem:[#allocation6 + $0x60] sm:$0xff]
    %v5603 = vld [vmem:[#allocation6 + $0x68] sm:$0xff]
    %v5604 = vld [vmem:[#allocation6 + $0x70] sm:$0xff]
    %v5605 = vld [vmem:[#allocation6 + $0x78] sm:$0xff]
    %v5606 = vld [vmem:[#allocation6 + $0x80] sm:$0xff]
    %v5607 = vld [vmem:[#allocation6 + $0x88] sm:$0xff]
    %v5608 = vld [vmem:[#allocation6 + $0x90] sm:$0xff]
    %v5609 = vld [vmem:[#allocation6 + $0x98] sm:$0xff]
    %v5610 = vld [vmem:[#allocation6 + $0xa0] sm:$0xff]
    %v5611 = vld [vmem:[#allocation6 + $0xa8] sm:$0xff]
    %v5612 = vld [vmem:[#allocation6 + $0xb0] sm:$0xff]
    %v5613 = vld [vmem:[#allocation6 + $0xb8] sm:$0xff]
    %v5614 = vld [vmem:[#allocation6 + $0xc0] sm:$0xff]
    %v5615 = vld [vmem:[#allocation6 + $0xc8] sm:$0xff]
    %v5616 = vld [vmem:[#allocation6 + $0xd0] sm:$0xff]
    %v5617 = vld [vmem:[#allocation6 + $0xd8] sm:$0xff]
    %v5618 = vld [vmem:[#allocation6 + $0xe0] sm:$0xff]
    %v5619 = vld [vmem:[#allocation6 + $0xe8] sm:$0xff]
    %v5620 = vld [vmem:[#allocation6 + $0xf0] sm:$0xff]
    %v5621 = vld [vmem:[#allocation6 + $0xf8] sm:$0xff]
    %v5622 = vld [vmem:[#allocation6 + $0x100] sm:$0xff]
    %v5623 = vld [vmem:[#allocation6 + $0x108] sm:$0xff]
    %v5624 = vld [vmem:[#allocation6 + $0x110] sm:$0xff]
    %v5625 = vld [vmem:[#allocation6 + $0x118] sm:$0xff]
    %v5626 = vld [vmem:[#allocation6 + $0x120] sm:$0xff]
    %v5627 = vld [vmem:[#allocation6 + $0x128] sm:$0xff]
    %v5628 = vld [vmem:[#allocation6 + $0x130] sm:$0xff]
    %v5629 = vld [vmem:[#allocation6 + $0x138] sm:$0xff]
    %v5630 = vld [vmem:[#allocation6 + $0x140] sm:$0xff]
    %v5631 = vld [vmem:[#allocation6 + $0x148] sm:$0xff]
    %v5632 = vld [vmem:[#allocation6 + $0x150] sm:$0xff]
    %v5633 = vld [vmem:[#allocation6 + $0x158] sm:$0xff]
    %v5634 = vld [vmem:[#allocation6 + $0x160] sm:$0xff]
    %v5635 = vld [vmem:[#allocation6 + $0x168] sm:$0xff]
    %v5636 = vld [vmem:[#allocation6 + $0x170] sm:$0xff]
    %v5637 = vld [vmem:[#allocation6 + $0x178] sm:$0xff]
    %v5638 = vld [vmem:[#allocation6 + $0x180] sm:$0xff]
    %v5639 = vld [vmem:[#allocation6 + $0x188] sm:$0xff]
    %v5640 = vld [vmem:[#allocation6 + $0x190] sm:$0xff]
    %v5641 = vld [vmem:[#allocation6 + $0x198] sm:$0xff]
    %v5642 = vld [vmem:[#allocation6 + $0x1a0] sm:$0xff]
    %v5643 = vld [vmem:[#allocation6 + $0x1a8] sm:$0xff]
    %v5644 = vld [vmem:[#allocation6 + $0x1b0] sm:$0xff]
    %v5645 = vld [vmem:[#allocation6 + $0x1b8] sm:$0xff]
    %v5646 = vld [vmem:[#allocation6 + $0x1c0] sm:$0xff]
    %v5647 = vld [vmem:[#allocation6 + $0x1c8] sm:$0xff]
    %v5648 = vld [vmem:[#allocation6 + $0x1d0] sm:$0xff]
    %v5649 = vld [vmem:[#allocation6 + $0x1d8] sm:$0xff]
    %v5650 = vld [vmem:[#allocation6 + $0x1e0] sm:$0xff]
    %v5651 = vld [vmem:[#allocation6 + $0x1e8] sm:$0xff]
    %v5652 = vld [vmem:[#allocation6 + $0x1f0] sm:$0xff]
    %v5653 = vld [vmem:[#allocation6 + $0x1f8] sm:$0xff]
    %5654 = vmatprep.subr.mxu0 %v5591
    %5655 = vmatpush1.msra.mxu0 %v5590
    %5656 = vmatprep.subr.mxu0 %v5593
    %5657 = vmatpush1.msra.mxu0 %v5592
    %5658 = vmatprep.subr.mxu0 %v5595
    %5659 = vmatpush1.msra.mxu0 %v5594
    %5660 = vmatprep.subr.mxu0 %v5597
    %5661 = vmatpush1.msra.mxu0 %v5596
    %5662 = vmatprep.subr.mxu0 %v5599
    %5663 = vmatpush1.msra.mxu0 %v5598
    %5664 = vmatprep.subr.mxu0 %v5601
    %5665 = vmatpush1.msra.mxu0 %v5600
    %5666 = vmatprep.subr.mxu0 %v5603
    %5667 = vmatpush1.msra.mxu0 %v5602
    %5668 = vmatprep.subr.mxu0 %v5605
    %5669 = vmatpush1.msra.mxu0 %v5604
    %5670 = vmatprep.subr.mxu0 %v5607
    %5671 = vmatpush1.msra.mxu0 %v5606
    %5672 = vmatprep.subr.mxu0 %v5609
    %5673 = vmatpush1.msra.mxu0 %v5608
    %5674 = vmatprep.subr.mxu0 %v5611
    %5675 = vmatpush1.msra.mxu0 %v5610
    %5676 = vmatprep.subr.mxu0 %v5613
    %5677 = vmatpush1.msra.mxu0 %v5612
    %5678 = vmatprep.subr.mxu0 %v5615
    %5679 = vmatpush1.msra.mxu0 %v5614
    %5680 = vmatprep.subr.mxu0 %v5617
    %5681 = vmatpush1.msra.mxu0 %v5616
    %5682 = vmatprep.subr.mxu0 %v5619
    %5683 = vmatpush1.msra.mxu0 %v5618
    %5684 = vmatprep.subr.mxu0 %v5621
    %5685 = vmatpush1.msra.mxu0 %v5620
    %5686 = vmatprep.subr.mxu0 %v5623
    %5687 = vmatpush1.msra.mxu0 %v5622
    %5688 = vmatprep.subr.mxu0 %v5625
    %5689 = vmatpush1.msra.mxu0 %v5624
    %5690 = vmatprep.subr.mxu0 %v5627
    %5691 = vmatpush1.msra.mxu0 %v5626
    %5692 = vmatprep.subr.mxu0 %v5629
    %5693 = vmatpush1.msra.mxu0 %v5628
    %5694 = vmatprep.subr.mxu0 %v5631
    %5695 = vmatpush1.msra.mxu0 %v5630
    %5696 = vmatprep.subr.mxu0 %v5633
    %5697 = vmatpush1.msra.mxu0 %v5632
    %5698 = vmatprep.subr.mxu0 %v5635
    %5699 = vmatpush1.msra.mxu0 %v5634
    %5700 = vmatprep.subr.mxu0 %v5637
    %5701 = vmatpush1.msra.mxu0 %v5636
    %5702 = vmatprep.subr.mxu0 %v5639
    %5703 = vmatpush1.msra.mxu0 %v5638
    %5704 = vmatprep.subr.mxu0 %v5641
    %5705 = vmatpush1.msra.mxu0 %v5640
    %5706 = vmatprep.subr.mxu0 %v5643
    %5707 = vmatpush1.msra.mxu0 %v5642
    %5708 = vmatprep.subr.mxu0 %v5645
    %5709 = vmatpush1.msra.mxu0 %v5644
    %5710 = vmatprep.subr.mxu0 %v5647
    %5711 = vmatpush1.msra.mxu0 %v5646
    %5712 = vmatprep.subr.mxu0 %v5649
    %5713 = vmatpush1.msra.mxu0 %v5648
    %5714 = vmatprep.subr.mxu0 %v5651
    %5715 = vmatpush1.msra.mxu0 %v5650
    %5716 = vmatprep.subr.mxu0 %v5653
    %5717 = vmatpush1.msra.mxu0 %v5652
    %5718 = vmatprep.mubr.f32.mxu0 %v5575
    %5719 = vmatmul.mubr.f32.gmra.mrb[0].mxu0 %v5574
    %v5720 = vpop.f32.mrb[0].mxu0
    %v5721 = vadd.f32 0.0, %v5720
    %v5722 = vpop.f32.mrb[0].mxu0
    %v5723 = vadd.f32 0.0, %v5722
    %5724 = vmatprep.mubr.f32.mxu0 %v5577
    %5725 = vmatmul.mubr.f32.gmra.mrb[0].mxu0 %v5576
    %v5726 = vpop.f32.mrb[0].mxu0
    %v5727 = vadd.f32 0.0, %v5726
    %v5728 = vpop.f32.mrb[0].mxu0
    %v5729 = vadd.f32 0.0, %v5728
    %5730 = vmatprep.mubr.f32.mxu0 %v5579
    %5731 = vmatmul.mubr.f32.gmra.mrb[0].mxu0 %v5578
    %v5732 = vpop.f32.mrb[0].mxu0
    %v5733 = vadd.f32 0.0, %v5732
    %v5734 = vpop.f32.mrb[0].mxu0
    %v5735 = vadd.f32 0.0, %v5734
    %5736 = vmatprep.mubr.f32.mxu0 %v5581
    %5737 = vmatmul.mubr.f32.gmra.mrb[0].mxu0 %v5580
    %v5738 = vpop.f32.mrb[0].mxu0
    %v5739 = vadd.f32 0.0, %v5738
    %v5740 = vpop.f32.mrb[0].mxu0
    %v5741 = vadd.f32 0.0, %v5740
    %5742 = vmatprep.mubr.f32.mxu0 %v5583
    %5743 = vmatmul.mubr.f32.gmra.mrb[0].mxu0 %v5582
    %v5744 = vpop.f32.mrb[0].mxu0
    %v5745 = vadd.f32 0.0, %v5744
    %v5746 = vpop.f32.mrb[0].mxu0
    %v5747 = vadd.f32 0.0, %v5746
    %5748 = vmatprep.mubr.f32.mxu0 %v5585
    %5749 = vmatmul.mubr.f32.gmra.mrb[0].mxu0 %v5584
    %v5750 = vpop.f32.mrb[0].mxu0
    %v5751 = vadd.f32 0.0, %v5750
    %v5752 = vpop.f32.mrb[0].mxu0
    %v5753 = vadd.f32 0.0, %v5752
    %5754 = vmatprep.mubr.f32.mxu0 %v5587
    %5755 = vmatmul.mubr.f32.gmra.mrb[0].mxu0 %v5586
    %v5756 = vpop.f32.mrb[0].mxu0
    %v5757 = vadd.f32 0.0, %v5756
    %v5758 = vpop.f32.mrb[0].mxu0
    %v5759 = vadd.f32 0.0, %v5758
    %5760 = vmatprep.mubr.f32.mxu0 %v5589
    %5761 = vmatmul.mubr.f32.gmra.mrb[0].mxu0 %v5588
    %v5762 = vpop.f32.mrb[0].mxu0
    %v5763 = vadd.f32 0.0, %v5762
    %v5764 = vpop.f32.mrb[0].mxu0
    %v5765 = vadd.f32 0.0, %v5764
    %5766 = vdwg.mxu0
    %v5767 = vtanh.pop %v5721
    %v5768 = vtanh.pop %v5723
    %v5769 = vtanh.pop %v5727
    %v5770 = vtanh.pop %v5729
    %v5771 = vtanh.pop %v5733
    %v5772 = vtanh.pop %v5735
    %v5773 = vtanh.pop %v5739
    %v5774 = vtanh.pop %v5741
    %v5775 = vtanh.pop %v5745
    %v5776 = vtanh.pop %v5747
    %v5777 = vtanh.pop %v5751
    %v5778 = vtanh.pop %v5753
    %v5779 = vtanh.pop %v5757
    %v5780 = vtanh.pop %v5759
    %v5781 = vtanh.pop %v5763
    %v5782 = vtanh.pop %v5765
    %v5783 = vld [vmem:[#allocation8] sm:$0xff]
    %v5784 = vld [vmem:[#allocation8 + $0x8] sm:$0xff]
    %v5785 = vld [vmem:[#allocation8 + $0x10] sm:$0xff]
    %v5786 = vld [vmem:[#allocation8 + $0x18] sm:$0xff]
    %v5787 = vld [vmem:[#allocation8 + $0x20] sm:$0xff]
    %v5788 = vld [vmem:[#allocation8 + $0x28] sm:$0xff]
    %v5789 = vld [vmem:[#allocation8 + $0x30] sm:$0xff]
    %v5790 = vld [vmem:[#allocation8 + $0x38] sm:$0xff]
    %v5791 = vld [vmem:[#allocation8 + $0x40] sm:$0xff]
    %v5792 = vld [vmem:[#allocation8 + $0x48] sm:$0xff]
    %v5793 = vld [vmem:[#allocation8 + $0x50] sm:$0xff]
    %v5794 = vld [vmem:[#allocation8 + $0x58] sm:$0xff]
    %v5795 = vld [vmem:[#allocation8 + $0x60] sm:$0xff]
    %v5796 = vld [vmem:[#allocation8 + $0x68] sm:$0xff]
    %v5797 = vld [vmem:[#allocation8 + $0x70] sm:$0xff]
    %v5798 = vld [vmem:[#allocation8 + $0x78] sm:$0xff]
    %v5799 = vld [vmem:[#allocation8 + $0x80] sm:$0xff]
    %v5800 = vld [vmem:[#allocation8 + $0x88] sm:$0xff]
    %v5801 = vld [vmem:[#allocation8 + $0x90] sm:$0xff]
    %v5802 = vld [vmem:[#allocation8 + $0x98] sm:$0xff]
    %v5803 = vld [vmem:[#allocation8 + $0xa0] sm:$0xff]
    %v5804 = vld [vmem:[#allocation8 + $0xa8] sm:$0xff]
    %v5805 = vld [vmem:[#allocation8 + $0xb0] sm:$0xff]
    %v5806 = vld [vmem:[#allocation8 + $0xb8] sm:$0xff]
    %v5807 = vld [vmem:[#allocation8 + $0xc0] sm:$0xff]
    %v5808 = vld [vmem:[#allocation8 + $0xc8] sm:$0xff]
    %v5809 = vld [vmem:[#allocation8 + $0xd0] sm:$0xff]
    %v5810 = vld [vmem:[#allocation8 + $0xd8] sm:$0xff]
    %v5811 = vld [vmem:[#allocation8 + $0xe0] sm:$0xff]
    %v5812 = vld [vmem:[#allocation8 + $0xe8] sm:$0xff]
    %v5813 = vld [vmem:[#allocation8 + $0xf0] sm:$0xff]
    %v5814 = vld [vmem:[#allocation8 + $0xf8] sm:$0xff]
    %5815 = vmatprep.subr.mxu0 0.0
    %5816 = vmatpush1.msra.mxu0 %v5783
    %5817 = vmatprep.subr.mxu0 0.0
    %5818 = vmatpush1.msra.mxu0 %v5784
    %5819 = vmatprep.subr.mxu0 0.0
    %5820 = vmatpush1.msra.mxu0 %v5785
    %5821 = vmatprep.subr.mxu0 0.0
    %5822 = vmatpush1.msra.mxu0 %v5786
    %5823 = vmatprep.subr.mxu0 0.0
    %5824 = vmatpush1.msra.mxu0 %v5787
    %5825 = vmatprep.subr.mxu0 0.0
    %5826 = vmatpush1.msra.mxu0 %v5788
    %5827 = vmatprep.subr.mxu0 0.0
    %5828 = vmatpush1.msra.mxu0 %v5789
    %5829 = vmatprep.subr.mxu0 0.0
    %5830 = vmatpush1.msra.mxu0 %v5790
    %5831 = vmatprep.subr.mxu0 0.0
    %5832 = vmatpush1.msra.mxu0 %v5791
    %5833 = vmatprep.subr.mxu0 0.0
    %5834 = vmatpush1.msra.mxu0 %v5792
    %5835 = vmatprep.subr.mxu0 0.0
    %5836 = vmatpush1.msra.mxu0 %v5793
    %5837 = vmatprep.subr.mxu0 0.0
    %5838 = vmatpush1.msra.mxu0 %v5794
    %5839 = vmatprep.subr.mxu0 0.0
    %5840 = vmatpush1.msra.mxu0 %v5795
    %5841 = vmatprep.subr.mxu0 0.0
    %5842 = vmatpush1.msra.mxu0 %v5796
    %5843 = vmatprep.subr.mxu0 0.0
    %5844 = vmatpush1.msra.mxu0 %v5797
    %5845 = vmatprep.subr.mxu0 0.0
    %5846 = vmatpush1.msra.mxu0 %v5798
    %5847 = vmatprep.subr.mxu0 0.0
    %5848 = vmatpush1.msra.mxu0 %v5799
    %5849 = vmatprep.subr.mxu0 0.0
    %5850 = vmatpush1.msra.mxu0 %v5800
    %5851 = vmatprep.subr.mxu0 0.0
    %5852 = vmatpush1.msra.mxu0 %v5801
    %5853 = vmatprep.subr.mxu0 0.0
    %5854 = vmatpush1.msra.mxu0 %v5802
    %5855 = vmatprep.subr.mxu0 0.0
    %5856 = vmatpush1.msra.mxu0 %v5803
    %5857 = vmatprep.subr.mxu0 0.0
    %5858 = vmatpush1.msra.mxu0 %v5804
    %5859 = vmatprep.subr.mxu0 0.0
    %5860 = vmatpush1.msra.mxu0 %v5805
    %5861 = vmatprep.subr.mxu0 0.0
    %5862 = vmatpush1.msra.mxu0 %v5806
    %5863 = vmatprep.subr.mxu0 0.0
    %5864 = vmatpush1.msra.mxu0 %v5807
    %5865 = vmatprep.subr.mxu0 0.0
    %5866 = vmatpush1.msra.mxu0 %v5808
    %5867 = vmatprep.subr.mxu0 0.0
    %5868 = vmatpush1.msra.mxu0 %v5809
    %5869 = vmatprep.subr.mxu0 0.0
    %5870 = vmatpush1.msra.mxu0 %v5810
    %5871 = vmatprep.subr.mxu0 0.0
    %5872 = vmatpush1.msra.mxu0 %v5811
    %5873 = vmatprep.subr.mxu0 0.0
    %5874 = vmatpush1.msra.mxu0 %v5812
    %5875 = vmatprep.subr.mxu0 0.0
    %5876 = vmatpush1.msra.mxu0 %v5813
    %5877 = vmatprep.subr.mxu0 0.0
    %5878 = vmatpush1.msra.mxu0 %v5814
    %5879 = vmatprep.mubr.f32.mxu0 %v5768
    %5880 = vmatmul.mubr.f32.gmra.mrb[0].mxu0 %v5767
    %v5881 = vpop.f32.mrb[0].mxu0
    %v5882 = vadd.f32 0.0, %v5881
    %v5883 = vpop.f32.mrb[0].mxu0
    %5884 = vmatprep.mubr.f32.mxu0 %v5770
    %5885 = vmatmul.mubr.f32.gmra.mrb[0].mxu0 %v5769
    %v5886 = vpop.f32.mrb[0].mxu0
    %v5887 = vadd.f32 0.0, %v5886
    %v5888 = vpop.f32.mrb[0].mxu0
    %5889 = vmatprep.mubr.f32.mxu0 %v5772
    %5890 = vmatmul.mubr.f32.gmra.mrb[0].mxu0 %v5771
    %v5891 = vpop.f32.mrb[0].mxu0
    %v5892 = vadd.f32 0.0, %v5891
    %v5893 = vpop.f32.mrb[0].mxu0
    %5894 = vmatprep.mubr.f32.mxu0 %v5774
    %5895 = vmatmul.mubr.f32.gmra.mrb[0].mxu0 %v5773
    %v5896 = vpop.f32.mrb[0].mxu0
    %v5897 = vadd.f32 0.0, %v5896
    %v5898 = vpop.f32.mrb[0].mxu0
    %5899 = vmatprep.mubr.f32.mxu0 %v5776
    %5900 = vmatmul.mubr.f32.gmra.mrb[0].mxu0 %v5775
    %v5901 = vpop.f32.mrb[0].mxu0
    %v5902 = vadd.f32 0.0, %v5901
    %v5903 = vpop.f32.mrb[0].mxu0
    %5904 = vmatprep.mubr.f32.mxu0 %v5778
    %5905 = vmatmul.mubr.f32.gmra.mrb[0].mxu0 %v5777
    %v5906 = vpop.f32.mrb[0].mxu0
    %v5907 = vadd.f32 0.0, %v5906
    %v5908 = vpop.f32.mrb[0].mxu0
    %5909 = vmatprep.mubr.f32.mxu0 %v5780
    %5910 = vmatmul.mubr.f32.gmra.mrb[0].mxu0 %v5779
    %v5911 = vpop.f32.mrb[0].mxu0
    %v5912 = vadd.f32 0.0, %v5911
    %v5913 = vpop.f32.mrb[0].mxu0
    %5914 = vmatprep.mubr.f32.mxu0 %v5782
    %5915 = vmatmul.mubr.f32.gmra.mrb[0].mxu0 %v5781
    %v5916 = vpop.f32.mrb[0].mxu0
    %v5917 = vadd.f32 0.0, %v5916
    %v5918 = vpop.f32.mrb[0].mxu0
    %5919 = vdwg.mxu0
    %v5920 = vmax.f32 %v5882, %v5902
    %v5921 = vmax.f32 %v5887, %v5907
    %v5922 = vmax.f32 %v5892, %v5912
    %v5923 = vmax.f32 %v5897, %v5917
    %v5924 = vmax.f32 %v5920, %v5921
    %v5925 = vmax.f32 %v5922, %v5923
    %v5926 = vmax.f32 %v5924, %v5925
    %v5927 = vsub.f32 %v5882, %v5926
    %v5928 = vsub.f32 %v5887, %v5926
    %v5929 = vsub.f32 %v5892, %v5926
    %v5930 = vsub.f32 %v5897, %v5926
    %v5931 = vsub.f32 %v5902, %v5926
    %v5932 = vsub.f32 %v5907, %v5926
    %v5933 = vsub.f32 %v5912, %v5926
    %v5934 = vsub.f32 %v5917, %v5926
    %v5935 = vmul.f32 %v5927, 1.442695
    %v5936 = vpow.pop %v5935
    %v5937 = vmul.f32 %v5928, 1.442695
    %v5938 = vpow.pop %v5937
    %v5939 = vmul.f32 %v5929, 1.442695
    %v5940 = vpow.pop %v5939
    %v5941 = vmul.f32 %v5930, 1.442695
    %v5942 = vpow.pop %v5941
    %v5943 = vmul.f32 %v5931, 1.442695
    %v5944 = vpow.pop %v5943
    %v5945 = vmul.f32 %v5932, 1.442695
    %v5946 = vpow.pop %v5945
    %v5947 = vmul.f32 %v5933, 1.442695
    %v5948 = vpow.pop %v5947
    %v5949 = vmul.f32 %v5934, 1.442695
    %v5950 = vpow.pop %v5949
    %v5951 = vadd.f32 %v5936, %v5938
    %v5952 = vadd.f32 %v5951, %v5940
    %v5953 = vadd.f32 %v5952, %v5942
    %v5954 = vadd.f32 %v5953, %v5944
    %v5955 = vadd.f32 %v5954, %v5946
    %v5956 = vadd.f32 %v5955, %v5948
    %v5957 = vadd.f32 %v5956, %v5950
    %v5958 = vrcp.pop %v5957
    %v5959 = vmul.f32 %v5936, %v5958
    %v5960 = vmul.f32 %v5938, %v5958
    %v5961 = vmul.f32 %v5940, %v5958
    %v5962 = vmul.f32 %v5942, %v5958
    %v5963 = vmul.f32 %v5944, %v5958
    %v5964 = vmul.f32 %v5946, %v5958
    %v5965 = vmul.f32 %v5948, %v5958
    %v5966 = vmul.f32 %v5950, %v5958
    %v5967 = vld [vmem:[%s6] sm:$0xff]
    %v5968 = vld [vmem:[%s6 + $0x8] sm:$0xff]
    %v5969 = vld [vmem:[%s6 + $0x10] sm:$0xff]
    %v5970 = vld [vmem:[%s6 + $0x18] sm:$0xff]
    %v5971 = vld [vmem:[%s6 + $0x20] sm:$0xff]
    %v5972 = vld [vmem:[%s6 + $0x28] sm:$0xff]
    %v5973 = vld [vmem:[%s6 + $0x30] sm:$0xff]
    %v5974 = vld [vmem:[%s6 + $0x38] sm:$0xff]
    %v5975 = vld [vmem:[%s6 + $0x40] sm:$0xff]
    %v5976 = vld [vmem:[%s6 + $0x48] sm:$0xff]
    %v5977 = vld [vmem:[%s6 + $0x50] sm:$0xff]
    %v5978 = vld [vmem:[%s6 + $0x58] sm:$0xff]
    %v5979 = vld [vmem:[%s6 + $0x60] sm:$0xff]
    %v5980 = vld [vmem:[%s6 + $0x68] sm:$0xff]
    %v5981 = vld [vmem:[%s6 + $0x70] sm:$0xff]
    %v5982 = vld [vmem:[%s6 + $0x78] sm:$0xff]
    %5983 = vmatprep.subr.mxu0 0.0
    %5984 = vmatpush1.msra.mxu0 %v5967
    %5985 = vmatprep.subr.mxu0 0.0
    %5986 = vmatpush1.msra.mxu0 %v5968
    %5987 = vmatprep.subr.mxu0 0.0
    %5988 = vmatpush1.msra.mxu0 %v5969
    %5989 = vmatprep.subr.mxu0 0.0
    %5990 = vmatpush1.msra.mxu0 %v5970
    %5991 = vmatprep.subr.mxu0 0.0
    %5992 = vmatpush1.msra.mxu0 %v5971
    %5993 = vmatprep.subr.mxu0 0.0
    %5994 = vmatpush1.msra.mxu0 %v5972
    %5995 = vmatprep.subr.mxu0 0.0
    %5996 = vmatpush1.msra.mxu0 %v5973
    %5997 = vmatprep.subr.mxu0 0.0
    %5998 = vmatpush1.msra.mxu0 %v5974
    %5999 = vmatprep.subr.mxu0 0.0
    %6000 = vmatpush1.msra.mxu0 %v5975
    %6001 = vmatprep.subr.mxu0 0.0
    %6002 = vmatpush1.msra.mxu0 %v5976
    %6003 = vmatprep.subr.mxu0 0.0
    %6004 = vmatpush1.msra.mxu0 %v5977
    %6005 = vmatprep.subr.mxu0 0.0
    %6006 = vmatpush1.msra.mxu0 %v5978
    %6007 = vmatprep.subr.mxu0 0.0
    %6008 = vmatpush1.msra.mxu0 %v5979
    %6009 = vmatprep.subr.mxu0 0.0
    %6010 = vmatpush1.msra.mxu0 %v5980
    %6011 = vmatprep.subr.mxu0 0.0
    %6012 = vmatpush1.msra.mxu0 %v5981
    %6013 = vmatprep.subr.mxu0 0.0
    %6014 = vmatpush1.msra.mxu0 %v5982
    %6015 = vmatprep.subr.mxu0 0.0
    %6016 = vmatpush1.msra.mxu0 0.0
    %6017 = vmatprep.subr.mxu0 0.0
    %6018 = vmatpush1.msra.mxu0 0.0
    %6019 = vmatprep.subr.mxu0 0.0
    %6020 = vmatpush1.msra.mxu0 0.0
    %6021 = vmatprep.subr.mxu0 0.0
    %6022 = vmatpush1.msra.mxu0 0.0
    %6023 = vmatprep.subr.mxu0 0.0
    %6024 = vmatpush1.msra.mxu0 0.0
    %6025 = vmatprep.subr.mxu0 0.0
    %6026 = vmatpush1.msra.mxu0 0.0
    %6027 = vmatprep.subr.mxu0 0.0
    %6028 = vmatpush1.msra.mxu0 0.0
    %6029 = vmatprep.subr.mxu0 0.0
    %6030 = vmatpush1.msra.mxu0 0.0
    %6031 = vmatprep.subr.mxu0 0.0
    %6032 = vmatpush1.msra.mxu0 0.0
    %6033 = vmatprep.subr.mxu0 0.0
    %6034 = vmatpush1.msra.mxu0 0.0
    %6035 = vmatprep.subr.mxu0 0.0
    %6036 = vmatpush1.msra.mxu0 0.0
    %6037 = vmatprep.subr.mxu0 0.0
    %6038 = vmatpush1.msra.mxu0 0.0
    %6039 = vmatprep.subr.mxu0 0.0
    %6040 = vmatpush1.msra.mxu0 0.0
    %6041 = vmatprep.subr.mxu0 0.0
    %6042 = vmatpush1.msra.mxu0 0.0
    %6043 = vmatprep.subr.mxu0 0.0
    %6044 = vmatpush1.msra.mxu0 0.0
    %6045 = vmatprep.subr.mxu0 0.0
    %6046 = vmatpush1.msra.mxu0 0.0
    %6047 = vmatprep.mubr.f32.mxu0 0.0
    %6048 = vmatmul.mubr.f32.gmra.mrb[0].mxu0 %v5959
    %v6049 = vpop.f32.mrb[0].mxu0
    %v6050 = vadd.f32 0.0, %v6049
    %v6051 = vpop.f32.mrb[0].mxu0
    %6052 = vmatprep.mubr.f32.mxu0 0.0
    %6053 = vmatmul.mubr.f32.gmra.mrb[0].mxu0 %v5960
    %v6054 = vpop.f32.mrb[0].mxu0
    %v6055 = vadd.f32 0.0, %v6054
    %v6056 = vpop.f32.mrb[0].mxu0
    %6057 = vmatprep.mubr.f32.mxu0 0.0
    %6058 = vmatmul.mubr.f32.gmra.mrb[0].mxu0 %v5961
    %v6059 = vpop.f32.mrb[0].mxu0
    %v6060 = vadd.f32 0.0, %v6059
    %v6061 = vpop.f32.mrb[0].mxu0
    %6062 = vmatprep.mubr.f32.mxu0 0.0
    %6063 = vmatmul.mubr.f32.gmra.mrb[0].mxu0 %v5962
    %v6064 = vpop.f32.mrb[0].mxu0
    %v6065 = vadd.f32 0.0, %v6064
    %v6066 = vpop.f32.mrb[0].mxu0
    %6067 = vmatprep.mubr.f32.mxu0 0.0
    %6068 = vmatmul.mubr.f32.gmra.mrb[0].mxu0 %v5963
    %v6069 = vpop.f32.mrb[0].mxu0
    %v6070 = vadd.f32 0.0, %v6069
    %v6071 = vpop.f32.mrb[0].mxu0
    %6072 = vmatprep.mubr.f32.mxu0 0.0
    %6073 = vmatmul.mubr.f32.gmra.mrb[0].mxu0 %v5964
    %v6074 = vpop.f32.mrb[0].mxu0
    %v6075 = vadd.f32 0.0, %v6074
    %v6076 = vpop.f32.mrb[0].mxu0
    %6077 = vmatprep.mubr.f32.mxu0 0.0
    %6078 = vmatmul.mubr.f32.gmra.mrb[0].mxu0 %v5965
    %v6079 = vpop.f32.mrb[0].mxu0
    %v6080 = vadd.f32 0.0, %v6079
    %v6081 = vpop.f32.mrb[0].mxu0
    %6082 = vmatprep.mubr.f32.mxu0 0.0
    %6083 = vmatmul.mubr.f32.gmra.mrb[0].mxu0 %v5966
    %v6084 = vpop.f32.mrb[0].mxu0
    %v6085 = vadd.f32 0.0, %v6084
    %v6086 = vpop.f32.mrb[0].mxu0
    %6087 = vdwg.mxu0
    %v6088 = vld [vmem:[#allocation9] sm:$0xff]
    %v6089 = vld [vmem:[#allocation9 + $0x8] sm:$0xff]
    %v6090 = vld [vmem:[#allocation9 + $0x10] sm:$0xff]
    %v6091 = vld [vmem:[#allocation9 + $0x18] sm:$0xff]
    %v6092 = vld [vmem:[#allocation9 + $0x20] sm:$0xff]
    %v6093 = vld [vmem:[#allocation9 + $0x28] sm:$0xff]
    %v6094 = vld [vmem:[#allocation9 + $0x30] sm:$0xff]
    %v6095 = vld [vmem:[#allocation9 + $0x38] sm:$0xff]
    %v6096 = vld [vmem:[#allocation9 + $0x40] sm:$0xff]
    %v6097 = vld [vmem:[#allocation9 + $0x48] sm:$0xff]
    %v6098 = vld [vmem:[#allocation9 + $0x50] sm:$0xff]
    %v6099 = vld [vmem:[#allocation9 + $0x58] sm:$0xff]
    %v6100 = vld [vmem:[#allocation9 + $0x60] sm:$0xff]
    %v6101 = vld [vmem:[#allocation9 + $0x68] sm:$0xff]
    %v6102 = vld [vmem:[#allocation9 + $0x70] sm:$0xff]
    %v6103 = vld [vmem:[#allocation9 + $0x78] sm:$0xff]
    %v6104 = vld [vmem:[#allocation9 + $0x80] sm:$0xff]
    %v6105 = vld [vmem:[#allocation9 + $0x88] sm:$0xff]
    %v6106 = vld [vmem:[#allocation9 + $0x90] sm:$0xff]
    %v6107 = vld [vmem:[#allocation9 + $0x98] sm:$0xff]
    %v6108 = vld [vmem:[#allocation9 + $0xa0] sm:$0xff]
    %v6109 = vld [vmem:[#allocation9 + $0xa8] sm:$0xff]
    %v6110 = vld [vmem:[#allocation9 + $0xb0] sm:$0xff]
    %v6111 = vld [vmem:[#allocation9 + $0xb8] sm:$0xff]
    %v6112 = vld [vmem:[#allocation9 + $0xc0] sm:$0xff]
    %v6113 = vld [vmem:[#allocation9 + $0xc8] sm:$0xff]
    %v6114 = vld [vmem:[#allocation9 + $0xd0] sm:$0xff]
    %v6115 = vld [vmem:[#allocation9 + $0xd8] sm:$0xff]
    %v6116 = vld [vmem:[#allocation9 + $0xe0] sm:$0xff]
    %v6117 = vld [vmem:[#allocation9 + $0xe8] sm:$0xff]
    %v6118 = vld [vmem:[#allocation9 + $0xf0] sm:$0xff]
    %v6119 = vld [vmem:[#allocation9 + $0xf8] sm:$0xff]
    %6120 = vmatprep.subr.mxu0 0.0
    %6121 = vmatpush1.msra.mxu0 %v6088
    %6122 = vmatprep.subr.mxu0 0.0
    %6123 = vmatpush1.msra.mxu0 %v6089
    %6124 = vmatprep.subr.mxu0 0.0
    %6125 = vmatpush1.msra.mxu0 %v6090
    %6126 = vmatprep.subr.mxu0 0.0
    %6127 = vmatpush1.msra.mxu0 %v6091
    %6128 = vmatprep.subr.mxu0 0.0
    %6129 = vmatpush1.msra.mxu0 %v6092
    %6130 = vmatprep.subr.mxu0 0.0
    %6131 = vmatpush1.msra.mxu0 %v6093
    %6132 = vmatprep.subr.mxu0 0.0
    %6133 = vmatpush1.msra.mxu0 %v6094
    %6134 = vmatprep.subr.mxu0 0.0
    %6135 = vmatpush1.msra.mxu0 %v6095
    %6136 = vmatprep.subr.mxu0 0.0
    %6137 = vmatpush1.msra.mxu0 %v6096
    %6138 = vmatprep.subr.mxu0 0.0
    %6139 = vmatpush1.msra.mxu0 %v6097
    %6140 = vmatprep.subr.mxu0 0.0
    %6141 = vmatpush1.msra.mxu0 %v6098
    %6142 = vmatprep.subr.mxu0 0.0
    %6143 = vmatpush1.msra.mxu0 %v6099
    %6144 = vmatprep.subr.mxu0 0.0
    %6145 = vmatpush1.msra.mxu0 %v6100
    %6146 = vmatprep.subr.mxu0 0.0
    %6147 = vmatpush1.msra.mxu0 %v6101
    %6148 = vmatprep.subr.mxu0 0.0
    %6149 = vmatpush1.msra.mxu0 %v6102
    %6150 = vmatprep.subr.mxu0 0.0
    %6151 = vmatpush1.msra.mxu0 %v6103
    %6152 = vmatprep.subr.mxu0 0.0
    %6153 = vmatpush1.msra.mxu0 %v6104
    %6154 = vmatprep.subr.mxu0 0.0
    %6155 = vmatpush1.msra.mxu0 %v6105
    %6156 = vmatprep.subr.mxu0 0.0
    %6157 = vmatpush1.msra.mxu0 %v6106
    %6158 = vmatprep.subr.mxu0 0.0
    %6159 = vmatpush1.msra.mxu0 %v6107
    %6160 = vmatprep.subr.mxu0 0.0
    %6161 = vmatpush1.msra.mxu0 %v6108
    %6162 = vmatprep.subr.mxu0 0.0
    %6163 = vmatpush1.msra.mxu0 %v6109
    %6164 = vmatprep.subr.mxu0 0.0
    %6165 = vmatpush1.msra.mxu0 %v6110
    %6166 = vmatprep.subr.mxu0 0.0
    %6167 = vmatpush1.msra.mxu0 %v6111
    %6168 = vmatprep.subr.mxu0 0.0
    %6169 = vmatpush1.msra.mxu0 %v6112
    %6170 = vmatprep.subr.mxu0 0.0
    %6171 = vmatpush1.msra.mxu0 %v6113
    %6172 = vmatprep.subr.mxu0 0.0
    %6173 = vmatpush1.msra.mxu0 %v6114
    %6174 = vmatprep.subr.mxu0 0.0
    %6175 = vmatpush1.msra.mxu0 %v6115
    %6176 = vmatprep.subr.mxu0 0.0
    %6177 = vmatpush1.msra.mxu0 %v6116
    %6178 = vmatprep.subr.mxu0 0.0
    %6179 = vmatpush1.msra.mxu0 %v6117
    %6180 = vmatprep.subr.mxu0 0.0
    %6181 = vmatpush1.msra.mxu0 %v6118
    %6182 = vmatprep.subr.mxu0 0.0
    %6183 = vmatpush1.msra.mxu0 %v6119
    %6184 = vmatprep.mubr.f32.mxu0 %v5575
    %6185 = vmatmul.mubr.f32.gmra.mrb[0].mxu0 %v5574
    %v6186 = vpop.f32.mrb[0].mxu0
    %v6187 = vadd.f32 0.0, %v6186
    %v6188 = vpop.f32.mrb[0].mxu0
    %6189 = vmatprep.mubr.f32.mxu0 %v5577
    %6190 = vmatmul.mubr.f32.gmra.mrb[0].mxu0 %v5576
    %v6191 = vpop.f32.mrb[0].mxu0
    %v6192 = vadd.f32 0.0, %v6191
    %v6193 = vpop.f32.mrb[0].mxu0
    %6194 = vmatprep.mubr.f32.mxu0 %v5579
    %6195 = vmatmul.mubr.f32.gmra.mrb[0].mxu0 %v5578
    %v6196 = vpop.f32.mrb[0].mxu0
    %v6197 = vadd.f32 0.0, %v6196
    %v6198 = vpop.f32.mrb[0].mxu0
    %6199 = vmatprep.mubr.f32.mxu0 %v5581
    %6200 = vmatmul.mubr.f32.gmra.mrb[0].mxu0 %v5580
    %v6201 = vpop.f32.mrb[0].mxu0
    %v6202 = vadd.f32 0.0, %v6201
    %v6203 = vpop.f32.mrb[0].mxu0
    %6204 = vmatprep.mubr.f32.mxu0 %v5583
    %6205 = vmatmul.mubr.f32.gmra.mrb[0].mxu0 %v5582
    %v6206 = vpop.f32.mrb[0].mxu0
    %v6207 = vadd.f32 0.0, %v6206
    %v6208 = vpop.f32.mrb[0].mxu0
    %6209 = vmatprep.mubr.f32.mxu0 %v5585
    %6210 = vmatmul.mubr.f32.gmra.mrb[0].mxu0 %v5584
    %v6211 = vpop.f32.mrb[0].mxu0
    %v6212 = vadd.f32 0.0, %v6211
    %v6213 = vpop.f32.mrb[0].mxu0
    %6214 = vmatprep.mubr.f32.mxu0 %v5587
    %6215 = vmatmul.mubr.f32.gmra.mrb[0].mxu0 %v5586
    %v6216 = vpop.f32.mrb[0].mxu0
    %v6217 = vadd.f32 0.0, %v6216
    %v6218 = vpop.f32.mrb[0].mxu0
    %6219 = vmatprep.mubr.f32.mxu0 %v5589
    %6220 = vmatmul.mubr.f32.gmra.mrb[0].mxu0 %v5588
    %v6221 = vpop.f32.mrb[0].mxu0
    %v6222 = vadd.f32 0.0, %v6221
    %v6223 = vpop.f32.mrb[0].mxu0
    %6224 = vdwg.mxu0
    %v6225 = vmul.f32 %v6050, %v6187
    %v6226 = vmul.f32 %v6055, %v6192
    %v6227 = vmul.f32 %v6060, %v6197
    %v6228 = vmul.f32 %v6065, %v6202
    %v6229 = vmul.f32 %v6070, %v6207
    %v6230 = vmul.f32 %v6075, %v6212
    %v6231 = vmul.f32 %v6080, %v6217
    %v6232 = vmul.f32 %v6085, %v6222
    %v6233 = vadd.f32 %v6225, %v6226
    %v6234 = vadd.f32 %v6233, %v6227
    %v6235 = vadd.f32 %v6234, %v6228
    %v6236 = vadd.f32 %v6235, %v6229
    %v6237 = vadd.f32 %v6236, %v6230
    %v6238 = vadd.f32 %v6237, %v6231
    %v6239 = vadd.f32 %v6238, %v6232
    %v6240 = vld [vmem:[#allocation11] sm:$0xff]
    %v6241 = vld [vmem:[#allocation11 + $0x8] sm:$0xff]
    %v6242 = vld [vmem:[#allocation11 + $0x10] sm:$0xff]
    %v6243 = vld [vmem:[#allocation11 + $0x18] sm:$0xff]
    %v6244 = vld [vmem:[#allocation11 + $0x20] sm:$0xff]
    %v6245 = vld [vmem:[#allocation11 + $0x28] sm:$0xff]
    %v6246 = vld [vmem:[#allocation11 + $0x30] sm:$0xff]
    %v6247 = vld [vmem:[#allocation11 + $0x38] sm:$0xff]
    %v6248 = vld [vmem:[#allocation11 + $0x40] sm:$0xff]
    %v6249 = vld [vmem:[#allocation11 + $0x48] sm:$0xff]
    %v6250 = vld [vmem:[#allocation11 + $0x50] sm:$0xff]
    %v6251 = vld [vmem:[#allocation11 + $0x58] sm:$0xff]
    %v6252 = vld [vmem:[#allocation11 + $0x60] sm:$0xff]
    %v6253 = vld [vmem:[#allocation11 + $0x68] sm:$0xff]
    %v6254 = vld [vmem:[#allocation11 + $0x70] sm:$0xff]
    %v6255 = vld [vmem:[#allocation11 + $0x78] sm:$0xff]
    %v6256 = vld [vmem:[%s9] sm:$0x1]
    %v6258 = vlaneseq
    %v6259 = vshrl.u32 %v6258, 7
    %v6260 = vsub.s32 0, %v6259
    %v6261 = vrot.slane %v6256, %v6260
    %6263 = vmatprep.subr.mxu0 0.0
    %6264 = vmatpush1.msra.mxu0 %v6240
    %6265 = vmatprep.subr.mxu0 0.0
    %6266 = vmatpush1.msra.mxu0 %v6241
    %6267 = vmatprep.subr.mxu0 0.0
    %6268 = vmatpush1.msra.mxu0 %v6242
    %6269 = vmatprep.subr.mxu0 0.0
    %6270 = vmatpush1.msra.mxu0 %v6243
    %6271 = vmatprep.subr.mxu0 0.0
    %6272 = vmatpush1.msra.mxu0 %v6244
    %6273 = vmatprep.subr.mxu0 0.0
    %6274 = vmatpush1.msra.mxu0 %v6245
    %6275 = vmatprep.subr.mxu0 0.0
    %6276 = vmatpush1.msra.mxu0 %v6246
    %6277 = vmatprep.subr.mxu0 0.0
    %6278 = vmatpush1.msra.mxu0 %v6247
    %6279 = vmatprep.subr.mxu0 0.0
    %6280 = vmatpush1.msra.mxu0 %v6248
    %6281 = vmatprep.subr.mxu0 0.0
    %6282 = vmatpush1.msra.mxu0 %v6249
    %6283 = vmatprep.subr.mxu0 0.0
    %6284 = vmatpush1.msra.mxu0 %v6250
    %6285 = vmatprep.subr.mxu0 0.0
    %6286 = vmatpush1.msra.mxu0 %v6251
    %6287 = vmatprep.subr.mxu0 0.0
    %6288 = vmatpush1.msra.mxu0 %v6252
    %6289 = vmatprep.subr.mxu0 0.0
    %6290 = vmatpush1.msra.mxu0 %v6253
    %6291 = vmatprep.subr.mxu0 0.0
    %6292 = vmatpush1.msra.mxu0 %v6254
    %6293 = vmatprep.subr.mxu0 0.0
    %6294 = vmatpush1.msra.mxu0 %v6255
    %6295 = vmatprep.subr.mxu0 0.0
    %6296 = vmatpush1.msra.mxu0 0.0
    %6297 = vmatprep.subr.mxu0 0.0
    %6298 = vmatpush1.msra.mxu0 0.0
    %6299 = vmatprep.subr.mxu0 0.0
    %6300 = vmatpush1.msra.mxu0 0.0
    %6301 = vmatprep.subr.mxu0 0.0
    %6302 = vmatpush1.msra.mxu0 0.0
    %6303 = vmatprep.subr.mxu0 0.0
    %6304 = vmatpush1.msra.mxu0 0.0
    %6305 = vmatprep.subr.mxu0 0.0
    %6306 = vmatpush1.msra.mxu0 0.0
    %6307 = vmatprep.subr.mxu0 0.0
    %6308 = vmatpush1.msra.mxu0 0.0
    %6309 = vmatprep.subr.mxu0 0.0
    %6310 = vmatpush1.msra.mxu0 0.0
    %6311 = vmatprep.subr.mxu0 0.0
    %6312 = vmatpush1.msra.mxu0 0.0
    %6313 = vmatprep.subr.mxu0 0.0
    %6314 = vmatpush1.msra.mxu0 0.0
    %6315 = vmatprep.subr.mxu0 0.0
    %6316 = vmatpush1.msra.mxu0 0.0
    %6317 = vmatprep.subr.mxu0 0.0
    %6318 = vmatpush1.msra.mxu0 0.0
    %6319 = vmatprep.subr.mxu0 0.0
    %6320 = vmatpush1.msra.mxu0 0.0
    %6321 = vmatprep.subr.mxu0 0.0
    %6322 = vmatpush1.msra.mxu0 0.0
    %6323 = vmatprep.subr.mxu0 0.0
    %6324 = vmatpush1.msra.mxu0 0.0
    %6325 = vmatprep.subr.mxu0 0.0
    %6326 = vmatpush1.msra.mxu0 0.0
    %6327 = vmatprep.mubr.f32.mxu0 0.0
    %6328 = vmatmul.mubr.f32.gmra.mrb[0].mxu0 %v6239
    %v6329 = vpop.f32.mrb[0].mxu0
    %v6330 = vadd.f32 %v6261, %v6329
    %v6331 = vpop.f32.mrb[0].mxu0
    %6332 = vdwg.mxu0
    %6333 = vst [vmem:[%s10] sm:$0xff] %v6330
    // Predicated region
    $region62: #{model2_forward.1} parent=1 // pred_check
      _
    $region63: #{model2_forward.1} parent=1 // pred_check_branch
      %6335 = sbr.rel (0) target = $region65
    $region64: #{model2_forward.1} parent=1 // pred_region
      _
    $region65: #{model2_forward.1} parent=1 // pred_fallthru
      _
    // Predicated region
    $region66: #{model2_forward.1} parent=1 // pred_check
      _
    $region67: #{model2_forward.1} parent=1 // pred_check_branch
      %6337 = sbr.rel (0) target = $region69
    $region68: #{model2_forward.1} parent=1 // pred_region
      _
    $region69: #{model2_forward.1} parent=1 // pred_fallthru
      _
    %6338 = vsyncpa [#allocation5], 1
    %6339 = vsyncpa [#allocation7], 1
    %6340 = vsyncpa [#allocation10], 1

</llo_original>
